<compile_context>
chip_gen: v5e
topology: v5e:2x2
jax: 0.10.0
libtpu: 0.0.40
codegen_flags: <defaults>
</compile_context>

<pallas_src>
import functools
import math

import jax
import jax.numpy as jnp
from jax.experimental import pallas as pl
from jax.experimental.pallas import tpu as pltpu


_VMEM_LIMIT_BYTES = 48 * 1024 * 1024   # < 64 MiB (v7x physical), > v5e default
_VMEM = pl.BlockSpec(memory_space=pltpu.MemorySpace.VMEM)


# ----------------------------------------------------------------------------
# In-kernel helpers
# ----------------------------------------------------------------------------
def _layernorm(x, g, b, eps):
    mu = jnp.mean(x, axis=-1, keepdims=True)
    var = jnp.mean((x - mu) ** 2, axis=-1, keepdims=True)
    return (x - mu) * jax.lax.rsqrt(var + eps) * g + b


def _bf16(x):
    return x.astype(jnp.bfloat16)


def _dot(a, b):
    # bf16 MXU operands, f32 accumulation.
    return jnp.dot(_bf16(a), _bf16(b), preferred_element_type=jnp.float32)


# ----------------------------------------------------------------------------
# Capability probe: single-buffered resident blocks (pl.Buffered(1))
# ----------------------------------------------------------------------------
_RESIDENT_SINGLE_BUFFER = None


def _resident_single_buffer_ok():
    """True if this JAX/libtpu build accepts pipeline_mode=pl.Buffered(1)."""
    global _RESIDENT_SINGLE_BUFFER
    if _RESIDENT_SINGLE_BUFFER is not None:
        return _RESIDENT_SINGLE_BUFFER
    try:
        def _k(x_ref, o_ref):
            o_ref[...] = x_ref[...]
        f = pl.pallas_call(
            _k,
            out_shape=jax.ShapeDtypeStruct((8, 128), jnp.float32),
            grid=(2,),
            in_specs=[pl.BlockSpec((8, 128), lambda i: (0, 0),
                                   pipeline_mode=pl.Buffered(1))],
            out_specs=pl.BlockSpec((8, 128), lambda i: (0, 0)),
        )
        jax.jit(f).lower(jax.ShapeDtypeStruct((8, 128), jnp.float32)).compile()
        _RESIDENT_SINGLE_BUFFER = True
    except Exception:   # fall back to default (double-buffered) resident specs
        _RESIDENT_SINGLE_BUFFER = False
    return _RESIDENT_SINGLE_BUFFER


# ----------------------------------------------------------------------------
# Pallas kernels
# ----------------------------------------------------------------------------
def _bert_layer_kernel(x_ref, m_ref, *refs, num_heads, head_dim, eps,
                       fuse_input_ln):
    """One full BERT encoder layer, fully resident in VMEM.

    Blocks: x (Bt, S, H), additive mask (Bt, 1, S), whole resident weights,
    out (Bt, S, H) bf16.
    """
    if fuse_input_ln:
        iln_g_ref, iln_b_ref = refs[0], refs[1]
        refs = refs[2:]
    (wqkv_ref, bqkv_ref, wo_ref, bo_ref,
     ln1g_ref, ln1b_ref,
     w1_ref, b1_ref, w2_ref, b2_ref,
     ln2g_ref, ln2b_ref,
     o_ref) = refs

    blk_b, seq, hidden = x_ref.shape
    rows = blk_b * seq
    scale = 1.0 / math.sqrt(head_dim)

    # (Bt, S, H) -> (Bt*S, H): projections / LN / FFN run on one tall block so
    # the MXU M dimension is Bt*S instead of S.
    x = x_ref[...].astype(jnp.float32).reshape(rows, hidden)
    if fuse_input_ln:
        # Embedding LayerNorm fused into layer 0 (saves an HBM round trip).
        x = _layernorm(x, iln_g_ref[...], iln_b_ref[...], eps)

    # --- fused QKV projection (bf16 x bf16 -> f32 accumulation) ---------------
    qkv = _dot(x, wqkv_ref[...]) + bqkv_ref[...]            # (rows, 3H) f32

    # Scale folded into q: an (rows, H) multiply instead of per-head (S, S).
    q = _bf16(qkv[:, :hidden] * scale)
    k = _bf16(qkv[:, hidden:2 * hidden])
    v = _bf16(qkv[:, 2 * hidden:])

    # --- heads-batched self-attention, one batch element at a time ------------
    ctx_rows = []
    for b in range(blk_b):
        r0 = b * seq

        def heads(t, _r0=r0):                    # (S, H) -> (NH, S, Dh)
            return (t[_r0:_r0 + seq]
                    .reshape(seq, num_heads, head_dim)
                    .transpose(1, 0, 2))

        qh, kh, vh = heads(q), heads(k), heads(v)
        s = jnp.einsum('hqd,hkd->hqk', qh, kh,
                       preferred_element_type=jnp.float32)  # (NH, S, S) f32
        s = s + m_ref[b]                  # additive mask, one add per element
        s = s - jnp.max(s, axis=-1, keepdims=True)
        p = jnp.exp(s)
        p = p * pl.reciprocal(jnp.sum(p, axis=-1, keepdims=True), approx=True)
        ctx = jnp.einsum('hqk,hkd->hqd', _bf16(p), vh,
                         preferred_element_type=jnp.float32)  # (NH, S, Dh)
        ctx_rows.append(_bf16(ctx.transpose(1, 0, 2).reshape(seq, hidden)))
    ctx = ctx_rows[0] if blk_b == 1 else jnp.concatenate(ctx_rows, axis=0)

    # --- output projection + fused residual + LayerNorm -----------------------
    attn = _dot(ctx, wo_ref[...]) + bo_ref[...]
    h1 = _layernorm(x + attn, ln1g_ref[...], ln1b_ref[...], eps)

    # --- FFN (GELU) + fused residual + LayerNorm -------------------------------
    # TODO(synk): HuggingFace BERT uses exact (erf) GELU; tanh approx kept here.
    inter = _bf16(jax.nn.gelu(_dot(h1, w1_ref[...]) + b1_ref[...],
                              approximate=True))
    ffn = _dot(inter, w2_ref[...]) + b2_ref[...]
    out = _layernorm(h1 + ffn, ln2g_ref[...], ln2b_ref[...], eps)
    o_ref[...] = out.reshape(blk_b, seq, hidden).astype(o_ref.dtype)


def _pool_dnn_head_kernel(cls_ref, wp_ref, bp_ref,
                          w1_ref, b1_ref, w2_ref, b2_ref, w3_ref, b3_ref,
                          o_ref, *, batch):
    """tanh pooler for both towers + right-tower DNN + dot/softmax head."""
    pooled = jnp.tanh(_dot(cls_ref[...], wp_ref[...]) + bp_ref[...])   # (2B, H)
    h_left = pooled[:batch]                                            # (B, H)
    h = pooled[batch:]                                                 # (B, H)
    for w_ref, b_ref in ((w1_ref, b1_ref), (w2_ref, b2_ref), (w3_ref, b3_ref)):
        h = _dot(h, w_ref[...]) + b_ref[...]
    d = jnp.sum(h_left * h, axis=-1, keepdims=True)                    # (B, 1)
    logits = jnp.concatenate([1.0 - d, d], axis=-1)                    # (B, 2)
    m = jnp.max(logits, axis=-1, keepdims=True)
    e = jnp.exp(logits - m)
    o_ref[...] = e / jnp.sum(e, axis=-1, keepdims=True)   # exact output softmax


# ----------------------------------------------------------------------------
# Pallas wrappers
# ----------------------------------------------------------------------------
def _pick_block_batch(total_batch, seq, target_rows=256):
    """Largest divisor of total_batch with block_batch*seq <= target_rows."""
    cap = max(1, target_rows // max(seq, 1))
    best = 1
    for cand in range(1, total_batch + 1):
        if total_batch % cand == 0 and cand <= cap:
            best = cand
    return best


def pallas_bert_layer(x, add_mask, p, *, num_heads, eps=1e-12, input_ln=None):
    # x: (2B, S, H) f32/bf16 ; add_mask: (2B, 1, S) f32 additive mask.
    B, S, H = x.shape
    head_dim = H // num_heads
    bt = _pick_block_batch(B, S)

    weights = ()
    if input_ln is not None:
        weights += tuple(input_ln)            # fused embedding LN (layer 0)
    weights += (p["wqkv"], p["bqkv"], p["wo"], p["bo"],
                p["ln1_g"], p["ln1_b"],
                p["w1"], p["b1"], p["w2"], p["b2"],
                p["ln2_g"], p["ln2_b"])

    single_buf = _resident_single_buffer_ok()

    def resident_spec(a):
        # Whole array, constant block index: loaded to VMEM once and kept
        # resident across grid steps. Single-buffered where supported (no
        # second weight copy -- matters on v7x's 64 MiB VMEM).
        kwargs = {"pipeline_mode": pl.Buffered(1)} if single_buf else {}
        return pl.BlockSpec(a.shape, lambda b, _nd=a.ndim: (0,) * _nd, **kwargs)

    return pl.pallas_call(
        functools.partial(_bert_layer_kernel, num_heads=num_heads,
                          head_dim=head_dim, eps=eps,
                          fuse_input_ln=input_ln is not None),
        out_shape=jax.ShapeDtypeStruct((B, S, H), jnp.bfloat16),
        grid=(B // bt,),
        in_specs=[pl.BlockSpec((bt, S, H), lambda b: (b, 0, 0)),
                  pl.BlockSpec((bt, 1, S), lambda b: (b, 0, 0))]
                 + [resident_spec(w) for w in weights],
        out_specs=pl.BlockSpec((bt, S, H), lambda b: (b, 0, 0)),
        compiler_params=pltpu.CompilerParams(
            dimension_semantics=("parallel",),
            vmem_limit_bytes=_VMEM_LIMIT_BYTES),
    )(x, add_mask, *weights)


def pallas_pool_dnn_head(cls_all, bert_p, dnn_p, *, batch):
    args = (cls_all, bert_p["pooler_w"], bert_p["pooler_b"],
            dnn_p[0][0], dnn_p[0][1],
            dnn_p[1][0], dnn_p[1][1],
            dnn_p[2][0], dnn_p[2][1])
    return pl.pallas_call(
        functools.partial(_pool_dnn_head_kernel, batch=batch),
        out_shape=jax.ShapeDtypeStruct((batch, 2), jnp.float32),
        in_specs=[_VMEM] * len(args),
        out_specs=_VMEM,
        compiler_params=pltpu.CompilerParams(
            vmem_limit_bytes=_VMEM_LIMIT_BYTES),
    )(*args)


# ----------------------------------------------------------------------------
# Mini-BERT encoder (structure of BertModel, synthetic weights)
# ----------------------------------------------------------------------------
def bert_encoder(p, tokens, segments, mask, *, num_heads):
    _, S = tokens.shape
    emb = (p["word_emb"][tokens]
           + p["pos_emb"][jnp.arange(S)][None, :, :]
           + p["seg_emb"][segments])                        # (2B, S, H) f32

    # Additive attention mask kept at (2B, 1, S); the broadcast over heads and
    # query rows happens inside the layer kernel (no per-head copy).
    add_mask = ((1.0 - mask.astype(jnp.float32)) * -10000.0)[:, None, :]

    x = emb
    for i, layer_p in enumerate(p["layers"]):
        input_ln = (p["emb_ln_g"], p["emb_ln_b"]) if i == 0 else None
        x = pallas_bert_layer(x, add_mask, layer_p, num_heads=num_heads,
                              input_ln=input_ln)
    return x                                                # (2B, S, H) bf16


# ----------------------------------------------------------------------------
# SiameseBert forward
# ----------------------------------------------------------------------------
def siamese_bert_forward(params, tokens_l, segments_l, mask_l,
                         tokens_r, segments_r, mask_r, *, num_heads):
    B = tokens_l.shape[0]

    # Both siamese towers share the encoder: run them as one 2B batch.
    tokens = jnp.concatenate([tokens_l, tokens_r], axis=0)
    segments = jnp.concatenate([segments_l, segments_r], axis=0)
    mask = jnp.concatenate([mask_l, mask_r], axis=0)

    seq_out = bert_encoder(params["bert"], tokens, segments, mask,
                           num_heads=num_heads)
    cls_all = seq_out[:, 0, :]                              # (2B, H) bf16

    # Pooler (tanh) + right-tower DNN + dot -> [1-d, d] -> softmax, one kernel.
    # TODO(synk): label/loss branch not implemented (self.loss is undefined in
    # the reference module); only the inference softmax path is reproduced.
    return pallas_pool_dnn_head(cls_all, params["bert"], params["dnn"],
                                batch=B)


# ----------------------------------------------------------------------------
# Deterministic synthetic parameter init (bf16 matmul weights, f32 elsewhere)
# ----------------------------------------------------------------------------
def init_params(key, *, vocab, max_pos, type_vocab, hidden, num_heads,
                intermediate, num_layers):
    del num_heads  # static config, not stored in the traced pytree
    keys = iter(jax.random.split(key, 8 + 8 * num_layers))

    def nrm(shape, dtype=jnp.bfloat16, scale=0.02):
        return (jax.random.normal(next(keys), shape, jnp.float32)
                * scale).astype(dtype)

    bert = {
        "word_emb": nrm((vocab, hidden), jnp.float32),
        "pos_emb": nrm((max_pos, hidden), jnp.float32),
        "seg_emb": nrm((type_vocab, hidden), jnp.float32),
        "emb_ln_g": jnp.ones((1, hidden), jnp.float32),
        "emb_ln_b": jnp.zeros((1, hidden), jnp.float32),
        "pooler_w": nrm((hidden, hidden)),
        "pooler_b": jnp.zeros((1, hidden), jnp.float32),
        "layers": [],
    }
    for _ in range(num_layers):
        bert["layers"].append({
            "wqkv": nrm((hidden, 3 * hidden)),            # fused Q|K|V
            "bqkv": jnp.zeros((1, 3 * hidden), jnp.float32),
            "wo": nrm((hidden, hidden)),
            "bo": jnp.zeros((1, hidden), jnp.float32),
            "ln1_g": jnp.ones((1, hidden), jnp.float32),
            "ln1_b": jnp.zeros((1, hidden), jnp.float32),
            "w1": nrm((hidden, intermediate)),
            "b1": jnp.zeros((1, intermediate), jnp.float32),
            "w2": nrm((intermediate, hidden)),
            "b2": jnp.zeros((1, hidden), jnp.float32),
            "ln2_g": jnp.ones((1, hidden), jnp.float32),
            "ln2_b": jnp.zeros((1, hidden), jnp.float32),
        })

    # self.dnn = Linear(H,H) x 3 (no activations between them).
    dnn = [(nrm((hidden, hidden)), jnp.zeros((1, hidden), jnp.float32))
           for _ in range(3)]

    return {"bert": bert, "dnn": dnn}


# ----------------------------------------------------------------------------
if __name__ == "__main__":
    B, S = 2, 8           # batch, sequence length
    H, NH, I = 32, 4, 64  # hidden, heads, intermediate (scaled-down BERT)
    LAYERS, VOCAB = 2, 50

    key = jax.random.PRNGKey(0)
    k_params, k_tl, k_tr = jax.random.split(key, 3)

    params = init_params(k_params, vocab=VOCAB, max_pos=S, type_vocab=2,
                         hidden=H, num_heads=NH, intermediate=I,
                         num_layers=LAYERS)

    tokens_left = jax.random.randint(k_tl, (B, S), 0, VOCAB, dtype=jnp.int32)
    tokens_right = jax.random.randint(k_tr, (B, S), 0, VOCAB, dtype=jnp.int32)
    segments_left = jnp.zeros((B, S), jnp.int32)
    segments_right = jnp.zeros((B, S), jnp.int32)
    mask_left = jnp.ones((B, S), jnp.int32)
    mask_right = jnp.concatenate(
        [jnp.ones((B, S - 2), jnp.int32), jnp.zeros((B, 2), jnp.int32)], axis=1)

    fwd = jax.jit(functools.partial(siamese_bert_forward, num_heads=NH))
    probs = fwd(params, tokens_left, segments_left, mask_left,
                tokens_right, segments_right, mask_right)
    jax.block_until_ready(probs)

    assert probs.shape == (B, 2)
    print("KERNEL_OK")
</pallas_src>

<mosaic_0001>
module attributes {stable_mosaic.version = 11 : i64} {
  func.func @_pool_dnn_head_kernel(%arg0: memref<4x32xbf16, #tpu.memory_space<vmem>>, %arg1: memref<32x32xbf16, #tpu.memory_space<vmem>>, %arg2: memref<1x32xf32, #tpu.memory_space<vmem>>, %arg3: memref<32x32xbf16, #tpu.memory_space<vmem>>, %arg4: memref<1x32xf32, #tpu.memory_space<vmem>>, %arg5: memref<32x32xbf16, #tpu.memory_space<vmem>>, %arg6: memref<1x32xf32, #tpu.memory_space<vmem>>, %arg7: memref<32x32xbf16, #tpu.memory_space<vmem>>, %arg8: memref<1x32xf32, #tpu.memory_space<vmem>>, %arg9: memref<2x2xf32, #tpu.memory_space<vmem>>) attributes {dimension_semantics = [], scalar_prefetch = 0 : i64, scratch_operands = 0 : i64, tpu.core_type = #tpu.core_type<tc>} {
    %c0 = arith.constant 0 : index
    %c0_0 = arith.constant 0 : index
    %0 = vector.load %arg0[%c0, %c0_0] : memref<4x32xbf16, #tpu.memory_space<vmem>>, vector<4x32xbf16>
    %c0_1 = arith.constant 0 : index
    %c0_2 = arith.constant 0 : index
    %1 = vector.load %arg1[%c0_1, %c0_2] : memref<32x32xbf16, #tpu.memory_space<vmem>>, vector<32x32xbf16>
    %cst = arith.constant dense<0.000000e+00> : vector<4x32xf32>
    %2 = tpu.matmul %0, %1, %cst {dimension_numbers = #tpu.dot_dimension_numbers<[1], [0], [0], [1], [0, 0, 1, 1], [], []>} : vector<4x32xbf16>, vector<32x32xbf16>, vector<4x32xf32> -> vector<4x32xf32>
    %c0_3 = arith.constant 0 : index
    %c0_4 = arith.constant 0 : index
    %3 = vector.load %arg2[%c0_3, %c0_4] : memref<1x32xf32, #tpu.memory_space<vmem>>, vector<1x32xf32>
    %4 = vector.broadcast %3 : vector<1x32xf32> to vector<4x32xf32>
    %5 = arith.addf %2, %4 : vector<4x32xf32>
    %6 = math.tanh %5 : vector<4x32xf32>
    %7 = vector.extract_strided_slice %6 {offsets = [0, 0], sizes = [2, 32], strides = [1, 1]} : vector<4x32xf32> to vector<2x32xf32>
    %8 = vector.extract_strided_slice %6 {offsets = [2, 0], sizes = [2, 32], strides = [1, 1]} : vector<4x32xf32> to vector<2x32xf32>
    %c0_5 = arith.constant 0 : index
    %c0_6 = arith.constant 0 : index
    %9 = vector.load %arg3[%c0_5, %c0_6] : memref<32x32xbf16, #tpu.memory_space<vmem>>, vector<32x32xbf16>
    %10 = arith.truncf %8 : vector<2x32xf32> to vector<2x32xbf16>
    %cst_7 = arith.constant dense<0.000000e+00> : vector<2x32xf32>
    %11 = tpu.matmul %10, %9, %cst_7 {dimension_numbers = #tpu.dot_dimension_numbers<[1], [0], [0], [1], [0, 0, 1, 1], [], []>} : vector<2x32xbf16>, vector<32x32xbf16>, vector<2x32xf32> -> vector<2x32xf32>
    %c0_8 = arith.constant 0 : index
    %c0_9 = arith.constant 0 : index
    %12 = vector.load %arg4[%c0_8, %c0_9] : memref<1x32xf32, #tpu.memory_space<vmem>>, vector<1x32xf32>
    %13 = vector.broadcast %12 : vector<1x32xf32> to vector<2x32xf32>
    %14 = arith.addf %11, %13 : vector<2x32xf32>
    %c0_10 = arith.constant 0 : index
    %c0_11 = arith.constant 0 : index
    %15 = vector.load %arg5[%c0_10, %c0_11] : memref<32x32xbf16, #tpu.memory_space<vmem>>, vector<32x32xbf16>
    %16 = arith.truncf %14 : vector<2x32xf32> to vector<2x32xbf16>
    %cst_12 = arith.constant dense<0.000000e+00> : vector<2x32xf32>
    %17 = tpu.matmul %16, %15, %cst_12 {dimension_numbers = #tpu.dot_dimension_numbers<[1], [0], [0], [1], [0, 0, 1, 1], [], []>} : vector<2x32xbf16>, vector<32x32xbf16>, vector<2x32xf32> -> vector<2x32xf32>
    %c0_13 = arith.constant 0 : index
    %c0_14 = arith.constant 0 : index
    %18 = vector.load %arg6[%c0_13, %c0_14] : memref<1x32xf32, #tpu.memory_space<vmem>>, vector<1x32xf32>
    %19 = vector.broadcast %18 : vector<1x32xf32> to vector<2x32xf32>
    %20 = arith.addf %17, %19 : vector<2x32xf32>
    %c0_15 = arith.constant 0 : index
    %c0_16 = arith.constant 0 : index
    %21 = vector.load %arg7[%c0_15, %c0_16] : memref<32x32xbf16, #tpu.memory_space<vmem>>, vector<32x32xbf16>
    %22 = arith.truncf %20 : vector<2x32xf32> to vector<2x32xbf16>
    %cst_17 = arith.constant dense<0.000000e+00> : vector<2x32xf32>
    %23 = tpu.matmul %22, %21, %cst_17 {dimension_numbers = #tpu.dot_dimension_numbers<[1], [0], [0], [1], [0, 0, 1, 1], [], []>} : vector<2x32xbf16>, vector<32x32xbf16>, vector<2x32xf32> -> vector<2x32xf32>
    %c0_18 = arith.constant 0 : index
    %c0_19 = arith.constant 0 : index
    %24 = vector.load %arg8[%c0_18, %c0_19] : memref<1x32xf32, #tpu.memory_space<vmem>>, vector<1x32xf32>
    %25 = vector.broadcast %24 : vector<1x32xf32> to vector<2x32xf32>
    %26 = arith.addf %23, %25 : vector<2x32xf32>
    %27 = arith.mulf %7, %26 : vector<2x32xf32>
    %cst_20 = arith.constant dense<0.000000e+00> : vector<2xf32>
    %28 = vector.multi_reduction <add>, %27, %cst_20 [1] : vector<2x32xf32> to vector<2xf32>
    %29 = vector.shape_cast %28 : vector<2xf32> to vector<2x1xf32>
    %cst_21 = arith.constant 1.000000e+00 : f32
    %30 = vector.broadcast %cst_21 : f32 to vector<2x1xf32>
    %31 = arith.subf %30, %29 : vector<2x1xf32>
    %32 = tpu.concatenate %31, %29 in 1 : vector<2x1xf32>, vector<2x1xf32> -> vector<2x2xf32>
    %cst_22 = arith.constant dense<0xFF800000> : vector<2xf32>
    %33 = vector.multi_reduction <maximumf>, %32, %cst_22 [1] : vector<2x2xf32> to vector<2xf32>
    %34 = vector.shape_cast %33 : vector<2xf32> to vector<2x1xf32>
    %35 = vector.broadcast %34 : vector<2x1xf32> to vector<2x2xf32>
    %36 = arith.subf %32, %35 : vector<2x2xf32>
    %37 = math.exp %36 : vector<2x2xf32>
    %cst_23 = arith.constant dense<0.000000e+00> : vector<2xf32>
    %38 = vector.multi_reduction <add>, %37, %cst_23 [1] : vector<2x2xf32> to vector<2xf32>
    %39 = vector.shape_cast %38 : vector<2xf32> to vector<2x1xf32>
    %40 = vector.broadcast %39 : vector<2x1xf32> to vector<2x2xf32>
    %41 = arith.divf %37, %40 : vector<2x2xf32>
    %c0_24 = arith.constant 0 : index
    %c0_25 = arith.constant 0 : index
    %42 = vector.load %arg9[%c0_24, %c0_25] : memref<2x2xf32, #tpu.memory_space<vmem>>, vector<2x2xf32>
    tpu.vector_store %arg9[%c0_24, %c0_25], %41 {strides = array<i32>} : memref<2x2xf32, #tpu.memory_space<vmem>>, vector<2x2xf32>,
    return
  }
}

module attributes {stable_mosaic.version = 11 : i64} {
  func.func @_bert_layer_kernel(%arg0: i32, %arg1: memref<4x8x32xf32, #tpu.memory_space<vmem>>, %arg2: memref<4x1x8xf32, #tpu.memory_space<vmem>>, %arg3: memref<1x32xf32, #tpu.memory_space<vmem>>, %arg4: memref<1x32xf32, #tpu.memory_space<vmem>>, %arg5: memref<32x96xbf16, #tpu.memory_space<vmem>>, %arg6: memref<1x96xf32, #tpu.memory_space<vmem>>, %arg7: memref<32x32xbf16, #tpu.memory_space<vmem>>, %arg8: memref<1x32xf32, #tpu.memory_space<vmem>>, %arg9: memref<1x32xf32, #tpu.memory_space<vmem>>, %arg10: memref<1x32xf32, #tpu.memory_space<vmem>>, %arg11: memref<32x64xbf16, #tpu.memory_space<vmem>>, %arg12: memref<1x64xf32, #tpu.memory_space<vmem>>, %arg13: memref<64x32xbf16, #tpu.memory_space<vmem>>, %arg14: memref<1x32xf32, #tpu.memory_space<vmem>>, %arg15: memref<1x32xf32, #tpu.memory_space<vmem>>, %arg16: memref<1x32xf32, #tpu.memory_space<vmem>>, %arg17: memref<4x8x32xbf16, #tpu.memory_space<vmem>>) attributes {dimension_semantics = [#tpu.dimension_semantics<parallel>], iteration_bounds = array<i64: 1>, scalar_prefetch = 0 : i64, scratch_operands = 0 : i64, tpu.core_type = #tpu.core_type<tc>, window_params = [{transform_indices = @transform_0, window_bounds = array<i64: 4, 8, 32>}, {transform_indices = @transform_1, window_bounds = array<i64: 4, 1, 8>}, {pipeline_mode = #tpu.pipeline_mode<synchronous>, transform_indices = @transform_2, window_bounds = array<i64: 1, 32>}, {pipeline_mode = #tpu.pipeline_mode<synchronous>, transform_indices = @transform_3, window_bounds = array<i64: 1, 32>}, {pipeline_mode = #tpu.pipeline_mode<synchronous>, transform_indices = @transform_4, window_bounds = array<i64: 32, 96>}, {pipeline_mode = #tpu.pipeline_mode<synchronous>, transform_indices = @transform_5, window_bounds = array<i64: 1, 96>}, {pipeline_mode = #tpu.pipeline_mode<synchronous>, transform_indices = @transform_6, window_bounds = array<i64: 32, 32>}, {pipeline_mode = #tpu.pipeline_mode<synchronous>, transform_indices = @transform_7, window_bounds = array<i64: 1, 32>}, {pipeline_mode = #tpu.pipeline_mode<synchronous>, transform_indices = @transform_8, window_bounds = array<i64: 1, 32>}, {pipeline_mode = #tpu.pipeline_mode<synchronous>, transform_indices = @transform_9, window_bounds = array<i64: 1, 32>}, {pipeline_mode = #tpu.pipeline_mode<synchronous>, transform_indices = @transform_10, window_bounds = array<i64: 32, 64>}, {pipeline_mode = #tpu.pipeline_mode<synchronous>, transform_indices = @transform_11, window_bounds = array<i64: 1, 64>}, {pipeline_mode = #tpu.pipeline_mode<synchronous>, transform_indices = @transform_12, window_bounds = array<i64: 64, 32>}, {pipeline_mode = #tpu.pipeline_mode<synchronous>, transform_indices = @transform_13, window_bounds = array<i64: 1, 32>}, {pipeline_mode = #tpu.pipeline_mode<synchronous>, transform_indices = @transform_14, window_bounds = array<i64: 1, 32>}, {pipeline_mode = #tpu.pipeline_mode<synchronous>, transform_indices = @transform_15, window_bounds = array<i64: 1, 32>}, {transform_indices = @transform_16, window_bounds = array<i64: 4, 8, 32>}]} {
    %c0 = arith.constant 0 : index
    %c0_0 = arith.constant 0 : index
    %c0_1 = arith.constant 0 : index
    %0 = vector.load %arg1[%c0, %c0_0, %c0_1] : memref<4x8x32xf32, #tpu.memory_space<vmem>>, vector<4x8x32xf32>
    %1 = vector.shape_cast %0 : vector<4x8x32xf32> to vector<32x32xf32>
    %c0_2 = arith.constant 0 : index
    %c0_3 = arith.constant 0 : index
    %2 = vector.load %arg3[%c0_2, %c0_3] : memref<1x32xf32, #tpu.memory_space<vmem>>, vector<1x32xf32>
    %c0_4 = arith.constant 0 : index
    %c0_5 = arith.constant 0 : index
    %3 = vector.load %arg4[%c0_4, %c0_5] : memref<1x32xf32, #tpu.memory_space<vmem>>, vector<1x32xf32>
    %cst = arith.constant dense<0.000000e+00> : vector<32xf32>
    %4 = vector.multi_reduction <add>, %1, %cst [1] : vector<32x32xf32> to vector<32xf32>
    %5 = vector.shape_cast %4 : vector<32xf32> to vector<32x1xf32>
    %cst_6 = arith.constant 3.200000e+01 : f32
    %6 = vector.broadcast %cst_6 : f32 to vector<32x1xf32>
    %7 = arith.divf %5, %6 : vector<32x1xf32>
    %8 = vector.broadcast %7 : vector<32x1xf32> to vector<32x32xf32>
    %9 = arith.subf %1, %8 : vector<32x32xf32>
    %10 = arith.mulf %9, %9 : vector<32x32xf32>
    %cst_7 = arith.constant dense<0.000000e+00> : vector<32xf32>
    %11 = vector.multi_reduction <add>, %10, %cst_7 [1] : vector<32x32xf32> to vector<32xf32>
    %12 = vector.shape_cast %11 : vector<32xf32> to vector<32x1xf32>
    %cst_8 = arith.constant 3.200000e+01 : f32
    %13 = vector.broadcast %cst_8 : f32 to vector<32x1xf32>
    %14 = arith.divf %12, %13 : vector<32x1xf32>
    %15 = vector.broadcast %7 : vector<32x1xf32> to vector<32x32xf32>
    %16 = arith.subf %1, %15 : vector<32x32xf32>
    %cst_9 = arith.constant 9.99999996E-13 : f32
    %17 = vector.broadcast %cst_9 : f32 to vector<32x1xf32>
    %18 = arith.addf %14, %17 : vector<32x1xf32>
    %19 = math.rsqrt %18 : vector<32x1xf32>
    %20 = vector.broadcast %19 : vector<32x1xf32> to vector<32x32xf32>
    %21 = arith.mulf %16, %20 : vector<32x32xf32>
    %22 = vector.broadcast %2 : vector<1x32xf32> to vector<32x32xf32>
    %23 = arith.mulf %21, %22 : vector<32x32xf32>
    %24 = vector.broadcast %3 : vector<1x32xf32> to vector<32x32xf32>
    %25 = arith.addf %23, %24 : vector<32x32xf32>
    %c0_10 = arith.constant 0 : index
    %c0_11 = arith.constant 0 : index
    %26 = vector.load %arg5[%c0_10, %c0_11] : memref<32x96xbf16, #tpu.memory_space<vmem>>, vector<32x96xbf16>
    %27 = arith.truncf %25 : vector<32x32xf32> to vector<32x32xbf16>
    %cst_12 = arith.constant dense<0.000000e+00> : vector<32x96xf32>
    %28 = tpu.matmul %27, %26, %cst_12 {dimension_numbers = #tpu.dot_dimension_numbers<[1], [0], [0], [1], [0, 0, 1, 1], [], []>} : vector<32x32xbf16>, vector<32x96xbf16>, vector<32x96xf32> -> vector<32x96xf32>
    %c0_13 = arith.constant 0 : index
    %c0_14 = arith.constant 0 : index
    %29 = vector.load %arg6[%c0_13, %c0_14] : memref<1x96xf32, #tpu.memory_space<vmem>>, vector<1x96xf32>
    %30 = vector.broadcast %29 : vector<1x96xf32> to vector<32x96xf32>
    %31 = arith.addf %28, %30 : vector<32x96xf32>
    %32 = vector.extract_strided_slice %31 {offsets = [0, 0], sizes = [32, 32], strides = [1, 1]} : vector<32x96xf32> to vector<32x32xf32>
    %cst_15 = arith.constant 0.353553385 : f32
    %33 = vector.broadcast %cst_15 : f32 to vector<32x32xf32>
    %34 = arith.mulf %32, %33 : vector<32x32xf32>
    %35 = arith.truncf %34 : vector<32x32xf32> to vector<32x32xbf16>
    %36 = vector.extract_strided_slice %31 {offsets = [0, 32], sizes = [32, 32], strides = [1, 1]} : vector<32x96xf32> to vector<32x32xf32>
    %37 = arith.truncf %36 : vector<32x32xf32> to vector<32x32xbf16>
    %38 = vector.extract_strided_slice %31 {offsets = [0, 64], sizes = [32, 32], strides = [1, 1]} : vector<32x96xf32> to vector<32x32xf32>
    %39 = arith.truncf %38 : vector<32x32xf32> to vector<32x32xbf16>
    %40 = vector.extract_strided_slice %35 {offsets = [0, 0], sizes = [8, 32], strides = [1, 1]} : vector<32x32xbf16> to vector<8x32xbf16>
    %41 = vector.shape_cast %40 : vector<8x32xbf16> to vector<8x4x8xbf16>
    %42 = tpu.transpose %41, [1, 0, 2] : vector<8x4x8xbf16> -> vector<4x8x8xbf16>
    %43 = vector.extract_strided_slice %37 {offsets = [0, 0], sizes = [8, 32], strides = [1, 1]} : vector<32x32xbf16> to vector<8x32xbf16>
    %44 = vector.shape_cast %43 : vector<8x32xbf16> to vector<8x4x8xbf16>
    %45 = tpu.transpose %44, [1, 0, 2] : vector<8x4x8xbf16> -> vector<4x8x8xbf16>
    %46 = vector.extract_strided_slice %39 {offsets = [0, 0], sizes = [8, 32], strides = [1, 1]} : vector<32x32xbf16> to vector<8x32xbf16>
    %47 = vector.shape_cast %46 : vector<8x32xbf16> to vector<8x4x8xbf16>
    %48 = tpu.transpose %47, [1, 0, 2] : vector<8x4x8xbf16> -> vector<4x8x8xbf16>
    "tpu.trace_start"() <{level = 10 : i32, message = "hqd,hkd->hqk"}> : () -> ()
    %cst_16 = arith.constant dense<0.000000e+00> : vector<4x8x8xf32>
    %49 = tpu.matmul %42, %45, %cst_16 {dimension_numbers = #tpu.dot_dimension_numbers<[2], [2], [1], [1], [0, 0, 0, 1, 1, 1], [0], [0]>} : vector<4x8x8xbf16>, vector<4x8x8xbf16>, vector<4x8x8xf32> -> vector<4x8x8xf32>
    "tpu.trace_stop"() : () -> ()
    %c0_17 = arith.constant 0 : index
    %c0_18 = arith.constant 0 : index
    %c0_19 = arith.constant 0 : index
    %50 = vector.load %arg2[%c0_17, %c0_18, %c0_19] : memref<4x1x8xf32, #tpu.memory_space<vmem>>, vector<1x1x8xf32>
    %51 = vector.shape_cast %50 : vector<1x1x8xf32> to vector<1x8xf32>
    %52 = vector.shape_cast %51 : vector<1x8xf32> to vector<1x1x8xf32>
    %53 = vector.broadcast %52 : vector<1x1x8xf32> to vector<4x8x8xf32>
    %54 = arith.addf %49, %53 : vector<4x8x8xf32>
    %cst_20 = arith.constant dense<0xFF800000> : vector<4x8xf32>
    %55 = vector.multi_reduction <maximumf>, %54, %cst_20 [2] : vector<4x8x8xf32> to vector<4x8xf32>
    %56 = vector.shape_cast %55 : vector<4x8xf32> to vector<4x8x1xf32>
    %57 = vector.broadcast %56 : vector<4x8x1xf32> to vector<4x8x8xf32>
    %58 = arith.subf %54, %57 : vector<4x8x8xf32>
    %59 = math.exp %58 : vector<4x8x8xf32>
    %cst_21 = arith.constant dense<0.000000e+00> : vector<4x8xf32>
    %60 = vector.multi_reduction <add>, %59, %cst_21 [2] : vector<4x8x8xf32> to vector<4x8xf32>
    %61 = vector.shape_cast %60 : vector<4x8xf32> to vector<4x8x1xf32>
    %62 = tpu.reciprocal %61 {approx = true} : vector<4x8x1xf32> -> vector<4x8x1xf32>
    %63 = vector.broadcast %62 : vector<4x8x1xf32> to vector<4x8x8xf32>
    %64 = arith.mulf %59, %63 : vector<4x8x8xf32>
    %65 = arith.truncf %64 : vector<4x8x8xf32> to vector<4x8x8xbf16>
    "tpu.trace_start"() <{level = 10 : i32, message = "hqk,hkd->hqd"}> : () -> ()
    %cst_22 = arith.constant dense<0.000000e+00> : vector<4x8x8xf32>
    %66 = tpu.matmul %65, %48, %cst_22 {dimension_numbers = #tpu.dot_dimension_numbers<[2], [1], [1], [2], [0, 0, 0, 1, 1, 2], [0], [0]>} : vector<4x8x8xbf16>, vector<4x8x8xbf16>, vector<4x8x8xf32> -> vector<4x8x8xf32>
    "tpu.trace_stop"() : () -> ()
    %67 = tpu.transpose %66, [1, 0, 2] : vector<4x8x8xf32> -> vector<8x4x8xf32>
    %68 = vector.shape_cast %67 : vector<8x4x8xf32> to vector<8x32xf32>
    %69 = arith.truncf %68 : vector<8x32xf32> to vector<8x32xbf16>
    %70 = vector.extract_strided_slice %35 {offsets = [8, 0], sizes = [8, 32], strides = [1, 1]} : vector<32x32xbf16> to vector<8x32xbf16>
    %71 = vector.shape_cast %70 : vector<8x32xbf16> to vector<8x4x8xbf16>
    %72 = tpu.transpose %71, [1, 0, 2] : vector<8x4x8xbf16> -> vector<4x8x8xbf16>
    %73 = vector.extract_strided_slice %37 {offsets = [8, 0], sizes = [8, 32], strides = [1, 1]} : vector<32x32xbf16> to vector<8x32xbf16>
    %74 = vector.shape_cast %73 : vector<8x32xbf16> to vector<8x4x8xbf16>
    %75 = tpu.transpose %74, [1, 0, 2] : vector<8x4x8xbf16> -> vector<4x8x8xbf16>
    %76 = vector.extract_strided_slice %39 {offsets = [8, 0], sizes = [8, 32], strides = [1, 1]} : vector<32x32xbf16> to vector<8x32xbf16>
    %77 = vector.shape_cast %76 : vector<8x32xbf16> to vector<8x4x8xbf16>
    %78 = tpu.transpose %77, [1, 0, 2] : vector<8x4x8xbf16> -> vector<4x8x8xbf16>
    "tpu.trace_start"() <{level = 10 : i32, message = "hqd,hkd->hqk"}> : () -> ()
    %cst_23 = arith.constant dense<0.000000e+00> : vector<4x8x8xf32>
    %79 = tpu.matmul %72, %75, %cst_23 {dimension_numbers = #tpu.dot_dimension_numbers<[2], [2], [1], [1], [0, 0, 0, 1, 1, 1], [0], [0]>} : vector<4x8x8xbf16>, vector<4x8x8xbf16>, vector<4x8x8xf32> -> vector<4x8x8xf32>
    "tpu.trace_stop"() : () -> ()
    %c1 = arith.constant 1 : index
    %c0_24 = arith.constant 0 : index
    %c0_25 = arith.constant 0 : index
    %80 = vector.load %arg2[%c1, %c0_24, %c0_25] : memref<4x1x8xf32, #tpu.memory_space<vmem>>, vector<1x1x8xf32>
    %81 = vector.shape_cast %80 : vector<1x1x8xf32> to vector<1x8xf32>
    %82 = vector.shape_cast %81 : vector<1x8xf32> to vector<1x1x8xf32>
    %83 = vector.broadcast %82 : vector<1x1x8xf32> to vector<4x8x8xf32>
    %84 = arith.addf %79, %83 : vector<4x8x8xf32>
    %cst_26 = arith.constant dense<0xFF800000> : vector<4x8xf32>
    %85 = vector.multi_reduction <maximumf>, %84, %cst_26 [2] : vector<4x8x8xf32> to vector<4x8xf32>
    %86 = vector.shape_cast %85 : vector<4x8xf32> to vector<4x8x1xf32>
    %87 = vector.broadcast %86 : vector<4x8x1xf32> to vector<4x8x8xf32>
    %88 = arith.subf %84, %87 : vector<4x8x8xf32>
    %89 = math.exp %88 : vector<4x8x8xf32>
    %cst_27 = arith.constant dense<0.000000e+00> : vector<4x8xf32>
    %90 = vector.multi_reduction <add>, %89, %cst_27 [2] : vector<4x8x8xf32> to vector<4x8xf32>
    %91 = vector.shape_cast %90 : vector<4x8xf32> to vector<4x8x1xf32>
    %92 = tpu.reciprocal %91 {approx = true} : vector<4x8x1xf32> -> vector<4x8x1xf32>
    %93 = vector.broadcast %92 : vector<4x8x1xf32> to vector<4x8x8xf32>
    %94 = arith.mulf %89, %93 : vector<4x8x8xf32>
    %95 = arith.truncf %94 : vector<4x8x8xf32> to vector<4x8x8xbf16>
    "tpu.trace_start"() <{level = 10 : i32, message = "hqk,hkd->hqd"}> : () -> ()
    %cst_28 = arith.constant dense<0.000000e+00> : vector<4x8x8xf32>
    %96 = tpu.matmul %95, %78, %cst_28 {dimension_numbers = #tpu.dot_dimension_numbers<[2], [1], [1], [2], [0, 0, 0, 1, 1, 2], [0], [0]>} : vector<4x8x8xbf16>, vector<4x8x8xbf16>, vector<4x8x8xf32> -> vector<4x8x8xf32>
    "tpu.trace_stop"() : () -> ()
    %97 = tpu.transpose %96, [1, 0, 2] : vector<4x8x8xf32> -> vector<8x4x8xf32>
    %98 = vector.shape_cast %97 : vector<8x4x8xf32> to vector<8x32xf32>
    %99 = arith.truncf %98 : vector<8x32xf32> to vector<8x32xbf16>
    %100 = vector.extract_strided_slice %35 {offsets = [16, 0], sizes = [8, 32], strides = [1, 1]} : vector<32x32xbf16> to vector<8x32xbf16>
    %101 = vector.shape_cast %100 : vector<8x32xbf16> to vector<8x4x8xbf16>
    %102 = tpu.transpose %101, [1, 0, 2] : vector<8x4x8xbf16> -> vector<4x8x8xbf16>
    %103 = vector.extract_strided_slice %37 {offsets = [16, 0], sizes = [8, 32], strides = [1, 1]} : vector<32x32xbf16> to vector<8x32xbf16>
    %104 = vector.shape_cast %103 : vector<8x32xbf16> to vector<8x4x8xbf16>
    %105 = tpu.transpose %104, [1, 0, 2] : vector<8x4x8xbf16> -> vector<4x8x8xbf16>
    %106 = vector.extract_strided_slice %39 {offsets = [16, 0], sizes = [8, 32], strides = [1, 1]} : vector<32x32xbf16> to vector<8x32xbf16>
    %107 = vector.shape_cast %106 : vector<8x32xbf16> to vector<8x4x8xbf16>
    %108 = tpu.transpose %107, [1, 0, 2] : vector<8x4x8xbf16> -> vector<4x8x8xbf16>
    "tpu.trace_start"() <{level = 10 : i32, message = "hqd,hkd->hqk"}> : () -> ()
    %cst_29 = arith.constant dense<0.000000e+00> : vector<4x8x8xf32>
    %109 = tpu.matmul %102, %105, %cst_29 {dimension_numbers = #tpu.dot_dimension_numbers<[2], [2], [1], [1], [0, 0, 0, 1, 1, 1], [0], [0]>} : vector<4x8x8xbf16>, vector<4x8x8xbf16>, vector<4x8x8xf32> -> vector<4x8x8xf32>
    "tpu.trace_stop"() : () -> ()
    %c2 = arith.constant 2 : index
    %c0_30 = arith.constant 0 : index
    %c0_31 = arith.constant 0 : index
    %110 = vector.load %arg2[%c2, %c0_30, %c0_31] : memref<4x1x8xf32, #tpu.memory_space<vmem>>, vector<1x1x8xf32>
    %111 = vector.shape_cast %110 : vector<1x1x8xf32> to vector<1x8xf32>
    %112 = vector.shape_cast %111 : vector<1x8xf32> to vector<1x1x8xf32>
    %113 = vector.broadcast %112 : vector<1x1x8xf32> to vector<4x8x8xf32>
    %114 = arith.addf %109, %113 : vector<4x8x8xf32>
    %cst_32 = arith.constant dense<0xFF800000> : vector<4x8xf32>
    %115 = vector.multi_reduction <maximumf>, %114, %cst_32 [2] : vector<4x8x8xf32> to vector<4x8xf32>
    %116 = vector.shape_cast %115 : vector<4x8xf32> to vector<4x8x1xf32>
    %117 = vector.broadcast %116 : vector<4x8x1xf32> to vector<4x8x8xf32>
    %118 = arith.subf %114, %117 : vector<4x8x8xf32>
    %119 = math.exp %118 : vector<4x8x8xf32>
    %cst_33 = arith.constant dense<0.000000e+00> : vector<4x8xf32>
    %120 = vector.multi_reduction <add>, %119, %cst_33 [2] : vector<4x8x8xf32> to vector<4x8xf32>
    %121 = vector.shape_cast %120 : vector<4x8xf32> to vector<4x8x1xf32>
    %122 = tpu.reciprocal %121 {approx = true} : vector<4x8x1xf32> -> vector<4x8x1xf32>
    %123 = vector.broadcast %122 : vector<4x8x1xf32> to vector<4x8x8xf32>
    %124 = arith.mulf %119, %123 : vector<4x8x8xf32>
    %125 = arith.truncf %124 : vector<4x8x8xf32> to vector<4x8x8xbf16>
    "tpu.trace_start"() <{level = 10 : i32, message = "hqk,hkd->hqd"}> : () -> ()
    %cst_34 = arith.constant dense<0.000000e+00> : vector<4x8x8xf32>
    %126 = tpu.matmul %125, %108, %cst_34 {dimension_numbers = #tpu.dot_dimension_numbers<[2], [1], [1], [2], [0, 0, 0, 1, 1, 2], [0], [0]>} : vector<4x8x8xbf16>, vector<4x8x8xbf16>, vector<4x8x8xf32> -> vector<4x8x8xf32>
    "tpu.trace_stop"() : () -> ()
    %127 = tpu.transpose %126, [1, 0, 2] : vector<4x8x8xf32> -> vector<8x4x8xf32>
    %128 = vector.shape_cast %127 : vector<8x4x8xf32> to vector<8x32xf32>
    %129 = arith.truncf %128 : vector<8x32xf32> to vector<8x32xbf16>
    %130 = vector.extract_strided_slice %35 {offsets = [24, 0], sizes = [8, 32], strides = [1, 1]} : vector<32x32xbf16> to vector<8x32xbf16>
    %131 = vector.shape_cast %130 : vector<8x32xbf16> to vector<8x4x8xbf16>
    %132 = tpu.transpose %131, [1, 0, 2] : vector<8x4x8xbf16> -> vector<4x8x8xbf16>
    %133 = vector.extract_strided_slice %37 {offsets = [24, 0], sizes = [8, 32], strides = [1, 1]} : vector<32x32xbf16> to vector<8x32xbf16>
    %134 = vector.shape_cast %133 : vector<8x32xbf16> to vector<8x4x8xbf16>
    %135 = tpu.transpose %134, [1, 0, 2] : vector<8x4x8xbf16> -> vector<4x8x8xbf16>
    %136 = vector.extract_strided_slice %39 {offsets = [24, 0], sizes = [8, 32], strides = [1, 1]} : vector<32x32xbf16> to vector<8x32xbf16>
    %137 = vector.shape_cast %136 : vector<8x32xbf16> to vector<8x4x8xbf16>
    %138 = tpu.transpose %137, [1, 0, 2] : vector<8x4x8xbf16> -> vector<4x8x8xbf16>
    "tpu.trace_start"() <{level = 10 : i32, message = "hqd,hkd->hqk"}> : () -> ()
    %cst_35 = arith.constant dense<0.000000e+00> : vector<4x8x8xf32>
    %139 = tpu.matmul %132, %135, %cst_35 {dimension_numbers = #tpu.dot_dimension_numbers<[2], [2], [1], [1], [0, 0, 0, 1, 1, 1], [0], [0]>} : vector<4x8x8xbf16>, vector<4x8x8xbf16>, vector<4x8x8xf32> -> vector<4x8x8xf32>
    "tpu.trace_stop"() : () -> ()
    %c3 = arith.constant 3 : index
    %c0_36 = arith.constant 0 : index
    %c0_37 = arith.constant 0 : index
    %140 = vector.load %arg2[%c3, %c0_36, %c0_37] : memref<4x1x8xf32, #tpu.memory_space<vmem>>, vector<1x1x8xf32>
    %141 = vector.shape_cast %140 : vector<1x1x8xf32> to vector<1x8xf32>
    %142 = vector.shape_cast %141 : vector<1x8xf32> to vector<1x1x8xf32>
    %143 = vector.broadcast %142 : vector<1x1x8xf32> to vector<4x8x8xf32>
    %144 = arith.addf %139, %143 : vector<4x8x8xf32>
    %cst_38 = arith.constant dense<0xFF800000> : vector<4x8xf32>
    %145 = vector.multi_reduction <maximumf>, %144, %cst_38 [2] : vector<4x8x8xf32> to vector<4x8xf32>
    %146 = vector.shape_cast %145 : vector<4x8xf32> to vector<4x8x1xf32>
    %147 = vector.broadcast %146 : vector<4x8x1xf32> to vector<4x8x8xf32>
    %148 = arith.subf %144, %147 : vector<4x8x8xf32>
    %149 = math.exp %148 : vector<4x8x8xf32>
    %cst_39 = arith.constant dense<0.000000e+00> : vector<4x8xf32>
    %150 = vector.multi_reduction <add>, %149, %cst_39 [2] : vector<4x8x8xf32> to vector<4x8xf32>
    %151 = vector.shape_cast %150 : vector<4x8xf32> to vector<4x8x1xf32>
    %152 = tpu.reciprocal %151 {approx = true} : vector<4x8x1xf32> -> vector<4x8x1xf32>
    %153 = vector.broadcast %152 : vector<4x8x1xf32> to vector<4x8x8xf32>
    %154 = arith.mulf %149, %153 : vector<4x8x8xf32>
    %155 = arith.truncf %154 : vector<4x8x8xf32> to vector<4x8x8xbf16>
    "tpu.trace_start"() <{level = 10 : i32, message = "hqk,hkd->hqd"}> : () -> ()
    %cst_40 = arith.constant dense<0.000000e+00> : vector<4x8x8xf32>
    %156 = tpu.matmul %155, %138, %cst_40 {dimension_numbers = #tpu.dot_dimension_numbers<[2], [1], [1], [2], [0, 0, 0, 1, 1, 2], [0], [0]>} : vector<4x8x8xbf16>, vector<4x8x8xbf16>, vector<4x8x8xf32> -> vector<4x8x8xf32>
    "tpu.trace_stop"() : () -> ()
    %157 = tpu.transpose %156, [1, 0, 2] : vector<4x8x8xf32> -> vector<8x4x8xf32>
    %158 = vector.shape_cast %157 : vector<8x4x8xf32> to vector<8x32xf32>
    %159 = arith.truncf %158 : vector<8x32xf32> to vector<8x32xbf16>
    %160 = tpu.concatenate %69, %99, %129, %159 in 0 : vector<8x32xbf16>, vector<8x32xbf16>, vector<8x32xbf16>, vector<8x32xbf16> -> vector<32x32xbf16>
    %c0_41 = arith.constant 0 : index
    %c0_42 = arith.constant 0 : index
    %161 = vector.load %arg7[%c0_41, %c0_42] : memref<32x32xbf16, #tpu.memory_space<vmem>>, vector<32x32xbf16>
    %cst_43 = arith.constant dense<0.000000e+00> : vector<32x32xf32>
    %162 = tpu.matmul %160, %161, %cst_43 {dimension_numbers = #tpu.dot_dimension_numbers<[1], [0], [0], [1], [0, 0, 1, 1], [], []>} : vector<32x32xbf16>, vector<32x32xbf16>, vector<32x32xf32> -> vector<32x32xf32>
    %c0_44 = arith.constant 0 : index
    %c0_45 = arith.constant 0 : index
    %163 = vector.load %arg8[%c0_44, %c0_45] : memref<1x32xf32, #tpu.memory_space<vmem>>, vector<1x32xf32>
    %164 = vector.broadcast %163 : vector<1x32xf32> to vector<32x32xf32>
    %165 = arith.addf %162, %164 : vector<32x32xf32>
    %166 = arith.addf %25, %165 : vector<32x32xf32>
    %c0_46 = arith.constant 0 : index
    %c0_47 = arith.constant 0 : index
    %167 = vector.load %arg9[%c0_46, %c0_47] : memref<1x32xf32, #tpu.memory_space<vmem>>, vector<1x32xf32>
    %c0_48 = arith.constant 0 : index
    %c0_49 = arith.constant 0 : index
    %168 = vector.load %arg10[%c0_48, %c0_49] : memref<1x32xf32, #tpu.memory_space<vmem>>, vector<1x32xf32>
    %cst_50 = arith.constant dense<0.000000e+00> : vector<32xf32>
    %169 = vector.multi_reduction <add>, %166, %cst_50 [1] : vector<32x32xf32> to vector<32xf32>
    %170 = vector.shape_cast %169 : vector<32xf32> to vector<32x1xf32>
    %cst_51 = arith.constant 3.200000e+01 : f32
    %171 = vector.broadcast %cst_51 : f32 to vector<32x1xf32>
    %172 = arith.divf %170, %171 : vector<32x1xf32>
    %173 = vector.broadcast %172 : vector<32x1xf32> to vector<32x32xf32>
    %174 = arith.subf %166, %173 : vector<32x32xf32>
    %175 = arith.mulf %174, %174 : vector<32x32xf32>
    %cst_52 = arith.constant dense<0.000000e+00> : vector<32xf32>
    %176 = vector.multi_reduction <add>, %175, %cst_52 [1] : vector<32x32xf32> to vector<32xf32>
    %177 = vector.shape_cast %176 : vector<32xf32> to vector<32x1xf32>
    %cst_53 = arith.constant 3.200000e+01 : f32
    %178 = vector.broadcast %cst_53 : f32 to vector<32x1xf32>
    %179 = arith.divf %177, %178 : vector<32x1xf32>
    %180 = vector.broadcast %172 : vector<32x1xf32> to vector<32x32xf32>
    %181 = arith.subf %166, %180 : vector<32x32xf32>
    %cst_54 = arith.constant 9.99999996E-13 : f32
    %182 = vector.broadcast %cst_54 : f32 to vector<32x1xf32>
    %183 = arith.addf %179, %182 : vector<32x1xf32>
    %184 = math.rsqrt %183 : vector<32x1xf32>
    %185 = vector.broadcast %184 : vector<32x1xf32> to vector<32x32xf32>
    %186 = arith.mulf %181, %185 : vector<32x32xf32>
    %187 = vector.broadcast %167 : vector<1x32xf32> to vector<32x32xf32>
    %188 = arith.mulf %186, %187 : vector<32x32xf32>
    %189 = vector.broadcast %168 : vector<1x32xf32> to vector<32x32xf32>
    %190 = arith.addf %188, %189 : vector<32x32xf32>
    %c0_55 = arith.constant 0 : index
    %c0_56 = arith.constant 0 : index
    %191 = vector.load %arg11[%c0_55, %c0_56] : memref<32x64xbf16, #tpu.memory_space<vmem>>, vector<32x64xbf16>
    %192 = arith.truncf %190 : vector<32x32xf32> to vector<32x32xbf16>
    %cst_57 = arith.constant dense<0.000000e+00> : vector<32x64xf32>
    %193 = tpu.matmul %192, %191, %cst_57 {dimension_numbers = #tpu.dot_dimension_numbers<[1], [0], [0], [1], [0, 0, 1, 1], [], []>} : vector<32x32xbf16>, vector<32x64xbf16>, vector<32x64xf32> -> vector<32x64xf32>
    %c0_58 = arith.constant 0 : index
    %c0_59 = arith.constant 0 : index
    %194 = vector.load %arg12[%c0_58, %c0_59] : memref<1x64xf32, #tpu.memory_space<vmem>>, vector<1x64xf32>
    %195 = vector.broadcast %194 : vector<1x64xf32> to vector<32x64xf32>
    %196 = arith.addf %193, %195 : vector<32x64xf32>
    %197 = arith.mulf %196, %196 : vector<32x64xf32>
    %198 = arith.mulf %196, %197 : vector<32x64xf32>
    %cst_60 = arith.constant 4.471500e-02 : f32
    %199 = vector.broadcast %cst_60 : f32 to vector<32x64xf32>
    %200 = arith.mulf %199, %198 : vector<32x64xf32>
    %201 = arith.addf %196, %200 : vector<32x64xf32>
    %cst_61 = arith.constant 0.797884583 : f32
    %202 = vector.broadcast %cst_61 : f32 to vector<32x64xf32>
    %203 = arith.mulf %202, %201 : vector<32x64xf32>
    %204 = math.tanh %203 : vector<32x64xf32>
    %cst_62 = arith.constant 1.000000e+00 : f32
    %205 = vector.broadcast %cst_62 : f32 to vector<32x64xf32>
    %206 = arith.addf %205, %204 : vector<32x64xf32>
    %cst_63 = arith.constant 5.000000e-01 : f32
    %207 = vector.broadcast %cst_63 : f32 to vector<32x64xf32>
    %208 = arith.mulf %207, %206 : vector<32x64xf32>
    %209 = arith.mulf %196, %208 : vector<32x64xf32>
    %210 = arith.truncf %209 : vector<32x64xf32> to vector<32x64xbf16>
    %c0_64 = arith.constant 0 : index
    %c0_65 = arith.constant 0 : index
    %211 = vector.load %arg13[%c0_64, %c0_65] : memref<64x32xbf16, #tpu.memory_space<vmem>>, vector<64x32xbf16>
    %cst_66 = arith.constant dense<0.000000e+00> : vector<32x32xf32>
    %212 = tpu.matmul %210, %211, %cst_66 {dimension_numbers = #tpu.dot_dimension_numbers<[1], [0], [0], [1], [0, 0, 1, 1], [], []>} : vector<32x64xbf16>, vector<64x32xbf16>, vector<32x32xf32> -> vector<32x32xf32>
    %c0_67 = arith.constant 0 : index
    %c0_68 = arith.constant 0 : index
    %213 = vector.load %arg14[%c0_67, %c0_68] : memref<1x32xf32, #tpu.memory_space<vmem>>, vector<1x32xf32>
    %214 = vector.broadcast %213 : vector<1x32xf32> to vector<32x32xf32>
    %215 = arith.addf %212, %214 : vector<32x32xf32>
    %216 = arith.addf %190, %215 : vector<32x32xf32>
    %c0_69 = arith.constant 0 : index
    %c0_70 = arith.constant 0 : index
    %217 = vector.load %arg15[%c0_69, %c0_70] : memref<1x32xf32, #tpu.memory_space<vmem>>, vector<1x32xf32>
    %c0_71 = arith.constant 0 : index
    %c0_72 = arith.constant 0 : index
    %218 = vector.load %arg16[%c0_71, %c0_72] : memref<1x32xf32, #tpu.memory_space<vmem>>, vector<1x32xf32>
    %cst_73 = arith.constant dense<0.000000e+00> : vector<32xf32>
    %219 = vector.multi_reduction <add>, %216, %cst_73 [1] : vector<32x32xf32> to vector<32xf32>
    %220 = vector.shape_cast %219 : vector<32xf32> to vector<32x1xf32>
    %cst_74 = arith.constant 3.200000e+01 : f32
    %221 = vector.broadcast %cst_74 : f32 to vector<32x1xf32>
    %222 = arith.divf %220, %221 : vector<32x1xf32>
    %223 = vector.broadcast %222 : vector<32x1xf32> to vector<32x32xf32>
    %224 = arith.subf %216, %223 : vector<32x32xf32>
    %225 = arith.mulf %224, %224 : vector<32x32xf32>
    %cst_75 = arith.constant dense<0.000000e+00> : vector<32xf32>
    %226 = vector.multi_reduction <add>, %225, %cst_75 [1] : vector<32x32xf32> to vector<32xf32>
    %227 = vector.shape_cast %226 : vector<32xf32> to vector<32x1xf32>
    %cst_76 = arith.constant 3.200000e+01 : f32
    %228 = vector.broadcast %cst_76 : f32 to vector<32x1xf32>
    %229 = arith.divf %227, %228 : vector<32x1xf32>
    %230 = vector.broadcast %222 : vector<32x1xf32> to vector<32x32xf32>
    %231 = arith.subf %216, %230 : vector<32x32xf32>
    %cst_77 = arith.constant 9.99999996E-13 : f32
    %232 = vector.broadcast %cst_77 : f32 to vector<32x1xf32>
    %233 = arith.addf %229, %232 : vector<32x1xf32>
    %234 = math.rsqrt %233 : vector<32x1xf32>
    %235 = vector.broadcast %234 : vector<32x1xf32> to vector<32x32xf32>
    %236 = arith.mulf %231, %235 : vector<32x32xf32>
    %237 = vector.broadcast %217 : vector<1x32xf32> to vector<32x32xf32>
    %238 = arith.mulf %236, %237 : vector<32x32xf32>
    %239 = vector.broadcast %218 : vector<1x32xf32> to vector<32x32xf32>
    %240 = arith.addf %238, %239 : vector<32x32xf32>
    %241 = vector.shape_cast %240 : vector<32x32xf32> to vector<4x8x32xf32>
    %242 = arith.truncf %241 : vector<4x8x32xf32> to vector<4x8x32xbf16>
    %c0_78 = arith.constant 0 : index
    %c0_79 = arith.constant 0 : index
    %c0_80 = arith.constant 0 : index
    %243 = vector.load %arg17[%c0_78, %c0_79, %c0_80] : memref<4x8x32xbf16, #tpu.memory_space<vmem>>, vector<4x8x32xbf16>
    tpu.vector_store %arg17[%c0_78, %c0_79, %c0_80], %242 {strides = array<i32>} : memref<4x8x32xbf16, #tpu.memory_space<vmem>>, vector<4x8x32xbf16>,
    return
  }
  func.func @transform_0(%arg0: i32) -> (i32, i32, i32) {
    %c0_i32 = arith.constant 0 : i32
    %c0_i32_0 = arith.constant 0 : i32
    %c0_i32_1 = arith.constant 0 : i32
    return %arg0, %c0_i32, %c0_i32_0 : i32, i32, i32
  }
  func.func @transform_1(%arg0: i32) -> (i32, i32, i32) {
    %c0_i32 = arith.constant 0 : i32
    %c0_i32_0 = arith.constant 0 : i32
    %c0_i32_1 = arith.constant 0 : i32
    return %arg0, %c0_i32, %c0_i32_0 : i32, i32, i32
  }
  func.func @transform_2(%arg0: i32) -> (i32, i32) {
    %c0_i32 = arith.constant 0 : i32
    %c0_i32_0 = arith.constant 0 : i32
    %c0_i32_1 = arith.constant 0 : i32
    return %c0_i32, %c0_i32_0 : i32, i32
  }
  func.func @transform_3(%arg0: i32) -> (i32, i32) {
    %c0_i32 = arith.constant 0 : i32
    %c0_i32_0 = arith.constant 0 : i32
    %c0_i32_1 = arith.constant 0 : i32
    return %c0_i32, %c0_i32_0 : i32, i32
  }
  func.func @transform_4(%arg0: i32) -> (i32, i32) {
    %c0_i32 = arith.constant 0 : i32
    %c0_i32_0 = arith.constant 0 : i32
    %c0_i32_1 = arith.constant 0 : i32
    return %c0_i32, %c0_i32_0 : i32, i32
  }
  func.func @transform_5(%arg0: i32) -> (i32, i32) {
    %c0_i32 = arith.constant 0 : i32
    %c0_i32_0 = arith.constant 0 : i32
    %c0_i32_1 = arith.constant 0 : i32
    return %c0_i32, %c0_i32_0 : i32, i32
  }
  func.func @transform_6(%arg0: i32) -> (i32, i32) {
    %c0_i32 = arith.constant 0 : i32
    %c0_i32_0 = arith.constant 0 : i32
    %c0_i32_1 = arith.constant 0 : i32
    return %c0_i32, %c0_i32_0 : i32, i32
  }
  func.func @transform_7(%arg0: i32) -> (i32, i32) {
    %c0_i32 = arith.constant 0 : i32
    %c0_i32_0 = arith.constant 0 : i32
    %c0_i32_1 = arith.constant 0 : i32
    return %c0_i32, %c0_i32_0 : i32, i32
  }
  func.func @transform_8(%arg0: i32) -> (i32, i32) {
    %c0_i32 = arith.constant 0 : i32
    %c0_i32_0 = arith.constant 0 : i32
    %c0_i32_1 = arith.constant 0 : i32
    return %c0_i32, %c0_i32_0 : i32, i32
  }
  func.func @transform_9(%arg0: i32) -> (i32, i32) {
    %c0_i32 = arith.constant 0 : i32
    %c0_i32_0 = arith.constant 0 : i32
    %c0_i32_1 = arith.constant 0 : i32
    return %c0_i32, %c0_i32_0 : i32, i32
  }
  func.func @transform_10(%arg0: i32) -> (i32, i32) {
    %c0_i32 = arith.constant 0 : i32
    %c0_i32_0 = arith.constant 0 : i32
    %c0_i32_1 = arith.constant 0 : i32
    return %c0_i32, %c0_i32_0 : i32, i32
  }
  func.func @transform_11(%arg0: i32) -> (i32, i32) {
    %c0_i32 = arith.constant 0 : i32
    %c0_i32_0 = arith.constant 0 : i32
    %c0_i32_1 = arith.constant 0 : i32
    return %c0_i32, %c0_i32_0 : i32, i32
  }
  func.func @transform_12(%arg0: i32) -> (i32, i32) {
    %c0_i32 = arith.constant 0 : i32
    %c0_i32_0 = arith.constant 0 : i32
    %c0_i32_1 = arith.constant 0 : i32
    return %c0_i32, %c0_i32_0 : i32, i32
  }
  func.func @transform_13(%arg0: i32) -> (i32, i32) {
    %c0_i32 = arith.constant 0 : i32
    %c0_i32_0 = arith.constant 0 : i32
    %c0_i32_1 = arith.constant 0 : i32
    return %c0_i32, %c0_i32_0 : i32, i32
  }
  func.func @transform_14(%arg0: i32) -> (i32, i32) {
    %c0_i32 = arith.constant 0 : i32
    %c0_i32_0 = arith.constant 0 : i32
    %c0_i32_1 = arith.constant 0 : i32
    return %c0_i32, %c0_i32_0 : i32, i32
  }
  func.func @transform_15(%arg0: i32) -> (i32, i32) {
    %c0_i32 = arith.constant 0 : i32
    %c0_i32_0 = arith.constant 0 : i32
    %c0_i32_1 = arith.constant 0 : i32
    return %c0_i32, %c0_i32_0 : i32, i32
  }
  func.func @transform_16(%arg0: i32) -> (i32, i32, i32) {
    %c0_i32 = arith.constant 0 : i32
    %c0_i32_0 = arith.constant 0 : i32
    %c0_i32_1 = arith.constant 0 : i32
    return %arg0, %c0_i32, %c0_i32_0 : i32, i32, i32
  }
}

module attributes {stable_mosaic.version = 11 : i64} {
  func.func @_bert_layer_kernel(%arg0: i32, %arg1: memref<4x8x32xbf16, #tpu.memory_space<vmem>>, %arg2: memref<4x1x8xf32, #tpu.memory_space<vmem>>, %arg3: memref<32x96xbf16, #tpu.memory_space<vmem>>, %arg4: memref<1x96xf32, #tpu.memory_space<vmem>>, %arg5: memref<32x32xbf16, #tpu.memory_space<vmem>>, %arg6: memref<1x32xf32, #tpu.memory_space<vmem>>, %arg7: memref<1x32xf32, #tpu.memory_space<vmem>>, %arg8: memref<1x32xf32, #tpu.memory_space<vmem>>, %arg9: memref<32x64xbf16, #tpu.memory_space<vmem>>, %arg10: memref<1x64xf32, #tpu.memory_space<vmem>>, %arg11: memref<64x32xbf16, #tpu.memory_space<vmem>>, %arg12: memref<1x32xf32, #tpu.memory_space<vmem>>, %arg13: memref<1x32xf32, #tpu.memory_space<vmem>>, %arg14: memref<1x32xf32, #tpu.memory_space<vmem>>, %arg15: memref<4x8x32xbf16, #tpu.memory_space<vmem>>) attributes {dimension_semantics = [#tpu.dimension_semantics<parallel>], iteration_bounds = array<i64: 1>, scalar_prefetch = 0 : i64, scratch_operands = 0 : i64, tpu.core_type = #tpu.core_type<tc>, window_params = [{transform_indices = @transform_0, window_bounds = array<i64: 4, 8, 32>}, {transform_indices = @transform_1, window_bounds = array<i64: 4, 1, 8>}, {pipeline_mode = #tpu.pipeline_mode<synchronous>, transform_indices = @transform_2, window_bounds = array<i64: 32, 96>}, {pipeline_mode = #tpu.pipeline_mode<synchronous>, transform_indices = @transform_3, window_bounds = array<i64: 1, 96>}, {pipeline_mode = #tpu.pipeline_mode<synchronous>, transform_indices = @transform_4, window_bounds = array<i64: 32, 32>}, {pipeline_mode = #tpu.pipeline_mode<synchronous>, transform_indices = @transform_5, window_bounds = array<i64: 1, 32>}, {pipeline_mode = #tpu.pipeline_mode<synchronous>, transform_indices = @transform_6, window_bounds = array<i64: 1, 32>}, {pipeline_mode = #tpu.pipeline_mode<synchronous>, transform_indices = @transform_7, window_bounds = array<i64: 1, 32>}, {pipeline_mode = #tpu.pipeline_mode<synchronous>, transform_indices = @transform_8, window_bounds = array<i64: 32, 64>}, {pipeline_mode = #tpu.pipeline_mode<synchronous>, transform_indices = @transform_9, window_bounds = array<i64: 1, 64>}, {pipeline_mode = #tpu.pipeline_mode<synchronous>, transform_indices = @transform_10, window_bounds = array<i64: 64, 32>}, {pipeline_mode = #tpu.pipeline_mode<synchronous>, transform_indices = @transform_11, window_bounds = array<i64: 1, 32>}, {pipeline_mode = #tpu.pipeline_mode<synchronous>, transform_indices = @transform_12, window_bounds = array<i64: 1, 32>}, {pipeline_mode = #tpu.pipeline_mode<synchronous>, transform_indices = @transform_13, window_bounds = array<i64: 1, 32>}, {transform_indices = @transform_14, window_bounds = array<i64: 4, 8, 32>}]} {
    %c0 = arith.constant 0 : index
    %c0_0 = arith.constant 0 : index
    %c0_1 = arith.constant 0 : index
    %0 = vector.load %arg1[%c0, %c0_0, %c0_1] : memref<4x8x32xbf16, #tpu.memory_space<vmem>>, vector<4x8x32xbf16>
    %1 = arith.extf %0 : vector<4x8x32xbf16> to vector<4x8x32xf32>
    %2 = vector.shape_cast %1 : vector<4x8x32xf32> to vector<32x32xf32>
    %c0_2 = arith.constant 0 : index
    %c0_3 = arith.constant 0 : index
    %3 = vector.load %arg3[%c0_2, %c0_3] : memref<32x96xbf16, #tpu.memory_space<vmem>>, vector<32x96xbf16>
    %4 = arith.truncf %2 : vector<32x32xf32> to vector<32x32xbf16>
    %cst = arith.constant dense<0.000000e+00> : vector<32x96xf32>
    %5 = tpu.matmul %4, %3, %cst {dimension_numbers = #tpu.dot_dimension_numbers<[1], [0], [0], [1], [0, 0, 1, 1], [], []>} : vector<32x32xbf16>, vector<32x96xbf16>, vector<32x96xf32> -> vector<32x96xf32>
    %c0_4 = arith.constant 0 : index
    %c0_5 = arith.constant 0 : index
    %6 = vector.load %arg4[%c0_4, %c0_5] : memref<1x96xf32, #tpu.memory_space<vmem>>, vector<1x96xf32>
    %7 = vector.broadcast %6 : vector<1x96xf32> to vector<32x96xf32>
    %8 = arith.addf %5, %7 : vector<32x96xf32>
    %9 = vector.extract_strided_slice %8 {offsets = [0, 0], sizes = [32, 32], strides = [1, 1]} : vector<32x96xf32> to vector<32x32xf32>
    %cst_6 = arith.constant 0.353553385 : f32
    %10 = vector.broadcast %cst_6 : f32 to vector<32x32xf32>
    %11 = arith.mulf %9, %10 : vector<32x32xf32>
    %12 = arith.truncf %11 : vector<32x32xf32> to vector<32x32xbf16>
    %13 = vector.extract_strided_slice %8 {offsets = [0, 32], sizes = [32, 32], strides = [1, 1]} : vector<32x96xf32> to vector<32x32xf32>
    %14 = arith.truncf %13 : vector<32x32xf32> to vector<32x32xbf16>
    %15 = vector.extract_strided_slice %8 {offsets = [0, 64], sizes = [32, 32], strides = [1, 1]} : vector<32x96xf32> to vector<32x32xf32>
    %16 = arith.truncf %15 : vector<32x32xf32> to vector<32x32xbf16>
    %17 = vector.extract_strided_slice %12 {offsets = [0, 0], sizes = [8, 32], strides = [1, 1]} : vector<32x32xbf16> to vector<8x32xbf16>
    %18 = vector.shape_cast %17 : vector<8x32xbf16> to vector<8x4x8xbf16>
    %19 = tpu.transpose %18, [1, 0, 2] : vector<8x4x8xbf16> -> vector<4x8x8xbf16>
    %20 = vector.extract_strided_slice %14 {offsets = [0, 0], sizes = [8, 32], strides = [1, 1]} : vector<32x32xbf16> to vector<8x32xbf16>
    %21 = vector.shape_cast %20 : vector<8x32xbf16> to vector<8x4x8xbf16>
    %22 = tpu.transpose %21, [1, 0, 2] : vector<8x4x8xbf16> -> vector<4x8x8xbf16>
    %23 = vector.extract_strided_slice %16 {offsets = [0, 0], sizes = [8, 32], strides = [1, 1]} : vector<32x32xbf16> to vector<8x32xbf16>
    %24 = vector.shape_cast %23 : vector<8x32xbf16> to vector<8x4x8xbf16>
    %25 = tpu.transpose %24, [1, 0, 2] : vector<8x4x8xbf16> -> vector<4x8x8xbf16>
    "tpu.trace_start"() <{level = 10 : i32, message = "hqd,hkd->hqk"}> : () -> ()
    %cst_7 = arith.constant dense<0.000000e+00> : vector<4x8x8xf32>
    %26 = tpu.matmul %19, %22, %cst_7 {dimension_numbers = #tpu.dot_dimension_numbers<[2], [2], [1], [1], [0, 0, 0, 1, 1, 1], [0], [0]>} : vector<4x8x8xbf16>, vector<4x8x8xbf16>, vector<4x8x8xf32> -> vector<4x8x8xf32>
    "tpu.trace_stop"() : () -> ()
    %c0_8 = arith.constant 0 : index
    %c0_9 = arith.constant 0 : index
    %c0_10 = arith.constant 0 : index
    %27 = vector.load %arg2[%c0_8, %c0_9, %c0_10] : memref<4x1x8xf32, #tpu.memory_space<vmem>>, vector<1x1x8xf32>
    %28 = vector.shape_cast %27 : vector<1x1x8xf32> to vector<1x8xf32>
    %29 = vector.shape_cast %28 : vector<1x8xf32> to vector<1x1x8xf32>
    %30 = vector.broadcast %29 : vector<1x1x8xf32> to vector<4x8x8xf32>
    %31 = arith.addf %26, %30 : vector<4x8x8xf32>
    %cst_11 = arith.constant dense<0xFF800000> : vector<4x8xf32>
    %32 = vector.multi_reduction <maximumf>, %31, %cst_11 [2] : vector<4x8x8xf32> to vector<4x8xf32>
    %33 = vector.shape_cast %32 : vector<4x8xf32> to vector<4x8x1xf32>
    %34 = vector.broadcast %33 : vector<4x8x1xf32> to vector<4x8x8xf32>
    %35 = arith.subf %31, %34 : vector<4x8x8xf32>
    %36 = math.exp %35 : vector<4x8x8xf32>
    %cst_12 = arith.constant dense<0.000000e+00> : vector<4x8xf32>
    %37 = vector.multi_reduction <add>, %36, %cst_12 [2] : vector<4x8x8xf32> to vector<4x8xf32>
    %38 = vector.shape_cast %37 : vector<4x8xf32> to vector<4x8x1xf32>
    %39 = tpu.reciprocal %38 {approx = true} : vector<4x8x1xf32> -> vector<4x8x1xf32>
    %40 = vector.broadcast %39 : vector<4x8x1xf32> to vector<4x8x8xf32>
    %41 = arith.mulf %36, %40 : vector<4x8x8xf32>
    %42 = arith.truncf %41 : vector<4x8x8xf32> to vector<4x8x8xbf16>
    "tpu.trace_start"() <{level = 10 : i32, message = "hqk,hkd->hqd"}> : () -> ()
    %cst_13 = arith.constant dense<0.000000e+00> : vector<4x8x8xf32>
    %43 = tpu.matmul %42, %25, %cst_13 {dimension_numbers = #tpu.dot_dimension_numbers<[2], [1], [1], [2], [0, 0, 0, 1, 1, 2], [0], [0]>} : vector<4x8x8xbf16>, vector<4x8x8xbf16>, vector<4x8x8xf32> -> vector<4x8x8xf32>
    "tpu.trace_stop"() : () -> ()
    %44 = tpu.transpose %43, [1, 0, 2] : vector<4x8x8xf32> -> vector<8x4x8xf32>
    %45 = vector.shape_cast %44 : vector<8x4x8xf32> to vector<8x32xf32>
    %46 = arith.truncf %45 : vector<8x32xf32> to vector<8x32xbf16>
    %47 = vector.extract_strided_slice %12 {offsets = [8, 0], sizes = [8, 32], strides = [1, 1]} : vector<32x32xbf16> to vector<8x32xbf16>
    %48 = vector.shape_cast %47 : vector<8x32xbf16> to vector<8x4x8xbf16>
    %49 = tpu.transpose %48, [1, 0, 2] : vector<8x4x8xbf16> -> vector<4x8x8xbf16>
    %50 = vector.extract_strided_slice %14 {offsets = [8, 0], sizes = [8, 32], strides = [1, 1]} : vector<32x32xbf16> to vector<8x32xbf16>
    %51 = vector.shape_cast %50 : vector<8x32xbf16> to vector<8x4x8xbf16>
    %52 = tpu.transpose %51, [1, 0, 2] : vector<8x4x8xbf16> -> vector<4x8x8xbf16>
    %53 = vector.extract_strided_slice %16 {offsets = [8, 0], sizes = [8, 32], strides = [1, 1]} : vector<32x32xbf16> to vector<8x32xbf16>
    %54 = vector.shape_cast %53 : vector<8x32xbf16> to vector<8x4x8xbf16>
    %55 = tpu.transpose %54, [1, 0, 2] : vector<8x4x8xbf16> -> vector<4x8x8xbf16>
    "tpu.trace_start"() <{level = 10 : i32, message = "hqd,hkd->hqk"}> : () -> ()
    %cst_14 = arith.constant dense<0.000000e+00> : vector<4x8x8xf32>
    %56 = tpu.matmul %49, %52, %cst_14 {dimension_numbers = #tpu.dot_dimension_numbers<[2], [2], [1], [1], [0, 0, 0, 1, 1, 1], [0], [0]>} : vector<4x8x8xbf16>, vector<4x8x8xbf16>, vector<4x8x8xf32> -> vector<4x8x8xf32>
    "tpu.trace_stop"() : () -> ()
    %c1 = arith.constant 1 : index
    %c0_15 = arith.constant 0 : index
    %c0_16 = arith.constant 0 : index
    %57 = vector.load %arg2[%c1, %c0_15, %c0_16] : memref<4x1x8xf32, #tpu.memory_space<vmem>>, vector<1x1x8xf32>
    %58 = vector.shape_cast %57 : vector<1x1x8xf32> to vector<1x8xf32>
    %59 = vector.shape_cast %58 : vector<1x8xf32> to vector<1x1x8xf32>
    %60 = vector.broadcast %59 : vector<1x1x8xf32> to vector<4x8x8xf32>
    %61 = arith.addf %56, %60 : vector<4x8x8xf32>
    %cst_17 = arith.constant dense<0xFF800000> : vector<4x8xf32>
    %62 = vector.multi_reduction <maximumf>, %61, %cst_17 [2] : vector<4x8x8xf32> to vector<4x8xf32>
    %63 = vector.shape_cast %62 : vector<4x8xf32> to vector<4x8x1xf32>
    %64 = vector.broadcast %63 : vector<4x8x1xf32> to vector<4x8x8xf32>
    %65 = arith.subf %61, %64 : vector<4x8x8xf32>
    %66 = math.exp %65 : vector<4x8x8xf32>
    %cst_18 = arith.constant dense<0.000000e+00> : vector<4x8xf32>
    %67 = vector.multi_reduction <add>, %66, %cst_18 [2] : vector<4x8x8xf32> to vector<4x8xf32>
    %68 = vector.shape_cast %67 : vector<4x8xf32> to vector<4x8x1xf32>
    %69 = tpu.reciprocal %68 {approx = true} : vector<4x8x1xf32> -> vector<4x8x1xf32>
    %70 = vector.broadcast %69 : vector<4x8x1xf32> to vector<4x8x8xf32>
    %71 = arith.mulf %66, %70 : vector<4x8x8xf32>
    %72 = arith.truncf %71 : vector<4x8x8xf32> to vector<4x8x8xbf16>
    "tpu.trace_start"() <{level = 10 : i32, message = "hqk,hkd->hqd"}> : () -> ()
    %cst_19 = arith.constant dense<0.000000e+00> : vector<4x8x8xf32>
    %73 = tpu.matmul %72, %55, %cst_19 {dimension_numbers = #tpu.dot_dimension_numbers<[2], [1], [1], [2], [0, 0, 0, 1, 1, 2], [0], [0]>} : vector<4x8x8xbf16>, vector<4x8x8xbf16>, vector<4x8x8xf32> -> vector<4x8x8xf32>
    "tpu.trace_stop"() : () -> ()
    %74 = tpu.transpose %73, [1, 0, 2] : vector<4x8x8xf32> -> vector<8x4x8xf32>
    %75 = vector.shape_cast %74 : vector<8x4x8xf32> to vector<8x32xf32>
    %76 = arith.truncf %75 : vector<8x32xf32> to vector<8x32xbf16>
    %77 = vector.extract_strided_slice %12 {offsets = [16, 0], sizes = [8, 32], strides = [1, 1]} : vector<32x32xbf16> to vector<8x32xbf16>
    %78 = vector.shape_cast %77 : vector<8x32xbf16> to vector<8x4x8xbf16>
    %79 = tpu.transpose %78, [1, 0, 2] : vector<8x4x8xbf16> -> vector<4x8x8xbf16>
    %80 = vector.extract_strided_slice %14 {offsets = [16, 0], sizes = [8, 32], strides = [1, 1]} : vector<32x32xbf16> to vector<8x32xbf16>
    %81 = vector.shape_cast %80 : vector<8x32xbf16> to vector<8x4x8xbf16>
    %82 = tpu.transpose %81, [1, 0, 2] : vector<8x4x8xbf16> -> vector<4x8x8xbf16>
    %83 = vector.extract_strided_slice %16 {offsets = [16, 0], sizes = [8, 32], strides = [1, 1]} : vector<32x32xbf16> to vector<8x32xbf16>
    %84 = vector.shape_cast %83 : vector<8x32xbf16> to vector<8x4x8xbf16>
    %85 = tpu.transpose %84, [1, 0, 2] : vector<8x4x8xbf16> -> vector<4x8x8xbf16>
    "tpu.trace_start"() <{level = 10 : i32, message = "hqd,hkd->hqk"}> : () -> ()
    %cst_20 = arith.constant dense<0.000000e+00> : vector<4x8x8xf32>
    %86 = tpu.matmul %79, %82, %cst_20 {dimension_numbers = #tpu.dot_dimension_numbers<[2], [2], [1], [1], [0, 0, 0, 1, 1, 1], [0], [0]>} : vector<4x8x8xbf16>, vector<4x8x8xbf16>, vector<4x8x8xf32> -> vector<4x8x8xf32>
    "tpu.trace_stop"() : () -> ()
    %c2 = arith.constant 2 : index
    %c0_21 = arith.constant 0 : index
    %c0_22 = arith.constant 0 : index
    %87 = vector.load %arg2[%c2, %c0_21, %c0_22] : memref<4x1x8xf32, #tpu.memory_space<vmem>>, vector<1x1x8xf32>
    %88 = vector.shape_cast %87 : vector<1x1x8xf32> to vector<1x8xf32>
    %89 = vector.shape_cast %88 : vector<1x8xf32> to vector<1x1x8xf32>
    %90 = vector.broadcast %89 : vector<1x1x8xf32> to vector<4x8x8xf32>
    %91 = arith.addf %86, %90 : vector<4x8x8xf32>
    %cst_23 = arith.constant dense<0xFF800000> : vector<4x8xf32>
    %92 = vector.multi_reduction <maximumf>, %91, %cst_23 [2] : vector<4x8x8xf32> to vector<4x8xf32>
    %93 = vector.shape_cast %92 : vector<4x8xf32> to vector<4x8x1xf32>
    %94 = vector.broadcast %93 : vector<4x8x1xf32> to vector<4x8x8xf32>
    %95 = arith.subf %91, %94 : vector<4x8x8xf32>
    %96 = math.exp %95 : vector<4x8x8xf32>
    %cst_24 = arith.constant dense<0.000000e+00> : vector<4x8xf32>
    %97 = vector.multi_reduction <add>, %96, %cst_24 [2] : vector<4x8x8xf32> to vector<4x8xf32>
    %98 = vector.shape_cast %97 : vector<4x8xf32> to vector<4x8x1xf32>
    %99 = tpu.reciprocal %98 {approx = true} : vector<4x8x1xf32> -> vector<4x8x1xf32>
    %100 = vector.broadcast %99 : vector<4x8x1xf32> to vector<4x8x8xf32>
    %101 = arith.mulf %96, %100 : vector<4x8x8xf32>
    %102 = arith.truncf %101 : vector<4x8x8xf32> to vector<4x8x8xbf16>
    "tpu.trace_start"() <{level = 10 : i32, message = "hqk,hkd->hqd"}> : () -> ()
    %cst_25 = arith.constant dense<0.000000e+00> : vector<4x8x8xf32>
    %103 = tpu.matmul %102, %85, %cst_25 {dimension_numbers = #tpu.dot_dimension_numbers<[2], [1], [1], [2], [0, 0, 0, 1, 1, 2], [0], [0]>} : vector<4x8x8xbf16>, vector<4x8x8xbf16>, vector<4x8x8xf32> -> vector<4x8x8xf32>
    "tpu.trace_stop"() : () -> ()
    %104 = tpu.transpose %103, [1, 0, 2] : vector<4x8x8xf32> -> vector<8x4x8xf32>
    %105 = vector.shape_cast %104 : vector<8x4x8xf32> to vector<8x32xf32>
    %106 = arith.truncf %105 : vector<8x32xf32> to vector<8x32xbf16>
    %107 = vector.extract_strided_slice %12 {offsets = [24, 0], sizes = [8, 32], strides = [1, 1]} : vector<32x32xbf16> to vector<8x32xbf16>
    %108 = vector.shape_cast %107 : vector<8x32xbf16> to vector<8x4x8xbf16>
    %109 = tpu.transpose %108, [1, 0, 2] : vector<8x4x8xbf16> -> vector<4x8x8xbf16>
    %110 = vector.extract_strided_slice %14 {offsets = [24, 0], sizes = [8, 32], strides = [1, 1]} : vector<32x32xbf16> to vector<8x32xbf16>
    %111 = vector.shape_cast %110 : vector<8x32xbf16> to vector<8x4x8xbf16>
    %112 = tpu.transpose %111, [1, 0, 2] : vector<8x4x8xbf16> -> vector<4x8x8xbf16>
    %113 = vector.extract_strided_slice %16 {offsets = [24, 0], sizes = [8, 32], strides = [1, 1]} : vector<32x32xbf16> to vector<8x32xbf16>
    %114 = vector.shape_cast %113 : vector<8x32xbf16> to vector<8x4x8xbf16>
    %115 = tpu.transpose %114, [1, 0, 2] : vector<8x4x8xbf16> -> vector<4x8x8xbf16>
    "tpu.trace_start"() <{level = 10 : i32, message = "hqd,hkd->hqk"}> : () -> ()
    %cst_26 = arith.constant dense<0.000000e+00> : vector<4x8x8xf32>
    %116 = tpu.matmul %109, %112, %cst_26 {dimension_numbers = #tpu.dot_dimension_numbers<[2], [2], [1], [1], [0, 0, 0, 1, 1, 1], [0], [0]>} : vector<4x8x8xbf16>, vector<4x8x8xbf16>, vector<4x8x8xf32> -> vector<4x8x8xf32>
    "tpu.trace_stop"() : () -> ()
    %c3 = arith.constant 3 : index
    %c0_27 = arith.constant 0 : index
    %c0_28 = arith.constant 0 : index
    %117 = vector.load %arg2[%c3, %c0_27, %c0_28] : memref<4x1x8xf32, #tpu.memory_space<vmem>>, vector<1x1x8xf32>
    %118 = vector.shape_cast %117 : vector<1x1x8xf32> to vector<1x8xf32>
    %119 = vector.shape_cast %118 : vector<1x8xf32> to vector<1x1x8xf32>
    %120 = vector.broadcast %119 : vector<1x1x8xf32> to vector<4x8x8xf32>
    %121 = arith.addf %116, %120 : vector<4x8x8xf32>
    %cst_29 = arith.constant dense<0xFF800000> : vector<4x8xf32>
    %122 = vector.multi_reduction <maximumf>, %121, %cst_29 [2] : vector<4x8x8xf32> to vector<4x8xf32>
    %123 = vector.shape_cast %122 : vector<4x8xf32> to vector<4x8x1xf32>
    %124 = vector.broadcast %123 : vector<4x8x1xf32> to vector<4x8x8xf32>
    %125 = arith.subf %121, %124 : vector<4x8x8xf32>
    %126 = math.exp %125 : vector<4x8x8xf32>
    %cst_30 = arith.constant dense<0.000000e+00> : vector<4x8xf32>
    %127 = vector.multi_reduction <add>, %126, %cst_30 [2] : vector<4x8x8xf32> to vector<4x8xf32>
    %128 = vector.shape_cast %127 : vector<4x8xf32> to vector<4x8x1xf32>
    %129 = tpu.reciprocal %128 {approx = true} : vector<4x8x1xf32> -> vector<4x8x1xf32>
    %130 = vector.broadcast %129 : vector<4x8x1xf32> to vector<4x8x8xf32>
    %131 = arith.mulf %126, %130 : vector<4x8x8xf32>
    %132 = arith.truncf %131 : vector<4x8x8xf32> to vector<4x8x8xbf16>
    "tpu.trace_start"() <{level = 10 : i32, message = "hqk,hkd->hqd"}> : () -> ()
    %cst_31 = arith.constant dense<0.000000e+00> : vector<4x8x8xf32>
    %133 = tpu.matmul %132, %115, %cst_31 {dimension_numbers = #tpu.dot_dimension_numbers<[2], [1], [1], [2], [0, 0, 0, 1, 1, 2], [0], [0]>} : vector<4x8x8xbf16>, vector<4x8x8xbf16>, vector<4x8x8xf32> -> vector<4x8x8xf32>
    "tpu.trace_stop"() : () -> ()
    %134 = tpu.transpose %133, [1, 0, 2] : vector<4x8x8xf32> -> vector<8x4x8xf32>
    %135 = vector.shape_cast %134 : vector<8x4x8xf32> to vector<8x32xf32>
    %136 = arith.truncf %135 : vector<8x32xf32> to vector<8x32xbf16>
    %137 = tpu.concatenate %46, %76, %106, %136 in 0 : vector<8x32xbf16>, vector<8x32xbf16>, vector<8x32xbf16>, vector<8x32xbf16> -> vector<32x32xbf16>
    %c0_32 = arith.constant 0 : index
    %c0_33 = arith.constant 0 : index
    %138 = vector.load %arg5[%c0_32, %c0_33] : memref<32x32xbf16, #tpu.memory_space<vmem>>, vector<32x32xbf16>
    %cst_34 = arith.constant dense<0.000000e+00> : vector<32x32xf32>
    %139 = tpu.matmul %137, %138, %cst_34 {dimension_numbers = #tpu.dot_dimension_numbers<[1], [0], [0], [1], [0, 0, 1, 1], [], []>} : vector<32x32xbf16>, vector<32x32xbf16>, vector<32x32xf32> -> vector<32x32xf32>
    %c0_35 = arith.constant 0 : index
    %c0_36 = arith.constant 0 : index
    %140 = vector.load %arg6[%c0_35, %c0_36] : memref<1x32xf32, #tpu.memory_space<vmem>>, vector<1x32xf32>
    %141 = vector.broadcast %140 : vector<1x32xf32> to vector<32x32xf32>
    %142 = arith.addf %139, %141 : vector<32x32xf32>
    %143 = arith.addf %2, %142 : vector<32x32xf32>
    %c0_37 = arith.constant 0 : index
    %c0_38 = arith.constant 0 : index
    %144 = vector.load %arg7[%c0_37, %c0_38] : memref<1x32xf32, #tpu.memory_space<vmem>>, vector<1x32xf32>
    %c0_39 = arith.constant 0 : index
    %c0_40 = arith.constant 0 : index
    %145 = vector.load %arg8[%c0_39, %c0_40] : memref<1x32xf32, #tpu.memory_space<vmem>>, vector<1x32xf32>
    %cst_41 = arith.constant dense<0.000000e+00> : vector<32xf32>
    %146 = vector.multi_reduction <add>, %143, %cst_41 [1] : vector<32x32xf32> to vector<32xf32>
    %147 = vector.shape_cast %146 : vector<32xf32> to vector<32x1xf32>
    %cst_42 = arith.constant 3.200000e+01 : f32
    %148 = vector.broadcast %cst_42 : f32 to vector<32x1xf32>
    %149 = arith.divf %147, %148 : vector<32x1xf32>
    %150 = vector.broadcast %149 : vector<32x1xf32> to vector<32x32xf32>
    %151 = arith.subf %143, %150 : vector<32x32xf32>
    %152 = arith.mulf %151, %151 : vector<32x32xf32>
    %cst_43 = arith.constant dense<0.000000e+00> : vector<32xf32>
    %153 = vector.multi_reduction <add>, %152, %cst_43 [1] : vector<32x32xf32> to vector<32xf32>
    %154 = vector.shape_cast %153 : vector<32xf32> to vector<32x1xf32>
    %cst_44 = arith.constant 3.200000e+01 : f32
    %155 = vector.broadcast %cst_44 : f32 to vector<32x1xf32>
    %156 = arith.divf %154, %155 : vector<32x1xf32>
    %157 = vector.broadcast %149 : vector<32x1xf32> to vector<32x32xf32>
    %158 = arith.subf %143, %157 : vector<32x32xf32>
    %cst_45 = arith.constant 9.99999996E-13 : f32
    %159 = vector.broadcast %cst_45 : f32 to vector<32x1xf32>
    %160 = arith.addf %156, %159 : vector<32x1xf32>
    %161 = math.rsqrt %160 : vector<32x1xf32>
    %162 = vector.broadcast %161 : vector<32x1xf32> to vector<32x32xf32>
    %163 = arith.mulf %158, %162 : vector<32x32xf32>
    %164 = vector.broadcast %144 : vector<1x32xf32> to vector<32x32xf32>
    %165 = arith.mulf %163, %164 : vector<32x32xf32>
    %166 = vector.broadcast %145 : vector<1x32xf32> to vector<32x32xf32>
    %167 = arith.addf %165, %166 : vector<32x32xf32>
    %c0_46 = arith.constant 0 : index
    %c0_47 = arith.constant 0 : index
    %168 = vector.load %arg9[%c0_46, %c0_47] : memref<32x64xbf16, #tpu.memory_space<vmem>>, vector<32x64xbf16>
    %169 = arith.truncf %167 : vector<32x32xf32> to vector<32x32xbf16>
    %cst_48 = arith.constant dense<0.000000e+00> : vector<32x64xf32>
    %170 = tpu.matmul %169, %168, %cst_48 {dimension_numbers = #tpu.dot_dimension_numbers<[1], [0], [0], [1], [0, 0, 1, 1], [], []>} : vector<32x32xbf16>, vector<32x64xbf16>, vector<32x64xf32> -> vector<32x64xf32>
    %c0_49 = arith.constant 0 : index
    %c0_50 = arith.constant 0 : index
    %171 = vector.load %arg10[%c0_49, %c0_50] : memref<1x64xf32, #tpu.memory_space<vmem>>, vector<1x64xf32>
    %172 = vector.broadcast %171 : vector<1x64xf32> to vector<32x64xf32>
    %173 = arith.addf %170, %172 : vector<32x64xf32>
    %174 = arith.mulf %173, %173 : vector<32x64xf32>
    %175 = arith.mulf %173, %174 : vector<32x64xf32>
    %cst_51 = arith.constant 4.471500e-02 : f32
    %176 = vector.broadcast %cst_51 : f32 to vector<32x64xf32>
    %177 = arith.mulf %176, %175 : vector<32x64xf32>
    %178 = arith.addf %173, %177 : vector<32x64xf32>
    %cst_52 = arith.constant 0.797884583 : f32
    %179 = vector.broadcast %cst_52 : f32 to vector<32x64xf32>
    %180 = arith.mulf %179, %178 : vector<32x64xf32>
    %181 = math.tanh %180 : vector<32x64xf32>
    %cst_53 = arith.constant 1.000000e+00 : f32
    %182 = vector.broadcast %cst_53 : f32 to vector<32x64xf32>
    %183 = arith.addf %182, %181 : vector<32x64xf32>
    %cst_54 = arith.constant 5.000000e-01 : f32
    %184 = vector.broadcast %cst_54 : f32 to vector<32x64xf32>
    %185 = arith.mulf %184, %183 : vector<32x64xf32>
    %186 = arith.mulf %173, %185 : vector<32x64xf32>
    %187 = arith.truncf %186 : vector<32x64xf32> to vector<32x64xbf16>
    %c0_55 = arith.constant 0 : index
    %c0_56 = arith.constant 0 : index
    %188 = vector.load %arg11[%c0_55, %c0_56] : memref<64x32xbf16, #tpu.memory_space<vmem>>, vector<64x32xbf16>
    %cst_57 = arith.constant dense<0.000000e+00> : vector<32x32xf32>
    %189 = tpu.matmul %187, %188, %cst_57 {dimension_numbers = #tpu.dot_dimension_numbers<[1], [0], [0], [1], [0, 0, 1, 1], [], []>} : vector<32x64xbf16>, vector<64x32xbf16>, vector<32x32xf32> -> vector<32x32xf32>
    %c0_58 = arith.constant 0 : index
    %c0_59 = arith.constant 0 : index
    %190 = vector.load %arg12[%c0_58, %c0_59] : memref<1x32xf32, #tpu.memory_space<vmem>>, vector<1x32xf32>
    %191 = vector.broadcast %190 : vector<1x32xf32> to vector<32x32xf32>
    %192 = arith.addf %189, %191 : vector<32x32xf32>
    %193 = arith.addf %167, %192 : vector<32x32xf32>
    %c0_60 = arith.constant 0 : index
    %c0_61 = arith.constant 0 : index
    %194 = vector.load %arg13[%c0_60, %c0_61] : memref<1x32xf32, #tpu.memory_space<vmem>>, vector<1x32xf32>
    %c0_62 = arith.constant 0 : index
    %c0_63 = arith.constant 0 : index
    %195 = vector.load %arg14[%c0_62, %c0_63] : memref<1x32xf32, #tpu.memory_space<vmem>>, vector<1x32xf32>
    %cst_64 = arith.constant dense<0.000000e+00> : vector<32xf32>
    %196 = vector.multi_reduction <add>, %193, %cst_64 [1] : vector<32x32xf32> to vector<32xf32>
    %197 = vector.shape_cast %196 : vector<32xf32> to vector<32x1xf32>
    %cst_65 = arith.constant 3.200000e+01 : f32
    %198 = vector.broadcast %cst_65 : f32 to vector<32x1xf32>
    %199 = arith.divf %197, %198 : vector<32x1xf32>
    %200 = vector.broadcast %199 : vector<32x1xf32> to vector<32x32xf32>
    %201 = arith.subf %193, %200 : vector<32x32xf32>
    %202 = arith.mulf %201, %201 : vector<32x32xf32>
    %cst_66 = arith.constant dense<0.000000e+00> : vector<32xf32>
    %203 = vector.multi_reduction <add>, %202, %cst_66 [1] : vector<32x32xf32> to vector<32xf32>
    %204 = vector.shape_cast %203 : vector<32xf32> to vector<32x1xf32>
    %cst_67 = arith.constant 3.200000e+01 : f32
    %205 = vector.broadcast %cst_67 : f32 to vector<32x1xf32>
    %206 = arith.divf %204, %205 : vector<32x1xf32>
    %207 = vector.broadcast %199 : vector<32x1xf32> to vector<32x32xf32>
    %208 = arith.subf %193, %207 : vector<32x32xf32>
    %cst_68 = arith.constant 9.99999996E-13 : f32
    %209 = vector.broadcast %cst_68 : f32 to vector<32x1xf32>
    %210 = arith.addf %206, %209 : vector<32x1xf32>
    %211 = math.rsqrt %210 : vector<32x1xf32>
    %212 = vector.broadcast %211 : vector<32x1xf32> to vector<32x32xf32>
    %213 = arith.mulf %208, %212 : vector<32x32xf32>
    %214 = vector.broadcast %194 : vector<1x32xf32> to vector<32x32xf32>
    %215 = arith.mulf %213, %214 : vector<32x32xf32>
    %216 = vector.broadcast %195 : vector<1x32xf32> to vector<32x32xf32>
    %217 = arith.addf %215, %216 : vector<32x32xf32>
    %218 = vector.shape_cast %217 : vector<32x32xf32> to vector<4x8x32xf32>
    %219 = arith.truncf %218 : vector<4x8x32xf32> to vector<4x8x32xbf16>
    %c0_69 = arith.constant 0 : index
    %c0_70 = arith.constant 0 : index
    %c0_71 = arith.constant 0 : index
    %220 = vector.load %arg15[%c0_69, %c0_70, %c0_71] : memref<4x8x32xbf16, #tpu.memory_space<vmem>>, vector<4x8x32xbf16>
    tpu.vector_store %arg15[%c0_69, %c0_70, %c0_71], %219 {strides = array<i32>} : memref<4x8x32xbf16, #tpu.memory_space<vmem>>, vector<4x8x32xbf16>,
    return
  }
  func.func @transform_0(%arg0: i32) -> (i32, i32, i32) {
    %c0_i32 = arith.constant 0 : i32
    %c0_i32_0 = arith.constant 0 : i32
    %c0_i32_1 = arith.constant 0 : i32
    return %arg0, %c0_i32, %c0_i32_0 : i32, i32, i32
  }
  func.func @transform_1(%arg0: i32) -> (i32, i32, i32) {
    %c0_i32 = arith.constant 0 : i32
    %c0_i32_0 = arith.constant 0 : i32
    %c0_i32_1 = arith.constant 0 : i32
    return %arg0, %c0_i32, %c0_i32_0 : i32, i32, i32
  }
  func.func @transform_2(%arg0: i32) -> (i32, i32) {
    %c0_i32 = arith.constant 0 : i32
    %c0_i32_0 = arith.constant 0 : i32
    %c0_i32_1 = arith.constant 0 : i32
    return %c0_i32, %c0_i32_0 : i32, i32
  }
  func.func @transform_3(%arg0: i32) -> (i32, i32) {
    %c0_i32 = arith.constant 0 : i32
    %c0_i32_0 = arith.constant 0 : i32
    %c0_i32_1 = arith.constant 0 : i32
    return %c0_i32, %c0_i32_0 : i32, i32
  }
  func.func @transform_4(%arg0: i32) -> (i32, i32) {
    %c0_i32 = arith.constant 0 : i32
    %c0_i32_0 = arith.constant 0 : i32
    %c0_i32_1 = arith.constant 0 : i32
    return %c0_i32, %c0_i32_0 : i32, i32
  }
  func.func @transform_5(%arg0: i32) -> (i32, i32) {
    %c0_i32 = arith.constant 0 : i32
    %c0_i32_0 = arith.constant 0 : i32
    %c0_i32_1 = arith.constant 0 : i32
    return %c0_i32, %c0_i32_0 : i32, i32
  }
  func.func @transform_6(%arg0: i32) -> (i32, i32) {
    %c0_i32 = arith.constant 0 : i32
    %c0_i32_0 = arith.constant 0 : i32
    %c0_i32_1 = arith.constant 0 : i32
    return %c0_i32, %c0_i32_0 : i32, i32
  }
  func.func @transform_7(%arg0: i32) -> (i32, i32) {
    %c0_i32 = arith.constant 0 : i32
    %c0_i32_0 = arith.constant 0 : i32
    %c0_i32_1 = arith.constant 0 : i32
    return %c0_i32, %c0_i32_0 : i32, i32
  }
  func.func @transform_8(%arg0: i32) -> (i32, i32) {
    %c0_i32 = arith.constant 0 : i32
    %c0_i32_0 = arith.constant 0 : i32
    %c0_i32_1 = arith.constant 0 : i32
    return %c0_i32, %c0_i32_0 : i32, i32
  }
  func.func @transform_9(%arg0: i32) -> (i32, i32) {
    %c0_i32 = arith.constant 0 : i32
    %c0_i32_0 = arith.constant 0 : i32
    %c0_i32_1 = arith.constant 0 : i32
    return %c0_i32, %c0_i32_0 : i32, i32
  }
  func.func @transform_10(%arg0: i32) -> (i32, i32) {
    %c0_i32 = arith.constant 0 : i32
    %c0_i32_0 = arith.constant 0 : i32
    %c0_i32_1 = arith.constant 0 : i32
    return %c0_i32, %c0_i32_0 : i32, i32
  }
  func.func @transform_11(%arg0: i32) -> (i32, i32) {
    %c0_i32 = arith.constant 0 : i32
    %c0_i32_0 = arith.constant 0 : i32
    %c0_i32_1 = arith.constant 0 : i32
    return %c0_i32, %c0_i32_0 : i32, i32
  }
  func.func @transform_12(%arg0: i32) -> (i32, i32) {
    %c0_i32 = arith.constant 0 : i32
    %c0_i32_0 = arith.constant 0 : i32
    %c0_i32_1 = arith.constant 0 : i32
    return %c0_i32, %c0_i32_0 : i32, i32
  }
  func.func @transform_13(%arg0: i32) -> (i32, i32) {
    %c0_i32 = arith.constant 0 : i32
    %c0_i32_0 = arith.constant 0 : i32
    %c0_i32_1 = arith.constant 0 : i32
    return %c0_i32, %c0_i32_0 : i32, i32
  }
  func.func @transform_14(%arg0: i32) -> (i32, i32, i32) {
    %c0_i32 = arith.constant 0 : i32
    %c0_i32_0 = arith.constant 0 : i32
    %c0_i32_1 = arith.constant 0 : i32
    return %arg0, %c0_i32, %c0_i32_0 : i32, i32, i32
  }
}

</mosaic_0001>

<llo_original>
// kernel: siamese_bert_forward.5
$region0: #{siamese_bert_forward.5}
  #allocation0 [shape = 'u32[]', space=smem, size = 0x4, offset = 0x4, fixed_abs, tag = 'smem constant byte address 0x4 - core index']
  #allocation1 [shape = 'u32[72,128]{1,0:T(1,128)}', space=vmem, size = 0x9000, scoped, tag = 'internal scratch']
  %s0 = inlined_call_operand.vmem [shape: bf16[4,32], index: 0, kind: input, shape index: {}]
  %s1 = inlined_call_operand.vmem [shape: bf16[32,32], index: 1, kind: input, shape index: {}]
  %s2 = inlined_call_operand.vmem [shape: f32[1,32], index: 2, kind: input, shape index: {}]
  %s3 = inlined_call_operand.vmem [shape: bf16[32,32], index: 3, kind: input, shape index: {}]
  %s4 = inlined_call_operand.vmem [shape: f32[1,32], index: 4, kind: input, shape index: {}]
  %s5 = inlined_call_operand.vmem [shape: bf16[32,32], index: 5, kind: input, shape index: {}]
  %s6 = inlined_call_operand.vmem [shape: f32[1,32], index: 6, kind: input, shape index: {}]
  %s7 = inlined_call_operand.vmem [shape: bf16[32,32], index: 7, kind: input, shape index: {}]
  %s8 = inlined_call_operand.vmem [shape: f32[1,32], index: 8, kind: input, shape index: {}]
  %s9 = inlined_call_operand.hbm [shape: f32[2,2], index: 9, kind: output, shape index: {}]
  %s10 = sld [smem:[#allocation0]]
  $region46: #{siamese_bert_forward.5} parent=0
    _
  %s12 = ssub.s32 1, %s10
  %s13 = scalar_select 0, %s12, %s10
  $region1: #{siamese_bert_forward.5} parent=0
    #allocation2 [shape = 'u8[1024]{0}', space=vmem, size = 0x400, scoped, tag = 'output window, operand 0, single buffered']
    #allocation3 [shape = 's32[1]{0}', space=sflag, size = 0x4, scoped, tag = 'scoped memory for siamese_bert_forward.5']
    %14 = vsyncpa [#allocation3], 0
    // Predicated region
    $region2: #{siamese_bert_forward.5} parent=1 // pred_check
      _
    $region3: #{siamese_bert_forward.5} parent=1 // pred_check_branch
      %16 = sbr.rel (0) target = $region5
    $region4: #{siamese_bert_forward.5} parent=1 // pred_region
      _
    $region5: #{siamese_bert_forward.5} parent=1 // pred_fallthru
      _
    // Predicated region
    $region6: #{siamese_bert_forward.5} parent=1 // pred_check
      _
    $region7: #{siamese_bert_forward.5} parent=1 // pred_check_branch
      %18 = sbr.rel (0) target = $region9
    $region8: #{siamese_bert_forward.5} parent=1 // pred_region
      _
    $region9: #{siamese_bert_forward.5} parent=1 // pred_fallthru
      _
    // Predicated region
    $region10: #{siamese_bert_forward.5} parent=1 // pred_check
      _
    $region11: #{siamese_bert_forward.5} parent=1 // pred_check_branch
      %20 = sbr.rel (0) target = $region13
    $region12: #{siamese_bert_forward.5} parent=1 // pred_region
      _
    $region13: #{siamese_bert_forward.5} parent=1 // pred_fallthru
      _
    // Predicated region
    $region14: #{siamese_bert_forward.5} parent=1 // pred_check
      _
    $region15: #{siamese_bert_forward.5} parent=1 // pred_check_branch
      %22 = sbr.rel (0) target = $region17
    $region16: #{siamese_bert_forward.5} parent=1 // pred_region
      _
    $region17: #{siamese_bert_forward.5} parent=1 // pred_fallthru
      _
    // Predicated region
    $region18: #{siamese_bert_forward.5} parent=1 // pred_check
      _
    $region19: #{siamese_bert_forward.5} parent=1 // pred_check_branch
      %24 = sbr.rel (0) target = $region21
    $region20: #{siamese_bert_forward.5} parent=1 // pred_region
      _
    $region21: #{siamese_bert_forward.5} parent=1 // pred_fallthru
      _
    // Predicated region
    $region22: #{siamese_bert_forward.5} parent=1 // pred_check
      _
    $region23: #{siamese_bert_forward.5} parent=1 // pred_check_branch
      %26 = sbr.rel (0) target = $region25
    $region24: #{siamese_bert_forward.5} parent=1 // pred_region
      _
    $region25: #{siamese_bert_forward.5} parent=1 // pred_fallthru
      _
    // Predicated region
    $region26: #{siamese_bert_forward.5} parent=1 // pred_check
      _
    $region27: #{siamese_bert_forward.5} parent=1 // pred_check_branch
      %28 = sbr.rel (0) target = $region29
    $region28: #{siamese_bert_forward.5} parent=1 // pred_region
      _
    $region29: #{siamese_bert_forward.5} parent=1 // pred_fallthru
      _
    // Predicated region
    $region30: #{siamese_bert_forward.5} parent=1 // pred_check
      _
    $region31: #{siamese_bert_forward.5} parent=1 // pred_check_branch
      %30 = sbr.rel (0) target = $region33
    $region32: #{siamese_bert_forward.5} parent=1 // pred_region
      _
    $region33: #{siamese_bert_forward.5} parent=1 // pred_fallthru
      _
    // Predicated region
    $region34: #{siamese_bert_forward.5} parent=1 // pred_check
      _
    $region35: #{siamese_bert_forward.5} parent=1 // pred_check_branch
      %32 = sbr.rel (0) target = $region37
    $region36: #{siamese_bert_forward.5} parent=1 // pred_region
      _
    $region37: #{siamese_bert_forward.5} parent=1 // pred_fallthru
      _
    %v34 = vld [vmem:[%s0] sm:$0x3]
    %v35 = vld [vmem:[%s1] sm:$0xf]
    %v36 = vld [vmem:[%s1 + $0x4] sm:$0xf]
    %v37 = vld [vmem:[%s1 + $0x8] sm:$0xf]
    %v38 = vld [vmem:[%s1 + $0xc] sm:$0xf]
    %v39 = vld [vmem:[%s2] sm:$0x1]
    %v41 = vperm.slane %v39, 0
    %v47 = vunpack.c.l.b16 %v35
    %v48 = vunpack.c.l.b16 %v36
    %v49 = vunpack.c.l.b16 %v37
    %v50 = vunpack.c.l.b16 %v38
    %v51 = vpack.c.b16 %v48, %v47
    %v52 = vpack.c.b16 %v50, %v49
    %vm55 = vcmask 261120
    %v57 = vsel %vm55, %v34, 0
    %59 = vmatpush.bf16.msra.mxu0 0
    %60 = vmatpush.bf16.msra.mxu0 0
    %61 = vmatpush.bf16.msra.mxu0 0
    %62 = vmatpush.bf16.msra.mxu0 0
    %63 = vmatpush.bf16.msra.mxu0 0
    %64 = vmatpush.bf16.msra.mxu0 0
    %65 = vmatpush.bf16.msra.mxu0 %v52
    %66 = vmatpush.bf16.msra.mxu0 %v51
    %67 = vmatmul.bf16.gmra.mxu0 %v57
    %v68 = vpop.f32.mrf.mxu0
    %v69 = vadd.f32 %v41, %v68
    %v70 = vpop.f32.mrf.mxu0
    %71 = vdwg.mxu0
    %v72 = vtanh.pop %v69
    %v73 = vld [vmem:[%s3] sm:$0xf]
    %v74 = vld [vmem:[%s3 + $0x4] sm:$0xf]
    %v75 = vld [vmem:[%s3 + $0x8] sm:$0xf]
    %v76 = vld [vmem:[%s3 + $0xc] sm:$0xf]
    %v77 = vpack.c.bf16 %v72, %v72
    %v78 = vld [vmem:[%s4] sm:$0x1]
    %v80 = vperm.slane %v78, 0
    %v83 = vrot.slane %v77, 1
    %v88 = vunpack.c.l.b16 %v73
    %v89 = vunpack.c.l.b16 %v74
    %v90 = vunpack.c.l.b16 %v75
    %v91 = vunpack.c.l.b16 %v76
    %v92 = vpack.c.b16 %v89, %v88
    %v93 = vpack.c.b16 %v91, %v90
    %v97 = vsel %vm55, %v83, 0
    %99 = vmatpush.bf16.msra.mxu0 0
    %100 = vmatpush.bf16.msra.mxu0 0
    %101 = vmatpush.bf16.msra.mxu0 0
    %102 = vmatpush.bf16.msra.mxu0 0
    %103 = vmatpush.bf16.msra.mxu0 0
    %104 = vmatpush.bf16.msra.mxu0 0
    %105 = vmatpush.bf16.msra.mxu0 %v93
    %106 = vmatpush.bf16.msra.mxu0 %v92
    %107 = vmatmul.bf16.gmra.mxu0 %v97
    %v108 = vpop.f32.mrf.mxu0
    %v109 = vadd.f32 %v80, %v108
    %v110 = vpop.f32.mrf.mxu0
    %111 = vdwg.mxu0
    %v112 = vld [vmem:[%s5] sm:$0xf]
    %v113 = vld [vmem:[%s5 + $0x4] sm:$0xf]
    %v114 = vld [vmem:[%s5 + $0x8] sm:$0xf]
    %v115 = vld [vmem:[%s5 + $0xc] sm:$0xf]
    %v116 = vpack.c.bf16 %v109, %v109
    %v117 = vld [vmem:[%s6] sm:$0x1]
    %v119 = vperm.slane %v117, 0
    %v125 = vunpack.c.l.b16 %v112
    %v126 = vunpack.c.l.b16 %v113
    %v127 = vunpack.c.l.b16 %v114
    %v128 = vunpack.c.l.b16 %v115
    %v129 = vpack.c.b16 %v126, %v125
    %v130 = vpack.c.b16 %v128, %v127
    %v134 = vsel %vm55, %v116, 0
    %136 = vmatpush.bf16.msra.mxu0 0
    %137 = vmatpush.bf16.msra.mxu0 0
    %138 = vmatpush.bf16.msra.mxu0 0
    %139 = vmatpush.bf16.msra.mxu0 0
    %140 = vmatpush.bf16.msra.mxu0 0
    %141 = vmatpush.bf16.msra.mxu0 0
    %142 = vmatpush.bf16.msra.mxu0 %v130
    %143 = vmatpush.bf16.msra.mxu0 %v129
    %144 = vmatmul.bf16.gmra.mxu0 %v134
    %v145 = vpop.f32.mrf.mxu0
    %v146 = vadd.f32 %v119, %v145
    %v147 = vpop.f32.mrf.mxu0
    %148 = vdwg.mxu0
    %v149 = vld [vmem:[%s7] sm:$0xf]
    %v150 = vld [vmem:[%s7 + $0x4] sm:$0xf]
    %v151 = vld [vmem:[%s7 + $0x8] sm:$0xf]
    %v152 = vld [vmem:[%s7 + $0xc] sm:$0xf]
    %v153 = vpack.c.bf16 %v146, %v146
    %v154 = vld [vmem:[%s8] sm:$0x1]
    %v156 = vperm.slane %v154, 0
    %v162 = vunpack.c.l.b16 %v149
    %v163 = vunpack.c.l.b16 %v150
    %v164 = vunpack.c.l.b16 %v151
    %v165 = vunpack.c.l.b16 %v152
    %v166 = vpack.c.b16 %v163, %v162
    %v167 = vpack.c.b16 %v165, %v164
    %v171 = vsel %vm55, %v153, 0
    %173 = vmatpush.bf16.msra.mxu0 0
    %174 = vmatpush.bf16.msra.mxu0 0
    %175 = vmatpush.bf16.msra.mxu0 0
    %176 = vmatpush.bf16.msra.mxu0 0
    %177 = vmatpush.bf16.msra.mxu0 0
    %178 = vmatpush.bf16.msra.mxu0 0
    %179 = vmatpush.bf16.msra.mxu0 %v167
    %180 = vmatpush.bf16.msra.mxu0 %v166
    %181 = vmatmul.bf16.gmra.mxu0 %v171
    %v182 = vpop.f32.mrf.mxu0
    %v183 = vadd.f32 %v156, %v182
    %v184 = vpop.f32.mrf.mxu0
    %185 = vdwg.mxu0
    %v186 = vmul.f32 %v72, %v183
    %vm187 = vcmask 254976
    %v188 = vsel %vm187, %v186, 0.0
    %189 = vadd.xlane.f32.xlu0 %v188
    %v190 = vpop.xlane.xlu0 %189
    %v191 = vsub.f32 1.0, %v190
    %vm192 = vcmask 7168
    %v193 = vsel %vm192, %v191, %v190
    %vm194 = vcmask 9216
    %v195 = vsel %vm194, %v193, -inf
    %196 = vmax.xlane.f32.xlu0 %v195
    %v197 = vpop.xlane.xlu0 %196
    %v198 = vsub.f32 %v193, %v197
    %v199 = vmul.f32 %v198, 1.442695
    %v200 = vpow.pop %v199
    %v201 = vsel %vm194, %v200, 0.0
    %202 = vadd.xlane.f32.xlu0 %v201
    %v203 = vpop.xlane.xlu0 %202
    %v204 = vrcp.pop %v203
    %v205 = vmul.f32 %v203, %v204
    %v206 = vsub.f32 1.0, %v205
    %v207 = vmul.f32 %v204, %v206
    %v208 = vadd.f32 %v204, %v207
    %vm209 = vweird.f32 %v203
    %vm210 = vweird.f32 %v204
    %vm211 = vmor %vm209, %vm210
    %v212 = vsel %vm211, %v204, %v208
    %v213 = vand.u32 2147483647, %v203
    %vm214 = vcmp.eq.f32.partialorder %v213, 8.507059e+37
    %v215 = vand.u32 %v203, 2147483648
    %v216 = vor.u32 1.1754944e-38, %v215
    %v217 = vsel %vm214, %v216, %v212
    %v218 = vmul.f32 %v200, %v217
    %219 = vst.msk [vmem:[#allocation2] sm:$0x3] %vm194, %v218
    // Predicated region
    $region38: #{siamese_bert_forward.5} parent=1 // pred_check
      _
    $region39: #{siamese_bert_forward.5} parent=1 // pred_check_branch
      %221 = sbr.rel (0) target = $region41
    $region40: #{siamese_bert_forward.5} parent=1 // pred_region
      %223 = vsyncadd [#allocation3], 0
      %s225 = sshll.u32 [#allocation2], 4
      %s226 = int_to_ptr.vmem [resolvable:$true] %s225
      %s227 = sshll.u32 %s9, 4
      %s228 = int_to_ptr.hbm [resolvable:$true] %s227
      %230 = dma.vmem_to_hbm [thread:$0]  %s226, 32, %s228, [#allocation3]
    $region41: #{siamese_bert_forward.5} parent=1 // pred_fallthru
      _
    // Predicated region
    $region42: #{siamese_bert_forward.5} parent=1 // pred_check
      _
    $region43: #{siamese_bert_forward.5} parent=1 // pred_check_branch
      %232 = sbr.rel (0) target = $region45
    $region44: #{siamese_bert_forward.5} parent=1 // pred_region
      %234 = dma.done [#allocation3], 32
    $region45: #{siamese_bert_forward.5} parent=1 // pred_fallthru
      _
    %235 = vsyncpa [#allocation3], 1

// kernel: siamese_bert_forward.3
$region0: #{siamese_bert_forward.3}
  #allocation0 [shape = 'u32[]', space=smem, size = 0x4, offset = 0x4, fixed_abs, tag = 'smem constant byte address 0x4 - core index']
  #allocation1 [shape = 'u32[72,128]{1,0:T(1,128)}', space=vmem, size = 0x9000, scoped, tag = 'internal scratch']
  %s0 = inlined_call_operand.vmem [shape: f32[4,8,32], index: 0, kind: input, shape index: {}]
  %s1 = inlined_call_operand.vmem [shape: f32[4,1,8], index: 1, kind: input, shape index: {}]
  %s2 = inlined_call_operand.vmem [shape: f32[1,32], index: 2, kind: input, shape index: {}]
  %s3 = inlined_call_operand.vmem [shape: f32[1,32], index: 3, kind: input, shape index: {}]
  %s4 = inlined_call_operand.vmem [shape: bf16[32,96], index: 4, kind: input, shape index: {}]
  %s5 = inlined_call_operand.vmem [shape: f32[1,96], index: 5, kind: input, shape index: {}]
  %s6 = inlined_call_operand.vmem [shape: bf16[32,32], index: 6, kind: input, shape index: {}]
  %s7 = inlined_call_operand.vmem [shape: f32[1,32], index: 7, kind: input, shape index: {}]
  %s8 = inlined_call_operand.vmem [shape: f32[1,32], index: 8, kind: input, shape index: {}]
  %s9 = inlined_call_operand.vmem [shape: f32[1,32], index: 9, kind: input, shape index: {}]
  %s10 = inlined_call_operand.vmem [shape: bf16[32,64], index: 10, kind: input, shape index: {}]
  %s11 = inlined_call_operand.vmem [shape: f32[1,64], index: 11, kind: input, shape index: {}]
  %s12 = inlined_call_operand.vmem [shape: bf16[64,32], index: 12, kind: input, shape index: {}]
  %s13 = inlined_call_operand.vmem [shape: f32[1,32], index: 13, kind: input, shape index: {}]
  %s14 = inlined_call_operand.vmem [shape: f32[1,32], index: 14, kind: input, shape index: {}]
  %s15 = inlined_call_operand.vmem [shape: f32[1,32], index: 15, kind: input, shape index: {}]
  %s16 = inlined_call_operand.vmem [shape: bf16[4,8,32], index: 16, kind: output, shape index: {}]
  %s17 = sld [smem:[#allocation0]]
  $region74: #{siamese_bert_forward.3} parent=0
    _
  %s19 = ssub.s32 1, %s17
  %s20 = scalar_select 0, %s19, %s17
  // Predicated region
  $region2: #{siamese_bert_forward.3} parent=0 // pred_check
    _
  $region3: #{siamese_bert_forward.3} parent=0 // pred_check_branch
    %22 = sbr.rel (0) target = $region5
  $region4: #{siamese_bert_forward.3} parent=0 // pred_region
    _
  $region5: #{siamese_bert_forward.3} parent=0 // pred_fallthru
    _
  // Predicated region
  $region6: #{siamese_bert_forward.3} parent=0 // pred_check
    _
  $region7: #{siamese_bert_forward.3} parent=0 // pred_check_branch
    %24 = sbr.rel (0) target = $region9
  $region8: #{siamese_bert_forward.3} parent=0 // pred_region
    _
  $region9: #{siamese_bert_forward.3} parent=0 // pred_fallthru
    _
  // Predicated region
  $region10: #{siamese_bert_forward.3} parent=0 // pred_check
    _
  $region11: #{siamese_bert_forward.3} parent=0 // pred_check_branch
    %26 = sbr.rel (0) target = $region13
  $region12: #{siamese_bert_forward.3} parent=0 // pred_region
    _
  $region13: #{siamese_bert_forward.3} parent=0 // pred_fallthru
    _
  // Predicated region
  $region14: #{siamese_bert_forward.3} parent=0 // pred_check
    _
  $region15: #{siamese_bert_forward.3} parent=0 // pred_check_branch
    %28 = sbr.rel (0) target = $region17
  $region16: #{siamese_bert_forward.3} parent=0 // pred_region
    _
  $region17: #{siamese_bert_forward.3} parent=0 // pred_fallthru
    _
  // Predicated region
  $region18: #{siamese_bert_forward.3} parent=0 // pred_check
    _
  $region19: #{siamese_bert_forward.3} parent=0 // pred_check_branch
    %30 = sbr.rel (0) target = $region21
  $region20: #{siamese_bert_forward.3} parent=0 // pred_region
    _
  $region21: #{siamese_bert_forward.3} parent=0 // pred_fallthru
    _
  // Predicated region
  $region22: #{siamese_bert_forward.3} parent=0 // pred_check
    _
  $region23: #{siamese_bert_forward.3} parent=0 // pred_check_branch
    %32 = sbr.rel (0) target = $region25
  $region24: #{siamese_bert_forward.3} parent=0 // pred_region
    _
  $region25: #{siamese_bert_forward.3} parent=0 // pred_fallthru
    _
  // Predicated region
  $region26: #{siamese_bert_forward.3} parent=0 // pred_check
    _
  $region27: #{siamese_bert_forward.3} parent=0 // pred_check_branch
    %34 = sbr.rel (0) target = $region29
  $region28: #{siamese_bert_forward.3} parent=0 // pred_region
    _
  $region29: #{siamese_bert_forward.3} parent=0 // pred_fallthru
    _
  // Predicated region
  $region30: #{siamese_bert_forward.3} parent=0 // pred_check
    _
  $region31: #{siamese_bert_forward.3} parent=0 // pred_check_branch
    %36 = sbr.rel (0) target = $region33
  $region32: #{siamese_bert_forward.3} parent=0 // pred_region
    _
  $region33: #{siamese_bert_forward.3} parent=0 // pred_fallthru
    _
  // Predicated region
  $region34: #{siamese_bert_forward.3} parent=0 // pred_check
    _
  $region35: #{siamese_bert_forward.3} parent=0 // pred_check_branch
    %38 = sbr.rel (0) target = $region37
  $region36: #{siamese_bert_forward.3} parent=0 // pred_region
    _
  $region37: #{siamese_bert_forward.3} parent=0 // pred_fallthru
    _
  // Predicated region
  $region38: #{siamese_bert_forward.3} parent=0 // pred_check
    _
  $region39: #{siamese_bert_forward.3} parent=0 // pred_check_branch
    %40 = sbr.rel (0) target = $region41
  $region40: #{siamese_bert_forward.3} parent=0 // pred_region
    _
  $region41: #{siamese_bert_forward.3} parent=0 // pred_fallthru
    _
  // Predicated region
  $region42: #{siamese_bert_forward.3} parent=0 // pred_check
    _
  $region43: #{siamese_bert_forward.3} parent=0 // pred_check_branch
    %42 = sbr.rel (0) target = $region45
  $region44: #{siamese_bert_forward.3} parent=0 // pred_region
    _
  $region45: #{siamese_bert_forward.3} parent=0 // pred_fallthru
    _
  // Predicated region
  $region46: #{siamese_bert_forward.3} parent=0 // pred_check
    _
  $region47: #{siamese_bert_forward.3} parent=0 // pred_check_branch
    %44 = sbr.rel (0) target = $region49
  $region48: #{siamese_bert_forward.3} parent=0 // pred_region
    _
  $region49: #{siamese_bert_forward.3} parent=0 // pred_fallthru
    _
  // Predicated region
  $region50: #{siamese_bert_forward.3} parent=0 // pred_check
    _
  $region51: #{siamese_bert_forward.3} parent=0 // pred_check_branch
    %46 = sbr.rel (0) target = $region53
  $region52: #{siamese_bert_forward.3} parent=0 // pred_region
    _
  $region53: #{siamese_bert_forward.3} parent=0 // pred_fallthru
    _
  // Predicated region
  $region54: #{siamese_bert_forward.3} parent=0 // pred_check
    _
  $region55: #{siamese_bert_forward.3} parent=0 // pred_check_branch
    %48 = sbr.rel (0) target = $region57
  $region56: #{siamese_bert_forward.3} parent=0 // pred_region
    _
  $region57: #{siamese_bert_forward.3} parent=0 // pred_fallthru
    _
  // Predicated region
  $region58: #{siamese_bert_forward.3} parent=0 // pred_check
    _
  $region59: #{siamese_bert_forward.3} parent=0 // pred_check_branch
    %50 = sbr.rel (0) target = $region61
  $region60: #{siamese_bert_forward.3} parent=0 // pred_region
    _
  $region61: #{siamese_bert_forward.3} parent=0 // pred_fallthru
    _
  // Predicated region
  $region62: #{siamese_bert_forward.3} parent=0 // pred_check
    _
  $region63: #{siamese_bert_forward.3} parent=0 // pred_check_branch
    %52 = sbr.rel (0) target = $region65
  $region64: #{siamese_bert_forward.3} parent=0 // pred_region
    _
  $region65: #{siamese_bert_forward.3} parent=0 // pred_fallthru
    _
  %v54 = vld [vmem:[%s0] sm:$0xff]
  %v55 = vld [vmem:[%s0 + $0x8] sm:$0xff]
  %v56 = vld [vmem:[%s0 + $0x10] sm:$0xff]
  %v57 = vld [vmem:[%s0 + $0x18] sm:$0xff]
  %v58 = vld [vmem:[%s2] sm:$0x1]
  %v59 = vld [vmem:[%s3] sm:$0x1]
  %vm60 = vcmask 261120
  %v61 = vsel %vm60, %v54, 0.0
  %62 = vadd.xlane.f32.xlu0 %v61
  %v63 = vpop.xlane.xlu0 %62
  %v64 = vsel %vm60, %v55, 0.0
  %65 = vadd.xlane.f32.xlu0 %v64
  %v66 = vpop.xlane.xlu0 %65
  %v67 = vsel %vm60, %v56, 0.0
  %68 = vadd.xlane.f32.xlu0 %v67
  %v69 = vpop.xlane.xlu0 %68
  %v70 = vsel %vm60, %v57, 0.0
  %71 = vadd.xlane.f32.xlu0 %v70
  %v72 = vpop.xlane.xlu0 %71
  %v73 = vrcp.pop 32.0
  %v74 = vmul.f32 32.0, %v73
  %v75 = vsub.f32 1.0, %v74
  %v76 = vmul.f32 %v73, %v75
  %v77 = vadd.f32 %v73, %v76
  %vm78 = vweird.f32 %v73
  %v79 = vsel %vm78, %v73, %v77
  %v80 = vmul.f32 %v63, %v79
  %v81 = vmul.f32 %v66, %v79
  %v82 = vmul.f32 %v69, %v79
  %v83 = vmul.f32 %v72, %v79
  %v84 = vsub.f32 %v54, %v80
  %v85 = vsub.f32 %v55, %v81
  %v86 = vsub.f32 %v56, %v82
  %v87 = vsub.f32 %v57, %v83
  %v88 = vmul.f32 %v84, %v84
  %v89 = vmul.f32 %v85, %v85
  %v90 = vmul.f32 %v86, %v86
  %v91 = vmul.f32 %v87, %v87
  %v92 = vsel %vm60, %v88, 0.0
  %93 = vadd.xlane.f32.xlu0 %v92
  %v94 = vpop.xlane.xlu0 %93
  %v95 = vsel %vm60, %v89, 0.0
  %96 = vadd.xlane.f32.xlu0 %v95
  %v97 = vpop.xlane.xlu0 %96
  %v98 = vsel %vm60, %v90, 0.0
  %99 = vadd.xlane.f32.xlu0 %v98
  %v100 = vpop.xlane.xlu0 %99
  %v101 = vsel %vm60, %v91, 0.0
  %102 = vadd.xlane.f32.xlu0 %v101
  %v103 = vpop.xlane.xlu0 %102
  %v104 = vmul.f32 %v94, %v79
  %v105 = vmul.f32 %v97, %v79
  %v106 = vmul.f32 %v100, %v79
  %v107 = vmul.f32 %v103, %v79
  %v108 = vadd.f32 %v104, 1e-12
  %v109 = vadd.f32 %v105, 1e-12
  %v110 = vadd.f32 %v106, 1e-12
  %v111 = vadd.f32 %v107, 1e-12
  %v112 = vrsqrt.pop %v108
  %v113 = vmul.f32 %v112, %v108
  %v114 = vmul.f32 %v113, %v112
  %v115 = vmul.f32 0.5, %v114
  %v116 = vsub.f32 1.5, %v115
  %v117 = vmul.f32 %v112, %v116
  %vm118 = vweird.f32 %v108
  %vm119 = vweird.f32 %v112
  %vm120 = vmor %vm118, %vm119
  %v121 = vsel %vm120, %v112, %v117
  %v122 = vrsqrt.pop %v109
  %v123 = vmul.f32 %v122, %v109
  %v124 = vmul.f32 %v123, %v122
  %v125 = vmul.f32 0.5, %v124
  %v126 = vsub.f32 1.5, %v125
  %v127 = vmul.f32 %v122, %v126
  %vm128 = vweird.f32 %v109
  %vm129 = vweird.f32 %v122
  %vm130 = vmor %vm128, %vm129
  %v131 = vsel %vm130, %v122, %v127
  %v132 = vrsqrt.pop %v110
  %v133 = vmul.f32 %v132, %v110
  %v134 = vmul.f32 %v133, %v132
  %v135 = vmul.f32 0.5, %v134
  %v136 = vsub.f32 1.5, %v135
  %v137 = vmul.f32 %v132, %v136
  %vm138 = vweird.f32 %v110
  %vm139 = vweird.f32 %v132
  %vm140 = vmor %vm138, %vm139
  %v141 = vsel %vm140, %v132, %v137
  %v142 = vrsqrt.pop %v111
  %v143 = vmul.f32 %v142, %v111
  %v144 = vmul.f32 %v143, %v142
  %v145 = vmul.f32 0.5, %v144
  %v146 = vsub.f32 1.5, %v145
  %v147 = vmul.f32 %v142, %v146
  %vm148 = vweird.f32 %v111
  %vm149 = vweird.f32 %v142
  %vm150 = vmor %vm148, %vm149
  %v151 = vsel %vm150, %v142, %v147
  %v152 = vmul.f32 %v84, %v121
  %v153 = vmul.f32 %v85, %v131
  %v154 = vmul.f32 %v86, %v141
  %v155 = vmul.f32 %v87, %v151
  %v157 = vperm.slane %v58, 0
  %v159 = vmul.f32 %v152, %v157
  %v160 = vmul.f32 %v153, %v157
  %v161 = vmul.f32 %v154, %v157
  %v162 = vmul.f32 %v155, %v157
  %v164 = vperm.slane %v59, 0
  %v166 = vadd.f32 %v159, %v164
  %v167 = vadd.f32 %v160, %v164
  %v168 = vadd.f32 %v161, %v164
  %v169 = vadd.f32 %v162, %v164
  %v170 = vld [vmem:[%s4] sm:$0xf]
  %v171 = vld [vmem:[%s4 + $0x4] sm:$0xf]
  %v172 = vld [vmem:[%s4 + $0x8] sm:$0xf]
  %v173 = vld [vmem:[%s4 + $0xc] sm:$0xf]
  %v174 = vpack.c.bf16 %v167, %v166
  %v175 = vpack.c.bf16 %v169, %v168
  %v176 = vld [vmem:[%s5] sm:$0x1]
  %v178 = vperm.slane %v176, 0
  %v184 = vunpack.c.l.b16 %v170
  %v185 = vunpack.c.l.b16 %v171
  %v186 = vunpack.c.l.b16 %v172
  %v187 = vunpack.c.l.b16 %v173
  %v188 = vpack.c.b16 %v185, %v184
  %v189 = vpack.c.b16 %v187, %v186
  %v193 = vsel %vm60, %v174, 0
  %v196 = vsel %vm60, %v175, 0
  %198 = vmatpush.bf16.msra.mxu0 0
  %199 = vmatpush.bf16.msra.mxu0 0
  %200 = vmatpush.bf16.msra.mxu0 0
  %201 = vmatpush.bf16.msra.mxu0 0
  %202 = vmatpush.bf16.msra.mxu0 0
  %203 = vmatpush.bf16.msra.mxu0 0
  %204 = vmatpush.bf16.msra.mxu0 %v189
  %205 = vmatpush.bf16.msra.mxu0 %v188
  %206 = vmatmul.bf16.gmra.mxu0 %v193
  %v207 = vpop.f32.mrf.mxu0
  %v208 = vadd.f32 %v178, %v207
  %v209 = vpop.f32.mrf.mxu0
  %v210 = vadd.f32 %v178, %v209
  %211 = vmatmul.bf16.gmra.mxu0 %v196
  %v212 = vpop.f32.mrf.mxu0
  %v213 = vadd.f32 %v178, %v212
  %v214 = vpop.f32.mrf.mxu0
  %v215 = vadd.f32 %v178, %v214
  %216 = vdwg.mxu0
  %v217 = vmul.f32 %v208, 0.35355338
  %v218 = vmul.f32 %v210, 0.35355338
  %v219 = vmul.f32 %v213, 0.35355338
  %v220 = vmul.f32 %v215, 0.35355338
  %v221 = vpack.c.bf16 %v217, %v217
  %v222 = vpack.c.bf16 %v218, %v218
  %v223 = vpack.c.bf16 %v219, %v219
  %v224 = vpack.c.bf16 %v220, %v220
  %v225 = vpack.c.bf16 %v208, %v208
  %v226 = vpack.c.bf16 %v210, %v210
  %v227 = vpack.c.bf16 %v213, %v213
  %v228 = vpack.c.bf16 %v215, %v215
  %230 = vrot.lane.b32.xlu0 %v221, 120
  %v231 = vpop.permute.xlu0 %230
  %232 = vrot.lane.b32.xlu0 %v221, 112
  %v233 = vpop.permute.xlu0 %232
  %234 = vrot.lane.b32.xlu0 %v221, 104
  %v235 = vpop.permute.xlu0 %234
  %v238 = vpack.i.b16 %v231, %v221
  %v239 = vshrl.u32 %v221, 16
  %v240 = vshrl.u32 %v231, 16
  %v241 = vpack.i.b16 %v240, %v239
  %v244 = vpack.i.b16 %v235, %v233
  %v245 = vshrl.u32 %v233, 16
  %v246 = vshrl.u32 %v235, 16
  %v247 = vpack.i.b16 %v246, %v245
  %v250 = vunpack.c.l.s4 1983009808
  %v251 = vunpack.c.0.s8 %v250
  %v252 = vperm.slane %v238, %v251
  %v255 = vunpack.c.l.s4 1983009808
  %v256 = vunpack.c.0.s8 %v255
  %v257 = vperm.slane %v244, %v256
  %v258 = vrot.slane %v257, 4
  %vm259 = vcmask 1047556
  %v260 = vsel %vm259, %v258, %v252
  %v261 = vrot.slane %v252, 4
  %v262 = vsel %vm259, %v257, %v261
  %v264 = vunpack.c.l.s4 1934713408
  %v265 = vunpack.c.0.s8 %v264
  %v266 = vperm.slane %v260, %v265
  %v268 = vunpack.c.l.s4 1934713408
  %v269 = vunpack.c.0.s8 %v268
  %v270 = vperm.slane %v262, %v269
  %v271 = vrot.slane %v266, 4
  %v272 = vsel %vm259, 0, %v271
  %v273 = vrot.slane %v270, 4
  %v274 = vsel %vm259, 0, %v273
  %v277 = vunpack.c.l.s4 1983009808
  %v278 = vunpack.c.0.s8 %v277
  %v279 = vperm.slane %v241, %v278
  %v282 = vunpack.c.l.s4 1983009808
  %v283 = vunpack.c.0.s8 %v282
  %v284 = vperm.slane %v247, %v283
  %v285 = vrot.slane %v284, 4
  %v286 = vsel %vm259, %v285, %v279
  %v287 = vrot.slane %v279, 4
  %v288 = vsel %vm259, %v284, %v287
  %v290 = vunpack.c.l.s4 1934713408
  %v291 = vunpack.c.0.s8 %v290
  %v292 = vperm.slane %v286, %v291
  %v294 = vunpack.c.l.s4 1934713408
  %v295 = vunpack.c.0.s8 %v294
  %v296 = vperm.slane %v288, %v295
  %v297 = vrot.slane %v292, 4
  %v298 = vsel %vm259, 0, %v297
  %v299 = vrot.slane %v296, 4
  %v300 = vsel %vm259, 0, %v299
  %v301 = vsel %vm259, %v273, %v266
  %v303 = vunpack.c.l.s4 1983009808
  %v304 = vunpack.c.0.s8 %v303
  %v305 = vperm.slane %v301, %v304
  %v306 = vrot.slane %v274, 4
  %v307 = vsel %vm259, %v306, %v272
  %v309 = vunpack.c.l.s4 1983009808
  %v310 = vunpack.c.0.s8 %v309
  %v311 = vperm.slane %v307, %v310
  %v312 = vrot.slane %v311, 4
  %v313 = vsel %vm259, %v312, %v305
  %v315 = vunpack.c.l.s4 1934713408
  %v316 = vunpack.c.0.s8 %v315
  %v317 = vperm.slane %v313, %v316
  %v318 = vrot.slane %v317, 4
  %v319 = vsel %vm259, 0, %v318
  %v320 = vsel %vm259, %v299, %v292
  %v322 = vunpack.c.l.s4 1983009808
  %v323 = vunpack.c.0.s8 %v322
  %v324 = vperm.slane %v320, %v323
  %v325 = vrot.slane %v300, 4
  %v326 = vsel %vm259, %v325, %v298
  %v328 = vunpack.c.l.s4 1983009808
  %v329 = vunpack.c.0.s8 %v328
  %v330 = vperm.slane %v326, %v329
  %v331 = vrot.slane %v330, 4
  %v332 = vsel %vm259, %v331, %v324
  %v334 = vunpack.c.l.s4 1934713408
  %v335 = vunpack.c.0.s8 %v334
  %v336 = vperm.slane %v332, %v335
  %v337 = vrot.slane %v336, 4
  %v338 = vsel %vm259, 0, %v337
  %v341 = vpack.i.b16 %v336, %v317
  %v342 = vshrl.u32 %v317, 16
  %v343 = vshrl.u32 %v336, 16
  %v344 = vpack.i.b16 %v343, %v342
  %v347 = vpack.i.b16 %v338, %v319
  %v348 = vshrl.u32 %v319, 16
  %v349 = vshrl.u32 %v338, 16
  %v350 = vpack.i.b16 %v349, %v348
  %352 = vrot.lane.b32.xlu0 %v225, 120
  %v353 = vpop.permute.xlu0 %352
  %354 = vrot.lane.b32.xlu0 %v225, 112
  %v355 = vpop.permute.xlu0 %354
  %356 = vrot.lane.b32.xlu0 %v225, 104
  %v357 = vpop.permute.xlu0 %356
  %358 = vrot.lane.b32.xlu0 %v225, 96
  %v359 = vpop.permute.xlu0 %358
  %360 = vrot.lane.b32.xlu0 %v353, 96
  %v361 = vpop.permute.xlu0 %360
  %362 = vrot.lane.b32.xlu0 %v355, 96
  %v363 = vpop.permute.xlu0 %362
  %364 = vrot.lane.b32.xlu0 %v357, 96
  %v365 = vpop.permute.xlu0 %364
  %v368 = vpack.i.b16 %v361, %v359
  %v369 = vshrl.u32 %v359, 16
  %v370 = vshrl.u32 %v361, 16
  %v371 = vpack.i.b16 %v370, %v369
  %v374 = vpack.i.b16 %v365, %v363
  %v375 = vshrl.u32 %v363, 16
  %v376 = vshrl.u32 %v365, 16
  %v377 = vpack.i.b16 %v376, %v375
  %v380 = vunpack.c.l.s4 1983009808
  %v381 = vunpack.c.0.s8 %v380
  %v382 = vperm.slane %v368, %v381
  %v385 = vunpack.c.l.s4 1983009808
  %v386 = vunpack.c.0.s8 %v385
  %v387 = vperm.slane %v374, %v386
  %v388 = vrot.slane %v387, 4
  %v389 = vsel %vm259, %v388, %v382
  %v390 = vrot.slane %v382, 4
  %v391 = vsel %vm259, %v387, %v390
  %v393 = vunpack.c.l.s4 1934713408
  %v394 = vunpack.c.0.s8 %v393
  %v395 = vperm.slane %v389, %v394
  %v397 = vunpack.c.l.s4 1934713408
  %v398 = vunpack.c.0.s8 %v397
  %v399 = vperm.slane %v391, %v398
  %v400 = vrot.slane %v395, 4
  %v401 = vsel %vm259, 0, %v400
  %v402 = vrot.slane %v399, 4
  %v403 = vsel %vm259, 0, %v402
  %v406 = vunpack.c.l.s4 1983009808
  %v407 = vunpack.c.0.s8 %v406
  %v408 = vperm.slane %v371, %v407
  %v411 = vunpack.c.l.s4 1983009808
  %v412 = vunpack.c.0.s8 %v411
  %v413 = vperm.slane %v377, %v412
  %v414 = vrot.slane %v413, 4
  %v415 = vsel %vm259, %v414, %v408
  %v416 = vrot.slane %v408, 4
  %v417 = vsel %vm259, %v413, %v416
  %v419 = vunpack.c.l.s4 1934713408
  %v420 = vunpack.c.0.s8 %v419
  %v421 = vperm.slane %v415, %v420
  %v423 = vunpack.c.l.s4 1934713408
  %v424 = vunpack.c.0.s8 %v423
  %v425 = vperm.slane %v417, %v424
  %v426 = vrot.slane %v421, 4
  %v427 = vsel %vm259, 0, %v426
  %v428 = vrot.slane %v425, 4
  %v429 = vsel %vm259, 0, %v428
  %v430 = vsel %vm259, %v402, %v395
  %v432 = vunpack.c.l.s4 1983009808
  %v433 = vunpack.c.0.s8 %v432
  %v434 = vperm.slane %v430, %v433
  %v435 = vrot.slane %v403, 4
  %v436 = vsel %vm259, %v435, %v401
  %v438 = vunpack.c.l.s4 1983009808
  %v439 = vunpack.c.0.s8 %v438
  %v440 = vperm.slane %v436, %v439
  %v441 = vrot.slane %v440, 4
  %v442 = vsel %vm259, %v441, %v434
  %v444 = vunpack.c.l.s4 1934713408
  %v445 = vunpack.c.0.s8 %v444
  %v446 = vperm.slane %v442, %v445
  %v447 = vrot.slane %v446, 4
  %v448 = vsel %vm259, 0, %v447
  %v449 = vsel %vm259, %v428, %v421
  %v451 = vunpack.c.l.s4 1983009808
  %v452 = vunpack.c.0.s8 %v451
  %v453 = vperm.slane %v449, %v452
  %v454 = vrot.slane %v429, 4
  %v455 = vsel %vm259, %v454, %v427
  %v457 = vunpack.c.l.s4 1983009808
  %v458 = vunpack.c.0.s8 %v457
  %v459 = vperm.slane %v455, %v458
  %v460 = vrot.slane %v459, 4
  %v461 = vsel %vm259, %v460, %v453
  %v463 = vunpack.c.l.s4 1934713408
  %v464 = vunpack.c.0.s8 %v463
  %v465 = vperm.slane %v461, %v464
  %v466 = vrot.slane %v465, 4
  %v467 = vsel %vm259, 0, %v466
  %v470 = vpack.i.b16 %v465, %v446
  %v471 = vshrl.u32 %v446, 16
  %v472 = vshrl.u32 %v465, 16
  %v473 = vpack.i.b16 %v472, %v471
  %v476 = vpack.i.b16 %v467, %v448
  %v477 = vshrl.u32 %v448, 16
  %v478 = vshrl.u32 %v467, 16
  %v479 = vpack.i.b16 %v478, %v477
  %480 = vrot.lane.b32.xlu0 %v225, 64
  %v481 = vpop.permute.xlu0 %480
  %482 = vrot.lane.b32.xlu0 %v353, 64
  %v483 = vpop.permute.xlu0 %482
  %484 = vrot.lane.b32.xlu0 %v355, 64
  %v485 = vpop.permute.xlu0 %484
  %486 = vrot.lane.b32.xlu0 %v357, 64
  %v487 = vpop.permute.xlu0 %486
  %v490 = vpack.i.b16 %v483, %v481
  %v491 = vshrl.u32 %v481, 16
  %v492 = vshrl.u32 %v483, 16
  %v493 = vpack.i.b16 %v492, %v491
  %v496 = vpack.i.b16 %v487, %v485
  %v497 = vshrl.u32 %v485, 16
  %v498 = vshrl.u32 %v487, 16
  %v499 = vpack.i.b16 %v498, %v497
  %v502 = vunpack.c.l.s4 1983009808
  %v503 = vunpack.c.0.s8 %v502
  %v504 = vperm.slane %v490, %v503
  %v507 = vunpack.c.l.s4 1983009808
  %v508 = vunpack.c.0.s8 %v507
  %v509 = vperm.slane %v496, %v508
  %v510 = vrot.slane %v509, 4
  %v511 = vsel %vm259, %v510, %v504
  %v512 = vrot.slane %v504, 4
  %v513 = vsel %vm259, %v509, %v512
  %v515 = vunpack.c.l.s4 1934713408
  %v516 = vunpack.c.0.s8 %v515
  %v517 = vperm.slane %v511, %v516
  %v519 = vunpack.c.l.s4 1934713408
  %v520 = vunpack.c.0.s8 %v519
  %v521 = vperm.slane %v513, %v520
  %v522 = vrot.slane %v517, 4
  %v523 = vsel %vm259, 0, %v522
  %v524 = vrot.slane %v521, 4
  %v525 = vsel %vm259, 0, %v524
  %v528 = vunpack.c.l.s4 1983009808
  %v529 = vunpack.c.0.s8 %v528
  %v530 = vperm.slane %v493, %v529
  %v533 = vunpack.c.l.s4 1983009808
  %v534 = vunpack.c.0.s8 %v533
  %v535 = vperm.slane %v499, %v534
  %v536 = vrot.slane %v535, 4
  %v537 = vsel %vm259, %v536, %v530
  %v538 = vrot.slane %v530, 4
  %v539 = vsel %vm259, %v535, %v538
  %v541 = vunpack.c.l.s4 1934713408
  %v542 = vunpack.c.0.s8 %v541
  %v543 = vperm.slane %v537, %v542
  %v545 = vunpack.c.l.s4 1934713408
  %v546 = vunpack.c.0.s8 %v545
  %v547 = vperm.slane %v539, %v546
  %v548 = vrot.slane %v543, 4
  %v549 = vsel %vm259, 0, %v548
  %v550 = vrot.slane %v547, 4
  %v551 = vsel %vm259, 0, %v550
  %v552 = vsel %vm259, %v524, %v517
  %v554 = vunpack.c.l.s4 1983009808
  %v555 = vunpack.c.0.s8 %v554
  %v556 = vperm.slane %v552, %v555
  %v557 = vrot.slane %v525, 4
  %v558 = vsel %vm259, %v557, %v523
  %v560 = vunpack.c.l.s4 1983009808
  %v561 = vunpack.c.0.s8 %v560
  %v562 = vperm.slane %v558, %v561
  %v563 = vrot.slane %v562, 4
  %v564 = vsel %vm259, %v563, %v556
  %v566 = vunpack.c.l.s4 1934713408
  %v567 = vunpack.c.0.s8 %v566
  %v568 = vperm.slane %v564, %v567
  %v569 = vrot.slane %v568, 4
  %v570 = vsel %vm259, 0, %v569
  %v571 = vsel %vm259, %v550, %v543
  %v573 = vunpack.c.l.s4 1983009808
  %v574 = vunpack.c.0.s8 %v573
  %v575 = vperm.slane %v571, %v574
  %v576 = vrot.slane %v551, 4
  %v577 = vsel %vm259, %v576, %v549
  %v579 = vunpack.c.l.s4 1983009808
  %v580 = vunpack.c.0.s8 %v579
  %v581 = vperm.slane %v577, %v580
  %v582 = vrot.slane %v581, 4
  %v583 = vsel %vm259, %v582, %v575
  %v585 = vunpack.c.l.s4 1934713408
  %v586 = vunpack.c.0.s8 %v585
  %v587 = vperm.slane %v583, %v586
  %v588 = vrot.slane %v587, 4
  %v589 = vsel %vm259, 0, %v588
  %v592 = vpack.i.b16 %v587, %v568
  %v593 = vshrl.u32 %v568, 16
  %v594 = vshrl.u32 %v587, 16
  %v595 = vpack.i.b16 %v594, %v593
  %v598 = vpack.i.b16 %v589, %v570
  %v599 = vshrl.u32 %v570, 16
  %v600 = vshrl.u32 %v589, 16
  %v601 = vpack.i.b16 %v600, %v599
  %v602 = vld [vmem:[%s1] sm:$0x1]
  %v604 = vperm.slane %v602, 0
  %vm606 = vcmask 64512
  %v608 = vsel %vm606, %v341, 0
  %v611 = vsel %vm606, %v470, 0
  %613 = vmatpush.bf16.xpose.msra.mxu0 0
  %614 = vmatpush.bf16.xpose.msra.mxu0 0
  %615 = vmatpush.bf16.xpose.msra.mxu0 0
  %616 = vmatpush.bf16.xpose.msra.mxu0 0
  %617 = vmatpush.bf16.xpose.msra.mxu0 0
  %618 = vmatpush.bf16.xpose.msra.mxu0 0
  %619 = vmatpush.bf16.xpose.msra.mxu0 0
  %620 = vmatpush.bf16.xpose.msra.mxu0 %v611
  %621 = vmatmul.bf16.gmra.mxu0 %v608
  %v622 = vpop.f32.mrf.mxu0
  %v623 = vadd.f32 %v604, %v622
  %v624 = vpop.f32.mrf.mxu0
  %625 = vdwg.mxu0
  %v627 = vsel %vm606, %v344, 0
  %v630 = vsel %vm606, %v473, 0
  %632 = vmatpush.bf16.xpose.msra.mxu0 0
  %633 = vmatpush.bf16.xpose.msra.mxu0 0
  %634 = vmatpush.bf16.xpose.msra.mxu0 0
  %635 = vmatpush.bf16.xpose.msra.mxu0 0
  %636 = vmatpush.bf16.xpose.msra.mxu0 0
  %637 = vmatpush.bf16.xpose.msra.mxu0 0
  %638 = vmatpush.bf16.xpose.msra.mxu0 0
  %639 = vmatpush.bf16.xpose.msra.mxu0 %v630
  %640 = vmatmul.bf16.gmra.mxu0 %v627
  %v641 = vpop.f32.mrf.mxu0
  %v642 = vadd.f32 %v604, %v641
  %v643 = vpop.f32.mrf.mxu0
  %644 = vdwg.mxu0
  %v646 = vsel %vm606, %v347, 0
  %v649 = vsel %vm606, %v476, 0
  %651 = vmatpush.bf16.xpose.msra.mxu0 0
  %652 = vmatpush.bf16.xpose.msra.mxu0 0
  %653 = vmatpush.bf16.xpose.msra.mxu0 0
  %654 = vmatpush.bf16.xpose.msra.mxu0 0
  %655 = vmatpush.bf16.xpose.msra.mxu0 0
  %656 = vmatpush.bf16.xpose.msra.mxu0 0
  %657 = vmatpush.bf16.xpose.msra.mxu0 0
  %658 = vmatpush.bf16.xpose.msra.mxu0 %v649
  %659 = vmatmul.bf16.gmra.mxu0 %v646
  %v660 = vpop.f32.mrf.mxu0
  %v661 = vadd.f32 %v604, %v660
  %v662 = vpop.f32.mrf.mxu0
  %663 = vdwg.mxu0
  %v665 = vsel %vm606, %v350, 0
  %v668 = vsel %vm606, %v479, 0
  %670 = vmatpush.bf16.xpose.msra.mxu0 0
  %671 = vmatpush.bf16.xpose.msra.mxu0 0
  %672 = vmatpush.bf16.xpose.msra.mxu0 0
  %673 = vmatpush.bf16.xpose.msra.mxu0 0
  %674 = vmatpush.bf16.xpose.msra.mxu0 0
  %675 = vmatpush.bf16.xpose.msra.mxu0 0
  %676 = vmatpush.bf16.xpose.msra.mxu0 0
  %677 = vmatpush.bf16.xpose.msra.mxu0 %v668
  %678 = vmatmul.bf16.gmra.mxu0 %v665
  %v679 = vpop.f32.mrf.mxu0
  %v680 = vadd.f32 %v604, %v679
  %v681 = vpop.f32.mrf.mxu0
  %682 = vdwg.mxu0
  %v683 = vsel %vm606, %v623, -inf
  %684 = vmax.xlane.f32.xlu0 %v683
  %v685 = vpop.xlane.xlu0 %684
  %v686 = vsel %vm606, %v642, -inf
  %687 = vmax.xlane.f32.xlu0 %v686
  %v688 = vpop.xlane.xlu0 %687
  %v689 = vsel %vm606, %v661, -inf
  %690 = vmax.xlane.f32.xlu0 %v689
  %v691 = vpop.xlane.xlu0 %690
  %v692 = vsel %vm606, %v680, -inf
  %693 = vmax.xlane.f32.xlu0 %v692
  %v694 = vpop.xlane.xlu0 %693
  %v695 = vsub.f32 %v623, %v685
  %v696 = vsub.f32 %v642, %v688
  %v697 = vsub.f32 %v661, %v691
  %v698 = vsub.f32 %v680, %v694
  %v699 = vmul.f32 %v695, 1.442695
  %v700 = vpow.pop %v699
  %v701 = vmul.f32 %v696, 1.442695
  %v702 = vpow.pop %v701
  %v703 = vmul.f32 %v697, 1.442695
  %v704 = vpow.pop %v703
  %v705 = vmul.f32 %v698, 1.442695
  %v706 = vpow.pop %v705
  %v707 = vsel %vm606, %v700, 0.0
  %708 = vadd.xlane.f32.xlu0 %v707
  %v709 = vpop.xlane.xlu0 %708
  %v710 = vsel %vm606, %v702, 0.0
  %711 = vadd.xlane.f32.xlu0 %v710
  %v712 = vpop.xlane.xlu0 %711
  %v713 = vsel %vm606, %v704, 0.0
  %714 = vadd.xlane.f32.xlu0 %v713
  %v715 = vpop.xlane.xlu0 %714
  %v716 = vsel %vm606, %v706, 0.0
  %717 = vadd.xlane.f32.xlu0 %v716
  %v718 = vpop.xlane.xlu0 %717
  %v719 = vrcp.pop %v709
  %v720 = vrcp.pop %v712
  %v721 = vrcp.pop %v715
  %v722 = vrcp.pop %v718
  %v723 = vmul.f32 %v700, %v719
  %v724 = vmul.f32 %v702, %v720
  %v725 = vmul.f32 %v704, %v721
  %v726 = vmul.f32 %v706, %v722
  %v727 = vpack.c.bf16 %v723, %v723
  %v728 = vpack.c.bf16 %v724, %v724
  %v729 = vpack.c.bf16 %v725, %v725
  %v730 = vpack.c.bf16 %v726, %v726
  %v732 = vsel %vm606, %v727, 0
  %vm734 = vcmask 1043456
  %v736 = vsel %vm734, %v592, 0
  %738 = vmatpush.bf16.msra.mxu0 0
  %739 = vmatpush.bf16.msra.mxu0 0
  %740 = vmatpush.bf16.msra.mxu0 0
  %741 = vmatpush.bf16.msra.mxu0 0
  %742 = vmatpush.bf16.msra.mxu0 0
  %743 = vmatpush.bf16.msra.mxu0 0
  %744 = vmatpush.bf16.msra.mxu0 0
  %745 = vmatpush.bf16.msra.mxu0 %v736
  %746 = vmatmul.bf16.gmra.mxu0 %v732
  %v747 = vpop.f32.mrf.mxu0
  %v748 = vadd.f32 0.0, %v747
  %v749 = vpop.f32.mrf.mxu0
  %750 = vdwg.mxu0
  %v752 = vsel %vm606, %v728, 0
  %v755 = vsel %vm734, %v595, 0
  %757 = vmatpush.bf16.msra.mxu0 0
  %758 = vmatpush.bf16.msra.mxu0 0
  %759 = vmatpush.bf16.msra.mxu0 0
  %760 = vmatpush.bf16.msra.mxu0 0
  %761 = vmatpush.bf16.msra.mxu0 0
  %762 = vmatpush.bf16.msra.mxu0 0
  %763 = vmatpush.bf16.msra.mxu0 0
  %764 = vmatpush.bf16.msra.mxu0 %v755
  %765 = vmatmul.bf16.gmra.mxu0 %v752
  %v766 = vpop.f32.mrf.mxu0
  %v767 = vadd.f32 0.0, %v766
  %v768 = vpop.f32.mrf.mxu0
  %769 = vdwg.mxu0
  %v771 = vsel %vm606, %v729, 0
  %v774 = vsel %vm734, %v598, 0
  %776 = vmatpush.bf16.msra.mxu0 0
  %777 = vmatpush.bf16.msra.mxu0 0
  %778 = vmatpush.bf16.msra.mxu0 0
  %779 = vmatpush.bf16.msra.mxu0 0
  %780 = vmatpush.bf16.msra.mxu0 0
  %781 = vmatpush.bf16.msra.mxu0 0
  %782 = vmatpush.bf16.msra.mxu0 0
  %783 = vmatpush.bf16.msra.mxu0 %v774
  %784 = vmatmul.bf16.gmra.mxu0 %v771
  %v785 = vpop.f32.mrf.mxu0
  %v786 = vadd.f32 0.0, %v785
  %v787 = vpop.f32.mrf.mxu0
  %788 = vdwg.mxu0
  %v790 = vsel %vm606, %v730, 0
  %v793 = vsel %vm734, %v601, 0
  %795 = vmatpush.bf16.msra.mxu0 0
  %796 = vmatpush.bf16.msra.mxu0 0
  %797 = vmatpush.bf16.msra.mxu0 0
  %798 = vmatpush.bf16.msra.mxu0 0
  %799 = vmatpush.bf16.msra.mxu0 0
  %800 = vmatpush.bf16.msra.mxu0 0
  %801 = vmatpush.bf16.msra.mxu0 0
  %802 = vmatpush.bf16.msra.mxu0 %v793
  %803 = vmatmul.bf16.gmra.mxu0 %v790
  %v804 = vpop.f32.mrf.mxu0
  %v805 = vadd.f32 0.0, %v804
  %v806 = vpop.f32.mrf.mxu0
  %807 = vdwg.mxu0
  %v808 = vrot.slane %v786, 4
  %vm809 = vcmask 1047556
  %v810 = vsel %vm809, %v808, %v748
  %v811 = vrot.slane %v748, 4
  %v812 = vsel %vm809, %v786, %v811
  %v814 = vunpack.c.l.s4 1983009808
  %v815 = vunpack.c.0.s8 %v814
  %v816 = vperm.slane %v810, %v815
  %v818 = vunpack.c.l.s4 1983009808
  %v819 = vunpack.c.0.s8 %v818
  %v820 = vperm.slane %v812, %v819
  %v821 = vrot.slane %v805, 4
  %v822 = vsel %vm809, %v821, %v767
  %v823 = vrot.slane %v767, 4
  %v824 = vsel %vm809, %v805, %v823
  %v826 = vunpack.c.l.s4 1983009808
  %v827 = vunpack.c.0.s8 %v826
  %v828 = vperm.slane %v822, %v827
  %v830 = vunpack.c.l.s4 1983009808
  %v831 = vunpack.c.0.s8 %v830
  %v832 = vperm.slane %v824, %v831
  %v833 = vrot.slane %v828, 4
  %v834 = vsel %vm809, %v833, %v816
  %v835 = vrot.slane %v816, 4
  %v836 = vsel %vm809, %v828, %v835
  %v838 = vunpack.c.l.s4 1934713408
  %v839 = vunpack.c.0.s8 %v838
  %v840 = vperm.slane %v834, %v839
  %v842 = vunpack.c.l.s4 1934713408
  %v843 = vunpack.c.0.s8 %v842
  %v844 = vperm.slane %v836, %v843
  %v845 = vrot.slane %v832, 4
  %v846 = vsel %vm809, %v845, %v820
  %v847 = vrot.slane %v820, 4
  %v848 = vsel %vm809, %v832, %v847
  %v850 = vunpack.c.l.s4 1934713408
  %v851 = vunpack.c.0.s8 %v850
  %v852 = vperm.slane %v846, %v851
  %v854 = vunpack.c.l.s4 1934713408
  %v855 = vunpack.c.0.s8 %v854
  %v856 = vperm.slane %v848, %v855
  %v857 = vrot.slane %v840, 4
  %v858 = vsel %vm809, 0.0, %v857
  %v859 = vrot.slane %v844, 4
  %v860 = vsel %vm809, 0.0, %v859
  %v861 = vrot.slane %v852, 4
  %v862 = vsel %vm809, 0.0, %v861
  %v863 = vrot.slane %v856, 4
  %v864 = vsel %vm809, 0.0, %v863
  %v865 = vsel %vm809, %v859, %v840
  %v867 = vunpack.c.l.s4 1983009808
  %v868 = vunpack.c.0.s8 %v867
  %v869 = vperm.slane %v865, %v868
  %v870 = vrot.slane %v860, 4
  %v871 = vsel %vm809, %v870, %v858
  %v873 = vunpack.c.l.s4 1983009808
  %v874 = vunpack.c.0.s8 %v873
  %v875 = vperm.slane %v871, %v874
  %v876 = vsel %vm809, %v863, %v852
  %v878 = vunpack.c.l.s4 1983009808
  %v879 = vunpack.c.0.s8 %v878
  %v880 = vperm.slane %v876, %v879
  %v881 = vrot.slane %v864, 4
  %v882 = vsel %vm809, %v881, %v862
  %v884 = vunpack.c.l.s4 1983009808
  %v885 = vunpack.c.0.s8 %v884
  %v886 = vperm.slane %v882, %v885
  %v887 = vrot.slane %v875, 4
  %v888 = vsel %vm809, %v887, %v869
  %v889 = vrot.slane %v869, 4
  %v890 = vsel %vm809, %v875, %v889
  %v892 = vunpack.c.l.s4 1934713408
  %v893 = vunpack.c.0.s8 %v892
  %v894 = vperm.slane %v888, %v893
  %v896 = vunpack.c.l.s4 1934713408
  %v897 = vunpack.c.0.s8 %v896
  %v898 = vperm.slane %v890, %v897
  %v899 = vrot.slane %v886, 4
  %v900 = vsel %vm809, %v899, %v880
  %v901 = vrot.slane %v880, 4
  %v902 = vsel %vm809, %v886, %v901
  %v904 = vunpack.c.l.s4 1934713408
  %v905 = vunpack.c.0.s8 %v904
  %v906 = vperm.slane %v900, %v905
  %v908 = vunpack.c.l.s4 1934713408
  %v909 = vunpack.c.0.s8 %v908
  %v910 = vperm.slane %v902, %v909
  %v911 = vrot.slane %v906, 4
  %v912 = vsel %vm809, %v911, %v894
  %v913 = vrot.slane %v894, 4
  %v914 = vsel %vm809, %v906, %v913
  %v915 = vrot.slane %v910, 4
  %v916 = vsel %vm809, %v915, %v898
  %v917 = vrot.slane %v898, 4
  %v918 = vsel %vm809, %v910, %v917
  %920 = vrot.lane.b32.xlu0 %v914, 8
  %v921 = vpop.permute.xlu0 %920
  %924 = vrot.lane.b32.xlu0 %v916, 16
  %v925 = vpop.permute.xlu0 %924
  %928 = vrot.lane.b32.xlu0 %v918, 24
  %v929 = vpop.permute.xlu0 %928
  %v931 = vsel %vm606, %v912, %v921
  %vm932 = vcmask 130048
  %v933 = vsel %vm932, %v931, %v925
  %vm934 = vcmask 195584
  %v935 = vsel %vm934, %v933, %v929
  %v936 = vpack.c.bf16 %v935, %v935
  %938 = vrot.lane.b32.xlu0 %v222, 120
  %v939 = vpop.permute.xlu0 %938
  %940 = vrot.lane.b32.xlu0 %v222, 112
  %v941 = vpop.permute.xlu0 %940
  %942 = vrot.lane.b32.xlu0 %v222, 104
  %v943 = vpop.permute.xlu0 %942
  %v946 = vpack.i.b16 %v939, %v222
  %v947 = vshrl.u32 %v222, 16
  %v948 = vshrl.u32 %v939, 16
  %v949 = vpack.i.b16 %v948, %v947
  %v952 = vpack.i.b16 %v943, %v941
  %v953 = vshrl.u32 %v941, 16
  %v954 = vshrl.u32 %v943, 16
  %v955 = vpack.i.b16 %v954, %v953
  %v958 = vunpack.c.l.s4 1983009808
  %v959 = vunpack.c.0.s8 %v958
  %v960 = vperm.slane %v946, %v959
  %v963 = vunpack.c.l.s4 1983009808
  %v964 = vunpack.c.0.s8 %v963
  %v965 = vperm.slane %v952, %v964
  %v966 = vrot.slane %v965, 4
  %v967 = vsel %vm259, %v966, %v960
  %v968 = vrot.slane %v960, 4
  %v969 = vsel %vm259, %v965, %v968
  %v971 = vunpack.c.l.s4 1934713408
  %v972 = vunpack.c.0.s8 %v971
  %v973 = vperm.slane %v967, %v972
  %v975 = vunpack.c.l.s4 1934713408
  %v976 = vunpack.c.0.s8 %v975
  %v977 = vperm.slane %v969, %v976
  %v978 = vrot.slane %v973, 4
  %v979 = vsel %vm259, 0, %v978
  %v980 = vrot.slane %v977, 4
  %v981 = vsel %vm259, 0, %v980
  %v984 = vunpack.c.l.s4 1983009808
  %v985 = vunpack.c.0.s8 %v984
  %v986 = vperm.slane %v949, %v985
  %v989 = vunpack.c.l.s4 1983009808
  %v990 = vunpack.c.0.s8 %v989
  %v991 = vperm.slane %v955, %v990
  %v992 = vrot.slane %v991, 4
  %v993 = vsel %vm259, %v992, %v986
  %v994 = vrot.slane %v986, 4
  %v995 = vsel %vm259, %v991, %v994
  %v997 = vunpack.c.l.s4 1934713408
  %v998 = vunpack.c.0.s8 %v997
  %v999 = vperm.slane %v993, %v998
  %v1001 = vunpack.c.l.s4 1934713408
  %v1002 = vunpack.c.0.s8 %v1001
  %v1003 = vperm.slane %v995, %v1002
  %v1004 = vrot.slane %v999, 4
  %v1005 = vsel %vm259, 0, %v1004
  %v1006 = vrot.slane %v1003, 4
  %v1007 = vsel %vm259, 0, %v1006
  %v1008 = vsel %vm259, %v980, %v973
  %v1010 = vunpack.c.l.s4 1983009808
  %v1011 = vunpack.c.0.s8 %v1010
  %v1012 = vperm.slane %v1008, %v1011
  %v1013 = vrot.slane %v981, 4
  %v1014 = vsel %vm259, %v1013, %v979
  %v1016 = vunpack.c.l.s4 1983009808
  %v1017 = vunpack.c.0.s8 %v1016
  %v1018 = vperm.slane %v1014, %v1017
  %v1019 = vrot.slane %v1018, 4
  %v1020 = vsel %vm259, %v1019, %v1012
  %v1022 = vunpack.c.l.s4 1934713408
  %v1023 = vunpack.c.0.s8 %v1022
  %v1024 = vperm.slane %v1020, %v1023
  %v1025 = vrot.slane %v1024, 4
  %v1026 = vsel %vm259, 0, %v1025
  %v1027 = vsel %vm259, %v1006, %v999
  %v1029 = vunpack.c.l.s4 1983009808
  %v1030 = vunpack.c.0.s8 %v1029
  %v1031 = vperm.slane %v1027, %v1030
  %v1032 = vrot.slane %v1007, 4
  %v1033 = vsel %vm259, %v1032, %v1005
  %v1035 = vunpack.c.l.s4 1983009808
  %v1036 = vunpack.c.0.s8 %v1035
  %v1037 = vperm.slane %v1033, %v1036
  %v1038 = vrot.slane %v1037, 4
  %v1039 = vsel %vm259, %v1038, %v1031
  %v1041 = vunpack.c.l.s4 1934713408
  %v1042 = vunpack.c.0.s8 %v1041
  %v1043 = vperm.slane %v1039, %v1042
  %v1044 = vrot.slane %v1043, 4
  %v1045 = vsel %vm259, 0, %v1044
  %v1048 = vpack.i.b16 %v1043, %v1024
  %v1049 = vshrl.u32 %v1024, 16
  %v1050 = vshrl.u32 %v1043, 16
  %v1051 = vpack.i.b16 %v1050, %v1049
  %v1054 = vpack.i.b16 %v1045, %v1026
  %v1055 = vshrl.u32 %v1026, 16
  %v1056 = vshrl.u32 %v1045, 16
  %v1057 = vpack.i.b16 %v1056, %v1055
  %1059 = vrot.lane.b32.xlu0 %v226, 120
  %v1060 = vpop.permute.xlu0 %1059
  %1061 = vrot.lane.b32.xlu0 %v226, 112
  %v1062 = vpop.permute.xlu0 %1061
  %1063 = vrot.lane.b32.xlu0 %v226, 104
  %v1064 = vpop.permute.xlu0 %1063
  %1065 = vrot.lane.b32.xlu0 %v226, 96
  %v1066 = vpop.permute.xlu0 %1065
  %1067 = vrot.lane.b32.xlu0 %v1060, 96
  %v1068 = vpop.permute.xlu0 %1067
  %1069 = vrot.lane.b32.xlu0 %v1062, 96
  %v1070 = vpop.permute.xlu0 %1069
  %1071 = vrot.lane.b32.xlu0 %v1064, 96
  %v1072 = vpop.permute.xlu0 %1071
  %v1075 = vpack.i.b16 %v1068, %v1066
  %v1076 = vshrl.u32 %v1066, 16
  %v1077 = vshrl.u32 %v1068, 16
  %v1078 = vpack.i.b16 %v1077, %v1076
  %v1081 = vpack.i.b16 %v1072, %v1070
  %v1082 = vshrl.u32 %v1070, 16
  %v1083 = vshrl.u32 %v1072, 16
  %v1084 = vpack.i.b16 %v1083, %v1082
  %v1087 = vunpack.c.l.s4 1983009808
  %v1088 = vunpack.c.0.s8 %v1087
  %v1089 = vperm.slane %v1075, %v1088
  %v1092 = vunpack.c.l.s4 1983009808
  %v1093 = vunpack.c.0.s8 %v1092
  %v1094 = vperm.slane %v1081, %v1093
  %v1095 = vrot.slane %v1094, 4
  %v1096 = vsel %vm259, %v1095, %v1089
  %v1097 = vrot.slane %v1089, 4
  %v1098 = vsel %vm259, %v1094, %v1097
  %v1100 = vunpack.c.l.s4 1934713408
  %v1101 = vunpack.c.0.s8 %v1100
  %v1102 = vperm.slane %v1096, %v1101
  %v1104 = vunpack.c.l.s4 1934713408
  %v1105 = vunpack.c.0.s8 %v1104
  %v1106 = vperm.slane %v1098, %v1105
  %v1107 = vrot.slane %v1102, 4
  %v1108 = vsel %vm259, 0, %v1107
  %v1109 = vrot.slane %v1106, 4
  %v1110 = vsel %vm259, 0, %v1109
  %v1113 = vunpack.c.l.s4 1983009808
  %v1114 = vunpack.c.0.s8 %v1113
  %v1115 = vperm.slane %v1078, %v1114
  %v1118 = vunpack.c.l.s4 1983009808
  %v1119 = vunpack.c.0.s8 %v1118
  %v1120 = vperm.slane %v1084, %v1119
  %v1121 = vrot.slane %v1120, 4
  %v1122 = vsel %vm259, %v1121, %v1115
  %v1123 = vrot.slane %v1115, 4
  %v1124 = vsel %vm259, %v1120, %v1123
  %v1126 = vunpack.c.l.s4 1934713408
  %v1127 = vunpack.c.0.s8 %v1126
  %v1128 = vperm.slane %v1122, %v1127
  %v1130 = vunpack.c.l.s4 1934713408
  %v1131 = vunpack.c.0.s8 %v1130
  %v1132 = vperm.slane %v1124, %v1131
  %v1133 = vrot.slane %v1128, 4
  %v1134 = vsel %vm259, 0, %v1133
  %v1135 = vrot.slane %v1132, 4
  %v1136 = vsel %vm259, 0, %v1135
  %v1137 = vsel %vm259, %v1109, %v1102
  %v1139 = vunpack.c.l.s4 1983009808
  %v1140 = vunpack.c.0.s8 %v1139
  %v1141 = vperm.slane %v1137, %v1140
  %v1142 = vrot.slane %v1110, 4
  %v1143 = vsel %vm259, %v1142, %v1108
  %v1145 = vunpack.c.l.s4 1983009808
  %v1146 = vunpack.c.0.s8 %v1145
  %v1147 = vperm.slane %v1143, %v1146
  %v1148 = vrot.slane %v1147, 4
  %v1149 = vsel %vm259, %v1148, %v1141
  %v1151 = vunpack.c.l.s4 1934713408
  %v1152 = vunpack.c.0.s8 %v1151
  %v1153 = vperm.slane %v1149, %v1152
  %v1154 = vrot.slane %v1153, 4
  %v1155 = vsel %vm259, 0, %v1154
  %v1156 = vsel %vm259, %v1135, %v1128
  %v1158 = vunpack.c.l.s4 1983009808
  %v1159 = vunpack.c.0.s8 %v1158
  %v1160 = vperm.slane %v1156, %v1159
  %v1161 = vrot.slane %v1136, 4
  %v1162 = vsel %vm259, %v1161, %v1134
  %v1164 = vunpack.c.l.s4 1983009808
  %v1165 = vunpack.c.0.s8 %v1164
  %v1166 = vperm.slane %v1162, %v1165
  %v1167 = vrot.slane %v1166, 4
  %v1168 = vsel %vm259, %v1167, %v1160
  %v1170 = vunpack.c.l.s4 1934713408
  %v1171 = vunpack.c.0.s8 %v1170
  %v1172 = vperm.slane %v1168, %v1171
  %v1173 = vrot.slane %v1172, 4
  %v1174 = vsel %vm259, 0, %v1173
  %v1177 = vpack.i.b16 %v1172, %v1153
  %v1178 = vshrl.u32 %v1153, 16
  %v1179 = vshrl.u32 %v1172, 16
  %v1180 = vpack.i.b16 %v1179, %v1178
  %v1183 = vpack.i.b16 %v1174, %v1155
  %v1184 = vshrl.u32 %v1155, 16
  %v1185 = vshrl.u32 %v1174, 16
  %v1186 = vpack.i.b16 %v1185, %v1184
  %1187 = vrot.lane.b32.xlu0 %v226, 64
  %v1188 = vpop.permute.xlu0 %1187
  %1189 = vrot.lane.b32.xlu0 %v1060, 64
  %v1190 = vpop.permute.xlu0 %1189
  %1191 = vrot.lane.b32.xlu0 %v1062, 64
  %v1192 = vpop.permute.xlu0 %1191
  %1193 = vrot.lane.b32.xlu0 %v1064, 64
  %v1194 = vpop.permute.xlu0 %1193
  %v1197 = vpack.i.b16 %v1190, %v1188
  %v1198 = vshrl.u32 %v1188, 16
  %v1199 = vshrl.u32 %v1190, 16
  %v1200 = vpack.i.b16 %v1199, %v1198
  %v1203 = vpack.i.b16 %v1194, %v1192
  %v1204 = vshrl.u32 %v1192, 16
  %v1205 = vshrl.u32 %v1194, 16
  %v1206 = vpack.i.b16 %v1205, %v1204
  %v1209 = vunpack.c.l.s4 1983009808
  %v1210 = vunpack.c.0.s8 %v1209
  %v1211 = vperm.slane %v1197, %v1210
  %v1214 = vunpack.c.l.s4 1983009808
  %v1215 = vunpack.c.0.s8 %v1214
  %v1216 = vperm.slane %v1203, %v1215
  %v1217 = vrot.slane %v1216, 4
  %v1218 = vsel %vm259, %v1217, %v1211
  %v1219 = vrot.slane %v1211, 4
  %v1220 = vsel %vm259, %v1216, %v1219
  %v1222 = vunpack.c.l.s4 1934713408
  %v1223 = vunpack.c.0.s8 %v1222
  %v1224 = vperm.slane %v1218, %v1223
  %v1226 = vunpack.c.l.s4 1934713408
  %v1227 = vunpack.c.0.s8 %v1226
  %v1228 = vperm.slane %v1220, %v1227
  %v1229 = vrot.slane %v1224, 4
  %v1230 = vsel %vm259, 0, %v1229
  %v1231 = vrot.slane %v1228, 4
  %v1232 = vsel %vm259, 0, %v1231
  %v1235 = vunpack.c.l.s4 1983009808
  %v1236 = vunpack.c.0.s8 %v1235
  %v1237 = vperm.slane %v1200, %v1236
  %v1240 = vunpack.c.l.s4 1983009808
  %v1241 = vunpack.c.0.s8 %v1240
  %v1242 = vperm.slane %v1206, %v1241
  %v1243 = vrot.slane %v1242, 4
  %v1244 = vsel %vm259, %v1243, %v1237
  %v1245 = vrot.slane %v1237, 4
  %v1246 = vsel %vm259, %v1242, %v1245
  %v1248 = vunpack.c.l.s4 1934713408
  %v1249 = vunpack.c.0.s8 %v1248
  %v1250 = vperm.slane %v1244, %v1249
  %v1252 = vunpack.c.l.s4 1934713408
  %v1253 = vunpack.c.0.s8 %v1252
  %v1254 = vperm.slane %v1246, %v1253
  %v1255 = vrot.slane %v1250, 4
  %v1256 = vsel %vm259, 0, %v1255
  %v1257 = vrot.slane %v1254, 4
  %v1258 = vsel %vm259, 0, %v1257
  %v1259 = vsel %vm259, %v1231, %v1224
  %v1261 = vunpack.c.l.s4 1983009808
  %v1262 = vunpack.c.0.s8 %v1261
  %v1263 = vperm.slane %v1259, %v1262
  %v1264 = vrot.slane %v1232, 4
  %v1265 = vsel %vm259, %v1264, %v1230
  %v1267 = vunpack.c.l.s4 1983009808
  %v1268 = vunpack.c.0.s8 %v1267
  %v1269 = vperm.slane %v1265, %v1268
  %v1270 = vrot.slane %v1269, 4
  %v1271 = vsel %vm259, %v1270, %v1263
  %v1273 = vunpack.c.l.s4 1934713408
  %v1274 = vunpack.c.0.s8 %v1273
  %v1275 = vperm.slane %v1271, %v1274
  %v1276 = vrot.slane %v1275, 4
  %v1277 = vsel %vm259, 0, %v1276
  %v1278 = vsel %vm259, %v1257, %v1250
  %v1280 = vunpack.c.l.s4 1983009808
  %v1281 = vunpack.c.0.s8 %v1280
  %v1282 = vperm.slane %v1278, %v1281
  %v1283 = vrot.slane %v1258, 4
  %v1284 = vsel %vm259, %v1283, %v1256
  %v1286 = vunpack.c.l.s4 1983009808
  %v1287 = vunpack.c.0.s8 %v1286
  %v1288 = vperm.slane %v1284, %v1287
  %v1289 = vrot.slane %v1288, 4
  %v1290 = vsel %vm259, %v1289, %v1282
  %v1292 = vunpack.c.l.s4 1934713408
  %v1293 = vunpack.c.0.s8 %v1292
  %v1294 = vperm.slane %v1290, %v1293
  %v1295 = vrot.slane %v1294, 4
  %v1296 = vsel %vm259, 0, %v1295
  %v1299 = vpack.i.b16 %v1294, %v1275
  %v1300 = vshrl.u32 %v1275, 16
  %v1301 = vshrl.u32 %v1294, 16
  %v1302 = vpack.i.b16 %v1301, %v1300
  %v1305 = vpack.i.b16 %v1296, %v1277
  %v1306 = vshrl.u32 %v1277, 16
  %v1307 = vshrl.u32 %v1296, 16
  %v1308 = vpack.i.b16 %v1307, %v1306
  %s1309 = scalar_lea.vmem %s1, 1
  %v1310 = vld [vmem:[%s1309] sm:$0x1]
  %v1312 = vperm.slane %v1310, 0
  %v1315 = vsel %vm606, %v1048, 0
  %v1318 = vsel %vm606, %v1177, 0
  %1320 = vmatpush.bf16.xpose.msra.mxu0 0
  %1321 = vmatpush.bf16.xpose.msra.mxu0 0
  %1322 = vmatpush.bf16.xpose.msra.mxu0 0
  %1323 = vmatpush.bf16.xpose.msra.mxu0 0
  %1324 = vmatpush.bf16.xpose.msra.mxu0 0
  %1325 = vmatpush.bf16.xpose.msra.mxu0 0
  %1326 = vmatpush.bf16.xpose.msra.mxu0 0
  %1327 = vmatpush.bf16.xpose.msra.mxu0 %v1318
  %1328 = vmatmul.bf16.gmra.mxu0 %v1315
  %v1329 = vpop.f32.mrf.mxu0
  %v1330 = vadd.f32 %v1312, %v1329
  %v1331 = vpop.f32.mrf.mxu0
  %1332 = vdwg.mxu0
  %v1334 = vsel %vm606, %v1051, 0
  %v1337 = vsel %vm606, %v1180, 0
  %1339 = vmatpush.bf16.xpose.msra.mxu0 0
  %1340 = vmatpush.bf16.xpose.msra.mxu0 0
  %1341 = vmatpush.bf16.xpose.msra.mxu0 0
  %1342 = vmatpush.bf16.xpose.msra.mxu0 0
  %1343 = vmatpush.bf16.xpose.msra.mxu0 0
  %1344 = vmatpush.bf16.xpose.msra.mxu0 0
  %1345 = vmatpush.bf16.xpose.msra.mxu0 0
  %1346 = vmatpush.bf16.xpose.msra.mxu0 %v1337
  %1347 = vmatmul.bf16.gmra.mxu0 %v1334
  %v1348 = vpop.f32.mrf.mxu0
  %v1349 = vadd.f32 %v1312, %v1348
  %v1350 = vpop.f32.mrf.mxu0
  %1351 = vdwg.mxu0
  %v1353 = vsel %vm606, %v1054, 0
  %v1356 = vsel %vm606, %v1183, 0
  %1358 = vmatpush.bf16.xpose.msra.mxu0 0
  %1359 = vmatpush.bf16.xpose.msra.mxu0 0
  %1360 = vmatpush.bf16.xpose.msra.mxu0 0
  %1361 = vmatpush.bf16.xpose.msra.mxu0 0
  %1362 = vmatpush.bf16.xpose.msra.mxu0 0
  %1363 = vmatpush.bf16.xpose.msra.mxu0 0
  %1364 = vmatpush.bf16.xpose.msra.mxu0 0
  %1365 = vmatpush.bf16.xpose.msra.mxu0 %v1356
  %1366 = vmatmul.bf16.gmra.mxu0 %v1353
  %v1367 = vpop.f32.mrf.mxu0
  %v1368 = vadd.f32 %v1312, %v1367
  %v1369 = vpop.f32.mrf.mxu0
  %1370 = vdwg.mxu0
  %v1372 = vsel %vm606, %v1057, 0
  %v1375 = vsel %vm606, %v1186, 0
  %1377 = vmatpush.bf16.xpose.msra.mxu0 0
  %1378 = vmatpush.bf16.xpose.msra.mxu0 0
  %1379 = vmatpush.bf16.xpose.msra.mxu0 0
  %1380 = vmatpush.bf16.xpose.msra.mxu0 0
  %1381 = vmatpush.bf16.xpose.msra.mxu0 0
  %1382 = vmatpush.bf16.xpose.msra.mxu0 0
  %1383 = vmatpush.bf16.xpose.msra.mxu0 0
  %1384 = vmatpush.bf16.xpose.msra.mxu0 %v1375
  %1385 = vmatmul.bf16.gmra.mxu0 %v1372
  %v1386 = vpop.f32.mrf.mxu0
  %v1387 = vadd.f32 %v1312, %v1386
  %v1388 = vpop.f32.mrf.mxu0
  %1389 = vdwg.mxu0
  %v1390 = vsel %vm606, %v1330, -inf
  %1391 = vmax.xlane.f32.xlu0 %v1390
  %v1392 = vpop.xlane.xlu0 %1391
  %v1393 = vsel %vm606, %v1349, -inf
  %1394 = vmax.xlane.f32.xlu0 %v1393
  %v1395 = vpop.xlane.xlu0 %1394
  %v1396 = vsel %vm606, %v1368, -inf
  %1397 = vmax.xlane.f32.xlu0 %v1396
  %v1398 = vpop.xlane.xlu0 %1397
  %v1399 = vsel %vm606, %v1387, -inf
  %1400 = vmax.xlane.f32.xlu0 %v1399
  %v1401 = vpop.xlane.xlu0 %1400
  %v1402 = vsub.f32 %v1330, %v1392
  %v1403 = vsub.f32 %v1349, %v1395
  %v1404 = vsub.f32 %v1368, %v1398
  %v1405 = vsub.f32 %v1387, %v1401
  %v1406 = vmul.f32 %v1402, 1.442695
  %v1407 = vpow.pop %v1406
  %v1408 = vmul.f32 %v1403, 1.442695
  %v1409 = vpow.pop %v1408
  %v1410 = vmul.f32 %v1404, 1.442695
  %v1411 = vpow.pop %v1410
  %v1412 = vmul.f32 %v1405, 1.442695
  %v1413 = vpow.pop %v1412
  %v1414 = vsel %vm606, %v1407, 0.0
  %1415 = vadd.xlane.f32.xlu0 %v1414
  %v1416 = vpop.xlane.xlu0 %1415
  %v1417 = vsel %vm606, %v1409, 0.0
  %1418 = vadd.xlane.f32.xlu0 %v1417
  %v1419 = vpop.xlane.xlu0 %1418
  %v1420 = vsel %vm606, %v1411, 0.0
  %1421 = vadd.xlane.f32.xlu0 %v1420
  %v1422 = vpop.xlane.xlu0 %1421
  %v1423 = vsel %vm606, %v1413, 0.0
  %1424 = vadd.xlane.f32.xlu0 %v1423
  %v1425 = vpop.xlane.xlu0 %1424
  %v1426 = vrcp.pop %v1416
  %v1427 = vrcp.pop %v1419
  %v1428 = vrcp.pop %v1422
  %v1429 = vrcp.pop %v1425
  %v1430 = vmul.f32 %v1407, %v1426
  %v1431 = vmul.f32 %v1409, %v1427
  %v1432 = vmul.f32 %v1411, %v1428
  %v1433 = vmul.f32 %v1413, %v1429
  %v1434 = vpack.c.bf16 %v1430, %v1430
  %v1435 = vpack.c.bf16 %v1431, %v1431
  %v1436 = vpack.c.bf16 %v1432, %v1432
  %v1437 = vpack.c.bf16 %v1433, %v1433
  %v1439 = vsel %vm606, %v1434, 0
  %v1442 = vsel %vm734, %v1299, 0
  %1444 = vmatpush.bf16.msra.mxu0 0
  %1445 = vmatpush.bf16.msra.mxu0 0
  %1446 = vmatpush.bf16.msra.mxu0 0
  %1447 = vmatpush.bf16.msra.mxu0 0
  %1448 = vmatpush.bf16.msra.mxu0 0
  %1449 = vmatpush.bf16.msra.mxu0 0
  %1450 = vmatpush.bf16.msra.mxu0 0
  %1451 = vmatpush.bf16.msra.mxu0 %v1442
  %1452 = vmatmul.bf16.gmra.mxu0 %v1439
  %v1453 = vpop.f32.mrf.mxu0
  %v1454 = vadd.f32 0.0, %v1453
  %v1455 = vpop.f32.mrf.mxu0
  %1456 = vdwg.mxu0
  %v1458 = vsel %vm606, %v1435, 0
  %v1461 = vsel %vm734, %v1302, 0
  %1463 = vmatpush.bf16.msra.mxu0 0
  %1464 = vmatpush.bf16.msra.mxu0 0
  %1465 = vmatpush.bf16.msra.mxu0 0
  %1466 = vmatpush.bf16.msra.mxu0 0
  %1467 = vmatpush.bf16.msra.mxu0 0
  %1468 = vmatpush.bf16.msra.mxu0 0
  %1469 = vmatpush.bf16.msra.mxu0 0
  %1470 = vmatpush.bf16.msra.mxu0 %v1461
  %1471 = vmatmul.bf16.gmra.mxu0 %v1458
  %v1472 = vpop.f32.mrf.mxu0
  %v1473 = vadd.f32 0.0, %v1472
  %v1474 = vpop.f32.mrf.mxu0
  %1475 = vdwg.mxu0
  %v1477 = vsel %vm606, %v1436, 0
  %v1480 = vsel %vm734, %v1305, 0
  %1482 = vmatpush.bf16.msra.mxu0 0
  %1483 = vmatpush.bf16.msra.mxu0 0
  %1484 = vmatpush.bf16.msra.mxu0 0
  %1485 = vmatpush.bf16.msra.mxu0 0
  %1486 = vmatpush.bf16.msra.mxu0 0
  %1487 = vmatpush.bf16.msra.mxu0 0
  %1488 = vmatpush.bf16.msra.mxu0 0
  %1489 = vmatpush.bf16.msra.mxu0 %v1480
  %1490 = vmatmul.bf16.gmra.mxu0 %v1477
  %v1491 = vpop.f32.mrf.mxu0
  %v1492 = vadd.f32 0.0, %v1491
  %v1493 = vpop.f32.mrf.mxu0
  %1494 = vdwg.mxu0
  %v1496 = vsel %vm606, %v1437, 0
  %v1499 = vsel %vm734, %v1308, 0
  %1501 = vmatpush.bf16.msra.mxu0 0
  %1502 = vmatpush.bf16.msra.mxu0 0
  %1503 = vmatpush.bf16.msra.mxu0 0
  %1504 = vmatpush.bf16.msra.mxu0 0
  %1505 = vmatpush.bf16.msra.mxu0 0
  %1506 = vmatpush.bf16.msra.mxu0 0
  %1507 = vmatpush.bf16.msra.mxu0 0
  %1508 = vmatpush.bf16.msra.mxu0 %v1499
  %1509 = vmatmul.bf16.gmra.mxu0 %v1496
  %v1510 = vpop.f32.mrf.mxu0
  %v1511 = vadd.f32 0.0, %v1510
  %v1512 = vpop.f32.mrf.mxu0
  %1513 = vdwg.mxu0
  %v1514 = vrot.slane %v1492, 4
  %v1515 = vsel %vm809, %v1514, %v1454
  %v1516 = vrot.slane %v1454, 4
  %v1517 = vsel %vm809, %v1492, %v1516
  %v1519 = vunpack.c.l.s4 1983009808
  %v1520 = vunpack.c.0.s8 %v1519
  %v1521 = vperm.slane %v1515, %v1520
  %v1523 = vunpack.c.l.s4 1983009808
  %v1524 = vunpack.c.0.s8 %v1523
  %v1525 = vperm.slane %v1517, %v1524
  %v1526 = vrot.slane %v1511, 4
  %v1527 = vsel %vm809, %v1526, %v1473
  %v1528 = vrot.slane %v1473, 4
  %v1529 = vsel %vm809, %v1511, %v1528
  %v1531 = vunpack.c.l.s4 1983009808
  %v1532 = vunpack.c.0.s8 %v1531
  %v1533 = vperm.slane %v1527, %v1532
  %v1535 = vunpack.c.l.s4 1983009808
  %v1536 = vunpack.c.0.s8 %v1535
  %v1537 = vperm.slane %v1529, %v1536
  %v1538 = vrot.slane %v1533, 4
  %v1539 = vsel %vm809, %v1538, %v1521
  %v1540 = vrot.slane %v1521, 4
  %v1541 = vsel %vm809, %v1533, %v1540
  %v1543 = vunpack.c.l.s4 1934713408
  %v1544 = vunpack.c.0.s8 %v1543
  %v1545 = vperm.slane %v1539, %v1544
  %v1547 = vunpack.c.l.s4 1934713408
  %v1548 = vunpack.c.0.s8 %v1547
  %v1549 = vperm.slane %v1541, %v1548
  %v1550 = vrot.slane %v1537, 4
  %v1551 = vsel %vm809, %v1550, %v1525
  %v1552 = vrot.slane %v1525, 4
  %v1553 = vsel %vm809, %v1537, %v1552
  %v1555 = vunpack.c.l.s4 1934713408
  %v1556 = vunpack.c.0.s8 %v1555
  %v1557 = vperm.slane %v1551, %v1556
  %v1559 = vunpack.c.l.s4 1934713408
  %v1560 = vunpack.c.0.s8 %v1559
  %v1561 = vperm.slane %v1553, %v1560
  %v1562 = vrot.slane %v1545, 4
  %v1563 = vsel %vm809, 0.0, %v1562
  %v1564 = vrot.slane %v1549, 4
  %v1565 = vsel %vm809, 0.0, %v1564
  %v1566 = vrot.slane %v1557, 4
  %v1567 = vsel %vm809, 0.0, %v1566
  %v1568 = vrot.slane %v1561, 4
  %v1569 = vsel %vm809, 0.0, %v1568
  %v1570 = vsel %vm809, %v1564, %v1545
  %v1572 = vunpack.c.l.s4 1983009808
  %v1573 = vunpack.c.0.s8 %v1572
  %v1574 = vperm.slane %v1570, %v1573
  %v1575 = vrot.slane %v1565, 4
  %v1576 = vsel %vm809, %v1575, %v1563
  %v1578 = vunpack.c.l.s4 1983009808
  %v1579 = vunpack.c.0.s8 %v1578
  %v1580 = vperm.slane %v1576, %v1579
  %v1581 = vsel %vm809, %v1568, %v1557
  %v1583 = vunpack.c.l.s4 1983009808
  %v1584 = vunpack.c.0.s8 %v1583
  %v1585 = vperm.slane %v1581, %v1584
  %v1586 = vrot.slane %v1569, 4
  %v1587 = vsel %vm809, %v1586, %v1567
  %v1589 = vunpack.c.l.s4 1983009808
  %v1590 = vunpack.c.0.s8 %v1589
  %v1591 = vperm.slane %v1587, %v1590
  %v1592 = vrot.slane %v1580, 4
  %v1593 = vsel %vm809, %v1592, %v1574
  %v1594 = vrot.slane %v1574, 4
  %v1595 = vsel %vm809, %v1580, %v1594
  %v1597 = vunpack.c.l.s4 1934713408
  %v1598 = vunpack.c.0.s8 %v1597
  %v1599 = vperm.slane %v1593, %v1598
  %v1601 = vunpack.c.l.s4 1934713408
  %v1602 = vunpack.c.0.s8 %v1601
  %v1603 = vperm.slane %v1595, %v1602
  %v1604 = vrot.slane %v1591, 4
  %v1605 = vsel %vm809, %v1604, %v1585
  %v1606 = vrot.slane %v1585, 4
  %v1607 = vsel %vm809, %v1591, %v1606
  %v1609 = vunpack.c.l.s4 1934713408
  %v1610 = vunpack.c.0.s8 %v1609
  %v1611 = vperm.slane %v1605, %v1610
  %v1613 = vunpack.c.l.s4 1934713408
  %v1614 = vunpack.c.0.s8 %v1613
  %v1615 = vperm.slane %v1607, %v1614
  %v1616 = vrot.slane %v1611, 4
  %v1617 = vsel %vm809, %v1616, %v1599
  %v1618 = vrot.slane %v1599, 4
  %v1619 = vsel %vm809, %v1611, %v1618
  %v1620 = vrot.slane %v1615, 4
  %v1621 = vsel %vm809, %v1620, %v1603
  %v1622 = vrot.slane %v1603, 4
  %v1623 = vsel %vm809, %v1615, %v1622
  %1625 = vrot.lane.b32.xlu0 %v1619, 8
  %v1626 = vpop.permute.xlu0 %1625
  %1629 = vrot.lane.b32.xlu0 %v1621, 16
  %v1630 = vpop.permute.xlu0 %1629
  %1633 = vrot.lane.b32.xlu0 %v1623, 24
  %v1634 = vpop.permute.xlu0 %1633
  %v1636 = vsel %vm606, %v1617, %v1626
  %v1637 = vsel %vm932, %v1636, %v1630
  %v1638 = vsel %vm934, %v1637, %v1634
  %v1639 = vpack.c.bf16 %v1638, %v1638
  %1641 = vrot.lane.b32.xlu0 %v223, 120
  %v1642 = vpop.permute.xlu0 %1641
  %1643 = vrot.lane.b32.xlu0 %v223, 112
  %v1644 = vpop.permute.xlu0 %1643
  %1645 = vrot.lane.b32.xlu0 %v223, 104
  %v1646 = vpop.permute.xlu0 %1645
  %v1649 = vpack.i.b16 %v1642, %v223
  %v1650 = vshrl.u32 %v223, 16
  %v1651 = vshrl.u32 %v1642, 16
  %v1652 = vpack.i.b16 %v1651, %v1650
  %v1655 = vpack.i.b16 %v1646, %v1644
  %v1656 = vshrl.u32 %v1644, 16
  %v1657 = vshrl.u32 %v1646, 16
  %v1658 = vpack.i.b16 %v1657, %v1656
  %v1661 = vunpack.c.l.s4 1983009808
  %v1662 = vunpack.c.0.s8 %v1661
  %v1663 = vperm.slane %v1649, %v1662
  %v1666 = vunpack.c.l.s4 1983009808
  %v1667 = vunpack.c.0.s8 %v1666
  %v1668 = vperm.slane %v1655, %v1667
  %v1669 = vrot.slane %v1668, 4
  %v1670 = vsel %vm259, %v1669, %v1663
  %v1671 = vrot.slane %v1663, 4
  %v1672 = vsel %vm259, %v1668, %v1671
  %v1674 = vunpack.c.l.s4 1934713408
  %v1675 = vunpack.c.0.s8 %v1674
  %v1676 = vperm.slane %v1670, %v1675
  %v1678 = vunpack.c.l.s4 1934713408
  %v1679 = vunpack.c.0.s8 %v1678
  %v1680 = vperm.slane %v1672, %v1679
  %v1681 = vrot.slane %v1676, 4
  %v1682 = vsel %vm259, 0, %v1681
  %v1683 = vrot.slane %v1680, 4
  %v1684 = vsel %vm259, 0, %v1683
  %v1687 = vunpack.c.l.s4 1983009808
  %v1688 = vunpack.c.0.s8 %v1687
  %v1689 = vperm.slane %v1652, %v1688
  %v1692 = vunpack.c.l.s4 1983009808
  %v1693 = vunpack.c.0.s8 %v1692
  %v1694 = vperm.slane %v1658, %v1693
  %v1695 = vrot.slane %v1694, 4
  %v1696 = vsel %vm259, %v1695, %v1689
  %v1697 = vrot.slane %v1689, 4
  %v1698 = vsel %vm259, %v1694, %v1697
  %v1700 = vunpack.c.l.s4 1934713408
  %v1701 = vunpack.c.0.s8 %v1700
  %v1702 = vperm.slane %v1696, %v1701
  %v1704 = vunpack.c.l.s4 1934713408
  %v1705 = vunpack.c.0.s8 %v1704
  %v1706 = vperm.slane %v1698, %v1705
  %v1707 = vrot.slane %v1702, 4
  %v1708 = vsel %vm259, 0, %v1707
  %v1709 = vrot.slane %v1706, 4
  %v1710 = vsel %vm259, 0, %v1709
  %v1711 = vsel %vm259, %v1683, %v1676
  %v1713 = vunpack.c.l.s4 1983009808
  %v1714 = vunpack.c.0.s8 %v1713
  %v1715 = vperm.slane %v1711, %v1714
  %v1716 = vrot.slane %v1684, 4
  %v1717 = vsel %vm259, %v1716, %v1682
  %v1719 = vunpack.c.l.s4 1983009808
  %v1720 = vunpack.c.0.s8 %v1719
  %v1721 = vperm.slane %v1717, %v1720
  %v1722 = vrot.slane %v1721, 4
  %v1723 = vsel %vm259, %v1722, %v1715
  %v1725 = vunpack.c.l.s4 1934713408
  %v1726 = vunpack.c.0.s8 %v1725
  %v1727 = vperm.slane %v1723, %v1726
  %v1728 = vrot.slane %v1727, 4
  %v1729 = vsel %vm259, 0, %v1728
  %v1730 = vsel %vm259, %v1709, %v1702
  %v1732 = vunpack.c.l.s4 1983009808
  %v1733 = vunpack.c.0.s8 %v1732
  %v1734 = vperm.slane %v1730, %v1733
  %v1735 = vrot.slane %v1710, 4
  %v1736 = vsel %vm259, %v1735, %v1708
  %v1738 = vunpack.c.l.s4 1983009808
  %v1739 = vunpack.c.0.s8 %v1738
  %v1740 = vperm.slane %v1736, %v1739
  %v1741 = vrot.slane %v1740, 4
  %v1742 = vsel %vm259, %v1741, %v1734
  %v1744 = vunpack.c.l.s4 1934713408
  %v1745 = vunpack.c.0.s8 %v1744
  %v1746 = vperm.slane %v1742, %v1745
  %v1747 = vrot.slane %v1746, 4
  %v1748 = vsel %vm259, 0, %v1747
  %v1751 = vpack.i.b16 %v1746, %v1727
  %v1752 = vshrl.u32 %v1727, 16
  %v1753 = vshrl.u32 %v1746, 16
  %v1754 = vpack.i.b16 %v1753, %v1752
  %v1757 = vpack.i.b16 %v1748, %v1729
  %v1758 = vshrl.u32 %v1729, 16
  %v1759 = vshrl.u32 %v1748, 16
  %v1760 = vpack.i.b16 %v1759, %v1758
  %1762 = vrot.lane.b32.xlu0 %v227, 120
  %v1763 = vpop.permute.xlu0 %1762
  %1764 = vrot.lane.b32.xlu0 %v227, 112
  %v1765 = vpop.permute.xlu0 %1764
  %1766 = vrot.lane.b32.xlu0 %v227, 104
  %v1767 = vpop.permute.xlu0 %1766
  %1768 = vrot.lane.b32.xlu0 %v227, 96
  %v1769 = vpop.permute.xlu0 %1768
  %1770 = vrot.lane.b32.xlu0 %v1763, 96
  %v1771 = vpop.permute.xlu0 %1770
  %1772 = vrot.lane.b32.xlu0 %v1765, 96
  %v1773 = vpop.permute.xlu0 %1772
  %1774 = vrot.lane.b32.xlu0 %v1767, 96
  %v1775 = vpop.permute.xlu0 %1774
  %v1778 = vpack.i.b16 %v1771, %v1769
  %v1779 = vshrl.u32 %v1769, 16
  %v1780 = vshrl.u32 %v1771, 16
  %v1781 = vpack.i.b16 %v1780, %v1779
  %v1784 = vpack.i.b16 %v1775, %v1773
  %v1785 = vshrl.u32 %v1773, 16
  %v1786 = vshrl.u32 %v1775, 16
  %v1787 = vpack.i.b16 %v1786, %v1785
  %v1790 = vunpack.c.l.s4 1983009808
  %v1791 = vunpack.c.0.s8 %v1790
  %v1792 = vperm.slane %v1778, %v1791
  %v1795 = vunpack.c.l.s4 1983009808
  %v1796 = vunpack.c.0.s8 %v1795
  %v1797 = vperm.slane %v1784, %v1796
  %v1798 = vrot.slane %v1797, 4
  %v1799 = vsel %vm259, %v1798, %v1792
  %v1800 = vrot.slane %v1792, 4
  %v1801 = vsel %vm259, %v1797, %v1800
  %v1803 = vunpack.c.l.s4 1934713408
  %v1804 = vunpack.c.0.s8 %v1803
  %v1805 = vperm.slane %v1799, %v1804
  %v1807 = vunpack.c.l.s4 1934713408
  %v1808 = vunpack.c.0.s8 %v1807
  %v1809 = vperm.slane %v1801, %v1808
  %v1810 = vrot.slane %v1805, 4
  %v1811 = vsel %vm259, 0, %v1810
  %v1812 = vrot.slane %v1809, 4
  %v1813 = vsel %vm259, 0, %v1812
  %v1816 = vunpack.c.l.s4 1983009808
  %v1817 = vunpack.c.0.s8 %v1816
  %v1818 = vperm.slane %v1781, %v1817
  %v1821 = vunpack.c.l.s4 1983009808
  %v1822 = vunpack.c.0.s8 %v1821
  %v1823 = vperm.slane %v1787, %v1822
  %v1824 = vrot.slane %v1823, 4
  %v1825 = vsel %vm259, %v1824, %v1818
  %v1826 = vrot.slane %v1818, 4
  %v1827 = vsel %vm259, %v1823, %v1826
  %v1829 = vunpack.c.l.s4 1934713408
  %v1830 = vunpack.c.0.s8 %v1829
  %v1831 = vperm.slane %v1825, %v1830
  %v1833 = vunpack.c.l.s4 1934713408
  %v1834 = vunpack.c.0.s8 %v1833
  %v1835 = vperm.slane %v1827, %v1834
  %v1836 = vrot.slane %v1831, 4
  %v1837 = vsel %vm259, 0, %v1836
  %v1838 = vrot.slane %v1835, 4
  %v1839 = vsel %vm259, 0, %v1838
  %v1840 = vsel %vm259, %v1812, %v1805
  %v1842 = vunpack.c.l.s4 1983009808
  %v1843 = vunpack.c.0.s8 %v1842
  %v1844 = vperm.slane %v1840, %v1843
  %v1845 = vrot.slane %v1813, 4
  %v1846 = vsel %vm259, %v1845, %v1811
  %v1848 = vunpack.c.l.s4 1983009808
  %v1849 = vunpack.c.0.s8 %v1848
  %v1850 = vperm.slane %v1846, %v1849
  %v1851 = vrot.slane %v1850, 4
  %v1852 = vsel %vm259, %v1851, %v1844
  %v1854 = vunpack.c.l.s4 1934713408
  %v1855 = vunpack.c.0.s8 %v1854
  %v1856 = vperm.slane %v1852, %v1855
  %v1857 = vrot.slane %v1856, 4
  %v1858 = vsel %vm259, 0, %v1857
  %v1859 = vsel %vm259, %v1838, %v1831
  %v1861 = vunpack.c.l.s4 1983009808
  %v1862 = vunpack.c.0.s8 %v1861
  %v1863 = vperm.slane %v1859, %v1862
  %v1864 = vrot.slane %v1839, 4
  %v1865 = vsel %vm259, %v1864, %v1837
  %v1867 = vunpack.c.l.s4 1983009808
  %v1868 = vunpack.c.0.s8 %v1867
  %v1869 = vperm.slane %v1865, %v1868
  %v1870 = vrot.slane %v1869, 4
  %v1871 = vsel %vm259, %v1870, %v1863
  %v1873 = vunpack.c.l.s4 1934713408
  %v1874 = vunpack.c.0.s8 %v1873
  %v1875 = vperm.slane %v1871, %v1874
  %v1876 = vrot.slane %v1875, 4
  %v1877 = vsel %vm259, 0, %v1876
  %v1880 = vpack.i.b16 %v1875, %v1856
  %v1881 = vshrl.u32 %v1856, 16
  %v1882 = vshrl.u32 %v1875, 16
  %v1883 = vpack.i.b16 %v1882, %v1881
  %v1886 = vpack.i.b16 %v1877, %v1858
  %v1887 = vshrl.u32 %v1858, 16
  %v1888 = vshrl.u32 %v1877, 16
  %v1889 = vpack.i.b16 %v1888, %v1887
  %1890 = vrot.lane.b32.xlu0 %v227, 64
  %v1891 = vpop.permute.xlu0 %1890
  %1892 = vrot.lane.b32.xlu0 %v1763, 64
  %v1893 = vpop.permute.xlu0 %1892
  %1894 = vrot.lane.b32.xlu0 %v1765, 64
  %v1895 = vpop.permute.xlu0 %1894
  %1896 = vrot.lane.b32.xlu0 %v1767, 64
  %v1897 = vpop.permute.xlu0 %1896
  %v1900 = vpack.i.b16 %v1893, %v1891
  %v1901 = vshrl.u32 %v1891, 16
  %v1902 = vshrl.u32 %v1893, 16
  %v1903 = vpack.i.b16 %v1902, %v1901
  %v1906 = vpack.i.b16 %v1897, %v1895
  %v1907 = vshrl.u32 %v1895, 16
  %v1908 = vshrl.u32 %v1897, 16
  %v1909 = vpack.i.b16 %v1908, %v1907
  %v1912 = vunpack.c.l.s4 1983009808
  %v1913 = vunpack.c.0.s8 %v1912
  %v1914 = vperm.slane %v1900, %v1913
  %v1917 = vunpack.c.l.s4 1983009808
  %v1918 = vunpack.c.0.s8 %v1917
  %v1919 = vperm.slane %v1906, %v1918
  %v1920 = vrot.slane %v1919, 4
  %v1921 = vsel %vm259, %v1920, %v1914
  %v1922 = vrot.slane %v1914, 4
  %v1923 = vsel %vm259, %v1919, %v1922
  %v1925 = vunpack.c.l.s4 1934713408
  %v1926 = vunpack.c.0.s8 %v1925
  %v1927 = vperm.slane %v1921, %v1926
  %v1929 = vunpack.c.l.s4 1934713408
  %v1930 = vunpack.c.0.s8 %v1929
  %v1931 = vperm.slane %v1923, %v1930
  %v1932 = vrot.slane %v1927, 4
  %v1933 = vsel %vm259, 0, %v1932
  %v1934 = vrot.slane %v1931, 4
  %v1935 = vsel %vm259, 0, %v1934
  %v1938 = vunpack.c.l.s4 1983009808
  %v1939 = vunpack.c.0.s8 %v1938
  %v1940 = vperm.slane %v1903, %v1939
  %v1943 = vunpack.c.l.s4 1983009808
  %v1944 = vunpack.c.0.s8 %v1943
  %v1945 = vperm.slane %v1909, %v1944
  %v1946 = vrot.slane %v1945, 4
  %v1947 = vsel %vm259, %v1946, %v1940
  %v1948 = vrot.slane %v1940, 4
  %v1949 = vsel %vm259, %v1945, %v1948
  %v1951 = vunpack.c.l.s4 1934713408
  %v1952 = vunpack.c.0.s8 %v1951
  %v1953 = vperm.slane %v1947, %v1952
  %v1955 = vunpack.c.l.s4 1934713408
  %v1956 = vunpack.c.0.s8 %v1955
  %v1957 = vperm.slane %v1949, %v1956
  %v1958 = vrot.slane %v1953, 4
  %v1959 = vsel %vm259, 0, %v1958
  %v1960 = vrot.slane %v1957, 4
  %v1961 = vsel %vm259, 0, %v1960
  %v1962 = vsel %vm259, %v1934, %v1927
  %v1964 = vunpack.c.l.s4 1983009808
  %v1965 = vunpack.c.0.s8 %v1964
  %v1966 = vperm.slane %v1962, %v1965
  %v1967 = vrot.slane %v1935, 4
  %v1968 = vsel %vm259, %v1967, %v1933
  %v1970 = vunpack.c.l.s4 1983009808
  %v1971 = vunpack.c.0.s8 %v1970
  %v1972 = vperm.slane %v1968, %v1971
  %v1973 = vrot.slane %v1972, 4
  %v1974 = vsel %vm259, %v1973, %v1966
  %v1976 = vunpack.c.l.s4 1934713408
  %v1977 = vunpack.c.0.s8 %v1976
  %v1978 = vperm.slane %v1974, %v1977
  %v1979 = vrot.slane %v1978, 4
  %v1980 = vsel %vm259, 0, %v1979
  %v1981 = vsel %vm259, %v1960, %v1953
  %v1983 = vunpack.c.l.s4 1983009808
  %v1984 = vunpack.c.0.s8 %v1983
  %v1985 = vperm.slane %v1981, %v1984
  %v1986 = vrot.slane %v1961, 4
  %v1987 = vsel %vm259, %v1986, %v1959
  %v1989 = vunpack.c.l.s4 1983009808
  %v1990 = vunpack.c.0.s8 %v1989
  %v1991 = vperm.slane %v1987, %v1990
  %v1992 = vrot.slane %v1991, 4
  %v1993 = vsel %vm259, %v1992, %v1985
  %v1995 = vunpack.c.l.s4 1934713408
  %v1996 = vunpack.c.0.s8 %v1995
  %v1997 = vperm.slane %v1993, %v1996
  %v1998 = vrot.slane %v1997, 4
  %v1999 = vsel %vm259, 0, %v1998
  %v2002 = vpack.i.b16 %v1997, %v1978
  %v2003 = vshrl.u32 %v1978, 16
  %v2004 = vshrl.u32 %v1997, 16
  %v2005 = vpack.i.b16 %v2004, %v2003
  %v2008 = vpack.i.b16 %v1999, %v1980
  %v2009 = vshrl.u32 %v1980, 16
  %v2010 = vshrl.u32 %v1999, 16
  %v2011 = vpack.i.b16 %v2010, %v2009
  %s2012 = scalar_lea.vmem %s1, 2
  %v2013 = vld [vmem:[%s2012] sm:$0x1]
  %v2015 = vperm.slane %v2013, 0
  %v2018 = vsel %vm606, %v1751, 0
  %v2021 = vsel %vm606, %v1880, 0
  %2023 = vmatpush.bf16.xpose.msra.mxu0 0
  %2024 = vmatpush.bf16.xpose.msra.mxu0 0
  %2025 = vmatpush.bf16.xpose.msra.mxu0 0
  %2026 = vmatpush.bf16.xpose.msra.mxu0 0
  %2027 = vmatpush.bf16.xpose.msra.mxu0 0
  %2028 = vmatpush.bf16.xpose.msra.mxu0 0
  %2029 = vmatpush.bf16.xpose.msra.mxu0 0
  %2030 = vmatpush.bf16.xpose.msra.mxu0 %v2021
  %2031 = vmatmul.bf16.gmra.mxu0 %v2018
  %v2032 = vpop.f32.mrf.mxu0
  %v2033 = vadd.f32 %v2015, %v2032
  %v2034 = vpop.f32.mrf.mxu0
  %2035 = vdwg.mxu0
  %v2037 = vsel %vm606, %v1754, 0
  %v2040 = vsel %vm606, %v1883, 0
  %2042 = vmatpush.bf16.xpose.msra.mxu0 0
  %2043 = vmatpush.bf16.xpose.msra.mxu0 0
  %2044 = vmatpush.bf16.xpose.msra.mxu0 0
  %2045 = vmatpush.bf16.xpose.msra.mxu0 0
  %2046 = vmatpush.bf16.xpose.msra.mxu0 0
  %2047 = vmatpush.bf16.xpose.msra.mxu0 0
  %2048 = vmatpush.bf16.xpose.msra.mxu0 0
  %2049 = vmatpush.bf16.xpose.msra.mxu0 %v2040
  %2050 = vmatmul.bf16.gmra.mxu0 %v2037
  %v2051 = vpop.f32.mrf.mxu0
  %v2052 = vadd.f32 %v2015, %v2051
  %v2053 = vpop.f32.mrf.mxu0
  %2054 = vdwg.mxu0
  %v2056 = vsel %vm606, %v1757, 0
  %v2059 = vsel %vm606, %v1886, 0
  %2061 = vmatpush.bf16.xpose.msra.mxu0 0
  %2062 = vmatpush.bf16.xpose.msra.mxu0 0
  %2063 = vmatpush.bf16.xpose.msra.mxu0 0
  %2064 = vmatpush.bf16.xpose.msra.mxu0 0
  %2065 = vmatpush.bf16.xpose.msra.mxu0 0
  %2066 = vmatpush.bf16.xpose.msra.mxu0 0
  %2067 = vmatpush.bf16.xpose.msra.mxu0 0
  %2068 = vmatpush.bf16.xpose.msra.mxu0 %v2059
  %2069 = vmatmul.bf16.gmra.mxu0 %v2056
  %v2070 = vpop.f32.mrf.mxu0
  %v2071 = vadd.f32 %v2015, %v2070
  %v2072 = vpop.f32.mrf.mxu0
  %2073 = vdwg.mxu0
  %v2075 = vsel %vm606, %v1760, 0
  %v2078 = vsel %vm606, %v1889, 0
  %2080 = vmatpush.bf16.xpose.msra.mxu0 0
  %2081 = vmatpush.bf16.xpose.msra.mxu0 0
  %2082 = vmatpush.bf16.xpose.msra.mxu0 0
  %2083 = vmatpush.bf16.xpose.msra.mxu0 0
  %2084 = vmatpush.bf16.xpose.msra.mxu0 0
  %2085 = vmatpush.bf16.xpose.msra.mxu0 0
  %2086 = vmatpush.bf16.xpose.msra.mxu0 0
  %2087 = vmatpush.bf16.xpose.msra.mxu0 %v2078
  %2088 = vmatmul.bf16.gmra.mxu0 %v2075
  %v2089 = vpop.f32.mrf.mxu0
  %v2090 = vadd.f32 %v2015, %v2089
  %v2091 = vpop.f32.mrf.mxu0
  %2092 = vdwg.mxu0
  %v2093 = vsel %vm606, %v2033, -inf
  %2094 = vmax.xlane.f32.xlu0 %v2093
  %v2095 = vpop.xlane.xlu0 %2094
  %v2096 = vsel %vm606, %v2052, -inf
  %2097 = vmax.xlane.f32.xlu0 %v2096
  %v2098 = vpop.xlane.xlu0 %2097
  %v2099 = vsel %vm606, %v2071, -inf
  %2100 = vmax.xlane.f32.xlu0 %v2099
  %v2101 = vpop.xlane.xlu0 %2100
  %v2102 = vsel %vm606, %v2090, -inf
  %2103 = vmax.xlane.f32.xlu0 %v2102
  %v2104 = vpop.xlane.xlu0 %2103
  %v2105 = vsub.f32 %v2033, %v2095
  %v2106 = vsub.f32 %v2052, %v2098
  %v2107 = vsub.f32 %v2071, %v2101
  %v2108 = vsub.f32 %v2090, %v2104
  %v2109 = vmul.f32 %v2105, 1.442695
  %v2110 = vpow.pop %v2109
  %v2111 = vmul.f32 %v2106, 1.442695
  %v2112 = vpow.pop %v2111
  %v2113 = vmul.f32 %v2107, 1.442695
  %v2114 = vpow.pop %v2113
  %v2115 = vmul.f32 %v2108, 1.442695
  %v2116 = vpow.pop %v2115
  %v2117 = vsel %vm606, %v2110, 0.0
  %2118 = vadd.xlane.f32.xlu0 %v2117
  %v2119 = vpop.xlane.xlu0 %2118
  %v2120 = vsel %vm606, %v2112, 0.0
  %2121 = vadd.xlane.f32.xlu0 %v2120
  %v2122 = vpop.xlane.xlu0 %2121
  %v2123 = vsel %vm606, %v2114, 0.0
  %2124 = vadd.xlane.f32.xlu0 %v2123
  %v2125 = vpop.xlane.xlu0 %2124
  %v2126 = vsel %vm606, %v2116, 0.0
  %2127 = vadd.xlane.f32.xlu0 %v2126
  %v2128 = vpop.xlane.xlu0 %2127
  %v2129 = vrcp.pop %v2119
  %v2130 = vrcp.pop %v2122
  %v2131 = vrcp.pop %v2125
  %v2132 = vrcp.pop %v2128
  %v2133 = vmul.f32 %v2110, %v2129
  %v2134 = vmul.f32 %v2112, %v2130
  %v2135 = vmul.f32 %v2114, %v2131
  %v2136 = vmul.f32 %v2116, %v2132
  %v2137 = vpack.c.bf16 %v2133, %v2133
  %v2138 = vpack.c.bf16 %v2134, %v2134
  %v2139 = vpack.c.bf16 %v2135, %v2135
  %v2140 = vpack.c.bf16 %v2136, %v2136
  %v2142 = vsel %vm606, %v2137, 0
  %v2145 = vsel %vm734, %v2002, 0
  %2147 = vmatpush.bf16.msra.mxu0 0
  %2148 = vmatpush.bf16.msra.mxu0 0
  %2149 = vmatpush.bf16.msra.mxu0 0
  %2150 = vmatpush.bf16.msra.mxu0 0
  %2151 = vmatpush.bf16.msra.mxu0 0
  %2152 = vmatpush.bf16.msra.mxu0 0
  %2153 = vmatpush.bf16.msra.mxu0 0
  %2154 = vmatpush.bf16.msra.mxu0 %v2145
  %2155 = vmatmul.bf16.gmra.mxu0 %v2142
  %v2156 = vpop.f32.mrf.mxu0
  %v2157 = vadd.f32 0.0, %v2156
  %v2158 = vpop.f32.mrf.mxu0
  %2159 = vdwg.mxu0
  %v2161 = vsel %vm606, %v2138, 0
  %v2164 = vsel %vm734, %v2005, 0
  %2166 = vmatpush.bf16.msra.mxu0 0
  %2167 = vmatpush.bf16.msra.mxu0 0
  %2168 = vmatpush.bf16.msra.mxu0 0
  %2169 = vmatpush.bf16.msra.mxu0 0
  %2170 = vmatpush.bf16.msra.mxu0 0
  %2171 = vmatpush.bf16.msra.mxu0 0
  %2172 = vmatpush.bf16.msra.mxu0 0
  %2173 = vmatpush.bf16.msra.mxu0 %v2164
  %2174 = vmatmul.bf16.gmra.mxu0 %v2161
  %v2175 = vpop.f32.mrf.mxu0
  %v2176 = vadd.f32 0.0, %v2175
  %v2177 = vpop.f32.mrf.mxu0
  %2178 = vdwg.mxu0
  %v2180 = vsel %vm606, %v2139, 0
  %v2183 = vsel %vm734, %v2008, 0
  %2185 = vmatpush.bf16.msra.mxu0 0
  %2186 = vmatpush.bf16.msra.mxu0 0
  %2187 = vmatpush.bf16.msra.mxu0 0
  %2188 = vmatpush.bf16.msra.mxu0 0
  %2189 = vmatpush.bf16.msra.mxu0 0
  %2190 = vmatpush.bf16.msra.mxu0 0
  %2191 = vmatpush.bf16.msra.mxu0 0
  %2192 = vmatpush.bf16.msra.mxu0 %v2183
  %2193 = vmatmul.bf16.gmra.mxu0 %v2180
  %v2194 = vpop.f32.mrf.mxu0
  %v2195 = vadd.f32 0.0, %v2194
  %v2196 = vpop.f32.mrf.mxu0
  %2197 = vdwg.mxu0
  %v2199 = vsel %vm606, %v2140, 0
  %v2202 = vsel %vm734, %v2011, 0
  %2204 = vmatpush.bf16.msra.mxu0 0
  %2205 = vmatpush.bf16.msra.mxu0 0
  %2206 = vmatpush.bf16.msra.mxu0 0
  %2207 = vmatpush.bf16.msra.mxu0 0
  %2208 = vmatpush.bf16.msra.mxu0 0
  %2209 = vmatpush.bf16.msra.mxu0 0
  %2210 = vmatpush.bf16.msra.mxu0 0
  %2211 = vmatpush.bf16.msra.mxu0 %v2202
  %2212 = vmatmul.bf16.gmra.mxu0 %v2199
  %v2213 = vpop.f32.mrf.mxu0
  %v2214 = vadd.f32 0.0, %v2213
  %v2215 = vpop.f32.mrf.mxu0
  %2216 = vdwg.mxu0
  %v2217 = vrot.slane %v2195, 4
  %v2218 = vsel %vm809, %v2217, %v2157
  %v2219 = vrot.slane %v2157, 4
  %v2220 = vsel %vm809, %v2195, %v2219
  %v2222 = vunpack.c.l.s4 1983009808
  %v2223 = vunpack.c.0.s8 %v2222
  %v2224 = vperm.slane %v2218, %v2223
  %v2226 = vunpack.c.l.s4 1983009808
  %v2227 = vunpack.c.0.s8 %v2226
  %v2228 = vperm.slane %v2220, %v2227
  %v2229 = vrot.slane %v2214, 4
  %v2230 = vsel %vm809, %v2229, %v2176
  %v2231 = vrot.slane %v2176, 4
  %v2232 = vsel %vm809, %v2214, %v2231
  %v2234 = vunpack.c.l.s4 1983009808
  %v2235 = vunpack.c.0.s8 %v2234
  %v2236 = vperm.slane %v2230, %v2235
  %v2238 = vunpack.c.l.s4 1983009808
  %v2239 = vunpack.c.0.s8 %v2238
  %v2240 = vperm.slane %v2232, %v2239
  %v2241 = vrot.slane %v2236, 4
  %v2242 = vsel %vm809, %v2241, %v2224
  %v2243 = vrot.slane %v2224, 4
  %v2244 = vsel %vm809, %v2236, %v2243
  %v2246 = vunpack.c.l.s4 1934713408
  %v2247 = vunpack.c.0.s8 %v2246
  %v2248 = vperm.slane %v2242, %v2247
  %v2250 = vunpack.c.l.s4 1934713408
  %v2251 = vunpack.c.0.s8 %v2250
  %v2252 = vperm.slane %v2244, %v2251
  %v2253 = vrot.slane %v2240, 4
  %v2254 = vsel %vm809, %v2253, %v2228
  %v2255 = vrot.slane %v2228, 4
  %v2256 = vsel %vm809, %v2240, %v2255
  %v2258 = vunpack.c.l.s4 1934713408
  %v2259 = vunpack.c.0.s8 %v2258
  %v2260 = vperm.slane %v2254, %v2259
  %v2262 = vunpack.c.l.s4 1934713408
  %v2263 = vunpack.c.0.s8 %v2262
  %v2264 = vperm.slane %v2256, %v2263
  %v2265 = vrot.slane %v2248, 4
  %v2266 = vsel %vm809, 0.0, %v2265
  %v2267 = vrot.slane %v2252, 4
  %v2268 = vsel %vm809, 0.0, %v2267
  %v2269 = vrot.slane %v2260, 4
  %v2270 = vsel %vm809, 0.0, %v2269
  %v2271 = vrot.slane %v2264, 4
  %v2272 = vsel %vm809, 0.0, %v2271
  %v2273 = vsel %vm809, %v2267, %v2248
  %v2275 = vunpack.c.l.s4 1983009808
  %v2276 = vunpack.c.0.s8 %v2275
  %v2277 = vperm.slane %v2273, %v2276
  %v2278 = vrot.slane %v2268, 4
  %v2279 = vsel %vm809, %v2278, %v2266
  %v2281 = vunpack.c.l.s4 1983009808
  %v2282 = vunpack.c.0.s8 %v2281
  %v2283 = vperm.slane %v2279, %v2282
  %v2284 = vsel %vm809, %v2271, %v2260
  %v2286 = vunpack.c.l.s4 1983009808
  %v2287 = vunpack.c.0.s8 %v2286
  %v2288 = vperm.slane %v2284, %v2287
  %v2289 = vrot.slane %v2272, 4
  %v2290 = vsel %vm809, %v2289, %v2270
  %v2292 = vunpack.c.l.s4 1983009808
  %v2293 = vunpack.c.0.s8 %v2292
  %v2294 = vperm.slane %v2290, %v2293
  %v2295 = vrot.slane %v2283, 4
  %v2296 = vsel %vm809, %v2295, %v2277
  %v2297 = vrot.slane %v2277, 4
  %v2298 = vsel %vm809, %v2283, %v2297
  %v2300 = vunpack.c.l.s4 1934713408
  %v2301 = vunpack.c.0.s8 %v2300
  %v2302 = vperm.slane %v2296, %v2301
  %v2304 = vunpack.c.l.s4 1934713408
  %v2305 = vunpack.c.0.s8 %v2304
  %v2306 = vperm.slane %v2298, %v2305
  %v2307 = vrot.slane %v2294, 4
  %v2308 = vsel %vm809, %v2307, %v2288
  %v2309 = vrot.slane %v2288, 4
  %v2310 = vsel %vm809, %v2294, %v2309
  %v2312 = vunpack.c.l.s4 1934713408
  %v2313 = vunpack.c.0.s8 %v2312
  %v2314 = vperm.slane %v2308, %v2313
  %v2316 = vunpack.c.l.s4 1934713408
  %v2317 = vunpack.c.0.s8 %v2316
  %v2318 = vperm.slane %v2310, %v2317
  %v2319 = vrot.slane %v2314, 4
  %v2320 = vsel %vm809, %v2319, %v2302
  %v2321 = vrot.slane %v2302, 4
  %v2322 = vsel %vm809, %v2314, %v2321
  %v2323 = vrot.slane %v2318, 4
  %v2324 = vsel %vm809, %v2323, %v2306
  %v2325 = vrot.slane %v2306, 4
  %v2326 = vsel %vm809, %v2318, %v2325
  %2328 = vrot.lane.b32.xlu0 %v2322, 8
  %v2329 = vpop.permute.xlu0 %2328
  %2332 = vrot.lane.b32.xlu0 %v2324, 16
  %v2333 = vpop.permute.xlu0 %2332
  %2336 = vrot.lane.b32.xlu0 %v2326, 24
  %v2337 = vpop.permute.xlu0 %2336
  %v2339 = vsel %vm606, %v2320, %v2329
  %v2340 = vsel %vm932, %v2339, %v2333
  %v2341 = vsel %vm934, %v2340, %v2337
  %v2342 = vpack.c.bf16 %v2341, %v2341
  %2344 = vrot.lane.b32.xlu0 %v224, 120
  %v2345 = vpop.permute.xlu0 %2344
  %2346 = vrot.lane.b32.xlu0 %v224, 112
  %v2347 = vpop.permute.xlu0 %2346
  %2348 = vrot.lane.b32.xlu0 %v224, 104
  %v2349 = vpop.permute.xlu0 %2348
  %v2352 = vpack.i.b16 %v2345, %v224
  %v2353 = vshrl.u32 %v224, 16
  %v2354 = vshrl.u32 %v2345, 16
  %v2355 = vpack.i.b16 %v2354, %v2353
  %v2358 = vpack.i.b16 %v2349, %v2347
  %v2359 = vshrl.u32 %v2347, 16
  %v2360 = vshrl.u32 %v2349, 16
  %v2361 = vpack.i.b16 %v2360, %v2359
  %v2364 = vunpack.c.l.s4 1983009808
  %v2365 = vunpack.c.0.s8 %v2364
  %v2366 = vperm.slane %v2352, %v2365
  %v2369 = vunpack.c.l.s4 1983009808
  %v2370 = vunpack.c.0.s8 %v2369
  %v2371 = vperm.slane %v2358, %v2370
  %v2372 = vrot.slane %v2371, 4
  %v2373 = vsel %vm259, %v2372, %v2366
  %v2374 = vrot.slane %v2366, 4
  %v2375 = vsel %vm259, %v2371, %v2374
  %v2377 = vunpack.c.l.s4 1934713408
  %v2378 = vunpack.c.0.s8 %v2377
  %v2379 = vperm.slane %v2373, %v2378
  %v2381 = vunpack.c.l.s4 1934713408
  %v2382 = vunpack.c.0.s8 %v2381
  %v2383 = vperm.slane %v2375, %v2382
  %v2384 = vrot.slane %v2379, 4
  %v2385 = vsel %vm259, 0, %v2384
  %v2386 = vrot.slane %v2383, 4
  %v2387 = vsel %vm259, 0, %v2386
  %v2390 = vunpack.c.l.s4 1983009808
  %v2391 = vunpack.c.0.s8 %v2390
  %v2392 = vperm.slane %v2355, %v2391
  %v2395 = vunpack.c.l.s4 1983009808
  %v2396 = vunpack.c.0.s8 %v2395
  %v2397 = vperm.slane %v2361, %v2396
  %v2398 = vrot.slane %v2397, 4
  %v2399 = vsel %vm259, %v2398, %v2392
  %v2400 = vrot.slane %v2392, 4
  %v2401 = vsel %vm259, %v2397, %v2400
  %v2403 = vunpack.c.l.s4 1934713408
  %v2404 = vunpack.c.0.s8 %v2403
  %v2405 = vperm.slane %v2399, %v2404
  %v2407 = vunpack.c.l.s4 1934713408
  %v2408 = vunpack.c.0.s8 %v2407
  %v2409 = vperm.slane %v2401, %v2408
  %v2410 = vrot.slane %v2405, 4
  %v2411 = vsel %vm259, 0, %v2410
  %v2412 = vrot.slane %v2409, 4
  %v2413 = vsel %vm259, 0, %v2412
  %v2414 = vsel %vm259, %v2386, %v2379
  %v2416 = vunpack.c.l.s4 1983009808
  %v2417 = vunpack.c.0.s8 %v2416
  %v2418 = vperm.slane %v2414, %v2417
  %v2419 = vrot.slane %v2387, 4
  %v2420 = vsel %vm259, %v2419, %v2385
  %v2422 = vunpack.c.l.s4 1983009808
  %v2423 = vunpack.c.0.s8 %v2422
  %v2424 = vperm.slane %v2420, %v2423
  %v2425 = vrot.slane %v2424, 4
  %v2426 = vsel %vm259, %v2425, %v2418
  %v2428 = vunpack.c.l.s4 1934713408
  %v2429 = vunpack.c.0.s8 %v2428
  %v2430 = vperm.slane %v2426, %v2429
  %v2431 = vrot.slane %v2430, 4
  %v2432 = vsel %vm259, 0, %v2431
  %v2433 = vsel %vm259, %v2412, %v2405
  %v2435 = vunpack.c.l.s4 1983009808
  %v2436 = vunpack.c.0.s8 %v2435
  %v2437 = vperm.slane %v2433, %v2436
  %v2438 = vrot.slane %v2413, 4
  %v2439 = vsel %vm259, %v2438, %v2411
  %v2441 = vunpack.c.l.s4 1983009808
  %v2442 = vunpack.c.0.s8 %v2441
  %v2443 = vperm.slane %v2439, %v2442
  %v2444 = vrot.slane %v2443, 4
  %v2445 = vsel %vm259, %v2444, %v2437
  %v2447 = vunpack.c.l.s4 1934713408
  %v2448 = vunpack.c.0.s8 %v2447
  %v2449 = vperm.slane %v2445, %v2448
  %v2450 = vrot.slane %v2449, 4
  %v2451 = vsel %vm259, 0, %v2450
  %v2454 = vpack.i.b16 %v2449, %v2430
  %v2455 = vshrl.u32 %v2430, 16
  %v2456 = vshrl.u32 %v2449, 16
  %v2457 = vpack.i.b16 %v2456, %v2455
  %v2460 = vpack.i.b16 %v2451, %v2432
  %v2461 = vshrl.u32 %v2432, 16
  %v2462 = vshrl.u32 %v2451, 16
  %v2463 = vpack.i.b16 %v2462, %v2461
  %2465 = vrot.lane.b32.xlu0 %v228, 120
  %v2466 = vpop.permute.xlu0 %2465
  %2467 = vrot.lane.b32.xlu0 %v228, 112
  %v2468 = vpop.permute.xlu0 %2467
  %2469 = vrot.lane.b32.xlu0 %v228, 104
  %v2470 = vpop.permute.xlu0 %2469
  %2471 = vrot.lane.b32.xlu0 %v228, 96
  %v2472 = vpop.permute.xlu0 %2471
  %2473 = vrot.lane.b32.xlu0 %v2466, 96
  %v2474 = vpop.permute.xlu0 %2473
  %2475 = vrot.lane.b32.xlu0 %v2468, 96
  %v2476 = vpop.permute.xlu0 %2475
  %2477 = vrot.lane.b32.xlu0 %v2470, 96
  %v2478 = vpop.permute.xlu0 %2477
  %v2481 = vpack.i.b16 %v2474, %v2472
  %v2482 = vshrl.u32 %v2472, 16
  %v2483 = vshrl.u32 %v2474, 16
  %v2484 = vpack.i.b16 %v2483, %v2482
  %v2487 = vpack.i.b16 %v2478, %v2476
  %v2488 = vshrl.u32 %v2476, 16
  %v2489 = vshrl.u32 %v2478, 16
  %v2490 = vpack.i.b16 %v2489, %v2488
  %v2493 = vunpack.c.l.s4 1983009808
  %v2494 = vunpack.c.0.s8 %v2493
  %v2495 = vperm.slane %v2481, %v2494
  %v2498 = vunpack.c.l.s4 1983009808
  %v2499 = vunpack.c.0.s8 %v2498
  %v2500 = vperm.slane %v2487, %v2499
  %v2501 = vrot.slane %v2500, 4
  %v2502 = vsel %vm259, %v2501, %v2495
  %v2503 = vrot.slane %v2495, 4
  %v2504 = vsel %vm259, %v2500, %v2503
  %v2506 = vunpack.c.l.s4 1934713408
  %v2507 = vunpack.c.0.s8 %v2506
  %v2508 = vperm.slane %v2502, %v2507
  %v2510 = vunpack.c.l.s4 1934713408
  %v2511 = vunpack.c.0.s8 %v2510
  %v2512 = vperm.slane %v2504, %v2511
  %v2513 = vrot.slane %v2508, 4
  %v2514 = vsel %vm259, 0, %v2513
  %v2515 = vrot.slane %v2512, 4
  %v2516 = vsel %vm259, 0, %v2515
  %v2519 = vunpack.c.l.s4 1983009808
  %v2520 = vunpack.c.0.s8 %v2519
  %v2521 = vperm.slane %v2484, %v2520
  %v2524 = vunpack.c.l.s4 1983009808
  %v2525 = vunpack.c.0.s8 %v2524
  %v2526 = vperm.slane %v2490, %v2525
  %v2527 = vrot.slane %v2526, 4
  %v2528 = vsel %vm259, %v2527, %v2521
  %v2529 = vrot.slane %v2521, 4
  %v2530 = vsel %vm259, %v2526, %v2529
  %v2532 = vunpack.c.l.s4 1934713408
  %v2533 = vunpack.c.0.s8 %v2532
  %v2534 = vperm.slane %v2528, %v2533
  %v2536 = vunpack.c.l.s4 1934713408
  %v2537 = vunpack.c.0.s8 %v2536
  %v2538 = vperm.slane %v2530, %v2537
  %v2539 = vrot.slane %v2534, 4
  %v2540 = vsel %vm259, 0, %v2539
  %v2541 = vrot.slane %v2538, 4
  %v2542 = vsel %vm259, 0, %v2541
  %v2543 = vsel %vm259, %v2515, %v2508
  %v2545 = vunpack.c.l.s4 1983009808
  %v2546 = vunpack.c.0.s8 %v2545
  %v2547 = vperm.slane %v2543, %v2546
  %v2548 = vrot.slane %v2516, 4
  %v2549 = vsel %vm259, %v2548, %v2514
  %v2551 = vunpack.c.l.s4 1983009808
  %v2552 = vunpack.c.0.s8 %v2551
  %v2553 = vperm.slane %v2549, %v2552
  %v2554 = vrot.slane %v2553, 4
  %v2555 = vsel %vm259, %v2554, %v2547
  %v2557 = vunpack.c.l.s4 1934713408
  %v2558 = vunpack.c.0.s8 %v2557
  %v2559 = vperm.slane %v2555, %v2558
  %v2560 = vrot.slane %v2559, 4
  %v2561 = vsel %vm259, 0, %v2560
  %v2562 = vsel %vm259, %v2541, %v2534
  %v2564 = vunpack.c.l.s4 1983009808
  %v2565 = vunpack.c.0.s8 %v2564
  %v2566 = vperm.slane %v2562, %v2565
  %v2567 = vrot.slane %v2542, 4
  %v2568 = vsel %vm259, %v2567, %v2540
  %v2570 = vunpack.c.l.s4 1983009808
  %v2571 = vunpack.c.0.s8 %v2570
  %v2572 = vperm.slane %v2568, %v2571
  %v2573 = vrot.slane %v2572, 4
  %v2574 = vsel %vm259, %v2573, %v2566
  %v2576 = vunpack.c.l.s4 1934713408
  %v2577 = vunpack.c.0.s8 %v2576
  %v2578 = vperm.slane %v2574, %v2577
  %v2579 = vrot.slane %v2578, 4
  %v2580 = vsel %vm259, 0, %v2579
  %v2583 = vpack.i.b16 %v2578, %v2559
  %v2584 = vshrl.u32 %v2559, 16
  %v2585 = vshrl.u32 %v2578, 16
  %v2586 = vpack.i.b16 %v2585, %v2584
  %v2589 = vpack.i.b16 %v2580, %v2561
  %v2590 = vshrl.u32 %v2561, 16
  %v2591 = vshrl.u32 %v2580, 16
  %v2592 = vpack.i.b16 %v2591, %v2590
  %2593 = vrot.lane.b32.xlu0 %v228, 64
  %v2594 = vpop.permute.xlu0 %2593
  %2595 = vrot.lane.b32.xlu0 %v2466, 64
  %v2596 = vpop.permute.xlu0 %2595
  %2597 = vrot.lane.b32.xlu0 %v2468, 64
  %v2598 = vpop.permute.xlu0 %2597
  %2599 = vrot.lane.b32.xlu0 %v2470, 64
  %v2600 = vpop.permute.xlu0 %2599
  %v2603 = vpack.i.b16 %v2596, %v2594
  %v2604 = vshrl.u32 %v2594, 16
  %v2605 = vshrl.u32 %v2596, 16
  %v2606 = vpack.i.b16 %v2605, %v2604
  %v2609 = vpack.i.b16 %v2600, %v2598
  %v2610 = vshrl.u32 %v2598, 16
  %v2611 = vshrl.u32 %v2600, 16
  %v2612 = vpack.i.b16 %v2611, %v2610
  %v2615 = vunpack.c.l.s4 1983009808
  %v2616 = vunpack.c.0.s8 %v2615
  %v2617 = vperm.slane %v2603, %v2616
  %v2620 = vunpack.c.l.s4 1983009808
  %v2621 = vunpack.c.0.s8 %v2620
  %v2622 = vperm.slane %v2609, %v2621
  %v2623 = vrot.slane %v2622, 4
  %v2624 = vsel %vm259, %v2623, %v2617
  %v2625 = vrot.slane %v2617, 4
  %v2626 = vsel %vm259, %v2622, %v2625
  %v2628 = vunpack.c.l.s4 1934713408
  %v2629 = vunpack.c.0.s8 %v2628
  %v2630 = vperm.slane %v2624, %v2629
  %v2632 = vunpack.c.l.s4 1934713408
  %v2633 = vunpack.c.0.s8 %v2632
  %v2634 = vperm.slane %v2626, %v2633
  %v2635 = vrot.slane %v2630, 4
  %v2636 = vsel %vm259, 0, %v2635
  %v2637 = vrot.slane %v2634, 4
  %v2638 = vsel %vm259, 0, %v2637
  %v2641 = vunpack.c.l.s4 1983009808
  %v2642 = vunpack.c.0.s8 %v2641
  %v2643 = vperm.slane %v2606, %v2642
  %v2646 = vunpack.c.l.s4 1983009808
  %v2647 = vunpack.c.0.s8 %v2646
  %v2648 = vperm.slane %v2612, %v2647
  %v2649 = vrot.slane %v2648, 4
  %v2650 = vsel %vm259, %v2649, %v2643
  %v2651 = vrot.slane %v2643, 4
  %v2652 = vsel %vm259, %v2648, %v2651
  %v2654 = vunpack.c.l.s4 1934713408
  %v2655 = vunpack.c.0.s8 %v2654
  %v2656 = vperm.slane %v2650, %v2655
  %v2658 = vunpack.c.l.s4 1934713408
  %v2659 = vunpack.c.0.s8 %v2658
  %v2660 = vperm.slane %v2652, %v2659
  %v2661 = vrot.slane %v2656, 4
  %v2662 = vsel %vm259, 0, %v2661
  %v2663 = vrot.slane %v2660, 4
  %v2664 = vsel %vm259, 0, %v2663
  %v2665 = vsel %vm259, %v2637, %v2630
  %v2667 = vunpack.c.l.s4 1983009808
  %v2668 = vunpack.c.0.s8 %v2667
  %v2669 = vperm.slane %v2665, %v2668
  %v2670 = vrot.slane %v2638, 4
  %v2671 = vsel %vm259, %v2670, %v2636
  %v2673 = vunpack.c.l.s4 1983009808
  %v2674 = vunpack.c.0.s8 %v2673
  %v2675 = vperm.slane %v2671, %v2674
  %v2676 = vrot.slane %v2675, 4
  %v2677 = vsel %vm259, %v2676, %v2669
  %v2679 = vunpack.c.l.s4 1934713408
  %v2680 = vunpack.c.0.s8 %v2679
  %v2681 = vperm.slane %v2677, %v2680
  %v2682 = vrot.slane %v2681, 4
  %v2683 = vsel %vm259, 0, %v2682
  %v2684 = vsel %vm259, %v2663, %v2656
  %v2686 = vunpack.c.l.s4 1983009808
  %v2687 = vunpack.c.0.s8 %v2686
  %v2688 = vperm.slane %v2684, %v2687
  %v2689 = vrot.slane %v2664, 4
  %v2690 = vsel %vm259, %v2689, %v2662
  %v2692 = vunpack.c.l.s4 1983009808
  %v2693 = vunpack.c.0.s8 %v2692
  %v2694 = vperm.slane %v2690, %v2693
  %v2695 = vrot.slane %v2694, 4
  %v2696 = vsel %vm259, %v2695, %v2688
  %v2698 = vunpack.c.l.s4 1934713408
  %v2699 = vunpack.c.0.s8 %v2698
  %v2700 = vperm.slane %v2696, %v2699
  %v2701 = vrot.slane %v2700, 4
  %v2702 = vsel %vm259, 0, %v2701
  %v2705 = vpack.i.b16 %v2700, %v2681
  %v2706 = vshrl.u32 %v2681, 16
  %v2707 = vshrl.u32 %v2700, 16
  %v2708 = vpack.i.b16 %v2707, %v2706
  %v2711 = vpack.i.b16 %v2702, %v2683
  %v2712 = vshrl.u32 %v2683, 16
  %v2713 = vshrl.u32 %v2702, 16
  %v2714 = vpack.i.b16 %v2713, %v2712
  %s2715 = scalar_lea.vmem %s1, 3
  %v2716 = vld [vmem:[%s2715] sm:$0x1]
  %v2718 = vperm.slane %v2716, 0
  %v2721 = vsel %vm606, %v2454, 0
  %v2724 = vsel %vm606, %v2583, 0
  %2726 = vmatpush.bf16.xpose.msra.mxu0 0
  %2727 = vmatpush.bf16.xpose.msra.mxu0 0
  %2728 = vmatpush.bf16.xpose.msra.mxu0 0
  %2729 = vmatpush.bf16.xpose.msra.mxu0 0
  %2730 = vmatpush.bf16.xpose.msra.mxu0 0
  %2731 = vmatpush.bf16.xpose.msra.mxu0 0
  %2732 = vmatpush.bf16.xpose.msra.mxu0 0
  %2733 = vmatpush.bf16.xpose.msra.mxu0 %v2724
  %2734 = vmatmul.bf16.gmra.mxu0 %v2721
  %v2735 = vpop.f32.mrf.mxu0
  %v2736 = vadd.f32 %v2718, %v2735
  %v2737 = vpop.f32.mrf.mxu0
  %2738 = vdwg.mxu0
  %v2740 = vsel %vm606, %v2457, 0
  %v2743 = vsel %vm606, %v2586, 0
  %2745 = vmatpush.bf16.xpose.msra.mxu0 0
  %2746 = vmatpush.bf16.xpose.msra.mxu0 0
  %2747 = vmatpush.bf16.xpose.msra.mxu0 0
  %2748 = vmatpush.bf16.xpose.msra.mxu0 0
  %2749 = vmatpush.bf16.xpose.msra.mxu0 0
  %2750 = vmatpush.bf16.xpose.msra.mxu0 0
  %2751 = vmatpush.bf16.xpose.msra.mxu0 0
  %2752 = vmatpush.bf16.xpose.msra.mxu0 %v2743
  %2753 = vmatmul.bf16.gmra.mxu0 %v2740
  %v2754 = vpop.f32.mrf.mxu0
  %v2755 = vadd.f32 %v2718, %v2754
  %v2756 = vpop.f32.mrf.mxu0
  %2757 = vdwg.mxu0
  %v2759 = vsel %vm606, %v2460, 0
  %v2762 = vsel %vm606, %v2589, 0
  %2764 = vmatpush.bf16.xpose.msra.mxu0 0
  %2765 = vmatpush.bf16.xpose.msra.mxu0 0
  %2766 = vmatpush.bf16.xpose.msra.mxu0 0
  %2767 = vmatpush.bf16.xpose.msra.mxu0 0
  %2768 = vmatpush.bf16.xpose.msra.mxu0 0
  %2769 = vmatpush.bf16.xpose.msra.mxu0 0
  %2770 = vmatpush.bf16.xpose.msra.mxu0 0
  %2771 = vmatpush.bf16.xpose.msra.mxu0 %v2762
  %2772 = vmatmul.bf16.gmra.mxu0 %v2759
  %v2773 = vpop.f32.mrf.mxu0
  %v2774 = vadd.f32 %v2718, %v2773
  %v2775 = vpop.f32.mrf.mxu0
  %2776 = vdwg.mxu0
  %v2778 = vsel %vm606, %v2463, 0
  %v2781 = vsel %vm606, %v2592, 0
  %2783 = vmatpush.bf16.xpose.msra.mxu0 0
  %2784 = vmatpush.bf16.xpose.msra.mxu0 0
  %2785 = vmatpush.bf16.xpose.msra.mxu0 0
  %2786 = vmatpush.bf16.xpose.msra.mxu0 0
  %2787 = vmatpush.bf16.xpose.msra.mxu0 0
  %2788 = vmatpush.bf16.xpose.msra.mxu0 0
  %2789 = vmatpush.bf16.xpose.msra.mxu0 0
  %2790 = vmatpush.bf16.xpose.msra.mxu0 %v2781
  %2791 = vmatmul.bf16.gmra.mxu0 %v2778
  %v2792 = vpop.f32.mrf.mxu0
  %v2793 = vadd.f32 %v2718, %v2792
  %v2794 = vpop.f32.mrf.mxu0
  %2795 = vdwg.mxu0
  %v2796 = vsel %vm606, %v2736, -inf
  %2797 = vmax.xlane.f32.xlu0 %v2796
  %v2798 = vpop.xlane.xlu0 %2797
  %v2799 = vsel %vm606, %v2755, -inf
  %2800 = vmax.xlane.f32.xlu0 %v2799
  %v2801 = vpop.xlane.xlu0 %2800
  %v2802 = vsel %vm606, %v2774, -inf
  %2803 = vmax.xlane.f32.xlu0 %v2802
  %v2804 = vpop.xlane.xlu0 %2803
  %v2805 = vsel %vm606, %v2793, -inf
  %2806 = vmax.xlane.f32.xlu0 %v2805
  %v2807 = vpop.xlane.xlu0 %2806
  %v2808 = vsub.f32 %v2736, %v2798
  %v2809 = vsub.f32 %v2755, %v2801
  %v2810 = vsub.f32 %v2774, %v2804
  %v2811 = vsub.f32 %v2793, %v2807
  %v2812 = vmul.f32 %v2808, 1.442695
  %v2813 = vpow.pop %v2812
  %v2814 = vmul.f32 %v2809, 1.442695
  %v2815 = vpow.pop %v2814
  %v2816 = vmul.f32 %v2810, 1.442695
  %v2817 = vpow.pop %v2816
  %v2818 = vmul.f32 %v2811, 1.442695
  %v2819 = vpow.pop %v2818
  %v2820 = vsel %vm606, %v2813, 0.0
  %2821 = vadd.xlane.f32.xlu0 %v2820
  %v2822 = vpop.xlane.xlu0 %2821
  %v2823 = vsel %vm606, %v2815, 0.0
  %2824 = vadd.xlane.f32.xlu0 %v2823
  %v2825 = vpop.xlane.xlu0 %2824
  %v2826 = vsel %vm606, %v2817, 0.0
  %2827 = vadd.xlane.f32.xlu0 %v2826
  %v2828 = vpop.xlane.xlu0 %2827
  %v2829 = vsel %vm606, %v2819, 0.0
  %2830 = vadd.xlane.f32.xlu0 %v2829
  %v2831 = vpop.xlane.xlu0 %2830
  %v2832 = vrcp.pop %v2822
  %v2833 = vrcp.pop %v2825
  %v2834 = vrcp.pop %v2828
  %v2835 = vrcp.pop %v2831
  %v2836 = vmul.f32 %v2813, %v2832
  %v2837 = vmul.f32 %v2815, %v2833
  %v2838 = vmul.f32 %v2817, %v2834
  %v2839 = vmul.f32 %v2819, %v2835
  %v2840 = vpack.c.bf16 %v2836, %v2836
  %v2841 = vpack.c.bf16 %v2837, %v2837
  %v2842 = vpack.c.bf16 %v2838, %v2838
  %v2843 = vpack.c.bf16 %v2839, %v2839
  %v2845 = vsel %vm606, %v2840, 0
  %v2848 = vsel %vm734, %v2705, 0
  %2850 = vmatpush.bf16.msra.mxu0 0
  %2851 = vmatpush.bf16.msra.mxu0 0
  %2852 = vmatpush.bf16.msra.mxu0 0
  %2853 = vmatpush.bf16.msra.mxu0 0
  %2854 = vmatpush.bf16.msra.mxu0 0
  %2855 = vmatpush.bf16.msra.mxu0 0
  %2856 = vmatpush.bf16.msra.mxu0 0
  %2857 = vmatpush.bf16.msra.mxu0 %v2848
  %2858 = vmatmul.bf16.gmra.mxu0 %v2845
  %v2859 = vpop.f32.mrf.mxu0
  %v2860 = vadd.f32 0.0, %v2859
  %v2861 = vpop.f32.mrf.mxu0
  %2862 = vdwg.mxu0
  %v2864 = vsel %vm606, %v2841, 0
  %v2867 = vsel %vm734, %v2708, 0
  %2869 = vmatpush.bf16.msra.mxu0 0
  %2870 = vmatpush.bf16.msra.mxu0 0
  %2871 = vmatpush.bf16.msra.mxu0 0
  %2872 = vmatpush.bf16.msra.mxu0 0
  %2873 = vmatpush.bf16.msra.mxu0 0
  %2874 = vmatpush.bf16.msra.mxu0 0
  %2875 = vmatpush.bf16.msra.mxu0 0
  %2876 = vmatpush.bf16.msra.mxu0 %v2867
  %2877 = vmatmul.bf16.gmra.mxu0 %v2864
  %v2878 = vpop.f32.mrf.mxu0
  %v2879 = vadd.f32 0.0, %v2878
  %v2880 = vpop.f32.mrf.mxu0
  %2881 = vdwg.mxu0
  %v2883 = vsel %vm606, %v2842, 0
  %v2886 = vsel %vm734, %v2711, 0
  %2888 = vmatpush.bf16.msra.mxu0 0
  %2889 = vmatpush.bf16.msra.mxu0 0
  %2890 = vmatpush.bf16.msra.mxu0 0
  %2891 = vmatpush.bf16.msra.mxu0 0
  %2892 = vmatpush.bf16.msra.mxu0 0
  %2893 = vmatpush.bf16.msra.mxu0 0
  %2894 = vmatpush.bf16.msra.mxu0 0
  %2895 = vmatpush.bf16.msra.mxu0 %v2886
  %2896 = vmatmul.bf16.gmra.mxu0 %v2883
  %v2897 = vpop.f32.mrf.mxu0
  %v2898 = vadd.f32 0.0, %v2897
  %v2899 = vpop.f32.mrf.mxu0
  %2900 = vdwg.mxu0
  %v2902 = vsel %vm606, %v2843, 0
  %v2905 = vsel %vm734, %v2714, 0
  %2907 = vmatpush.bf16.msra.mxu0 0
  %2908 = vmatpush.bf16.msra.mxu0 0
  %2909 = vmatpush.bf16.msra.mxu0 0
  %2910 = vmatpush.bf16.msra.mxu0 0
  %2911 = vmatpush.bf16.msra.mxu0 0
  %2912 = vmatpush.bf16.msra.mxu0 0
  %2913 = vmatpush.bf16.msra.mxu0 0
  %2914 = vmatpush.bf16.msra.mxu0 %v2905
  %2915 = vmatmul.bf16.gmra.mxu0 %v2902
  %v2916 = vpop.f32.mrf.mxu0
  %v2917 = vadd.f32 0.0, %v2916
  %v2918 = vpop.f32.mrf.mxu0
  %2919 = vdwg.mxu0
  %v2920 = vrot.slane %v2898, 4
  %v2921 = vsel %vm809, %v2920, %v2860
  %v2922 = vrot.slane %v2860, 4
  %v2923 = vsel %vm809, %v2898, %v2922
  %v2925 = vunpack.c.l.s4 1983009808
  %v2926 = vunpack.c.0.s8 %v2925
  %v2927 = vperm.slane %v2921, %v2926
  %v2929 = vunpack.c.l.s4 1983009808
  %v2930 = vunpack.c.0.s8 %v2929
  %v2931 = vperm.slane %v2923, %v2930
  %v2932 = vrot.slane %v2917, 4
  %v2933 = vsel %vm809, %v2932, %v2879
  %v2934 = vrot.slane %v2879, 4
  %v2935 = vsel %vm809, %v2917, %v2934
  %v2937 = vunpack.c.l.s4 1983009808
  %v2938 = vunpack.c.0.s8 %v2937
  %v2939 = vperm.slane %v2933, %v2938
  %v2941 = vunpack.c.l.s4 1983009808
  %v2942 = vunpack.c.0.s8 %v2941
  %v2943 = vperm.slane %v2935, %v2942
  %v2944 = vrot.slane %v2939, 4
  %v2945 = vsel %vm809, %v2944, %v2927
  %v2946 = vrot.slane %v2927, 4
  %v2947 = vsel %vm809, %v2939, %v2946
  %v2949 = vunpack.c.l.s4 1934713408
  %v2950 = vunpack.c.0.s8 %v2949
  %v2951 = vperm.slane %v2945, %v2950
  %v2953 = vunpack.c.l.s4 1934713408
  %v2954 = vunpack.c.0.s8 %v2953
  %v2955 = vperm.slane %v2947, %v2954
  %v2956 = vrot.slane %v2943, 4
  %v2957 = vsel %vm809, %v2956, %v2931
  %v2958 = vrot.slane %v2931, 4
  %v2959 = vsel %vm809, %v2943, %v2958
  %v2961 = vunpack.c.l.s4 1934713408
  %v2962 = vunpack.c.0.s8 %v2961
  %v2963 = vperm.slane %v2957, %v2962
  %v2965 = vunpack.c.l.s4 1934713408
  %v2966 = vunpack.c.0.s8 %v2965
  %v2967 = vperm.slane %v2959, %v2966
  %v2968 = vrot.slane %v2951, 4
  %v2969 = vsel %vm809, 0.0, %v2968
  %v2970 = vrot.slane %v2955, 4
  %v2971 = vsel %vm809, 0.0, %v2970
  %v2972 = vrot.slane %v2963, 4
  %v2973 = vsel %vm809, 0.0, %v2972
  %v2974 = vrot.slane %v2967, 4
  %v2975 = vsel %vm809, 0.0, %v2974
  %v2976 = vsel %vm809, %v2970, %v2951
  %v2978 = vunpack.c.l.s4 1983009808
  %v2979 = vunpack.c.0.s8 %v2978
  %v2980 = vperm.slane %v2976, %v2979
  %v2981 = vrot.slane %v2971, 4
  %v2982 = vsel %vm809, %v2981, %v2969
  %v2984 = vunpack.c.l.s4 1983009808
  %v2985 = vunpack.c.0.s8 %v2984
  %v2986 = vperm.slane %v2982, %v2985
  %v2987 = vsel %vm809, %v2974, %v2963
  %v2989 = vunpack.c.l.s4 1983009808
  %v2990 = vunpack.c.0.s8 %v2989
  %v2991 = vperm.slane %v2987, %v2990
  %v2992 = vrot.slane %v2975, 4
  %v2993 = vsel %vm809, %v2992, %v2973
  %v2995 = vunpack.c.l.s4 1983009808
  %v2996 = vunpack.c.0.s8 %v2995
  %v2997 = vperm.slane %v2993, %v2996
  %v2998 = vrot.slane %v2986, 4
  %v2999 = vsel %vm809, %v2998, %v2980
  %v3000 = vrot.slane %v2980, 4
  %v3001 = vsel %vm809, %v2986, %v3000
  %v3003 = vunpack.c.l.s4 1934713408
  %v3004 = vunpack.c.0.s8 %v3003
  %v3005 = vperm.slane %v2999, %v3004
  %v3007 = vunpack.c.l.s4 1934713408
  %v3008 = vunpack.c.0.s8 %v3007
  %v3009 = vperm.slane %v3001, %v3008
  %v3010 = vrot.slane %v2997, 4
  %v3011 = vsel %vm809, %v3010, %v2991
  %v3012 = vrot.slane %v2991, 4
  %v3013 = vsel %vm809, %v2997, %v3012
  %v3015 = vunpack.c.l.s4 1934713408
  %v3016 = vunpack.c.0.s8 %v3015
  %v3017 = vperm.slane %v3011, %v3016
  %v3019 = vunpack.c.l.s4 1934713408
  %v3020 = vunpack.c.0.s8 %v3019
  %v3021 = vperm.slane %v3013, %v3020
  %v3022 = vrot.slane %v3017, 4
  %v3023 = vsel %vm809, %v3022, %v3005
  %v3024 = vrot.slane %v3005, 4
  %v3025 = vsel %vm809, %v3017, %v3024
  %v3026 = vrot.slane %v3021, 4
  %v3027 = vsel %vm809, %v3026, %v3009
  %v3028 = vrot.slane %v3009, 4
  %v3029 = vsel %vm809, %v3021, %v3028
  %3031 = vrot.lane.b32.xlu0 %v3025, 8
  %v3032 = vpop.permute.xlu0 %3031
  %3035 = vrot.lane.b32.xlu0 %v3027, 16
  %v3036 = vpop.permute.xlu0 %3035
  %3039 = vrot.lane.b32.xlu0 %v3029, 24
  %v3040 = vpop.permute.xlu0 %3039
  %v3042 = vsel %vm606, %v3023, %v3032
  %v3043 = vsel %vm932, %v3042, %v3036
  %v3044 = vsel %vm934, %v3043, %v3040
  %v3045 = vpack.c.bf16 %v3044, %v3044
  %v3047 = vunpack.c.l.b16 %v1639
  %v3048 = vpack.c.b16 %v3047, %v3047
  %v3050 = vunpack.c.l.b16 %v3045
  %v3051 = vpack.c.b16 %v3050, %v3050
  %v3054 = vsel %vm734, %v936, %v3048
  %v3057 = vsel %vm734, %v2342, %v3051
  %v3058 = vld [vmem:[%s6] sm:$0xf]
  %v3059 = vld [vmem:[%s6 + $0x4] sm:$0xf]
  %v3060 = vld [vmem:[%s6 + $0x8] sm:$0xf]
  %v3061 = vld [vmem:[%s6 + $0xc] sm:$0xf]
  %v3062 = vld [vmem:[%s7] sm:$0x1]
  %v3064 = vperm.slane %v3062, 0
  %v3070 = vunpack.c.l.b16 %v3058
  %v3071 = vunpack.c.l.b16 %v3059
  %v3072 = vunpack.c.l.b16 %v3060
  %v3073 = vunpack.c.l.b16 %v3061
  %v3074 = vpack.c.b16 %v3071, %v3070
  %v3075 = vpack.c.b16 %v3073, %v3072
  %v3078 = vsel %vm60, %v3054, 0
  %v3080 = vsel %vm60, %v3057, 0
  %3082 = vmatpush.bf16.msra.mxu0 0
  %3083 = vmatpush.bf16.msra.mxu0 0
  %3084 = vmatpush.bf16.msra.mxu0 0
  %3085 = vmatpush.bf16.msra.mxu0 0
  %3086 = vmatpush.bf16.msra.mxu0 0
  %3087 = vmatpush.bf16.msra.mxu0 0
  %3088 = vmatpush.bf16.msra.mxu0 %v3075
  %3089 = vmatpush.bf16.msra.mxu0 %v3074
  %3090 = vmatmul.bf16.gmra.mxu0 %v3078
  %v3091 = vpop.f32.mrf.mxu0
  %v3092 = vadd.f32 %v3064, %v3091
  %v3093 = vpop.f32.mrf.mxu0
  %v3094 = vadd.f32 %v3064, %v3093
  %3095 = vmatmul.bf16.gmra.mxu0 %v3080
  %v3096 = vpop.f32.mrf.mxu0
  %v3097 = vadd.f32 %v3064, %v3096
  %v3098 = vpop.f32.mrf.mxu0
  %v3099 = vadd.f32 %v3064, %v3098
  %3100 = vdwg.mxu0
  %v3101 = vadd.f32 %v166, %v3092
  %v3102 = vadd.f32 %v167, %v3094
  %v3103 = vadd.f32 %v168, %v3097
  %v3104 = vadd.f32 %v169, %v3099
  %v3105 = vld [vmem:[%s8] sm:$0x1]
  %v3106 = vld [vmem:[%s9] sm:$0x1]
  %v3107 = vsel %vm60, %v3101, 0.0
  %3108 = vadd.xlane.f32.xlu0 %v3107
  %v3109 = vpop.xlane.xlu0 %3108
  %v3110 = vsel %vm60, %v3102, 0.0
  %3111 = vadd.xlane.f32.xlu0 %v3110
  %v3112 = vpop.xlane.xlu0 %3111
  %v3113 = vsel %vm60, %v3103, 0.0
  %3114 = vadd.xlane.f32.xlu0 %v3113
  %v3115 = vpop.xlane.xlu0 %3114
  %v3116 = vsel %vm60, %v3104, 0.0
  %3117 = vadd.xlane.f32.xlu0 %v3116
  %v3118 = vpop.xlane.xlu0 %3117
  %v3119 = vmul.f32 %v3109, %v79
  %v3120 = vmul.f32 %v3112, %v79
  %v3121 = vmul.f32 %v3115, %v79
  %v3122 = vmul.f32 %v3118, %v79
  %v3123 = vsub.f32 %v3101, %v3119
  %v3124 = vsub.f32 %v3102, %v3120
  %v3125 = vsub.f32 %v3103, %v3121
  %v3126 = vsub.f32 %v3104, %v3122
  %v3127 = vmul.f32 %v3123, %v3123
  %v3128 = vmul.f32 %v3124, %v3124
  %v3129 = vmul.f32 %v3125, %v3125
  %v3130 = vmul.f32 %v3126, %v3126
  %v3131 = vsel %vm60, %v3127, 0.0
  %3132 = vadd.xlane.f32.xlu0 %v3131
  %v3133 = vpop.xlane.xlu0 %3132
  %v3134 = vsel %vm60, %v3128, 0.0
  %3135 = vadd.xlane.f32.xlu0 %v3134
  %v3136 = vpop.xlane.xlu0 %3135
  %v3137 = vsel %vm60, %v3129, 0.0
  %3138 = vadd.xlane.f32.xlu0 %v3137
  %v3139 = vpop.xlane.xlu0 %3138
  %v3140 = vsel %vm60, %v3130, 0.0
  %3141 = vadd.xlane.f32.xlu0 %v3140
  %v3142 = vpop.xlane.xlu0 %3141
  %v3143 = vmul.f32 %v3133, %v79
  %v3144 = vmul.f32 %v3136, %v79
  %v3145 = vmul.f32 %v3139, %v79
  %v3146 = vmul.f32 %v3142, %v79
  %v3147 = vadd.f32 %v3143, 1e-12
  %v3148 = vadd.f32 %v3144, 1e-12
  %v3149 = vadd.f32 %v3145, 1e-12
  %v3150 = vadd.f32 %v3146, 1e-12
  %v3151 = vrsqrt.pop %v3147
  %v3152 = vmul.f32 %v3151, %v3147
  %v3153 = vmul.f32 %v3152, %v3151
  %v3154 = vmul.f32 0.5, %v3153
  %v3155 = vsub.f32 1.5, %v3154
  %v3156 = vmul.f32 %v3151, %v3155
  %vm3157 = vweird.f32 %v3147
  %vm3158 = vweird.f32 %v3151
  %vm3159 = vmor %vm3157, %vm3158
  %v3160 = vsel %vm3159, %v3151, %v3156
  %v3161 = vrsqrt.pop %v3148
  %v3162 = vmul.f32 %v3161, %v3148
  %v3163 = vmul.f32 %v3162, %v3161
  %v3164 = vmul.f32 0.5, %v3163
  %v3165 = vsub.f32 1.5, %v3164
  %v3166 = vmul.f32 %v3161, %v3165
  %vm3167 = vweird.f32 %v3148
  %vm3168 = vweird.f32 %v3161
  %vm3169 = vmor %vm3167, %vm3168
  %v3170 = vsel %vm3169, %v3161, %v3166
  %v3171 = vrsqrt.pop %v3149
  %v3172 = vmul.f32 %v3171, %v3149
  %v3173 = vmul.f32 %v3172, %v3171
  %v3174 = vmul.f32 0.5, %v3173
  %v3175 = vsub.f32 1.5, %v3174
  %v3176 = vmul.f32 %v3171, %v3175
  %vm3177 = vweird.f32 %v3149
  %vm3178 = vweird.f32 %v3171
  %vm3179 = vmor %vm3177, %vm3178
  %v3180 = vsel %vm3179, %v3171, %v3176
  %v3181 = vrsqrt.pop %v3150
  %v3182 = vmul.f32 %v3181, %v3150
  %v3183 = vmul.f32 %v3182, %v3181
  %v3184 = vmul.f32 0.5, %v3183
  %v3185 = vsub.f32 1.5, %v3184
  %v3186 = vmul.f32 %v3181, %v3185
  %vm3187 = vweird.f32 %v3150
  %vm3188 = vweird.f32 %v3181
  %vm3189 = vmor %vm3187, %vm3188
  %v3190 = vsel %vm3189, %v3181, %v3186
  %v3191 = vmul.f32 %v3123, %v3160
  %v3192 = vmul.f32 %v3124, %v3170
  %v3193 = vmul.f32 %v3125, %v3180
  %v3194 = vmul.f32 %v3126, %v3190
  %v3196 = vperm.slane %v3105, 0
  %v3198 = vmul.f32 %v3191, %v3196
  %v3199 = vmul.f32 %v3192, %v3196
  %v3200 = vmul.f32 %v3193, %v3196
  %v3201 = vmul.f32 %v3194, %v3196
  %v3203 = vperm.slane %v3106, 0
  %v3205 = vadd.f32 %v3198, %v3203
  %v3206 = vadd.f32 %v3199, %v3203
  %v3207 = vadd.f32 %v3200, %v3203
  %v3208 = vadd.f32 %v3201, %v3203
  %v3209 = vld [vmem:[%s10] sm:$0xf]
  %v3210 = vld [vmem:[%s10 + $0x4] sm:$0xf]
  %v3211 = vld [vmem:[%s10 + $0x8] sm:$0xf]
  %v3212 = vld [vmem:[%s10 + $0xc] sm:$0xf]
  %v3213 = vpack.c.bf16 %v3206, %v3205
  %v3214 = vpack.c.bf16 %v3208, %v3207
  %v3215 = vld [vmem:[%s11] sm:$0x1]
  %v3217 = vperm.slane %v3215, 0
  %v3223 = vunpack.c.l.b16 %v3209
  %v3224 = vunpack.c.l.b16 %v3210
  %v3225 = vunpack.c.l.b16 %v3211
  %v3226 = vunpack.c.l.b16 %v3212
  %v3227 = vpack.c.b16 %v3224, %v3223
  %v3228 = vpack.c.b16 %v3226, %v3225
  %v3232 = vsel %vm60, %v3213, 0
  %v3235 = vsel %vm60, %v3214, 0
  %3237 = vmatpush.bf16.msra.mxu0 0
  %3238 = vmatpush.bf16.msra.mxu0 0
  %3239 = vmatpush.bf16.msra.mxu0 0
  %3240 = vmatpush.bf16.msra.mxu0 0
  %3241 = vmatpush.bf16.msra.mxu0 0
  %3242 = vmatpush.bf16.msra.mxu0 0
  %3243 = vmatpush.bf16.msra.mxu0 %v3228
  %3244 = vmatpush.bf16.msra.mxu0 %v3227
  %3245 = vmatmul.bf16.gmra.mxu0 %v3232
  %v3246 = vpop.f32.mrf.mxu0
  %v3247 = vadd.f32 %v3217, %v3246
  %v3248 = vpop.f32.mrf.mxu0
  %v3249 = vadd.f32 %v3217, %v3248
  %3250 = vmatmul.bf16.gmra.mxu0 %v3235
  %v3251 = vpop.f32.mrf.mxu0
  %v3252 = vadd.f32 %v3217, %v3251
  %v3253 = vpop.f32.mrf.mxu0
  %v3254 = vadd.f32 %v3217, %v3253
  %3255 = vdwg.mxu0
  %v3256 = vmul.f32 %v3247, %v3247
  %v3257 = vmul.f32 %v3249, %v3249
  %v3258 = vmul.f32 %v3252, %v3252
  %v3259 = vmul.f32 %v3254, %v3254
  %v3260 = vmul.f32 %v3247, %v3256
  %v3261 = vmul.f32 %v3249, %v3257
  %v3262 = vmul.f32 %v3252, %v3258
  %v3263 = vmul.f32 %v3254, %v3259
  %v3264 = vmul.f32 %v3260, 0.044715
  %v3265 = vmul.f32 %v3261, 0.044715
  %v3266 = vmul.f32 %v3262, 0.044715
  %v3267 = vmul.f32 %v3263, 0.044715
  %v3268 = vadd.f32 %v3247, %v3264
  %v3269 = vadd.f32 %v3249, %v3265
  %v3270 = vadd.f32 %v3252, %v3266
  %v3271 = vadd.f32 %v3254, %v3267
  %v3272 = vmul.f32 %v3268, 0.7978846
  %v3273 = vmul.f32 %v3269, 0.7978846
  %v3274 = vmul.f32 %v3270, 0.7978846
  %v3275 = vmul.f32 %v3271, 0.7978846
  %v3276 = vtanh.pop %v3272
  %v3277 = vtanh.pop %v3273
  %v3278 = vtanh.pop %v3274
  %v3279 = vtanh.pop %v3275
  %v3280 = vadd.f32 %v3276, 1.0
  %v3281 = vadd.f32 %v3277, 1.0
  %v3282 = vadd.f32 %v3278, 1.0
  %v3283 = vadd.f32 %v3279, 1.0
  %v3284 = vmul.f32 %v3280, 0.5
  %v3285 = vmul.f32 %v3281, 0.5
  %v3286 = vmul.f32 %v3282, 0.5
  %v3287 = vmul.f32 %v3283, 0.5
  %v3288 = vmul.f32 %v3247, %v3284
  %v3289 = vmul.f32 %v3249, %v3285
  %v3290 = vmul.f32 %v3252, %v3286
  %v3291 = vmul.f32 %v3254, %v3287
  %v3292 = vpack.c.bf16 %v3289, %v3288
  %v3293 = vpack.c.bf16 %v3291, %v3290
  %v3294 = vld [vmem:[%s12] sm:$0xf]
  %v3295 = vld [vmem:[%s12 + $0x4] sm:$0xf]
  %v3296 = vld [vmem:[%s12 + $0x8] sm:$0xf]
  %v3297 = vld [vmem:[%s12 + $0xc] sm:$0xf]
  %v3298 = vld [vmem:[%s12 + $0x10] sm:$0xf]
  %v3299 = vld [vmem:[%s12 + $0x14] sm:$0xf]
  %v3300 = vld [vmem:[%s12 + $0x18] sm:$0xf]
  %v3301 = vld [vmem:[%s12 + $0x1c] sm:$0xf]
  %v3302 = vld [vmem:[%s13] sm:$0x1]
  %v3304 = vperm.slane %v3302, 0
  %v3314 = vunpack.c.l.b16 %v3294
  %v3315 = vunpack.c.l.b16 %v3295
  %v3316 = vunpack.c.l.b16 %v3296
  %v3317 = vunpack.c.l.b16 %v3297
  %v3318 = vunpack.c.l.b16 %v3298
  %v3319 = vunpack.c.l.b16 %v3299
  %v3320 = vunpack.c.l.b16 %v3300
  %v3321 = vunpack.c.l.b16 %v3301
  %v3322 = vpack.c.b16 %v3315, %v3314
  %v3323 = vpack.c.b16 %v3317, %v3316
  %v3324 = vpack.c.b16 %v3319, %v3318
  %v3325 = vpack.c.b16 %v3321, %v3320
  %vm3330 = vcmask 523264
  %v3332 = vsel %vm3330, %v3292, 0
  %v3335 = vsel %vm3330, %v3293, 0
  %3337 = vmatpush.bf16.msra.mxu0 0
  %3338 = vmatpush.bf16.msra.mxu0 0
  %3339 = vmatpush.bf16.msra.mxu0 0
  %3340 = vmatpush.bf16.msra.mxu0 0
  %3341 = vmatpush.bf16.msra.mxu0 %v3325
  %3342 = vmatpush.bf16.msra.mxu0 %v3324
  %3343 = vmatpush.bf16.msra.mxu0 %v3323
  %3344 = vmatpush.bf16.msra.mxu0 %v3322
  %3345 = vmatmul.bf16.gmra.mxu0 %v3332
  %v3346 = vpop.f32.mrf.mxu0
  %v3347 = vadd.f32 %v3304, %v3346
  %v3348 = vpop.f32.mrf.mxu0
  %v3349 = vadd.f32 %v3304, %v3348
  %3350 = vmatmul.bf16.gmra.mxu0 %v3335
  %v3351 = vpop.f32.mrf.mxu0
  %v3352 = vadd.f32 %v3304, %v3351
  %v3353 = vpop.f32.mrf.mxu0
  %v3354 = vadd.f32 %v3304, %v3353
  %3355 = vdwg.mxu0
  %v3356 = vadd.f32 %v3205, %v3347
  %v3357 = vadd.f32 %v3206, %v3349
  %v3358 = vadd.f32 %v3207, %v3352
  %v3359 = vadd.f32 %v3208, %v3354
  %v3360 = vld [vmem:[%s14] sm:$0x1]
  %v3361 = vld [vmem:[%s15] sm:$0x1]
  %v3362 = vsel %vm60, %v3356, 0.0
  %3363 = vadd.xlane.f32.xlu0 %v3362
  %v3364 = vpop.xlane.xlu0 %3363
  %v3365 = vsel %vm60, %v3357, 0.0
  %3366 = vadd.xlane.f32.xlu0 %v3365
  %v3367 = vpop.xlane.xlu0 %3366
  %v3368 = vsel %vm60, %v3358, 0.0
  %3369 = vadd.xlane.f32.xlu0 %v3368
  %v3370 = vpop.xlane.xlu0 %3369
  %v3371 = vsel %vm60, %v3359, 0.0
  %3372 = vadd.xlane.f32.xlu0 %v3371
  %v3373 = vpop.xlane.xlu0 %3372
  %v3374 = vmul.f32 %v3364, %v79
  %v3375 = vmul.f32 %v3367, %v79
  %v3376 = vmul.f32 %v3370, %v79
  %v3377 = vmul.f32 %v3373, %v79
  %v3378 = vsub.f32 %v3356, %v3374
  %v3379 = vsub.f32 %v3357, %v3375
  %v3380 = vsub.f32 %v3358, %v3376
  %v3381 = vsub.f32 %v3359, %v3377
  %v3382 = vmul.f32 %v3378, %v3378
  %v3383 = vmul.f32 %v3379, %v3379
  %v3384 = vmul.f32 %v3380, %v3380
  %v3385 = vmul.f32 %v3381, %v3381
  %v3386 = vsel %vm60, %v3382, 0.0
  %3387 = vadd.xlane.f32.xlu0 %v3386
  %v3388 = vpop.xlane.xlu0 %3387
  %v3389 = vsel %vm60, %v3383, 0.0
  %3390 = vadd.xlane.f32.xlu0 %v3389
  %v3391 = vpop.xlane.xlu0 %3390
  %v3392 = vsel %vm60, %v3384, 0.0
  %3393 = vadd.xlane.f32.xlu0 %v3392
  %v3394 = vpop.xlane.xlu0 %3393
  %v3395 = vsel %vm60, %v3385, 0.0
  %3396 = vadd.xlane.f32.xlu0 %v3395
  %v3397 = vpop.xlane.xlu0 %3396
  %v3398 = vmul.f32 %v3388, %v79
  %v3399 = vmul.f32 %v3391, %v79
  %v3400 = vmul.f32 %v3394, %v79
  %v3401 = vmul.f32 %v3397, %v79
  %v3402 = vadd.f32 %v3398, 1e-12
  %v3403 = vadd.f32 %v3399, 1e-12
  %v3404 = vadd.f32 %v3400, 1e-12
  %v3405 = vadd.f32 %v3401, 1e-12
  %v3406 = vrsqrt.pop %v3402
  %v3407 = vmul.f32 %v3406, %v3402
  %v3408 = vmul.f32 %v3407, %v3406
  %v3409 = vmul.f32 0.5, %v3408
  %v3410 = vsub.f32 1.5, %v3409
  %v3411 = vmul.f32 %v3406, %v3410
  %vm3412 = vweird.f32 %v3402
  %vm3413 = vweird.f32 %v3406
  %vm3414 = vmor %vm3412, %vm3413
  %v3415 = vsel %vm3414, %v3406, %v3411
  %v3416 = vrsqrt.pop %v3403
  %v3417 = vmul.f32 %v3416, %v3403
  %v3418 = vmul.f32 %v3417, %v3416
  %v3419 = vmul.f32 0.5, %v3418
  %v3420 = vsub.f32 1.5, %v3419
  %v3421 = vmul.f32 %v3416, %v3420
  %vm3422 = vweird.f32 %v3403
  %vm3423 = vweird.f32 %v3416
  %vm3424 = vmor %vm3422, %vm3423
  %v3425 = vsel %vm3424, %v3416, %v3421
  %v3426 = vrsqrt.pop %v3404
  %v3427 = vmul.f32 %v3426, %v3404
  %v3428 = vmul.f32 %v3427, %v3426
  %v3429 = vmul.f32 0.5, %v3428
  %v3430 = vsub.f32 1.5, %v3429
  %v3431 = vmul.f32 %v3426, %v3430
  %vm3432 = vweird.f32 %v3404
  %vm3433 = vweird.f32 %v3426
  %vm3434 = vmor %vm3432, %vm3433
  %v3435 = vsel %vm3434, %v3426, %v3431
  %v3436 = vrsqrt.pop %v3405
  %v3437 = vmul.f32 %v3436, %v3405
  %v3438 = vmul.f32 %v3437, %v3436
  %v3439 = vmul.f32 0.5, %v3438
  %v3440 = vsub.f32 1.5, %v3439
  %v3441 = vmul.f32 %v3436, %v3440
  %vm3442 = vweird.f32 %v3405
  %vm3443 = vweird.f32 %v3436
  %vm3444 = vmor %vm3442, %vm3443
  %v3445 = vsel %vm3444, %v3436, %v3441
  %v3446 = vmul.f32 %v3378, %v3415
  %v3447 = vmul.f32 %v3379, %v3425
  %v3448 = vmul.f32 %v3380, %v3435
  %v3449 = vmul.f32 %v3381, %v3445
  %v3451 = vperm.slane %v3360, 0
  %v3453 = vmul.f32 %v3446, %v3451
  %v3454 = vmul.f32 %v3447, %v3451
  %v3455 = vmul.f32 %v3448, %v3451
  %v3456 = vmul.f32 %v3449, %v3451
  %v3458 = vperm.slane %v3361, 0
  %v3460 = vadd.f32 %v3453, %v3458
  %v3461 = vadd.f32 %v3454, %v3458
  %v3462 = vadd.f32 %v3455, %v3458
  %v3463 = vadd.f32 %v3456, %v3458
  %v3464 = vpack.c.bf16 %v3460, %v3460
  %v3465 = vpack.c.bf16 %v3461, %v3461
  %v3466 = vpack.c.bf16 %v3462, %v3462
  %v3467 = vpack.c.bf16 %v3463, %v3463
  %vm3468 = vcmask 257024
  %3469 = vst.msk [vmem:[%s16] sm:$0xf] %vm3468, %v3464
  %3470 = vst.msk [vmem:[%s16 + $0x4] sm:$0xf] %vm3468, %v3465
  %3471 = vst.msk [vmem:[%s16 + $0x8] sm:$0xf] %vm3468, %v3466
  %3472 = vst.msk [vmem:[%s16 + $0xc] sm:$0xf] %vm3468, %v3467
  // Predicated region
  $region66: #{siamese_bert_forward.3} parent=0 // pred_check
    _
  $region67: #{siamese_bert_forward.3} parent=0 // pred_check_branch
    %3474 = sbr.rel (0) target = $region69
  $region68: #{siamese_bert_forward.3} parent=0 // pred_region
    _
  $region69: #{siamese_bert_forward.3} parent=0 // pred_fallthru
    _
  // Predicated region
  $region70: #{siamese_bert_forward.3} parent=0 // pred_check
    _
  $region71: #{siamese_bert_forward.3} parent=0 // pred_check_branch
    %3476 = sbr.rel (0) target = $region73
  $region72: #{siamese_bert_forward.3} parent=0 // pred_region
    _
  $region73: #{siamese_bert_forward.3} parent=0 // pred_fallthru
    _

// kernel: siamese_bert_forward.4
$region0: #{siamese_bert_forward.4}
  #allocation0 [shape = 'u32[]', space=smem, size = 0x4, offset = 0x4, fixed_abs, tag = 'smem constant byte address 0x4 - core index']
  #allocation1 [shape = 'u32[72,128]{1,0:T(1,128)}', space=vmem, size = 0x9000, scoped, tag = 'internal scratch']
  %s0 = inlined_call_operand.vmem [shape: bf16[4,8,32], index: 0, kind: input, shape index: {}]
  %s1 = inlined_call_operand.vmem [shape: f32[4,1,8], index: 1, kind: input, shape index: {}]
  %s2 = inlined_call_operand.vmem [shape: bf16[32,96], index: 2, kind: input, shape index: {}]
  %s3 = inlined_call_operand.vmem [shape: f32[1,96], index: 3, kind: input, shape index: {}]
  %s4 = inlined_call_operand.vmem [shape: bf16[32,32], index: 4, kind: input, shape index: {}]
  %s5 = inlined_call_operand.vmem [shape: f32[1,32], index: 5, kind: input, shape index: {}]
  %s6 = inlined_call_operand.vmem [shape: f32[1,32], index: 6, kind: input, shape index: {}]
  %s7 = inlined_call_operand.vmem [shape: f32[1,32], index: 7, kind: input, shape index: {}]
  %s8 = inlined_call_operand.vmem [shape: bf16[32,64], index: 8, kind: input, shape index: {}]
  %s9 = inlined_call_operand.vmem [shape: f32[1,64], index: 9, kind: input, shape index: {}]
  %s10 = inlined_call_operand.vmem [shape: bf16[64,32], index: 10, kind: input, shape index: {}]
  %s11 = inlined_call_operand.vmem [shape: f32[1,32], index: 11, kind: input, shape index: {}]
  %s12 = inlined_call_operand.vmem [shape: f32[1,32], index: 12, kind: input, shape index: {}]
  %s13 = inlined_call_operand.vmem [shape: f32[1,32], index: 13, kind: input, shape index: {}]
  %s14 = inlined_call_operand.vmem [shape: bf16[4,8,32], index: 14, kind: output, shape index: {}]
  %s15 = sld [smem:[#allocation0]]
  $region66: #{siamese_bert_forward.4} parent=0
    _
  %s17 = ssub.s32 1, %s15
  %s18 = scalar_select 0, %s17, %s15
  // Predicated region
  $region2: #{siamese_bert_forward.4} parent=0 // pred_check
    _
  $region3: #{siamese_bert_forward.4} parent=0 // pred_check_branch
    %20 = sbr.rel (0) target = $region5
  $region4: #{siamese_bert_forward.4} parent=0 // pred_region
    _
  $region5: #{siamese_bert_forward.4} parent=0 // pred_fallthru
    _
  // Predicated region
  $region6: #{siamese_bert_forward.4} parent=0 // pred_check
    _
  $region7: #{siamese_bert_forward.4} parent=0 // pred_check_branch
    %22 = sbr.rel (0) target = $region9
  $region8: #{siamese_bert_forward.4} parent=0 // pred_region
    _
  $region9: #{siamese_bert_forward.4} parent=0 // pred_fallthru
    _
  // Predicated region
  $region10: #{siamese_bert_forward.4} parent=0 // pred_check
    _
  $region11: #{siamese_bert_forward.4} parent=0 // pred_check_branch
    %24 = sbr.rel (0) target = $region13
  $region12: #{siamese_bert_forward.4} parent=0 // pred_region
    _
  $region13: #{siamese_bert_forward.4} parent=0 // pred_fallthru
    _
  // Predicated region
  $region14: #{siamese_bert_forward.4} parent=0 // pred_check
    _
  $region15: #{siamese_bert_forward.4} parent=0 // pred_check_branch
    %26 = sbr.rel (0) target = $region17
  $region16: #{siamese_bert_forward.4} parent=0 // pred_region
    _
  $region17: #{siamese_bert_forward.4} parent=0 // pred_fallthru
    _
  // Predicated region
  $region18: #{siamese_bert_forward.4} parent=0 // pred_check
    _
  $region19: #{siamese_bert_forward.4} parent=0 // pred_check_branch
    %28 = sbr.rel (0) target = $region21
  $region20: #{siamese_bert_forward.4} parent=0 // pred_region
    _
  $region21: #{siamese_bert_forward.4} parent=0 // pred_fallthru
    _
  // Predicated region
  $region22: #{siamese_bert_forward.4} parent=0 // pred_check
    _
  $region23: #{siamese_bert_forward.4} parent=0 // pred_check_branch
    %30 = sbr.rel (0) target = $region25
  $region24: #{siamese_bert_forward.4} parent=0 // pred_region
    _
  $region25: #{siamese_bert_forward.4} parent=0 // pred_fallthru
    _
  // Predicated region
  $region26: #{siamese_bert_forward.4} parent=0 // pred_check
    _
  $region27: #{siamese_bert_forward.4} parent=0 // pred_check_branch
    %32 = sbr.rel (0) target = $region29
  $region28: #{siamese_bert_forward.4} parent=0 // pred_region
    _
  $region29: #{siamese_bert_forward.4} parent=0 // pred_fallthru
    _
  // Predicated region
  $region30: #{siamese_bert_forward.4} parent=0 // pred_check
    _
  $region31: #{siamese_bert_forward.4} parent=0 // pred_check_branch
    %34 = sbr.rel (0) target = $region33
  $region32: #{siamese_bert_forward.4} parent=0 // pred_region
    _
  $region33: #{siamese_bert_forward.4} parent=0 // pred_fallthru
    _
  // Predicated region
  $region34: #{siamese_bert_forward.4} parent=0 // pred_check
    _
  $region35: #{siamese_bert_forward.4} parent=0 // pred_check_branch
    %36 = sbr.rel (0) target = $region37
  $region36: #{siamese_bert_forward.4} parent=0 // pred_region
    _
  $region37: #{siamese_bert_forward.4} parent=0 // pred_fallthru
    _
  // Predicated region
  $region38: #{siamese_bert_forward.4} parent=0 // pred_check
    _
  $region39: #{siamese_bert_forward.4} parent=0 // pred_check_branch
    %38 = sbr.rel (0) target = $region41
  $region40: #{siamese_bert_forward.4} parent=0 // pred_region
    _
  $region41: #{siamese_bert_forward.4} parent=0 // pred_fallthru
    _
  // Predicated region
  $region42: #{siamese_bert_forward.4} parent=0 // pred_check
    _
  $region43: #{siamese_bert_forward.4} parent=0 // pred_check_branch
    %40 = sbr.rel (0) target = $region45
  $region44: #{siamese_bert_forward.4} parent=0 // pred_region
    _
  $region45: #{siamese_bert_forward.4} parent=0 // pred_fallthru
    _
  // Predicated region
  $region46: #{siamese_bert_forward.4} parent=0 // pred_check
    _
  $region47: #{siamese_bert_forward.4} parent=0 // pred_check_branch
    %42 = sbr.rel (0) target = $region49
  $region48: #{siamese_bert_forward.4} parent=0 // pred_region
    _
  $region49: #{siamese_bert_forward.4} parent=0 // pred_fallthru
    _
  // Predicated region
  $region50: #{siamese_bert_forward.4} parent=0 // pred_check
    _
  $region51: #{siamese_bert_forward.4} parent=0 // pred_check_branch
    %44 = sbr.rel (0) target = $region53
  $region52: #{siamese_bert_forward.4} parent=0 // pred_region
    _
  $region53: #{siamese_bert_forward.4} parent=0 // pred_fallthru
    _
  // Predicated region
  $region54: #{siamese_bert_forward.4} parent=0 // pred_check
    _
  $region55: #{siamese_bert_forward.4} parent=0 // pred_check_branch
    %46 = sbr.rel (0) target = $region57
  $region56: #{siamese_bert_forward.4} parent=0 // pred_region
    _
  $region57: #{siamese_bert_forward.4} parent=0 // pred_fallthru
    _
  %v48 = vld [vmem:[%s0] sm:$0xf]
  %v49 = vld [vmem:[%s0 + $0x4] sm:$0xf]
  %v50 = vld [vmem:[%s0 + $0x8] sm:$0xf]
  %v51 = vld [vmem:[%s0 + $0xc] sm:$0xf]
  %v52 = vunpack.c.l.bf16 %v48
  %v53 = vunpack.c.l.bf16 %v49
  %v54 = vunpack.c.l.bf16 %v50
  %v55 = vunpack.c.l.bf16 %v51
  %v56 = vld [vmem:[%s2] sm:$0xf]
  %v57 = vld [vmem:[%s2 + $0x4] sm:$0xf]
  %v58 = vld [vmem:[%s2 + $0x8] sm:$0xf]
  %v59 = vld [vmem:[%s2 + $0xc] sm:$0xf]
  %v60 = vpack.c.bf16 %v53, %v52
  %v61 = vpack.c.bf16 %v55, %v54
  %v62 = vld [vmem:[%s3] sm:$0x1]
  %v64 = vperm.slane %v62, 0
  %v70 = vunpack.c.l.b16 %v56
  %v71 = vunpack.c.l.b16 %v57
  %v72 = vunpack.c.l.b16 %v58
  %v73 = vunpack.c.l.b16 %v59
  %v74 = vpack.c.b16 %v71, %v70
  %v75 = vpack.c.b16 %v73, %v72
  %vm78 = vcmask 261120
  %v80 = vsel %vm78, %v60, 0
  %v83 = vsel %vm78, %v61, 0
  %85 = vmatpush.bf16.msra.mxu0 0
  %86 = vmatpush.bf16.msra.mxu0 0
  %87 = vmatpush.bf16.msra.mxu0 0
  %88 = vmatpush.bf16.msra.mxu0 0
  %89 = vmatpush.bf16.msra.mxu0 0
  %90 = vmatpush.bf16.msra.mxu0 0
  %91 = vmatpush.bf16.msra.mxu0 %v75
  %92 = vmatpush.bf16.msra.mxu0 %v74
  %93 = vmatmul.bf16.gmra.mxu0 %v80
  %v94 = vpop.f32.mrf.mxu0
  %v95 = vadd.f32 %v64, %v94
  %v96 = vpop.f32.mrf.mxu0
  %v97 = vadd.f32 %v64, %v96
  %98 = vmatmul.bf16.gmra.mxu0 %v83
  %v99 = vpop.f32.mrf.mxu0
  %v100 = vadd.f32 %v64, %v99
  %v101 = vpop.f32.mrf.mxu0
  %v102 = vadd.f32 %v64, %v101
  %103 = vdwg.mxu0
  %v104 = vmul.f32 %v95, 0.35355338
  %v105 = vmul.f32 %v97, 0.35355338
  %v106 = vmul.f32 %v100, 0.35355338
  %v107 = vmul.f32 %v102, 0.35355338
  %v108 = vpack.c.bf16 %v104, %v104
  %v109 = vpack.c.bf16 %v105, %v105
  %v110 = vpack.c.bf16 %v106, %v106
  %v111 = vpack.c.bf16 %v107, %v107
  %v112 = vpack.c.bf16 %v95, %v95
  %v113 = vpack.c.bf16 %v97, %v97
  %v114 = vpack.c.bf16 %v100, %v100
  %v115 = vpack.c.bf16 %v102, %v102
  %117 = vrot.lane.b32.xlu0 %v108, 120
  %v118 = vpop.permute.xlu0 %117
  %119 = vrot.lane.b32.xlu0 %v108, 112
  %v120 = vpop.permute.xlu0 %119
  %121 = vrot.lane.b32.xlu0 %v108, 104
  %v122 = vpop.permute.xlu0 %121
  %v125 = vpack.i.b16 %v118, %v108
  %v126 = vshrl.u32 %v108, 16
  %v127 = vshrl.u32 %v118, 16
  %v128 = vpack.i.b16 %v127, %v126
  %v131 = vpack.i.b16 %v122, %v120
  %v132 = vshrl.u32 %v120, 16
  %v133 = vshrl.u32 %v122, 16
  %v134 = vpack.i.b16 %v133, %v132
  %v137 = vunpack.c.l.s4 1983009808
  %v138 = vunpack.c.0.s8 %v137
  %v139 = vperm.slane %v125, %v138
  %v142 = vunpack.c.l.s4 1983009808
  %v143 = vunpack.c.0.s8 %v142
  %v144 = vperm.slane %v131, %v143
  %v145 = vrot.slane %v144, 4
  %vm146 = vcmask 1047556
  %v147 = vsel %vm146, %v145, %v139
  %v148 = vrot.slane %v139, 4
  %v149 = vsel %vm146, %v144, %v148
  %v151 = vunpack.c.l.s4 1934713408
  %v152 = vunpack.c.0.s8 %v151
  %v153 = vperm.slane %v147, %v152
  %v155 = vunpack.c.l.s4 1934713408
  %v156 = vunpack.c.0.s8 %v155
  %v157 = vperm.slane %v149, %v156
  %v158 = vrot.slane %v153, 4
  %v159 = vsel %vm146, 0, %v158
  %v160 = vrot.slane %v157, 4
  %v161 = vsel %vm146, 0, %v160
  %v164 = vunpack.c.l.s4 1983009808
  %v165 = vunpack.c.0.s8 %v164
  %v166 = vperm.slane %v128, %v165
  %v169 = vunpack.c.l.s4 1983009808
  %v170 = vunpack.c.0.s8 %v169
  %v171 = vperm.slane %v134, %v170
  %v172 = vrot.slane %v171, 4
  %v173 = vsel %vm146, %v172, %v166
  %v174 = vrot.slane %v166, 4
  %v175 = vsel %vm146, %v171, %v174
  %v177 = vunpack.c.l.s4 1934713408
  %v178 = vunpack.c.0.s8 %v177
  %v179 = vperm.slane %v173, %v178
  %v181 = vunpack.c.l.s4 1934713408
  %v182 = vunpack.c.0.s8 %v181
  %v183 = vperm.slane %v175, %v182
  %v184 = vrot.slane %v179, 4
  %v185 = vsel %vm146, 0, %v184
  %v186 = vrot.slane %v183, 4
  %v187 = vsel %vm146, 0, %v186
  %v188 = vsel %vm146, %v160, %v153
  %v190 = vunpack.c.l.s4 1983009808
  %v191 = vunpack.c.0.s8 %v190
  %v192 = vperm.slane %v188, %v191
  %v193 = vrot.slane %v161, 4
  %v194 = vsel %vm146, %v193, %v159
  %v196 = vunpack.c.l.s4 1983009808
  %v197 = vunpack.c.0.s8 %v196
  %v198 = vperm.slane %v194, %v197
  %v199 = vrot.slane %v198, 4
  %v200 = vsel %vm146, %v199, %v192
  %v202 = vunpack.c.l.s4 1934713408
  %v203 = vunpack.c.0.s8 %v202
  %v204 = vperm.slane %v200, %v203
  %v205 = vrot.slane %v204, 4
  %v206 = vsel %vm146, 0, %v205
  %v207 = vsel %vm146, %v186, %v179
  %v209 = vunpack.c.l.s4 1983009808
  %v210 = vunpack.c.0.s8 %v209
  %v211 = vperm.slane %v207, %v210
  %v212 = vrot.slane %v187, 4
  %v213 = vsel %vm146, %v212, %v185
  %v215 = vunpack.c.l.s4 1983009808
  %v216 = vunpack.c.0.s8 %v215
  %v217 = vperm.slane %v213, %v216
  %v218 = vrot.slane %v217, 4
  %v219 = vsel %vm146, %v218, %v211
  %v221 = vunpack.c.l.s4 1934713408
  %v222 = vunpack.c.0.s8 %v221
  %v223 = vperm.slane %v219, %v222
  %v224 = vrot.slane %v223, 4
  %v225 = vsel %vm146, 0, %v224
  %v228 = vpack.i.b16 %v223, %v204
  %v229 = vshrl.u32 %v204, 16
  %v230 = vshrl.u32 %v223, 16
  %v231 = vpack.i.b16 %v230, %v229
  %v234 = vpack.i.b16 %v225, %v206
  %v235 = vshrl.u32 %v206, 16
  %v236 = vshrl.u32 %v225, 16
  %v237 = vpack.i.b16 %v236, %v235
  %239 = vrot.lane.b32.xlu0 %v112, 120
  %v240 = vpop.permute.xlu0 %239
  %241 = vrot.lane.b32.xlu0 %v112, 112
  %v242 = vpop.permute.xlu0 %241
  %243 = vrot.lane.b32.xlu0 %v112, 104
  %v244 = vpop.permute.xlu0 %243
  %245 = vrot.lane.b32.xlu0 %v112, 96
  %v246 = vpop.permute.xlu0 %245
  %247 = vrot.lane.b32.xlu0 %v240, 96
  %v248 = vpop.permute.xlu0 %247
  %249 = vrot.lane.b32.xlu0 %v242, 96
  %v250 = vpop.permute.xlu0 %249
  %251 = vrot.lane.b32.xlu0 %v244, 96
  %v252 = vpop.permute.xlu0 %251
  %v255 = vpack.i.b16 %v248, %v246
  %v256 = vshrl.u32 %v246, 16
  %v257 = vshrl.u32 %v248, 16
  %v258 = vpack.i.b16 %v257, %v256
  %v261 = vpack.i.b16 %v252, %v250
  %v262 = vshrl.u32 %v250, 16
  %v263 = vshrl.u32 %v252, 16
  %v264 = vpack.i.b16 %v263, %v262
  %v267 = vunpack.c.l.s4 1983009808
  %v268 = vunpack.c.0.s8 %v267
  %v269 = vperm.slane %v255, %v268
  %v272 = vunpack.c.l.s4 1983009808
  %v273 = vunpack.c.0.s8 %v272
  %v274 = vperm.slane %v261, %v273
  %v275 = vrot.slane %v274, 4
  %v276 = vsel %vm146, %v275, %v269
  %v277 = vrot.slane %v269, 4
  %v278 = vsel %vm146, %v274, %v277
  %v280 = vunpack.c.l.s4 1934713408
  %v281 = vunpack.c.0.s8 %v280
  %v282 = vperm.slane %v276, %v281
  %v284 = vunpack.c.l.s4 1934713408
  %v285 = vunpack.c.0.s8 %v284
  %v286 = vperm.slane %v278, %v285
  %v287 = vrot.slane %v282, 4
  %v288 = vsel %vm146, 0, %v287
  %v289 = vrot.slane %v286, 4
  %v290 = vsel %vm146, 0, %v289
  %v293 = vunpack.c.l.s4 1983009808
  %v294 = vunpack.c.0.s8 %v293
  %v295 = vperm.slane %v258, %v294
  %v298 = vunpack.c.l.s4 1983009808
  %v299 = vunpack.c.0.s8 %v298
  %v300 = vperm.slane %v264, %v299
  %v301 = vrot.slane %v300, 4
  %v302 = vsel %vm146, %v301, %v295
  %v303 = vrot.slane %v295, 4
  %v304 = vsel %vm146, %v300, %v303
  %v306 = vunpack.c.l.s4 1934713408
  %v307 = vunpack.c.0.s8 %v306
  %v308 = vperm.slane %v302, %v307
  %v310 = vunpack.c.l.s4 1934713408
  %v311 = vunpack.c.0.s8 %v310
  %v312 = vperm.slane %v304, %v311
  %v313 = vrot.slane %v308, 4
  %v314 = vsel %vm146, 0, %v313
  %v315 = vrot.slane %v312, 4
  %v316 = vsel %vm146, 0, %v315
  %v317 = vsel %vm146, %v289, %v282
  %v319 = vunpack.c.l.s4 1983009808
  %v320 = vunpack.c.0.s8 %v319
  %v321 = vperm.slane %v317, %v320
  %v322 = vrot.slane %v290, 4
  %v323 = vsel %vm146, %v322, %v288
  %v325 = vunpack.c.l.s4 1983009808
  %v326 = vunpack.c.0.s8 %v325
  %v327 = vperm.slane %v323, %v326
  %v328 = vrot.slane %v327, 4
  %v329 = vsel %vm146, %v328, %v321
  %v331 = vunpack.c.l.s4 1934713408
  %v332 = vunpack.c.0.s8 %v331
  %v333 = vperm.slane %v329, %v332
  %v334 = vrot.slane %v333, 4
  %v335 = vsel %vm146, 0, %v334
  %v336 = vsel %vm146, %v315, %v308
  %v338 = vunpack.c.l.s4 1983009808
  %v339 = vunpack.c.0.s8 %v338
  %v340 = vperm.slane %v336, %v339
  %v341 = vrot.slane %v316, 4
  %v342 = vsel %vm146, %v341, %v314
  %v344 = vunpack.c.l.s4 1983009808
  %v345 = vunpack.c.0.s8 %v344
  %v346 = vperm.slane %v342, %v345
  %v347 = vrot.slane %v346, 4
  %v348 = vsel %vm146, %v347, %v340
  %v350 = vunpack.c.l.s4 1934713408
  %v351 = vunpack.c.0.s8 %v350
  %v352 = vperm.slane %v348, %v351
  %v353 = vrot.slane %v352, 4
  %v354 = vsel %vm146, 0, %v353
  %v357 = vpack.i.b16 %v352, %v333
  %v358 = vshrl.u32 %v333, 16
  %v359 = vshrl.u32 %v352, 16
  %v360 = vpack.i.b16 %v359, %v358
  %v363 = vpack.i.b16 %v354, %v335
  %v364 = vshrl.u32 %v335, 16
  %v365 = vshrl.u32 %v354, 16
  %v366 = vpack.i.b16 %v365, %v364
  %367 = vrot.lane.b32.xlu0 %v112, 64
  %v368 = vpop.permute.xlu0 %367
  %369 = vrot.lane.b32.xlu0 %v240, 64
  %v370 = vpop.permute.xlu0 %369
  %371 = vrot.lane.b32.xlu0 %v242, 64
  %v372 = vpop.permute.xlu0 %371
  %373 = vrot.lane.b32.xlu0 %v244, 64
  %v374 = vpop.permute.xlu0 %373
  %v377 = vpack.i.b16 %v370, %v368
  %v378 = vshrl.u32 %v368, 16
  %v379 = vshrl.u32 %v370, 16
  %v380 = vpack.i.b16 %v379, %v378
  %v383 = vpack.i.b16 %v374, %v372
  %v384 = vshrl.u32 %v372, 16
  %v385 = vshrl.u32 %v374, 16
  %v386 = vpack.i.b16 %v385, %v384
  %v389 = vunpack.c.l.s4 1983009808
  %v390 = vunpack.c.0.s8 %v389
  %v391 = vperm.slane %v377, %v390
  %v394 = vunpack.c.l.s4 1983009808
  %v395 = vunpack.c.0.s8 %v394
  %v396 = vperm.slane %v383, %v395
  %v397 = vrot.slane %v396, 4
  %v398 = vsel %vm146, %v397, %v391
  %v399 = vrot.slane %v391, 4
  %v400 = vsel %vm146, %v396, %v399
  %v402 = vunpack.c.l.s4 1934713408
  %v403 = vunpack.c.0.s8 %v402
  %v404 = vperm.slane %v398, %v403
  %v406 = vunpack.c.l.s4 1934713408
  %v407 = vunpack.c.0.s8 %v406
  %v408 = vperm.slane %v400, %v407
  %v409 = vrot.slane %v404, 4
  %v410 = vsel %vm146, 0, %v409
  %v411 = vrot.slane %v408, 4
  %v412 = vsel %vm146, 0, %v411
  %v415 = vunpack.c.l.s4 1983009808
  %v416 = vunpack.c.0.s8 %v415
  %v417 = vperm.slane %v380, %v416
  %v420 = vunpack.c.l.s4 1983009808
  %v421 = vunpack.c.0.s8 %v420
  %v422 = vperm.slane %v386, %v421
  %v423 = vrot.slane %v422, 4
  %v424 = vsel %vm146, %v423, %v417
  %v425 = vrot.slane %v417, 4
  %v426 = vsel %vm146, %v422, %v425
  %v428 = vunpack.c.l.s4 1934713408
  %v429 = vunpack.c.0.s8 %v428
  %v430 = vperm.slane %v424, %v429
  %v432 = vunpack.c.l.s4 1934713408
  %v433 = vunpack.c.0.s8 %v432
  %v434 = vperm.slane %v426, %v433
  %v435 = vrot.slane %v430, 4
  %v436 = vsel %vm146, 0, %v435
  %v437 = vrot.slane %v434, 4
  %v438 = vsel %vm146, 0, %v437
  %v439 = vsel %vm146, %v411, %v404
  %v441 = vunpack.c.l.s4 1983009808
  %v442 = vunpack.c.0.s8 %v441
  %v443 = vperm.slane %v439, %v442
  %v444 = vrot.slane %v412, 4
  %v445 = vsel %vm146, %v444, %v410
  %v447 = vunpack.c.l.s4 1983009808
  %v448 = vunpack.c.0.s8 %v447
  %v449 = vperm.slane %v445, %v448
  %v450 = vrot.slane %v449, 4
  %v451 = vsel %vm146, %v450, %v443
  %v453 = vunpack.c.l.s4 1934713408
  %v454 = vunpack.c.0.s8 %v453
  %v455 = vperm.slane %v451, %v454
  %v456 = vrot.slane %v455, 4
  %v457 = vsel %vm146, 0, %v456
  %v458 = vsel %vm146, %v437, %v430
  %v460 = vunpack.c.l.s4 1983009808
  %v461 = vunpack.c.0.s8 %v460
  %v462 = vperm.slane %v458, %v461
  %v463 = vrot.slane %v438, 4
  %v464 = vsel %vm146, %v463, %v436
  %v466 = vunpack.c.l.s4 1983009808
  %v467 = vunpack.c.0.s8 %v466
  %v468 = vperm.slane %v464, %v467
  %v469 = vrot.slane %v468, 4
  %v470 = vsel %vm146, %v469, %v462
  %v472 = vunpack.c.l.s4 1934713408
  %v473 = vunpack.c.0.s8 %v472
  %v474 = vperm.slane %v470, %v473
  %v475 = vrot.slane %v474, 4
  %v476 = vsel %vm146, 0, %v475
  %v479 = vpack.i.b16 %v474, %v455
  %v480 = vshrl.u32 %v455, 16
  %v481 = vshrl.u32 %v474, 16
  %v482 = vpack.i.b16 %v481, %v480
  %v485 = vpack.i.b16 %v476, %v457
  %v486 = vshrl.u32 %v457, 16
  %v487 = vshrl.u32 %v476, 16
  %v488 = vpack.i.b16 %v487, %v486
  %v489 = vld [vmem:[%s1] sm:$0x1]
  %v491 = vperm.slane %v489, 0
  %vm493 = vcmask 64512
  %v495 = vsel %vm493, %v228, 0
  %v498 = vsel %vm493, %v357, 0
  %500 = vmatpush.bf16.xpose.msra.mxu0 0
  %501 = vmatpush.bf16.xpose.msra.mxu0 0
  %502 = vmatpush.bf16.xpose.msra.mxu0 0
  %503 = vmatpush.bf16.xpose.msra.mxu0 0
  %504 = vmatpush.bf16.xpose.msra.mxu0 0
  %505 = vmatpush.bf16.xpose.msra.mxu0 0
  %506 = vmatpush.bf16.xpose.msra.mxu0 0
  %507 = vmatpush.bf16.xpose.msra.mxu0 %v498
  %508 = vmatmul.bf16.gmra.mxu0 %v495
  %v509 = vpop.f32.mrf.mxu0
  %v510 = vadd.f32 %v491, %v509
  %v511 = vpop.f32.mrf.mxu0
  %512 = vdwg.mxu0
  %v514 = vsel %vm493, %v231, 0
  %v517 = vsel %vm493, %v360, 0
  %519 = vmatpush.bf16.xpose.msra.mxu0 0
  %520 = vmatpush.bf16.xpose.msra.mxu0 0
  %521 = vmatpush.bf16.xpose.msra.mxu0 0
  %522 = vmatpush.bf16.xpose.msra.mxu0 0
  %523 = vmatpush.bf16.xpose.msra.mxu0 0
  %524 = vmatpush.bf16.xpose.msra.mxu0 0
  %525 = vmatpush.bf16.xpose.msra.mxu0 0
  %526 = vmatpush.bf16.xpose.msra.mxu0 %v517
  %527 = vmatmul.bf16.gmra.mxu0 %v514
  %v528 = vpop.f32.mrf.mxu0
  %v529 = vadd.f32 %v491, %v528
  %v530 = vpop.f32.mrf.mxu0
  %531 = vdwg.mxu0
  %v533 = vsel %vm493, %v234, 0
  %v536 = vsel %vm493, %v363, 0
  %538 = vmatpush.bf16.xpose.msra.mxu0 0
  %539 = vmatpush.bf16.xpose.msra.mxu0 0
  %540 = vmatpush.bf16.xpose.msra.mxu0 0
  %541 = vmatpush.bf16.xpose.msra.mxu0 0
  %542 = vmatpush.bf16.xpose.msra.mxu0 0
  %543 = vmatpush.bf16.xpose.msra.mxu0 0
  %544 = vmatpush.bf16.xpose.msra.mxu0 0
  %545 = vmatpush.bf16.xpose.msra.mxu0 %v536
  %546 = vmatmul.bf16.gmra.mxu0 %v533
  %v547 = vpop.f32.mrf.mxu0
  %v548 = vadd.f32 %v491, %v547
  %v549 = vpop.f32.mrf.mxu0
  %550 = vdwg.mxu0
  %v552 = vsel %vm493, %v237, 0
  %v555 = vsel %vm493, %v366, 0
  %557 = vmatpush.bf16.xpose.msra.mxu0 0
  %558 = vmatpush.bf16.xpose.msra.mxu0 0
  %559 = vmatpush.bf16.xpose.msra.mxu0 0
  %560 = vmatpush.bf16.xpose.msra.mxu0 0
  %561 = vmatpush.bf16.xpose.msra.mxu0 0
  %562 = vmatpush.bf16.xpose.msra.mxu0 0
  %563 = vmatpush.bf16.xpose.msra.mxu0 0
  %564 = vmatpush.bf16.xpose.msra.mxu0 %v555
  %565 = vmatmul.bf16.gmra.mxu0 %v552
  %v566 = vpop.f32.mrf.mxu0
  %v567 = vadd.f32 %v491, %v566
  %v568 = vpop.f32.mrf.mxu0
  %569 = vdwg.mxu0
  %v570 = vsel %vm493, %v510, -inf
  %571 = vmax.xlane.f32.xlu0 %v570
  %v572 = vpop.xlane.xlu0 %571
  %v573 = vsel %vm493, %v529, -inf
  %574 = vmax.xlane.f32.xlu0 %v573
  %v575 = vpop.xlane.xlu0 %574
  %v576 = vsel %vm493, %v548, -inf
  %577 = vmax.xlane.f32.xlu0 %v576
  %v578 = vpop.xlane.xlu0 %577
  %v579 = vsel %vm493, %v567, -inf
  %580 = vmax.xlane.f32.xlu0 %v579
  %v581 = vpop.xlane.xlu0 %580
  %v582 = vsub.f32 %v510, %v572
  %v583 = vsub.f32 %v529, %v575
  %v584 = vsub.f32 %v548, %v578
  %v585 = vsub.f32 %v567, %v581
  %v586 = vmul.f32 %v582, 1.442695
  %v587 = vpow.pop %v586
  %v588 = vmul.f32 %v583, 1.442695
  %v589 = vpow.pop %v588
  %v590 = vmul.f32 %v584, 1.442695
  %v591 = vpow.pop %v590
  %v592 = vmul.f32 %v585, 1.442695
  %v593 = vpow.pop %v592
  %v594 = vsel %vm493, %v587, 0.0
  %595 = vadd.xlane.f32.xlu0 %v594
  %v596 = vpop.xlane.xlu0 %595
  %v597 = vsel %vm493, %v589, 0.0
  %598 = vadd.xlane.f32.xlu0 %v597
  %v599 = vpop.xlane.xlu0 %598
  %v600 = vsel %vm493, %v591, 0.0
  %601 = vadd.xlane.f32.xlu0 %v600
  %v602 = vpop.xlane.xlu0 %601
  %v603 = vsel %vm493, %v593, 0.0
  %604 = vadd.xlane.f32.xlu0 %v603
  %v605 = vpop.xlane.xlu0 %604
  %v606 = vrcp.pop %v596
  %v607 = vrcp.pop %v599
  %v608 = vrcp.pop %v602
  %v609 = vrcp.pop %v605
  %v610 = vmul.f32 %v587, %v606
  %v611 = vmul.f32 %v589, %v607
  %v612 = vmul.f32 %v591, %v608
  %v613 = vmul.f32 %v593, %v609
  %v614 = vpack.c.bf16 %v610, %v610
  %v615 = vpack.c.bf16 %v611, %v611
  %v616 = vpack.c.bf16 %v612, %v612
  %v617 = vpack.c.bf16 %v613, %v613
  %v619 = vsel %vm493, %v614, 0
  %vm621 = vcmask 1043456
  %v623 = vsel %vm621, %v479, 0
  %625 = vmatpush.bf16.msra.mxu0 0
  %626 = vmatpush.bf16.msra.mxu0 0
  %627 = vmatpush.bf16.msra.mxu0 0
  %628 = vmatpush.bf16.msra.mxu0 0
  %629 = vmatpush.bf16.msra.mxu0 0
  %630 = vmatpush.bf16.msra.mxu0 0
  %631 = vmatpush.bf16.msra.mxu0 0
  %632 = vmatpush.bf16.msra.mxu0 %v623
  %633 = vmatmul.bf16.gmra.mxu0 %v619
  %v634 = vpop.f32.mrf.mxu0
  %v635 = vadd.f32 0.0, %v634
  %v636 = vpop.f32.mrf.mxu0
  %637 = vdwg.mxu0
  %v639 = vsel %vm493, %v615, 0
  %v642 = vsel %vm621, %v482, 0
  %644 = vmatpush.bf16.msra.mxu0 0
  %645 = vmatpush.bf16.msra.mxu0 0
  %646 = vmatpush.bf16.msra.mxu0 0
  %647 = vmatpush.bf16.msra.mxu0 0
  %648 = vmatpush.bf16.msra.mxu0 0
  %649 = vmatpush.bf16.msra.mxu0 0
  %650 = vmatpush.bf16.msra.mxu0 0
  %651 = vmatpush.bf16.msra.mxu0 %v642
  %652 = vmatmul.bf16.gmra.mxu0 %v639
  %v653 = vpop.f32.mrf.mxu0
  %v654 = vadd.f32 0.0, %v653
  %v655 = vpop.f32.mrf.mxu0
  %656 = vdwg.mxu0
  %v658 = vsel %vm493, %v616, 0
  %v661 = vsel %vm621, %v485, 0
  %663 = vmatpush.bf16.msra.mxu0 0
  %664 = vmatpush.bf16.msra.mxu0 0
  %665 = vmatpush.bf16.msra.mxu0 0
  %666 = vmatpush.bf16.msra.mxu0 0
  %667 = vmatpush.bf16.msra.mxu0 0
  %668 = vmatpush.bf16.msra.mxu0 0
  %669 = vmatpush.bf16.msra.mxu0 0
  %670 = vmatpush.bf16.msra.mxu0 %v661
  %671 = vmatmul.bf16.gmra.mxu0 %v658
  %v672 = vpop.f32.mrf.mxu0
  %v673 = vadd.f32 0.0, %v672
  %v674 = vpop.f32.mrf.mxu0
  %675 = vdwg.mxu0
  %v677 = vsel %vm493, %v617, 0
  %v680 = vsel %vm621, %v488, 0
  %682 = vmatpush.bf16.msra.mxu0 0
  %683 = vmatpush.bf16.msra.mxu0 0
  %684 = vmatpush.bf16.msra.mxu0 0
  %685 = vmatpush.bf16.msra.mxu0 0
  %686 = vmatpush.bf16.msra.mxu0 0
  %687 = vmatpush.bf16.msra.mxu0 0
  %688 = vmatpush.bf16.msra.mxu0 0
  %689 = vmatpush.bf16.msra.mxu0 %v680
  %690 = vmatmul.bf16.gmra.mxu0 %v677
  %v691 = vpop.f32.mrf.mxu0
  %v692 = vadd.f32 0.0, %v691
  %v693 = vpop.f32.mrf.mxu0
  %694 = vdwg.mxu0
  %v695 = vrot.slane %v673, 4
  %vm696 = vcmask 1047556
  %v697 = vsel %vm696, %v695, %v635
  %v698 = vrot.slane %v635, 4
  %v699 = vsel %vm696, %v673, %v698
  %v701 = vunpack.c.l.s4 1983009808
  %v702 = vunpack.c.0.s8 %v701
  %v703 = vperm.slane %v697, %v702
  %v705 = vunpack.c.l.s4 1983009808
  %v706 = vunpack.c.0.s8 %v705
  %v707 = vperm.slane %v699, %v706
  %v708 = vrot.slane %v692, 4
  %v709 = vsel %vm696, %v708, %v654
  %v710 = vrot.slane %v654, 4
  %v711 = vsel %vm696, %v692, %v710
  %v713 = vunpack.c.l.s4 1983009808
  %v714 = vunpack.c.0.s8 %v713
  %v715 = vperm.slane %v709, %v714
  %v717 = vunpack.c.l.s4 1983009808
  %v718 = vunpack.c.0.s8 %v717
  %v719 = vperm.slane %v711, %v718
  %v720 = vrot.slane %v715, 4
  %v721 = vsel %vm696, %v720, %v703
  %v722 = vrot.slane %v703, 4
  %v723 = vsel %vm696, %v715, %v722
  %v725 = vunpack.c.l.s4 1934713408
  %v726 = vunpack.c.0.s8 %v725
  %v727 = vperm.slane %v721, %v726
  %v729 = vunpack.c.l.s4 1934713408
  %v730 = vunpack.c.0.s8 %v729
  %v731 = vperm.slane %v723, %v730
  %v732 = vrot.slane %v719, 4
  %v733 = vsel %vm696, %v732, %v707
  %v734 = vrot.slane %v707, 4
  %v735 = vsel %vm696, %v719, %v734
  %v737 = vunpack.c.l.s4 1934713408
  %v738 = vunpack.c.0.s8 %v737
  %v739 = vperm.slane %v733, %v738
  %v741 = vunpack.c.l.s4 1934713408
  %v742 = vunpack.c.0.s8 %v741
  %v743 = vperm.slane %v735, %v742
  %v744 = vrot.slane %v727, 4
  %v745 = vsel %vm696, 0.0, %v744
  %v746 = vrot.slane %v731, 4
  %v747 = vsel %vm696, 0.0, %v746
  %v748 = vrot.slane %v739, 4
  %v749 = vsel %vm696, 0.0, %v748
  %v750 = vrot.slane %v743, 4
  %v751 = vsel %vm696, 0.0, %v750
  %v752 = vsel %vm696, %v746, %v727
  %v754 = vunpack.c.l.s4 1983009808
  %v755 = vunpack.c.0.s8 %v754
  %v756 = vperm.slane %v752, %v755
  %v757 = vrot.slane %v747, 4
  %v758 = vsel %vm696, %v757, %v745
  %v760 = vunpack.c.l.s4 1983009808
  %v761 = vunpack.c.0.s8 %v760
  %v762 = vperm.slane %v758, %v761
  %v763 = vsel %vm696, %v750, %v739
  %v765 = vunpack.c.l.s4 1983009808
  %v766 = vunpack.c.0.s8 %v765
  %v767 = vperm.slane %v763, %v766
  %v768 = vrot.slane %v751, 4
  %v769 = vsel %vm696, %v768, %v749
  %v771 = vunpack.c.l.s4 1983009808
  %v772 = vunpack.c.0.s8 %v771
  %v773 = vperm.slane %v769, %v772
  %v774 = vrot.slane %v762, 4
  %v775 = vsel %vm696, %v774, %v756
  %v776 = vrot.slane %v756, 4
  %v777 = vsel %vm696, %v762, %v776
  %v779 = vunpack.c.l.s4 1934713408
  %v780 = vunpack.c.0.s8 %v779
  %v781 = vperm.slane %v775, %v780
  %v783 = vunpack.c.l.s4 1934713408
  %v784 = vunpack.c.0.s8 %v783
  %v785 = vperm.slane %v777, %v784
  %v786 = vrot.slane %v773, 4
  %v787 = vsel %vm696, %v786, %v767
  %v788 = vrot.slane %v767, 4
  %v789 = vsel %vm696, %v773, %v788
  %v791 = vunpack.c.l.s4 1934713408
  %v792 = vunpack.c.0.s8 %v791
  %v793 = vperm.slane %v787, %v792
  %v795 = vunpack.c.l.s4 1934713408
  %v796 = vunpack.c.0.s8 %v795
  %v797 = vperm.slane %v789, %v796
  %v798 = vrot.slane %v793, 4
  %v799 = vsel %vm696, %v798, %v781
  %v800 = vrot.slane %v781, 4
  %v801 = vsel %vm696, %v793, %v800
  %v802 = vrot.slane %v797, 4
  %v803 = vsel %vm696, %v802, %v785
  %v804 = vrot.slane %v785, 4
  %v805 = vsel %vm696, %v797, %v804
  %807 = vrot.lane.b32.xlu0 %v801, 8
  %v808 = vpop.permute.xlu0 %807
  %811 = vrot.lane.b32.xlu0 %v803, 16
  %v812 = vpop.permute.xlu0 %811
  %815 = vrot.lane.b32.xlu0 %v805, 24
  %v816 = vpop.permute.xlu0 %815
  %v818 = vsel %vm493, %v799, %v808
  %vm819 = vcmask 130048
  %v820 = vsel %vm819, %v818, %v812
  %vm821 = vcmask 195584
  %v822 = vsel %vm821, %v820, %v816
  %v823 = vpack.c.bf16 %v822, %v822
  %825 = vrot.lane.b32.xlu0 %v109, 120
  %v826 = vpop.permute.xlu0 %825
  %827 = vrot.lane.b32.xlu0 %v109, 112
  %v828 = vpop.permute.xlu0 %827
  %829 = vrot.lane.b32.xlu0 %v109, 104
  %v830 = vpop.permute.xlu0 %829
  %v833 = vpack.i.b16 %v826, %v109
  %v834 = vshrl.u32 %v109, 16
  %v835 = vshrl.u32 %v826, 16
  %v836 = vpack.i.b16 %v835, %v834
  %v839 = vpack.i.b16 %v830, %v828
  %v840 = vshrl.u32 %v828, 16
  %v841 = vshrl.u32 %v830, 16
  %v842 = vpack.i.b16 %v841, %v840
  %v845 = vunpack.c.l.s4 1983009808
  %v846 = vunpack.c.0.s8 %v845
  %v847 = vperm.slane %v833, %v846
  %v850 = vunpack.c.l.s4 1983009808
  %v851 = vunpack.c.0.s8 %v850
  %v852 = vperm.slane %v839, %v851
  %v853 = vrot.slane %v852, 4
  %v854 = vsel %vm146, %v853, %v847
  %v855 = vrot.slane %v847, 4
  %v856 = vsel %vm146, %v852, %v855
  %v858 = vunpack.c.l.s4 1934713408
  %v859 = vunpack.c.0.s8 %v858
  %v860 = vperm.slane %v854, %v859
  %v862 = vunpack.c.l.s4 1934713408
  %v863 = vunpack.c.0.s8 %v862
  %v864 = vperm.slane %v856, %v863
  %v865 = vrot.slane %v860, 4
  %v866 = vsel %vm146, 0, %v865
  %v867 = vrot.slane %v864, 4
  %v868 = vsel %vm146, 0, %v867
  %v871 = vunpack.c.l.s4 1983009808
  %v872 = vunpack.c.0.s8 %v871
  %v873 = vperm.slane %v836, %v872
  %v876 = vunpack.c.l.s4 1983009808
  %v877 = vunpack.c.0.s8 %v876
  %v878 = vperm.slane %v842, %v877
  %v879 = vrot.slane %v878, 4
  %v880 = vsel %vm146, %v879, %v873
  %v881 = vrot.slane %v873, 4
  %v882 = vsel %vm146, %v878, %v881
  %v884 = vunpack.c.l.s4 1934713408
  %v885 = vunpack.c.0.s8 %v884
  %v886 = vperm.slane %v880, %v885
  %v888 = vunpack.c.l.s4 1934713408
  %v889 = vunpack.c.0.s8 %v888
  %v890 = vperm.slane %v882, %v889
  %v891 = vrot.slane %v886, 4
  %v892 = vsel %vm146, 0, %v891
  %v893 = vrot.slane %v890, 4
  %v894 = vsel %vm146, 0, %v893
  %v895 = vsel %vm146, %v867, %v860
  %v897 = vunpack.c.l.s4 1983009808
  %v898 = vunpack.c.0.s8 %v897
  %v899 = vperm.slane %v895, %v898
  %v900 = vrot.slane %v868, 4
  %v901 = vsel %vm146, %v900, %v866
  %v903 = vunpack.c.l.s4 1983009808
  %v904 = vunpack.c.0.s8 %v903
  %v905 = vperm.slane %v901, %v904
  %v906 = vrot.slane %v905, 4
  %v907 = vsel %vm146, %v906, %v899
  %v909 = vunpack.c.l.s4 1934713408
  %v910 = vunpack.c.0.s8 %v909
  %v911 = vperm.slane %v907, %v910
  %v912 = vrot.slane %v911, 4
  %v913 = vsel %vm146, 0, %v912
  %v914 = vsel %vm146, %v893, %v886
  %v916 = vunpack.c.l.s4 1983009808
  %v917 = vunpack.c.0.s8 %v916
  %v918 = vperm.slane %v914, %v917
  %v919 = vrot.slane %v894, 4
  %v920 = vsel %vm146, %v919, %v892
  %v922 = vunpack.c.l.s4 1983009808
  %v923 = vunpack.c.0.s8 %v922
  %v924 = vperm.slane %v920, %v923
  %v925 = vrot.slane %v924, 4
  %v926 = vsel %vm146, %v925, %v918
  %v928 = vunpack.c.l.s4 1934713408
  %v929 = vunpack.c.0.s8 %v928
  %v930 = vperm.slane %v926, %v929
  %v931 = vrot.slane %v930, 4
  %v932 = vsel %vm146, 0, %v931
  %v935 = vpack.i.b16 %v930, %v911
  %v936 = vshrl.u32 %v911, 16
  %v937 = vshrl.u32 %v930, 16
  %v938 = vpack.i.b16 %v937, %v936
  %v941 = vpack.i.b16 %v932, %v913
  %v942 = vshrl.u32 %v913, 16
  %v943 = vshrl.u32 %v932, 16
  %v944 = vpack.i.b16 %v943, %v942
  %946 = vrot.lane.b32.xlu0 %v113, 120
  %v947 = vpop.permute.xlu0 %946
  %948 = vrot.lane.b32.xlu0 %v113, 112
  %v949 = vpop.permute.xlu0 %948
  %950 = vrot.lane.b32.xlu0 %v113, 104
  %v951 = vpop.permute.xlu0 %950
  %952 = vrot.lane.b32.xlu0 %v113, 96
  %v953 = vpop.permute.xlu0 %952
  %954 = vrot.lane.b32.xlu0 %v947, 96
  %v955 = vpop.permute.xlu0 %954
  %956 = vrot.lane.b32.xlu0 %v949, 96
  %v957 = vpop.permute.xlu0 %956
  %958 = vrot.lane.b32.xlu0 %v951, 96
  %v959 = vpop.permute.xlu0 %958
  %v962 = vpack.i.b16 %v955, %v953
  %v963 = vshrl.u32 %v953, 16
  %v964 = vshrl.u32 %v955, 16
  %v965 = vpack.i.b16 %v964, %v963
  %v968 = vpack.i.b16 %v959, %v957
  %v969 = vshrl.u32 %v957, 16
  %v970 = vshrl.u32 %v959, 16
  %v971 = vpack.i.b16 %v970, %v969
  %v974 = vunpack.c.l.s4 1983009808
  %v975 = vunpack.c.0.s8 %v974
  %v976 = vperm.slane %v962, %v975
  %v979 = vunpack.c.l.s4 1983009808
  %v980 = vunpack.c.0.s8 %v979
  %v981 = vperm.slane %v968, %v980
  %v982 = vrot.slane %v981, 4
  %v983 = vsel %vm146, %v982, %v976
  %v984 = vrot.slane %v976, 4
  %v985 = vsel %vm146, %v981, %v984
  %v987 = vunpack.c.l.s4 1934713408
  %v988 = vunpack.c.0.s8 %v987
  %v989 = vperm.slane %v983, %v988
  %v991 = vunpack.c.l.s4 1934713408
  %v992 = vunpack.c.0.s8 %v991
  %v993 = vperm.slane %v985, %v992
  %v994 = vrot.slane %v989, 4
  %v995 = vsel %vm146, 0, %v994
  %v996 = vrot.slane %v993, 4
  %v997 = vsel %vm146, 0, %v996
  %v1000 = vunpack.c.l.s4 1983009808
  %v1001 = vunpack.c.0.s8 %v1000
  %v1002 = vperm.slane %v965, %v1001
  %v1005 = vunpack.c.l.s4 1983009808
  %v1006 = vunpack.c.0.s8 %v1005
  %v1007 = vperm.slane %v971, %v1006
  %v1008 = vrot.slane %v1007, 4
  %v1009 = vsel %vm146, %v1008, %v1002
  %v1010 = vrot.slane %v1002, 4
  %v1011 = vsel %vm146, %v1007, %v1010
  %v1013 = vunpack.c.l.s4 1934713408
  %v1014 = vunpack.c.0.s8 %v1013
  %v1015 = vperm.slane %v1009, %v1014
  %v1017 = vunpack.c.l.s4 1934713408
  %v1018 = vunpack.c.0.s8 %v1017
  %v1019 = vperm.slane %v1011, %v1018
  %v1020 = vrot.slane %v1015, 4
  %v1021 = vsel %vm146, 0, %v1020
  %v1022 = vrot.slane %v1019, 4
  %v1023 = vsel %vm146, 0, %v1022
  %v1024 = vsel %vm146, %v996, %v989
  %v1026 = vunpack.c.l.s4 1983009808
  %v1027 = vunpack.c.0.s8 %v1026
  %v1028 = vperm.slane %v1024, %v1027
  %v1029 = vrot.slane %v997, 4
  %v1030 = vsel %vm146, %v1029, %v995
  %v1032 = vunpack.c.l.s4 1983009808
  %v1033 = vunpack.c.0.s8 %v1032
  %v1034 = vperm.slane %v1030, %v1033
  %v1035 = vrot.slane %v1034, 4
  %v1036 = vsel %vm146, %v1035, %v1028
  %v1038 = vunpack.c.l.s4 1934713408
  %v1039 = vunpack.c.0.s8 %v1038
  %v1040 = vperm.slane %v1036, %v1039
  %v1041 = vrot.slane %v1040, 4
  %v1042 = vsel %vm146, 0, %v1041
  %v1043 = vsel %vm146, %v1022, %v1015
  %v1045 = vunpack.c.l.s4 1983009808
  %v1046 = vunpack.c.0.s8 %v1045
  %v1047 = vperm.slane %v1043, %v1046
  %v1048 = vrot.slane %v1023, 4
  %v1049 = vsel %vm146, %v1048, %v1021
  %v1051 = vunpack.c.l.s4 1983009808
  %v1052 = vunpack.c.0.s8 %v1051
  %v1053 = vperm.slane %v1049, %v1052
  %v1054 = vrot.slane %v1053, 4
  %v1055 = vsel %vm146, %v1054, %v1047
  %v1057 = vunpack.c.l.s4 1934713408
  %v1058 = vunpack.c.0.s8 %v1057
  %v1059 = vperm.slane %v1055, %v1058
  %v1060 = vrot.slane %v1059, 4
  %v1061 = vsel %vm146, 0, %v1060
  %v1064 = vpack.i.b16 %v1059, %v1040
  %v1065 = vshrl.u32 %v1040, 16
  %v1066 = vshrl.u32 %v1059, 16
  %v1067 = vpack.i.b16 %v1066, %v1065
  %v1070 = vpack.i.b16 %v1061, %v1042
  %v1071 = vshrl.u32 %v1042, 16
  %v1072 = vshrl.u32 %v1061, 16
  %v1073 = vpack.i.b16 %v1072, %v1071
  %1074 = vrot.lane.b32.xlu0 %v113, 64
  %v1075 = vpop.permute.xlu0 %1074
  %1076 = vrot.lane.b32.xlu0 %v947, 64
  %v1077 = vpop.permute.xlu0 %1076
  %1078 = vrot.lane.b32.xlu0 %v949, 64
  %v1079 = vpop.permute.xlu0 %1078
  %1080 = vrot.lane.b32.xlu0 %v951, 64
  %v1081 = vpop.permute.xlu0 %1080
  %v1084 = vpack.i.b16 %v1077, %v1075
  %v1085 = vshrl.u32 %v1075, 16
  %v1086 = vshrl.u32 %v1077, 16
  %v1087 = vpack.i.b16 %v1086, %v1085
  %v1090 = vpack.i.b16 %v1081, %v1079
  %v1091 = vshrl.u32 %v1079, 16
  %v1092 = vshrl.u32 %v1081, 16
  %v1093 = vpack.i.b16 %v1092, %v1091
  %v1096 = vunpack.c.l.s4 1983009808
  %v1097 = vunpack.c.0.s8 %v1096
  %v1098 = vperm.slane %v1084, %v1097
  %v1101 = vunpack.c.l.s4 1983009808
  %v1102 = vunpack.c.0.s8 %v1101
  %v1103 = vperm.slane %v1090, %v1102
  %v1104 = vrot.slane %v1103, 4
  %v1105 = vsel %vm146, %v1104, %v1098
  %v1106 = vrot.slane %v1098, 4
  %v1107 = vsel %vm146, %v1103, %v1106
  %v1109 = vunpack.c.l.s4 1934713408
  %v1110 = vunpack.c.0.s8 %v1109
  %v1111 = vperm.slane %v1105, %v1110
  %v1113 = vunpack.c.l.s4 1934713408
  %v1114 = vunpack.c.0.s8 %v1113
  %v1115 = vperm.slane %v1107, %v1114
  %v1116 = vrot.slane %v1111, 4
  %v1117 = vsel %vm146, 0, %v1116
  %v1118 = vrot.slane %v1115, 4
  %v1119 = vsel %vm146, 0, %v1118
  %v1122 = vunpack.c.l.s4 1983009808
  %v1123 = vunpack.c.0.s8 %v1122
  %v1124 = vperm.slane %v1087, %v1123
  %v1127 = vunpack.c.l.s4 1983009808
  %v1128 = vunpack.c.0.s8 %v1127
  %v1129 = vperm.slane %v1093, %v1128
  %v1130 = vrot.slane %v1129, 4
  %v1131 = vsel %vm146, %v1130, %v1124
  %v1132 = vrot.slane %v1124, 4
  %v1133 = vsel %vm146, %v1129, %v1132
  %v1135 = vunpack.c.l.s4 1934713408
  %v1136 = vunpack.c.0.s8 %v1135
  %v1137 = vperm.slane %v1131, %v1136
  %v1139 = vunpack.c.l.s4 1934713408
  %v1140 = vunpack.c.0.s8 %v1139
  %v1141 = vperm.slane %v1133, %v1140
  %v1142 = vrot.slane %v1137, 4
  %v1143 = vsel %vm146, 0, %v1142
  %v1144 = vrot.slane %v1141, 4
  %v1145 = vsel %vm146, 0, %v1144
  %v1146 = vsel %vm146, %v1118, %v1111
  %v1148 = vunpack.c.l.s4 1983009808
  %v1149 = vunpack.c.0.s8 %v1148
  %v1150 = vperm.slane %v1146, %v1149
  %v1151 = vrot.slane %v1119, 4
  %v1152 = vsel %vm146, %v1151, %v1117
  %v1154 = vunpack.c.l.s4 1983009808
  %v1155 = vunpack.c.0.s8 %v1154
  %v1156 = vperm.slane %v1152, %v1155
  %v1157 = vrot.slane %v1156, 4
  %v1158 = vsel %vm146, %v1157, %v1150
  %v1160 = vunpack.c.l.s4 1934713408
  %v1161 = vunpack.c.0.s8 %v1160
  %v1162 = vperm.slane %v1158, %v1161
  %v1163 = vrot.slane %v1162, 4
  %v1164 = vsel %vm146, 0, %v1163
  %v1165 = vsel %vm146, %v1144, %v1137
  %v1167 = vunpack.c.l.s4 1983009808
  %v1168 = vunpack.c.0.s8 %v1167
  %v1169 = vperm.slane %v1165, %v1168
  %v1170 = vrot.slane %v1145, 4
  %v1171 = vsel %vm146, %v1170, %v1143
  %v1173 = vunpack.c.l.s4 1983009808
  %v1174 = vunpack.c.0.s8 %v1173
  %v1175 = vperm.slane %v1171, %v1174
  %v1176 = vrot.slane %v1175, 4
  %v1177 = vsel %vm146, %v1176, %v1169
  %v1179 = vunpack.c.l.s4 1934713408
  %v1180 = vunpack.c.0.s8 %v1179
  %v1181 = vperm.slane %v1177, %v1180
  %v1182 = vrot.slane %v1181, 4
  %v1183 = vsel %vm146, 0, %v1182
  %v1186 = vpack.i.b16 %v1181, %v1162
  %v1187 = vshrl.u32 %v1162, 16
  %v1188 = vshrl.u32 %v1181, 16
  %v1189 = vpack.i.b16 %v1188, %v1187
  %v1192 = vpack.i.b16 %v1183, %v1164
  %v1193 = vshrl.u32 %v1164, 16
  %v1194 = vshrl.u32 %v1183, 16
  %v1195 = vpack.i.b16 %v1194, %v1193
  %s1196 = scalar_lea.vmem %s1, 1
  %v1197 = vld [vmem:[%s1196] sm:$0x1]
  %v1199 = vperm.slane %v1197, 0
  %v1202 = vsel %vm493, %v935, 0
  %v1205 = vsel %vm493, %v1064, 0
  %1207 = vmatpush.bf16.xpose.msra.mxu0 0
  %1208 = vmatpush.bf16.xpose.msra.mxu0 0
  %1209 = vmatpush.bf16.xpose.msra.mxu0 0
  %1210 = vmatpush.bf16.xpose.msra.mxu0 0
  %1211 = vmatpush.bf16.xpose.msra.mxu0 0
  %1212 = vmatpush.bf16.xpose.msra.mxu0 0
  %1213 = vmatpush.bf16.xpose.msra.mxu0 0
  %1214 = vmatpush.bf16.xpose.msra.mxu0 %v1205
  %1215 = vmatmul.bf16.gmra.mxu0 %v1202
  %v1216 = vpop.f32.mrf.mxu0
  %v1217 = vadd.f32 %v1199, %v1216
  %v1218 = vpop.f32.mrf.mxu0
  %1219 = vdwg.mxu0
  %v1221 = vsel %vm493, %v938, 0
  %v1224 = vsel %vm493, %v1067, 0
  %1226 = vmatpush.bf16.xpose.msra.mxu0 0
  %1227 = vmatpush.bf16.xpose.msra.mxu0 0
  %1228 = vmatpush.bf16.xpose.msra.mxu0 0
  %1229 = vmatpush.bf16.xpose.msra.mxu0 0
  %1230 = vmatpush.bf16.xpose.msra.mxu0 0
  %1231 = vmatpush.bf16.xpose.msra.mxu0 0
  %1232 = vmatpush.bf16.xpose.msra.mxu0 0
  %1233 = vmatpush.bf16.xpose.msra.mxu0 %v1224
  %1234 = vmatmul.bf16.gmra.mxu0 %v1221
  %v1235 = vpop.f32.mrf.mxu0
  %v1236 = vadd.f32 %v1199, %v1235
  %v1237 = vpop.f32.mrf.mxu0
  %1238 = vdwg.mxu0
  %v1240 = vsel %vm493, %v941, 0
  %v1243 = vsel %vm493, %v1070, 0
  %1245 = vmatpush.bf16.xpose.msra.mxu0 0
  %1246 = vmatpush.bf16.xpose.msra.mxu0 0
  %1247 = vmatpush.bf16.xpose.msra.mxu0 0
  %1248 = vmatpush.bf16.xpose.msra.mxu0 0
  %1249 = vmatpush.bf16.xpose.msra.mxu0 0
  %1250 = vmatpush.bf16.xpose.msra.mxu0 0
  %1251 = vmatpush.bf16.xpose.msra.mxu0 0
  %1252 = vmatpush.bf16.xpose.msra.mxu0 %v1243
  %1253 = vmatmul.bf16.gmra.mxu0 %v1240
  %v1254 = vpop.f32.mrf.mxu0
  %v1255 = vadd.f32 %v1199, %v1254
  %v1256 = vpop.f32.mrf.mxu0
  %1257 = vdwg.mxu0
  %v1259 = vsel %vm493, %v944, 0
  %v1262 = vsel %vm493, %v1073, 0
  %1264 = vmatpush.bf16.xpose.msra.mxu0 0
  %1265 = vmatpush.bf16.xpose.msra.mxu0 0
  %1266 = vmatpush.bf16.xpose.msra.mxu0 0
  %1267 = vmatpush.bf16.xpose.msra.mxu0 0
  %1268 = vmatpush.bf16.xpose.msra.mxu0 0
  %1269 = vmatpush.bf16.xpose.msra.mxu0 0
  %1270 = vmatpush.bf16.xpose.msra.mxu0 0
  %1271 = vmatpush.bf16.xpose.msra.mxu0 %v1262
  %1272 = vmatmul.bf16.gmra.mxu0 %v1259
  %v1273 = vpop.f32.mrf.mxu0
  %v1274 = vadd.f32 %v1199, %v1273
  %v1275 = vpop.f32.mrf.mxu0
  %1276 = vdwg.mxu0
  %v1277 = vsel %vm493, %v1217, -inf
  %1278 = vmax.xlane.f32.xlu0 %v1277
  %v1279 = vpop.xlane.xlu0 %1278
  %v1280 = vsel %vm493, %v1236, -inf
  %1281 = vmax.xlane.f32.xlu0 %v1280
  %v1282 = vpop.xlane.xlu0 %1281
  %v1283 = vsel %vm493, %v1255, -inf
  %1284 = vmax.xlane.f32.xlu0 %v1283
  %v1285 = vpop.xlane.xlu0 %1284
  %v1286 = vsel %vm493, %v1274, -inf
  %1287 = vmax.xlane.f32.xlu0 %v1286
  %v1288 = vpop.xlane.xlu0 %1287
  %v1289 = vsub.f32 %v1217, %v1279
  %v1290 = vsub.f32 %v1236, %v1282
  %v1291 = vsub.f32 %v1255, %v1285
  %v1292 = vsub.f32 %v1274, %v1288
  %v1293 = vmul.f32 %v1289, 1.442695
  %v1294 = vpow.pop %v1293
  %v1295 = vmul.f32 %v1290, 1.442695
  %v1296 = vpow.pop %v1295
  %v1297 = vmul.f32 %v1291, 1.442695
  %v1298 = vpow.pop %v1297
  %v1299 = vmul.f32 %v1292, 1.442695
  %v1300 = vpow.pop %v1299
  %v1301 = vsel %vm493, %v1294, 0.0
  %1302 = vadd.xlane.f32.xlu0 %v1301
  %v1303 = vpop.xlane.xlu0 %1302
  %v1304 = vsel %vm493, %v1296, 0.0
  %1305 = vadd.xlane.f32.xlu0 %v1304
  %v1306 = vpop.xlane.xlu0 %1305
  %v1307 = vsel %vm493, %v1298, 0.0
  %1308 = vadd.xlane.f32.xlu0 %v1307
  %v1309 = vpop.xlane.xlu0 %1308
  %v1310 = vsel %vm493, %v1300, 0.0
  %1311 = vadd.xlane.f32.xlu0 %v1310
  %v1312 = vpop.xlane.xlu0 %1311
  %v1313 = vrcp.pop %v1303
  %v1314 = vrcp.pop %v1306
  %v1315 = vrcp.pop %v1309
  %v1316 = vrcp.pop %v1312
  %v1317 = vmul.f32 %v1294, %v1313
  %v1318 = vmul.f32 %v1296, %v1314
  %v1319 = vmul.f32 %v1298, %v1315
  %v1320 = vmul.f32 %v1300, %v1316
  %v1321 = vpack.c.bf16 %v1317, %v1317
  %v1322 = vpack.c.bf16 %v1318, %v1318
  %v1323 = vpack.c.bf16 %v1319, %v1319
  %v1324 = vpack.c.bf16 %v1320, %v1320
  %v1326 = vsel %vm493, %v1321, 0
  %v1329 = vsel %vm621, %v1186, 0
  %1331 = vmatpush.bf16.msra.mxu0 0
  %1332 = vmatpush.bf16.msra.mxu0 0
  %1333 = vmatpush.bf16.msra.mxu0 0
  %1334 = vmatpush.bf16.msra.mxu0 0
  %1335 = vmatpush.bf16.msra.mxu0 0
  %1336 = vmatpush.bf16.msra.mxu0 0
  %1337 = vmatpush.bf16.msra.mxu0 0
  %1338 = vmatpush.bf16.msra.mxu0 %v1329
  %1339 = vmatmul.bf16.gmra.mxu0 %v1326
  %v1340 = vpop.f32.mrf.mxu0
  %v1341 = vadd.f32 0.0, %v1340
  %v1342 = vpop.f32.mrf.mxu0
  %1343 = vdwg.mxu0
  %v1345 = vsel %vm493, %v1322, 0
  %v1348 = vsel %vm621, %v1189, 0
  %1350 = vmatpush.bf16.msra.mxu0 0
  %1351 = vmatpush.bf16.msra.mxu0 0
  %1352 = vmatpush.bf16.msra.mxu0 0
  %1353 = vmatpush.bf16.msra.mxu0 0
  %1354 = vmatpush.bf16.msra.mxu0 0
  %1355 = vmatpush.bf16.msra.mxu0 0
  %1356 = vmatpush.bf16.msra.mxu0 0
  %1357 = vmatpush.bf16.msra.mxu0 %v1348
  %1358 = vmatmul.bf16.gmra.mxu0 %v1345
  %v1359 = vpop.f32.mrf.mxu0
  %v1360 = vadd.f32 0.0, %v1359
  %v1361 = vpop.f32.mrf.mxu0
  %1362 = vdwg.mxu0
  %v1364 = vsel %vm493, %v1323, 0
  %v1367 = vsel %vm621, %v1192, 0
  %1369 = vmatpush.bf16.msra.mxu0 0
  %1370 = vmatpush.bf16.msra.mxu0 0
  %1371 = vmatpush.bf16.msra.mxu0 0
  %1372 = vmatpush.bf16.msra.mxu0 0
  %1373 = vmatpush.bf16.msra.mxu0 0
  %1374 = vmatpush.bf16.msra.mxu0 0
  %1375 = vmatpush.bf16.msra.mxu0 0
  %1376 = vmatpush.bf16.msra.mxu0 %v1367
  %1377 = vmatmul.bf16.gmra.mxu0 %v1364
  %v1378 = vpop.f32.mrf.mxu0
  %v1379 = vadd.f32 0.0, %v1378
  %v1380 = vpop.f32.mrf.mxu0
  %1381 = vdwg.mxu0
  %v1383 = vsel %vm493, %v1324, 0
  %v1386 = vsel %vm621, %v1195, 0
  %1388 = vmatpush.bf16.msra.mxu0 0
  %1389 = vmatpush.bf16.msra.mxu0 0
  %1390 = vmatpush.bf16.msra.mxu0 0
  %1391 = vmatpush.bf16.msra.mxu0 0
  %1392 = vmatpush.bf16.msra.mxu0 0
  %1393 = vmatpush.bf16.msra.mxu0 0
  %1394 = vmatpush.bf16.msra.mxu0 0
  %1395 = vmatpush.bf16.msra.mxu0 %v1386
  %1396 = vmatmul.bf16.gmra.mxu0 %v1383
  %v1397 = vpop.f32.mrf.mxu0
  %v1398 = vadd.f32 0.0, %v1397
  %v1399 = vpop.f32.mrf.mxu0
  %1400 = vdwg.mxu0
  %v1401 = vrot.slane %v1379, 4
  %v1402 = vsel %vm696, %v1401, %v1341
  %v1403 = vrot.slane %v1341, 4
  %v1404 = vsel %vm696, %v1379, %v1403
  %v1406 = vunpack.c.l.s4 1983009808
  %v1407 = vunpack.c.0.s8 %v1406
  %v1408 = vperm.slane %v1402, %v1407
  %v1410 = vunpack.c.l.s4 1983009808
  %v1411 = vunpack.c.0.s8 %v1410
  %v1412 = vperm.slane %v1404, %v1411
  %v1413 = vrot.slane %v1398, 4
  %v1414 = vsel %vm696, %v1413, %v1360
  %v1415 = vrot.slane %v1360, 4
  %v1416 = vsel %vm696, %v1398, %v1415
  %v1418 = vunpack.c.l.s4 1983009808
  %v1419 = vunpack.c.0.s8 %v1418
  %v1420 = vperm.slane %v1414, %v1419
  %v1422 = vunpack.c.l.s4 1983009808
  %v1423 = vunpack.c.0.s8 %v1422
  %v1424 = vperm.slane %v1416, %v1423
  %v1425 = vrot.slane %v1420, 4
  %v1426 = vsel %vm696, %v1425, %v1408
  %v1427 = vrot.slane %v1408, 4
  %v1428 = vsel %vm696, %v1420, %v1427
  %v1430 = vunpack.c.l.s4 1934713408
  %v1431 = vunpack.c.0.s8 %v1430
  %v1432 = vperm.slane %v1426, %v1431
  %v1434 = vunpack.c.l.s4 1934713408
  %v1435 = vunpack.c.0.s8 %v1434
  %v1436 = vperm.slane %v1428, %v1435
  %v1437 = vrot.slane %v1424, 4
  %v1438 = vsel %vm696, %v1437, %v1412
  %v1439 = vrot.slane %v1412, 4
  %v1440 = vsel %vm696, %v1424, %v1439
  %v1442 = vunpack.c.l.s4 1934713408
  %v1443 = vunpack.c.0.s8 %v1442
  %v1444 = vperm.slane %v1438, %v1443
  %v1446 = vunpack.c.l.s4 1934713408
  %v1447 = vunpack.c.0.s8 %v1446
  %v1448 = vperm.slane %v1440, %v1447
  %v1449 = vrot.slane %v1432, 4
  %v1450 = vsel %vm696, 0.0, %v1449
  %v1451 = vrot.slane %v1436, 4
  %v1452 = vsel %vm696, 0.0, %v1451
  %v1453 = vrot.slane %v1444, 4
  %v1454 = vsel %vm696, 0.0, %v1453
  %v1455 = vrot.slane %v1448, 4
  %v1456 = vsel %vm696, 0.0, %v1455
  %v1457 = vsel %vm696, %v1451, %v1432
  %v1459 = vunpack.c.l.s4 1983009808
  %v1460 = vunpack.c.0.s8 %v1459
  %v1461 = vperm.slane %v1457, %v1460
  %v1462 = vrot.slane %v1452, 4
  %v1463 = vsel %vm696, %v1462, %v1450
  %v1465 = vunpack.c.l.s4 1983009808
  %v1466 = vunpack.c.0.s8 %v1465
  %v1467 = vperm.slane %v1463, %v1466
  %v1468 = vsel %vm696, %v1455, %v1444
  %v1470 = vunpack.c.l.s4 1983009808
  %v1471 = vunpack.c.0.s8 %v1470
  %v1472 = vperm.slane %v1468, %v1471
  %v1473 = vrot.slane %v1456, 4
  %v1474 = vsel %vm696, %v1473, %v1454
  %v1476 = vunpack.c.l.s4 1983009808
  %v1477 = vunpack.c.0.s8 %v1476
  %v1478 = vperm.slane %v1474, %v1477
  %v1479 = vrot.slane %v1467, 4
  %v1480 = vsel %vm696, %v1479, %v1461
  %v1481 = vrot.slane %v1461, 4
  %v1482 = vsel %vm696, %v1467, %v1481
  %v1484 = vunpack.c.l.s4 1934713408
  %v1485 = vunpack.c.0.s8 %v1484
  %v1486 = vperm.slane %v1480, %v1485
  %v1488 = vunpack.c.l.s4 1934713408
  %v1489 = vunpack.c.0.s8 %v1488
  %v1490 = vperm.slane %v1482, %v1489
  %v1491 = vrot.slane %v1478, 4
  %v1492 = vsel %vm696, %v1491, %v1472
  %v1493 = vrot.slane %v1472, 4
  %v1494 = vsel %vm696, %v1478, %v1493
  %v1496 = vunpack.c.l.s4 1934713408
  %v1497 = vunpack.c.0.s8 %v1496
  %v1498 = vperm.slane %v1492, %v1497
  %v1500 = vunpack.c.l.s4 1934713408
  %v1501 = vunpack.c.0.s8 %v1500
  %v1502 = vperm.slane %v1494, %v1501
  %v1503 = vrot.slane %v1498, 4
  %v1504 = vsel %vm696, %v1503, %v1486
  %v1505 = vrot.slane %v1486, 4
  %v1506 = vsel %vm696, %v1498, %v1505
  %v1507 = vrot.slane %v1502, 4
  %v1508 = vsel %vm696, %v1507, %v1490
  %v1509 = vrot.slane %v1490, 4
  %v1510 = vsel %vm696, %v1502, %v1509
  %1512 = vrot.lane.b32.xlu0 %v1506, 8
  %v1513 = vpop.permute.xlu0 %1512
  %1516 = vrot.lane.b32.xlu0 %v1508, 16
  %v1517 = vpop.permute.xlu0 %1516
  %1520 = vrot.lane.b32.xlu0 %v1510, 24
  %v1521 = vpop.permute.xlu0 %1520
  %v1523 = vsel %vm493, %v1504, %v1513
  %v1524 = vsel %vm819, %v1523, %v1517
  %v1525 = vsel %vm821, %v1524, %v1521
  %v1526 = vpack.c.bf16 %v1525, %v1525
  %1528 = vrot.lane.b32.xlu0 %v110, 120
  %v1529 = vpop.permute.xlu0 %1528
  %1530 = vrot.lane.b32.xlu0 %v110, 112
  %v1531 = vpop.permute.xlu0 %1530
  %1532 = vrot.lane.b32.xlu0 %v110, 104
  %v1533 = vpop.permute.xlu0 %1532
  %v1536 = vpack.i.b16 %v1529, %v110
  %v1537 = vshrl.u32 %v110, 16
  %v1538 = vshrl.u32 %v1529, 16
  %v1539 = vpack.i.b16 %v1538, %v1537
  %v1542 = vpack.i.b16 %v1533, %v1531
  %v1543 = vshrl.u32 %v1531, 16
  %v1544 = vshrl.u32 %v1533, 16
  %v1545 = vpack.i.b16 %v1544, %v1543
  %v1548 = vunpack.c.l.s4 1983009808
  %v1549 = vunpack.c.0.s8 %v1548
  %v1550 = vperm.slane %v1536, %v1549
  %v1553 = vunpack.c.l.s4 1983009808
  %v1554 = vunpack.c.0.s8 %v1553
  %v1555 = vperm.slane %v1542, %v1554
  %v1556 = vrot.slane %v1555, 4
  %v1557 = vsel %vm146, %v1556, %v1550
  %v1558 = vrot.slane %v1550, 4
  %v1559 = vsel %vm146, %v1555, %v1558
  %v1561 = vunpack.c.l.s4 1934713408
  %v1562 = vunpack.c.0.s8 %v1561
  %v1563 = vperm.slane %v1557, %v1562
  %v1565 = vunpack.c.l.s4 1934713408
  %v1566 = vunpack.c.0.s8 %v1565
  %v1567 = vperm.slane %v1559, %v1566
  %v1568 = vrot.slane %v1563, 4
  %v1569 = vsel %vm146, 0, %v1568
  %v1570 = vrot.slane %v1567, 4
  %v1571 = vsel %vm146, 0, %v1570
  %v1574 = vunpack.c.l.s4 1983009808
  %v1575 = vunpack.c.0.s8 %v1574
  %v1576 = vperm.slane %v1539, %v1575
  %v1579 = vunpack.c.l.s4 1983009808
  %v1580 = vunpack.c.0.s8 %v1579
  %v1581 = vperm.slane %v1545, %v1580
  %v1582 = vrot.slane %v1581, 4
  %v1583 = vsel %vm146, %v1582, %v1576
  %v1584 = vrot.slane %v1576, 4
  %v1585 = vsel %vm146, %v1581, %v1584
  %v1587 = vunpack.c.l.s4 1934713408
  %v1588 = vunpack.c.0.s8 %v1587
  %v1589 = vperm.slane %v1583, %v1588
  %v1591 = vunpack.c.l.s4 1934713408
  %v1592 = vunpack.c.0.s8 %v1591
  %v1593 = vperm.slane %v1585, %v1592
  %v1594 = vrot.slane %v1589, 4
  %v1595 = vsel %vm146, 0, %v1594
  %v1596 = vrot.slane %v1593, 4
  %v1597 = vsel %vm146, 0, %v1596
  %v1598 = vsel %vm146, %v1570, %v1563
  %v1600 = vunpack.c.l.s4 1983009808
  %v1601 = vunpack.c.0.s8 %v1600
  %v1602 = vperm.slane %v1598, %v1601
  %v1603 = vrot.slane %v1571, 4
  %v1604 = vsel %vm146, %v1603, %v1569
  %v1606 = vunpack.c.l.s4 1983009808
  %v1607 = vunpack.c.0.s8 %v1606
  %v1608 = vperm.slane %v1604, %v1607
  %v1609 = vrot.slane %v1608, 4
  %v1610 = vsel %vm146, %v1609, %v1602
  %v1612 = vunpack.c.l.s4 1934713408
  %v1613 = vunpack.c.0.s8 %v1612
  %v1614 = vperm.slane %v1610, %v1613
  %v1615 = vrot.slane %v1614, 4
  %v1616 = vsel %vm146, 0, %v1615
  %v1617 = vsel %vm146, %v1596, %v1589
  %v1619 = vunpack.c.l.s4 1983009808
  %v1620 = vunpack.c.0.s8 %v1619
  %v1621 = vperm.slane %v1617, %v1620
  %v1622 = vrot.slane %v1597, 4
  %v1623 = vsel %vm146, %v1622, %v1595
  %v1625 = vunpack.c.l.s4 1983009808
  %v1626 = vunpack.c.0.s8 %v1625
  %v1627 = vperm.slane %v1623, %v1626
  %v1628 = vrot.slane %v1627, 4
  %v1629 = vsel %vm146, %v1628, %v1621
  %v1631 = vunpack.c.l.s4 1934713408
  %v1632 = vunpack.c.0.s8 %v1631
  %v1633 = vperm.slane %v1629, %v1632
  %v1634 = vrot.slane %v1633, 4
  %v1635 = vsel %vm146, 0, %v1634
  %v1638 = vpack.i.b16 %v1633, %v1614
  %v1639 = vshrl.u32 %v1614, 16
  %v1640 = vshrl.u32 %v1633, 16
  %v1641 = vpack.i.b16 %v1640, %v1639
  %v1644 = vpack.i.b16 %v1635, %v1616
  %v1645 = vshrl.u32 %v1616, 16
  %v1646 = vshrl.u32 %v1635, 16
  %v1647 = vpack.i.b16 %v1646, %v1645
  %1649 = vrot.lane.b32.xlu0 %v114, 120
  %v1650 = vpop.permute.xlu0 %1649
  %1651 = vrot.lane.b32.xlu0 %v114, 112
  %v1652 = vpop.permute.xlu0 %1651
  %1653 = vrot.lane.b32.xlu0 %v114, 104
  %v1654 = vpop.permute.xlu0 %1653
  %1655 = vrot.lane.b32.xlu0 %v114, 96
  %v1656 = vpop.permute.xlu0 %1655
  %1657 = vrot.lane.b32.xlu0 %v1650, 96
  %v1658 = vpop.permute.xlu0 %1657
  %1659 = vrot.lane.b32.xlu0 %v1652, 96
  %v1660 = vpop.permute.xlu0 %1659
  %1661 = vrot.lane.b32.xlu0 %v1654, 96
  %v1662 = vpop.permute.xlu0 %1661
  %v1665 = vpack.i.b16 %v1658, %v1656
  %v1666 = vshrl.u32 %v1656, 16
  %v1667 = vshrl.u32 %v1658, 16
  %v1668 = vpack.i.b16 %v1667, %v1666
  %v1671 = vpack.i.b16 %v1662, %v1660
  %v1672 = vshrl.u32 %v1660, 16
  %v1673 = vshrl.u32 %v1662, 16
  %v1674 = vpack.i.b16 %v1673, %v1672
  %v1677 = vunpack.c.l.s4 1983009808
  %v1678 = vunpack.c.0.s8 %v1677
  %v1679 = vperm.slane %v1665, %v1678
  %v1682 = vunpack.c.l.s4 1983009808
  %v1683 = vunpack.c.0.s8 %v1682
  %v1684 = vperm.slane %v1671, %v1683
  %v1685 = vrot.slane %v1684, 4
  %v1686 = vsel %vm146, %v1685, %v1679
  %v1687 = vrot.slane %v1679, 4
  %v1688 = vsel %vm146, %v1684, %v1687
  %v1690 = vunpack.c.l.s4 1934713408
  %v1691 = vunpack.c.0.s8 %v1690
  %v1692 = vperm.slane %v1686, %v1691
  %v1694 = vunpack.c.l.s4 1934713408
  %v1695 = vunpack.c.0.s8 %v1694
  %v1696 = vperm.slane %v1688, %v1695
  %v1697 = vrot.slane %v1692, 4
  %v1698 = vsel %vm146, 0, %v1697
  %v1699 = vrot.slane %v1696, 4
  %v1700 = vsel %vm146, 0, %v1699
  %v1703 = vunpack.c.l.s4 1983009808
  %v1704 = vunpack.c.0.s8 %v1703
  %v1705 = vperm.slane %v1668, %v1704
  %v1708 = vunpack.c.l.s4 1983009808
  %v1709 = vunpack.c.0.s8 %v1708
  %v1710 = vperm.slane %v1674, %v1709
  %v1711 = vrot.slane %v1710, 4
  %v1712 = vsel %vm146, %v1711, %v1705
  %v1713 = vrot.slane %v1705, 4
  %v1714 = vsel %vm146, %v1710, %v1713
  %v1716 = vunpack.c.l.s4 1934713408
  %v1717 = vunpack.c.0.s8 %v1716
  %v1718 = vperm.slane %v1712, %v1717
  %v1720 = vunpack.c.l.s4 1934713408
  %v1721 = vunpack.c.0.s8 %v1720
  %v1722 = vperm.slane %v1714, %v1721
  %v1723 = vrot.slane %v1718, 4
  %v1724 = vsel %vm146, 0, %v1723
  %v1725 = vrot.slane %v1722, 4
  %v1726 = vsel %vm146, 0, %v1725
  %v1727 = vsel %vm146, %v1699, %v1692
  %v1729 = vunpack.c.l.s4 1983009808
  %v1730 = vunpack.c.0.s8 %v1729
  %v1731 = vperm.slane %v1727, %v1730
  %v1732 = vrot.slane %v1700, 4
  %v1733 = vsel %vm146, %v1732, %v1698
  %v1735 = vunpack.c.l.s4 1983009808
  %v1736 = vunpack.c.0.s8 %v1735
  %v1737 = vperm.slane %v1733, %v1736
  %v1738 = vrot.slane %v1737, 4
  %v1739 = vsel %vm146, %v1738, %v1731
  %v1741 = vunpack.c.l.s4 1934713408
  %v1742 = vunpack.c.0.s8 %v1741
  %v1743 = vperm.slane %v1739, %v1742
  %v1744 = vrot.slane %v1743, 4
  %v1745 = vsel %vm146, 0, %v1744
  %v1746 = vsel %vm146, %v1725, %v1718
  %v1748 = vunpack.c.l.s4 1983009808
  %v1749 = vunpack.c.0.s8 %v1748
  %v1750 = vperm.slane %v1746, %v1749
  %v1751 = vrot.slane %v1726, 4
  %v1752 = vsel %vm146, %v1751, %v1724
  %v1754 = vunpack.c.l.s4 1983009808
  %v1755 = vunpack.c.0.s8 %v1754
  %v1756 = vperm.slane %v1752, %v1755
  %v1757 = vrot.slane %v1756, 4
  %v1758 = vsel %vm146, %v1757, %v1750
  %v1760 = vunpack.c.l.s4 1934713408
  %v1761 = vunpack.c.0.s8 %v1760
  %v1762 = vperm.slane %v1758, %v1761
  %v1763 = vrot.slane %v1762, 4
  %v1764 = vsel %vm146, 0, %v1763
  %v1767 = vpack.i.b16 %v1762, %v1743
  %v1768 = vshrl.u32 %v1743, 16
  %v1769 = vshrl.u32 %v1762, 16
  %v1770 = vpack.i.b16 %v1769, %v1768
  %v1773 = vpack.i.b16 %v1764, %v1745
  %v1774 = vshrl.u32 %v1745, 16
  %v1775 = vshrl.u32 %v1764, 16
  %v1776 = vpack.i.b16 %v1775, %v1774
  %1777 = vrot.lane.b32.xlu0 %v114, 64
  %v1778 = vpop.permute.xlu0 %1777
  %1779 = vrot.lane.b32.xlu0 %v1650, 64
  %v1780 = vpop.permute.xlu0 %1779
  %1781 = vrot.lane.b32.xlu0 %v1652, 64
  %v1782 = vpop.permute.xlu0 %1781
  %1783 = vrot.lane.b32.xlu0 %v1654, 64
  %v1784 = vpop.permute.xlu0 %1783
  %v1787 = vpack.i.b16 %v1780, %v1778
  %v1788 = vshrl.u32 %v1778, 16
  %v1789 = vshrl.u32 %v1780, 16
  %v1790 = vpack.i.b16 %v1789, %v1788
  %v1793 = vpack.i.b16 %v1784, %v1782
  %v1794 = vshrl.u32 %v1782, 16
  %v1795 = vshrl.u32 %v1784, 16
  %v1796 = vpack.i.b16 %v1795, %v1794
  %v1799 = vunpack.c.l.s4 1983009808
  %v1800 = vunpack.c.0.s8 %v1799
  %v1801 = vperm.slane %v1787, %v1800
  %v1804 = vunpack.c.l.s4 1983009808
  %v1805 = vunpack.c.0.s8 %v1804
  %v1806 = vperm.slane %v1793, %v1805
  %v1807 = vrot.slane %v1806, 4
  %v1808 = vsel %vm146, %v1807, %v1801
  %v1809 = vrot.slane %v1801, 4
  %v1810 = vsel %vm146, %v1806, %v1809
  %v1812 = vunpack.c.l.s4 1934713408
  %v1813 = vunpack.c.0.s8 %v1812
  %v1814 = vperm.slane %v1808, %v1813
  %v1816 = vunpack.c.l.s4 1934713408
  %v1817 = vunpack.c.0.s8 %v1816
  %v1818 = vperm.slane %v1810, %v1817
  %v1819 = vrot.slane %v1814, 4
  %v1820 = vsel %vm146, 0, %v1819
  %v1821 = vrot.slane %v1818, 4
  %v1822 = vsel %vm146, 0, %v1821
  %v1825 = vunpack.c.l.s4 1983009808
  %v1826 = vunpack.c.0.s8 %v1825
  %v1827 = vperm.slane %v1790, %v1826
  %v1830 = vunpack.c.l.s4 1983009808
  %v1831 = vunpack.c.0.s8 %v1830
  %v1832 = vperm.slane %v1796, %v1831
  %v1833 = vrot.slane %v1832, 4
  %v1834 = vsel %vm146, %v1833, %v1827
  %v1835 = vrot.slane %v1827, 4
  %v1836 = vsel %vm146, %v1832, %v1835
  %v1838 = vunpack.c.l.s4 1934713408
  %v1839 = vunpack.c.0.s8 %v1838
  %v1840 = vperm.slane %v1834, %v1839
  %v1842 = vunpack.c.l.s4 1934713408
  %v1843 = vunpack.c.0.s8 %v1842
  %v1844 = vperm.slane %v1836, %v1843
  %v1845 = vrot.slane %v1840, 4
  %v1846 = vsel %vm146, 0, %v1845
  %v1847 = vrot.slane %v1844, 4
  %v1848 = vsel %vm146, 0, %v1847
  %v1849 = vsel %vm146, %v1821, %v1814
  %v1851 = vunpack.c.l.s4 1983009808
  %v1852 = vunpack.c.0.s8 %v1851
  %v1853 = vperm.slane %v1849, %v1852
  %v1854 = vrot.slane %v1822, 4
  %v1855 = vsel %vm146, %v1854, %v1820
  %v1857 = vunpack.c.l.s4 1983009808
  %v1858 = vunpack.c.0.s8 %v1857
  %v1859 = vperm.slane %v1855, %v1858
  %v1860 = vrot.slane %v1859, 4
  %v1861 = vsel %vm146, %v1860, %v1853
  %v1863 = vunpack.c.l.s4 1934713408
  %v1864 = vunpack.c.0.s8 %v1863
  %v1865 = vperm.slane %v1861, %v1864
  %v1866 = vrot.slane %v1865, 4
  %v1867 = vsel %vm146, 0, %v1866
  %v1868 = vsel %vm146, %v1847, %v1840
  %v1870 = vunpack.c.l.s4 1983009808
  %v1871 = vunpack.c.0.s8 %v1870
  %v1872 = vperm.slane %v1868, %v1871
  %v1873 = vrot.slane %v1848, 4
  %v1874 = vsel %vm146, %v1873, %v1846
  %v1876 = vunpack.c.l.s4 1983009808
  %v1877 = vunpack.c.0.s8 %v1876
  %v1878 = vperm.slane %v1874, %v1877
  %v1879 = vrot.slane %v1878, 4
  %v1880 = vsel %vm146, %v1879, %v1872
  %v1882 = vunpack.c.l.s4 1934713408
  %v1883 = vunpack.c.0.s8 %v1882
  %v1884 = vperm.slane %v1880, %v1883
  %v1885 = vrot.slane %v1884, 4
  %v1886 = vsel %vm146, 0, %v1885
  %v1889 = vpack.i.b16 %v1884, %v1865
  %v1890 = vshrl.u32 %v1865, 16
  %v1891 = vshrl.u32 %v1884, 16
  %v1892 = vpack.i.b16 %v1891, %v1890
  %v1895 = vpack.i.b16 %v1886, %v1867
  %v1896 = vshrl.u32 %v1867, 16
  %v1897 = vshrl.u32 %v1886, 16
  %v1898 = vpack.i.b16 %v1897, %v1896
  %s1899 = scalar_lea.vmem %s1, 2
  %v1900 = vld [vmem:[%s1899] sm:$0x1]
  %v1902 = vperm.slane %v1900, 0
  %v1905 = vsel %vm493, %v1638, 0
  %v1908 = vsel %vm493, %v1767, 0
  %1910 = vmatpush.bf16.xpose.msra.mxu0 0
  %1911 = vmatpush.bf16.xpose.msra.mxu0 0
  %1912 = vmatpush.bf16.xpose.msra.mxu0 0
  %1913 = vmatpush.bf16.xpose.msra.mxu0 0
  %1914 = vmatpush.bf16.xpose.msra.mxu0 0
  %1915 = vmatpush.bf16.xpose.msra.mxu0 0
  %1916 = vmatpush.bf16.xpose.msra.mxu0 0
  %1917 = vmatpush.bf16.xpose.msra.mxu0 %v1908
  %1918 = vmatmul.bf16.gmra.mxu0 %v1905
  %v1919 = vpop.f32.mrf.mxu0
  %v1920 = vadd.f32 %v1902, %v1919
  %v1921 = vpop.f32.mrf.mxu0
  %1922 = vdwg.mxu0
  %v1924 = vsel %vm493, %v1641, 0
  %v1927 = vsel %vm493, %v1770, 0
  %1929 = vmatpush.bf16.xpose.msra.mxu0 0
  %1930 = vmatpush.bf16.xpose.msra.mxu0 0
  %1931 = vmatpush.bf16.xpose.msra.mxu0 0
  %1932 = vmatpush.bf16.xpose.msra.mxu0 0
  %1933 = vmatpush.bf16.xpose.msra.mxu0 0
  %1934 = vmatpush.bf16.xpose.msra.mxu0 0
  %1935 = vmatpush.bf16.xpose.msra.mxu0 0
  %1936 = vmatpush.bf16.xpose.msra.mxu0 %v1927
  %1937 = vmatmul.bf16.gmra.mxu0 %v1924
  %v1938 = vpop.f32.mrf.mxu0
  %v1939 = vadd.f32 %v1902, %v1938
  %v1940 = vpop.f32.mrf.mxu0
  %1941 = vdwg.mxu0
  %v1943 = vsel %vm493, %v1644, 0
  %v1946 = vsel %vm493, %v1773, 0
  %1948 = vmatpush.bf16.xpose.msra.mxu0 0
  %1949 = vmatpush.bf16.xpose.msra.mxu0 0
  %1950 = vmatpush.bf16.xpose.msra.mxu0 0
  %1951 = vmatpush.bf16.xpose.msra.mxu0 0
  %1952 = vmatpush.bf16.xpose.msra.mxu0 0
  %1953 = vmatpush.bf16.xpose.msra.mxu0 0
  %1954 = vmatpush.bf16.xpose.msra.mxu0 0
  %1955 = vmatpush.bf16.xpose.msra.mxu0 %v1946
  %1956 = vmatmul.bf16.gmra.mxu0 %v1943
  %v1957 = vpop.f32.mrf.mxu0
  %v1958 = vadd.f32 %v1902, %v1957
  %v1959 = vpop.f32.mrf.mxu0
  %1960 = vdwg.mxu0
  %v1962 = vsel %vm493, %v1647, 0
  %v1965 = vsel %vm493, %v1776, 0
  %1967 = vmatpush.bf16.xpose.msra.mxu0 0
  %1968 = vmatpush.bf16.xpose.msra.mxu0 0
  %1969 = vmatpush.bf16.xpose.msra.mxu0 0
  %1970 = vmatpush.bf16.xpose.msra.mxu0 0
  %1971 = vmatpush.bf16.xpose.msra.mxu0 0
  %1972 = vmatpush.bf16.xpose.msra.mxu0 0
  %1973 = vmatpush.bf16.xpose.msra.mxu0 0
  %1974 = vmatpush.bf16.xpose.msra.mxu0 %v1965
  %1975 = vmatmul.bf16.gmra.mxu0 %v1962
  %v1976 = vpop.f32.mrf.mxu0
  %v1977 = vadd.f32 %v1902, %v1976
  %v1978 = vpop.f32.mrf.mxu0
  %1979 = vdwg.mxu0
  %v1980 = vsel %vm493, %v1920, -inf
  %1981 = vmax.xlane.f32.xlu0 %v1980
  %v1982 = vpop.xlane.xlu0 %1981
  %v1983 = vsel %vm493, %v1939, -inf
  %1984 = vmax.xlane.f32.xlu0 %v1983
  %v1985 = vpop.xlane.xlu0 %1984
  %v1986 = vsel %vm493, %v1958, -inf
  %1987 = vmax.xlane.f32.xlu0 %v1986
  %v1988 = vpop.xlane.xlu0 %1987
  %v1989 = vsel %vm493, %v1977, -inf
  %1990 = vmax.xlane.f32.xlu0 %v1989
  %v1991 = vpop.xlane.xlu0 %1990
  %v1992 = vsub.f32 %v1920, %v1982
  %v1993 = vsub.f32 %v1939, %v1985
  %v1994 = vsub.f32 %v1958, %v1988
  %v1995 = vsub.f32 %v1977, %v1991
  %v1996 = vmul.f32 %v1992, 1.442695
  %v1997 = vpow.pop %v1996
  %v1998 = vmul.f32 %v1993, 1.442695
  %v1999 = vpow.pop %v1998
  %v2000 = vmul.f32 %v1994, 1.442695
  %v2001 = vpow.pop %v2000
  %v2002 = vmul.f32 %v1995, 1.442695
  %v2003 = vpow.pop %v2002
  %v2004 = vsel %vm493, %v1997, 0.0
  %2005 = vadd.xlane.f32.xlu0 %v2004
  %v2006 = vpop.xlane.xlu0 %2005
  %v2007 = vsel %vm493, %v1999, 0.0
  %2008 = vadd.xlane.f32.xlu0 %v2007
  %v2009 = vpop.xlane.xlu0 %2008
  %v2010 = vsel %vm493, %v2001, 0.0
  %2011 = vadd.xlane.f32.xlu0 %v2010
  %v2012 = vpop.xlane.xlu0 %2011
  %v2013 = vsel %vm493, %v2003, 0.0
  %2014 = vadd.xlane.f32.xlu0 %v2013
  %v2015 = vpop.xlane.xlu0 %2014
  %v2016 = vrcp.pop %v2006
  %v2017 = vrcp.pop %v2009
  %v2018 = vrcp.pop %v2012
  %v2019 = vrcp.pop %v2015
  %v2020 = vmul.f32 %v1997, %v2016
  %v2021 = vmul.f32 %v1999, %v2017
  %v2022 = vmul.f32 %v2001, %v2018
  %v2023 = vmul.f32 %v2003, %v2019
  %v2024 = vpack.c.bf16 %v2020, %v2020
  %v2025 = vpack.c.bf16 %v2021, %v2021
  %v2026 = vpack.c.bf16 %v2022, %v2022
  %v2027 = vpack.c.bf16 %v2023, %v2023
  %v2029 = vsel %vm493, %v2024, 0
  %v2032 = vsel %vm621, %v1889, 0
  %2034 = vmatpush.bf16.msra.mxu0 0
  %2035 = vmatpush.bf16.msra.mxu0 0
  %2036 = vmatpush.bf16.msra.mxu0 0
  %2037 = vmatpush.bf16.msra.mxu0 0
  %2038 = vmatpush.bf16.msra.mxu0 0
  %2039 = vmatpush.bf16.msra.mxu0 0
  %2040 = vmatpush.bf16.msra.mxu0 0
  %2041 = vmatpush.bf16.msra.mxu0 %v2032
  %2042 = vmatmul.bf16.gmra.mxu0 %v2029
  %v2043 = vpop.f32.mrf.mxu0
  %v2044 = vadd.f32 0.0, %v2043
  %v2045 = vpop.f32.mrf.mxu0
  %2046 = vdwg.mxu0
  %v2048 = vsel %vm493, %v2025, 0
  %v2051 = vsel %vm621, %v1892, 0
  %2053 = vmatpush.bf16.msra.mxu0 0
  %2054 = vmatpush.bf16.msra.mxu0 0
  %2055 = vmatpush.bf16.msra.mxu0 0
  %2056 = vmatpush.bf16.msra.mxu0 0
  %2057 = vmatpush.bf16.msra.mxu0 0
  %2058 = vmatpush.bf16.msra.mxu0 0
  %2059 = vmatpush.bf16.msra.mxu0 0
  %2060 = vmatpush.bf16.msra.mxu0 %v2051
  %2061 = vmatmul.bf16.gmra.mxu0 %v2048
  %v2062 = vpop.f32.mrf.mxu0
  %v2063 = vadd.f32 0.0, %v2062
  %v2064 = vpop.f32.mrf.mxu0
  %2065 = vdwg.mxu0
  %v2067 = vsel %vm493, %v2026, 0
  %v2070 = vsel %vm621, %v1895, 0
  %2072 = vmatpush.bf16.msra.mxu0 0
  %2073 = vmatpush.bf16.msra.mxu0 0
  %2074 = vmatpush.bf16.msra.mxu0 0
  %2075 = vmatpush.bf16.msra.mxu0 0
  %2076 = vmatpush.bf16.msra.mxu0 0
  %2077 = vmatpush.bf16.msra.mxu0 0
  %2078 = vmatpush.bf16.msra.mxu0 0
  %2079 = vmatpush.bf16.msra.mxu0 %v2070
  %2080 = vmatmul.bf16.gmra.mxu0 %v2067
  %v2081 = vpop.f32.mrf.mxu0
  %v2082 = vadd.f32 0.0, %v2081
  %v2083 = vpop.f32.mrf.mxu0
  %2084 = vdwg.mxu0
  %v2086 = vsel %vm493, %v2027, 0
  %v2089 = vsel %vm621, %v1898, 0
  %2091 = vmatpush.bf16.msra.mxu0 0
  %2092 = vmatpush.bf16.msra.mxu0 0
  %2093 = vmatpush.bf16.msra.mxu0 0
  %2094 = vmatpush.bf16.msra.mxu0 0
  %2095 = vmatpush.bf16.msra.mxu0 0
  %2096 = vmatpush.bf16.msra.mxu0 0
  %2097 = vmatpush.bf16.msra.mxu0 0
  %2098 = vmatpush.bf16.msra.mxu0 %v2089
  %2099 = vmatmul.bf16.gmra.mxu0 %v2086
  %v2100 = vpop.f32.mrf.mxu0
  %v2101 = vadd.f32 0.0, %v2100
  %v2102 = vpop.f32.mrf.mxu0
  %2103 = vdwg.mxu0
  %v2104 = vrot.slane %v2082, 4
  %v2105 = vsel %vm696, %v2104, %v2044
  %v2106 = vrot.slane %v2044, 4
  %v2107 = vsel %vm696, %v2082, %v2106
  %v2109 = vunpack.c.l.s4 1983009808
  %v2110 = vunpack.c.0.s8 %v2109
  %v2111 = vperm.slane %v2105, %v2110
  %v2113 = vunpack.c.l.s4 1983009808
  %v2114 = vunpack.c.0.s8 %v2113
  %v2115 = vperm.slane %v2107, %v2114
  %v2116 = vrot.slane %v2101, 4
  %v2117 = vsel %vm696, %v2116, %v2063
  %v2118 = vrot.slane %v2063, 4
  %v2119 = vsel %vm696, %v2101, %v2118
  %v2121 = vunpack.c.l.s4 1983009808
  %v2122 = vunpack.c.0.s8 %v2121
  %v2123 = vperm.slane %v2117, %v2122
  %v2125 = vunpack.c.l.s4 1983009808
  %v2126 = vunpack.c.0.s8 %v2125
  %v2127 = vperm.slane %v2119, %v2126
  %v2128 = vrot.slane %v2123, 4
  %v2129 = vsel %vm696, %v2128, %v2111
  %v2130 = vrot.slane %v2111, 4
  %v2131 = vsel %vm696, %v2123, %v2130
  %v2133 = vunpack.c.l.s4 1934713408
  %v2134 = vunpack.c.0.s8 %v2133
  %v2135 = vperm.slane %v2129, %v2134
  %v2137 = vunpack.c.l.s4 1934713408
  %v2138 = vunpack.c.0.s8 %v2137
  %v2139 = vperm.slane %v2131, %v2138
  %v2140 = vrot.slane %v2127, 4
  %v2141 = vsel %vm696, %v2140, %v2115
  %v2142 = vrot.slane %v2115, 4
  %v2143 = vsel %vm696, %v2127, %v2142
  %v2145 = vunpack.c.l.s4 1934713408
  %v2146 = vunpack.c.0.s8 %v2145
  %v2147 = vperm.slane %v2141, %v2146
  %v2149 = vunpack.c.l.s4 1934713408
  %v2150 = vunpack.c.0.s8 %v2149
  %v2151 = vperm.slane %v2143, %v2150
  %v2152 = vrot.slane %v2135, 4
  %v2153 = vsel %vm696, 0.0, %v2152
  %v2154 = vrot.slane %v2139, 4
  %v2155 = vsel %vm696, 0.0, %v2154
  %v2156 = vrot.slane %v2147, 4
  %v2157 = vsel %vm696, 0.0, %v2156
  %v2158 = vrot.slane %v2151, 4
  %v2159 = vsel %vm696, 0.0, %v2158
  %v2160 = vsel %vm696, %v2154, %v2135
  %v2162 = vunpack.c.l.s4 1983009808
  %v2163 = vunpack.c.0.s8 %v2162
  %v2164 = vperm.slane %v2160, %v2163
  %v2165 = vrot.slane %v2155, 4
  %v2166 = vsel %vm696, %v2165, %v2153
  %v2168 = vunpack.c.l.s4 1983009808
  %v2169 = vunpack.c.0.s8 %v2168
  %v2170 = vperm.slane %v2166, %v2169
  %v2171 = vsel %vm696, %v2158, %v2147
  %v2173 = vunpack.c.l.s4 1983009808
  %v2174 = vunpack.c.0.s8 %v2173
  %v2175 = vperm.slane %v2171, %v2174
  %v2176 = vrot.slane %v2159, 4
  %v2177 = vsel %vm696, %v2176, %v2157
  %v2179 = vunpack.c.l.s4 1983009808
  %v2180 = vunpack.c.0.s8 %v2179
  %v2181 = vperm.slane %v2177, %v2180
  %v2182 = vrot.slane %v2170, 4
  %v2183 = vsel %vm696, %v2182, %v2164
  %v2184 = vrot.slane %v2164, 4
  %v2185 = vsel %vm696, %v2170, %v2184
  %v2187 = vunpack.c.l.s4 1934713408
  %v2188 = vunpack.c.0.s8 %v2187
  %v2189 = vperm.slane %v2183, %v2188
  %v2191 = vunpack.c.l.s4 1934713408
  %v2192 = vunpack.c.0.s8 %v2191
  %v2193 = vperm.slane %v2185, %v2192
  %v2194 = vrot.slane %v2181, 4
  %v2195 = vsel %vm696, %v2194, %v2175
  %v2196 = vrot.slane %v2175, 4
  %v2197 = vsel %vm696, %v2181, %v2196
  %v2199 = vunpack.c.l.s4 1934713408
  %v2200 = vunpack.c.0.s8 %v2199
  %v2201 = vperm.slane %v2195, %v2200
  %v2203 = vunpack.c.l.s4 1934713408
  %v2204 = vunpack.c.0.s8 %v2203
  %v2205 = vperm.slane %v2197, %v2204
  %v2206 = vrot.slane %v2201, 4
  %v2207 = vsel %vm696, %v2206, %v2189
  %v2208 = vrot.slane %v2189, 4
  %v2209 = vsel %vm696, %v2201, %v2208
  %v2210 = vrot.slane %v2205, 4
  %v2211 = vsel %vm696, %v2210, %v2193
  %v2212 = vrot.slane %v2193, 4
  %v2213 = vsel %vm696, %v2205, %v2212
  %2215 = vrot.lane.b32.xlu0 %v2209, 8
  %v2216 = vpop.permute.xlu0 %2215
  %2219 = vrot.lane.b32.xlu0 %v2211, 16
  %v2220 = vpop.permute.xlu0 %2219
  %2223 = vrot.lane.b32.xlu0 %v2213, 24
  %v2224 = vpop.permute.xlu0 %2223
  %v2226 = vsel %vm493, %v2207, %v2216
  %v2227 = vsel %vm819, %v2226, %v2220
  %v2228 = vsel %vm821, %v2227, %v2224
  %v2229 = vpack.c.bf16 %v2228, %v2228
  %2231 = vrot.lane.b32.xlu0 %v111, 120
  %v2232 = vpop.permute.xlu0 %2231
  %2233 = vrot.lane.b32.xlu0 %v111, 112
  %v2234 = vpop.permute.xlu0 %2233
  %2235 = vrot.lane.b32.xlu0 %v111, 104
  %v2236 = vpop.permute.xlu0 %2235
  %v2239 = vpack.i.b16 %v2232, %v111
  %v2240 = vshrl.u32 %v111, 16
  %v2241 = vshrl.u32 %v2232, 16
  %v2242 = vpack.i.b16 %v2241, %v2240
  %v2245 = vpack.i.b16 %v2236, %v2234
  %v2246 = vshrl.u32 %v2234, 16
  %v2247 = vshrl.u32 %v2236, 16
  %v2248 = vpack.i.b16 %v2247, %v2246
  %v2251 = vunpack.c.l.s4 1983009808
  %v2252 = vunpack.c.0.s8 %v2251
  %v2253 = vperm.slane %v2239, %v2252
  %v2256 = vunpack.c.l.s4 1983009808
  %v2257 = vunpack.c.0.s8 %v2256
  %v2258 = vperm.slane %v2245, %v2257
  %v2259 = vrot.slane %v2258, 4
  %v2260 = vsel %vm146, %v2259, %v2253
  %v2261 = vrot.slane %v2253, 4
  %v2262 = vsel %vm146, %v2258, %v2261
  %v2264 = vunpack.c.l.s4 1934713408
  %v2265 = vunpack.c.0.s8 %v2264
  %v2266 = vperm.slane %v2260, %v2265
  %v2268 = vunpack.c.l.s4 1934713408
  %v2269 = vunpack.c.0.s8 %v2268
  %v2270 = vperm.slane %v2262, %v2269
  %v2271 = vrot.slane %v2266, 4
  %v2272 = vsel %vm146, 0, %v2271
  %v2273 = vrot.slane %v2270, 4
  %v2274 = vsel %vm146, 0, %v2273
  %v2277 = vunpack.c.l.s4 1983009808
  %v2278 = vunpack.c.0.s8 %v2277
  %v2279 = vperm.slane %v2242, %v2278
  %v2282 = vunpack.c.l.s4 1983009808
  %v2283 = vunpack.c.0.s8 %v2282
  %v2284 = vperm.slane %v2248, %v2283
  %v2285 = vrot.slane %v2284, 4
  %v2286 = vsel %vm146, %v2285, %v2279
  %v2287 = vrot.slane %v2279, 4
  %v2288 = vsel %vm146, %v2284, %v2287
  %v2290 = vunpack.c.l.s4 1934713408
  %v2291 = vunpack.c.0.s8 %v2290
  %v2292 = vperm.slane %v2286, %v2291
  %v2294 = vunpack.c.l.s4 1934713408
  %v2295 = vunpack.c.0.s8 %v2294
  %v2296 = vperm.slane %v2288, %v2295
  %v2297 = vrot.slane %v2292, 4
  %v2298 = vsel %vm146, 0, %v2297
  %v2299 = vrot.slane %v2296, 4
  %v2300 = vsel %vm146, 0, %v2299
  %v2301 = vsel %vm146, %v2273, %v2266
  %v2303 = vunpack.c.l.s4 1983009808
  %v2304 = vunpack.c.0.s8 %v2303
  %v2305 = vperm.slane %v2301, %v2304
  %v2306 = vrot.slane %v2274, 4
  %v2307 = vsel %vm146, %v2306, %v2272
  %v2309 = vunpack.c.l.s4 1983009808
  %v2310 = vunpack.c.0.s8 %v2309
  %v2311 = vperm.slane %v2307, %v2310
  %v2312 = vrot.slane %v2311, 4
  %v2313 = vsel %vm146, %v2312, %v2305
  %v2315 = vunpack.c.l.s4 1934713408
  %v2316 = vunpack.c.0.s8 %v2315
  %v2317 = vperm.slane %v2313, %v2316
  %v2318 = vrot.slane %v2317, 4
  %v2319 = vsel %vm146, 0, %v2318
  %v2320 = vsel %vm146, %v2299, %v2292
  %v2322 = vunpack.c.l.s4 1983009808
  %v2323 = vunpack.c.0.s8 %v2322
  %v2324 = vperm.slane %v2320, %v2323
  %v2325 = vrot.slane %v2300, 4
  %v2326 = vsel %vm146, %v2325, %v2298
  %v2328 = vunpack.c.l.s4 1983009808
  %v2329 = vunpack.c.0.s8 %v2328
  %v2330 = vperm.slane %v2326, %v2329
  %v2331 = vrot.slane %v2330, 4
  %v2332 = vsel %vm146, %v2331, %v2324
  %v2334 = vunpack.c.l.s4 1934713408
  %v2335 = vunpack.c.0.s8 %v2334
  %v2336 = vperm.slane %v2332, %v2335
  %v2337 = vrot.slane %v2336, 4
  %v2338 = vsel %vm146, 0, %v2337
  %v2341 = vpack.i.b16 %v2336, %v2317
  %v2342 = vshrl.u32 %v2317, 16
  %v2343 = vshrl.u32 %v2336, 16
  %v2344 = vpack.i.b16 %v2343, %v2342
  %v2347 = vpack.i.b16 %v2338, %v2319
  %v2348 = vshrl.u32 %v2319, 16
  %v2349 = vshrl.u32 %v2338, 16
  %v2350 = vpack.i.b16 %v2349, %v2348
  %2352 = vrot.lane.b32.xlu0 %v115, 120
  %v2353 = vpop.permute.xlu0 %2352
  %2354 = vrot.lane.b32.xlu0 %v115, 112
  %v2355 = vpop.permute.xlu0 %2354
  %2356 = vrot.lane.b32.xlu0 %v115, 104
  %v2357 = vpop.permute.xlu0 %2356
  %2358 = vrot.lane.b32.xlu0 %v115, 96
  %v2359 = vpop.permute.xlu0 %2358
  %2360 = vrot.lane.b32.xlu0 %v2353, 96
  %v2361 = vpop.permute.xlu0 %2360
  %2362 = vrot.lane.b32.xlu0 %v2355, 96
  %v2363 = vpop.permute.xlu0 %2362
  %2364 = vrot.lane.b32.xlu0 %v2357, 96
  %v2365 = vpop.permute.xlu0 %2364
  %v2368 = vpack.i.b16 %v2361, %v2359
  %v2369 = vshrl.u32 %v2359, 16
  %v2370 = vshrl.u32 %v2361, 16
  %v2371 = vpack.i.b16 %v2370, %v2369
  %v2374 = vpack.i.b16 %v2365, %v2363
  %v2375 = vshrl.u32 %v2363, 16
  %v2376 = vshrl.u32 %v2365, 16
  %v2377 = vpack.i.b16 %v2376, %v2375
  %v2380 = vunpack.c.l.s4 1983009808
  %v2381 = vunpack.c.0.s8 %v2380
  %v2382 = vperm.slane %v2368, %v2381
  %v2385 = vunpack.c.l.s4 1983009808
  %v2386 = vunpack.c.0.s8 %v2385
  %v2387 = vperm.slane %v2374, %v2386
  %v2388 = vrot.slane %v2387, 4
  %v2389 = vsel %vm146, %v2388, %v2382
  %v2390 = vrot.slane %v2382, 4
  %v2391 = vsel %vm146, %v2387, %v2390
  %v2393 = vunpack.c.l.s4 1934713408
  %v2394 = vunpack.c.0.s8 %v2393
  %v2395 = vperm.slane %v2389, %v2394
  %v2397 = vunpack.c.l.s4 1934713408
  %v2398 = vunpack.c.0.s8 %v2397
  %v2399 = vperm.slane %v2391, %v2398
  %v2400 = vrot.slane %v2395, 4
  %v2401 = vsel %vm146, 0, %v2400
  %v2402 = vrot.slane %v2399, 4
  %v2403 = vsel %vm146, 0, %v2402
  %v2406 = vunpack.c.l.s4 1983009808
  %v2407 = vunpack.c.0.s8 %v2406
  %v2408 = vperm.slane %v2371, %v2407
  %v2411 = vunpack.c.l.s4 1983009808
  %v2412 = vunpack.c.0.s8 %v2411
  %v2413 = vperm.slane %v2377, %v2412
  %v2414 = vrot.slane %v2413, 4
  %v2415 = vsel %vm146, %v2414, %v2408
  %v2416 = vrot.slane %v2408, 4
  %v2417 = vsel %vm146, %v2413, %v2416
  %v2419 = vunpack.c.l.s4 1934713408
  %v2420 = vunpack.c.0.s8 %v2419
  %v2421 = vperm.slane %v2415, %v2420
  %v2423 = vunpack.c.l.s4 1934713408
  %v2424 = vunpack.c.0.s8 %v2423
  %v2425 = vperm.slane %v2417, %v2424
  %v2426 = vrot.slane %v2421, 4
  %v2427 = vsel %vm146, 0, %v2426
  %v2428 = vrot.slane %v2425, 4
  %v2429 = vsel %vm146, 0, %v2428
  %v2430 = vsel %vm146, %v2402, %v2395
  %v2432 = vunpack.c.l.s4 1983009808
  %v2433 = vunpack.c.0.s8 %v2432
  %v2434 = vperm.slane %v2430, %v2433
  %v2435 = vrot.slane %v2403, 4
  %v2436 = vsel %vm146, %v2435, %v2401
  %v2438 = vunpack.c.l.s4 1983009808
  %v2439 = vunpack.c.0.s8 %v2438
  %v2440 = vperm.slane %v2436, %v2439
  %v2441 = vrot.slane %v2440, 4
  %v2442 = vsel %vm146, %v2441, %v2434
  %v2444 = vunpack.c.l.s4 1934713408
  %v2445 = vunpack.c.0.s8 %v2444
  %v2446 = vperm.slane %v2442, %v2445
  %v2447 = vrot.slane %v2446, 4
  %v2448 = vsel %vm146, 0, %v2447
  %v2449 = vsel %vm146, %v2428, %v2421
  %v2451 = vunpack.c.l.s4 1983009808
  %v2452 = vunpack.c.0.s8 %v2451
  %v2453 = vperm.slane %v2449, %v2452
  %v2454 = vrot.slane %v2429, 4
  %v2455 = vsel %vm146, %v2454, %v2427
  %v2457 = vunpack.c.l.s4 1983009808
  %v2458 = vunpack.c.0.s8 %v2457
  %v2459 = vperm.slane %v2455, %v2458
  %v2460 = vrot.slane %v2459, 4
  %v2461 = vsel %vm146, %v2460, %v2453
  %v2463 = vunpack.c.l.s4 1934713408
  %v2464 = vunpack.c.0.s8 %v2463
  %v2465 = vperm.slane %v2461, %v2464
  %v2466 = vrot.slane %v2465, 4
  %v2467 = vsel %vm146, 0, %v2466
  %v2470 = vpack.i.b16 %v2465, %v2446
  %v2471 = vshrl.u32 %v2446, 16
  %v2472 = vshrl.u32 %v2465, 16
  %v2473 = vpack.i.b16 %v2472, %v2471
  %v2476 = vpack.i.b16 %v2467, %v2448
  %v2477 = vshrl.u32 %v2448, 16
  %v2478 = vshrl.u32 %v2467, 16
  %v2479 = vpack.i.b16 %v2478, %v2477
  %2480 = vrot.lane.b32.xlu0 %v115, 64
  %v2481 = vpop.permute.xlu0 %2480
  %2482 = vrot.lane.b32.xlu0 %v2353, 64
  %v2483 = vpop.permute.xlu0 %2482
  %2484 = vrot.lane.b32.xlu0 %v2355, 64
  %v2485 = vpop.permute.xlu0 %2484
  %2486 = vrot.lane.b32.xlu0 %v2357, 64
  %v2487 = vpop.permute.xlu0 %2486
  %v2490 = vpack.i.b16 %v2483, %v2481
  %v2491 = vshrl.u32 %v2481, 16
  %v2492 = vshrl.u32 %v2483, 16
  %v2493 = vpack.i.b16 %v2492, %v2491
  %v2496 = vpack.i.b16 %v2487, %v2485
  %v2497 = vshrl.u32 %v2485, 16
  %v2498 = vshrl.u32 %v2487, 16
  %v2499 = vpack.i.b16 %v2498, %v2497
  %v2502 = vunpack.c.l.s4 1983009808
  %v2503 = vunpack.c.0.s8 %v2502
  %v2504 = vperm.slane %v2490, %v2503
  %v2507 = vunpack.c.l.s4 1983009808
  %v2508 = vunpack.c.0.s8 %v2507
  %v2509 = vperm.slane %v2496, %v2508
  %v2510 = vrot.slane %v2509, 4
  %v2511 = vsel %vm146, %v2510, %v2504
  %v2512 = vrot.slane %v2504, 4
  %v2513 = vsel %vm146, %v2509, %v2512
  %v2515 = vunpack.c.l.s4 1934713408
  %v2516 = vunpack.c.0.s8 %v2515
  %v2517 = vperm.slane %v2511, %v2516
  %v2519 = vunpack.c.l.s4 1934713408
  %v2520 = vunpack.c.0.s8 %v2519
  %v2521 = vperm.slane %v2513, %v2520
  %v2522 = vrot.slane %v2517, 4
  %v2523 = vsel %vm146, 0, %v2522
  %v2524 = vrot.slane %v2521, 4
  %v2525 = vsel %vm146, 0, %v2524
  %v2528 = vunpack.c.l.s4 1983009808
  %v2529 = vunpack.c.0.s8 %v2528
  %v2530 = vperm.slane %v2493, %v2529
  %v2533 = vunpack.c.l.s4 1983009808
  %v2534 = vunpack.c.0.s8 %v2533
  %v2535 = vperm.slane %v2499, %v2534
  %v2536 = vrot.slane %v2535, 4
  %v2537 = vsel %vm146, %v2536, %v2530
  %v2538 = vrot.slane %v2530, 4
  %v2539 = vsel %vm146, %v2535, %v2538
  %v2541 = vunpack.c.l.s4 1934713408
  %v2542 = vunpack.c.0.s8 %v2541
  %v2543 = vperm.slane %v2537, %v2542
  %v2545 = vunpack.c.l.s4 1934713408
  %v2546 = vunpack.c.0.s8 %v2545
  %v2547 = vperm.slane %v2539, %v2546
  %v2548 = vrot.slane %v2543, 4
  %v2549 = vsel %vm146, 0, %v2548
  %v2550 = vrot.slane %v2547, 4
  %v2551 = vsel %vm146, 0, %v2550
  %v2552 = vsel %vm146, %v2524, %v2517
  %v2554 = vunpack.c.l.s4 1983009808
  %v2555 = vunpack.c.0.s8 %v2554
  %v2556 = vperm.slane %v2552, %v2555
  %v2557 = vrot.slane %v2525, 4
  %v2558 = vsel %vm146, %v2557, %v2523
  %v2560 = vunpack.c.l.s4 1983009808
  %v2561 = vunpack.c.0.s8 %v2560
  %v2562 = vperm.slane %v2558, %v2561
  %v2563 = vrot.slane %v2562, 4
  %v2564 = vsel %vm146, %v2563, %v2556
  %v2566 = vunpack.c.l.s4 1934713408
  %v2567 = vunpack.c.0.s8 %v2566
  %v2568 = vperm.slane %v2564, %v2567
  %v2569 = vrot.slane %v2568, 4
  %v2570 = vsel %vm146, 0, %v2569
  %v2571 = vsel %vm146, %v2550, %v2543
  %v2573 = vunpack.c.l.s4 1983009808
  %v2574 = vunpack.c.0.s8 %v2573
  %v2575 = vperm.slane %v2571, %v2574
  %v2576 = vrot.slane %v2551, 4
  %v2577 = vsel %vm146, %v2576, %v2549
  %v2579 = vunpack.c.l.s4 1983009808
  %v2580 = vunpack.c.0.s8 %v2579
  %v2581 = vperm.slane %v2577, %v2580
  %v2582 = vrot.slane %v2581, 4
  %v2583 = vsel %vm146, %v2582, %v2575
  %v2585 = vunpack.c.l.s4 1934713408
  %v2586 = vunpack.c.0.s8 %v2585
  %v2587 = vperm.slane %v2583, %v2586
  %v2588 = vrot.slane %v2587, 4
  %v2589 = vsel %vm146, 0, %v2588
  %v2592 = vpack.i.b16 %v2587, %v2568
  %v2593 = vshrl.u32 %v2568, 16
  %v2594 = vshrl.u32 %v2587, 16
  %v2595 = vpack.i.b16 %v2594, %v2593
  %v2598 = vpack.i.b16 %v2589, %v2570
  %v2599 = vshrl.u32 %v2570, 16
  %v2600 = vshrl.u32 %v2589, 16
  %v2601 = vpack.i.b16 %v2600, %v2599
  %s2602 = scalar_lea.vmem %s1, 3
  %v2603 = vld [vmem:[%s2602] sm:$0x1]
  %v2605 = vperm.slane %v2603, 0
  %v2608 = vsel %vm493, %v2341, 0
  %v2611 = vsel %vm493, %v2470, 0
  %2613 = vmatpush.bf16.xpose.msra.mxu0 0
  %2614 = vmatpush.bf16.xpose.msra.mxu0 0
  %2615 = vmatpush.bf16.xpose.msra.mxu0 0
  %2616 = vmatpush.bf16.xpose.msra.mxu0 0
  %2617 = vmatpush.bf16.xpose.msra.mxu0 0
  %2618 = vmatpush.bf16.xpose.msra.mxu0 0
  %2619 = vmatpush.bf16.xpose.msra.mxu0 0
  %2620 = vmatpush.bf16.xpose.msra.mxu0 %v2611
  %2621 = vmatmul.bf16.gmra.mxu0 %v2608
  %v2622 = vpop.f32.mrf.mxu0
  %v2623 = vadd.f32 %v2605, %v2622
  %v2624 = vpop.f32.mrf.mxu0
  %2625 = vdwg.mxu0
  %v2627 = vsel %vm493, %v2344, 0
  %v2630 = vsel %vm493, %v2473, 0
  %2632 = vmatpush.bf16.xpose.msra.mxu0 0
  %2633 = vmatpush.bf16.xpose.msra.mxu0 0
  %2634 = vmatpush.bf16.xpose.msra.mxu0 0
  %2635 = vmatpush.bf16.xpose.msra.mxu0 0
  %2636 = vmatpush.bf16.xpose.msra.mxu0 0
  %2637 = vmatpush.bf16.xpose.msra.mxu0 0
  %2638 = vmatpush.bf16.xpose.msra.mxu0 0
  %2639 = vmatpush.bf16.xpose.msra.mxu0 %v2630
  %2640 = vmatmul.bf16.gmra.mxu0 %v2627
  %v2641 = vpop.f32.mrf.mxu0
  %v2642 = vadd.f32 %v2605, %v2641
  %v2643 = vpop.f32.mrf.mxu0
  %2644 = vdwg.mxu0
  %v2646 = vsel %vm493, %v2347, 0
  %v2649 = vsel %vm493, %v2476, 0
  %2651 = vmatpush.bf16.xpose.msra.mxu0 0
  %2652 = vmatpush.bf16.xpose.msra.mxu0 0
  %2653 = vmatpush.bf16.xpose.msra.mxu0 0
  %2654 = vmatpush.bf16.xpose.msra.mxu0 0
  %2655 = vmatpush.bf16.xpose.msra.mxu0 0
  %2656 = vmatpush.bf16.xpose.msra.mxu0 0
  %2657 = vmatpush.bf16.xpose.msra.mxu0 0
  %2658 = vmatpush.bf16.xpose.msra.mxu0 %v2649
  %2659 = vmatmul.bf16.gmra.mxu0 %v2646
  %v2660 = vpop.f32.mrf.mxu0
  %v2661 = vadd.f32 %v2605, %v2660
  %v2662 = vpop.f32.mrf.mxu0
  %2663 = vdwg.mxu0
  %v2665 = vsel %vm493, %v2350, 0
  %v2668 = vsel %vm493, %v2479, 0
  %2670 = vmatpush.bf16.xpose.msra.mxu0 0
  %2671 = vmatpush.bf16.xpose.msra.mxu0 0
  %2672 = vmatpush.bf16.xpose.msra.mxu0 0
  %2673 = vmatpush.bf16.xpose.msra.mxu0 0
  %2674 = vmatpush.bf16.xpose.msra.mxu0 0
  %2675 = vmatpush.bf16.xpose.msra.mxu0 0
  %2676 = vmatpush.bf16.xpose.msra.mxu0 0
  %2677 = vmatpush.bf16.xpose.msra.mxu0 %v2668
  %2678 = vmatmul.bf16.gmra.mxu0 %v2665
  %v2679 = vpop.f32.mrf.mxu0
  %v2680 = vadd.f32 %v2605, %v2679
  %v2681 = vpop.f32.mrf.mxu0
  %2682 = vdwg.mxu0
  %v2683 = vsel %vm493, %v2623, -inf
  %2684 = vmax.xlane.f32.xlu0 %v2683
  %v2685 = vpop.xlane.xlu0 %2684
  %v2686 = vsel %vm493, %v2642, -inf
  %2687 = vmax.xlane.f32.xlu0 %v2686
  %v2688 = vpop.xlane.xlu0 %2687
  %v2689 = vsel %vm493, %v2661, -inf
  %2690 = vmax.xlane.f32.xlu0 %v2689
  %v2691 = vpop.xlane.xlu0 %2690
  %v2692 = vsel %vm493, %v2680, -inf
  %2693 = vmax.xlane.f32.xlu0 %v2692
  %v2694 = vpop.xlane.xlu0 %2693
  %v2695 = vsub.f32 %v2623, %v2685
  %v2696 = vsub.f32 %v2642, %v2688
  %v2697 = vsub.f32 %v2661, %v2691
  %v2698 = vsub.f32 %v2680, %v2694
  %v2699 = vmul.f32 %v2695, 1.442695
  %v2700 = vpow.pop %v2699
  %v2701 = vmul.f32 %v2696, 1.442695
  %v2702 = vpow.pop %v2701
  %v2703 = vmul.f32 %v2697, 1.442695
  %v2704 = vpow.pop %v2703
  %v2705 = vmul.f32 %v2698, 1.442695
  %v2706 = vpow.pop %v2705
  %v2707 = vsel %vm493, %v2700, 0.0
  %2708 = vadd.xlane.f32.xlu0 %v2707
  %v2709 = vpop.xlane.xlu0 %2708
  %v2710 = vsel %vm493, %v2702, 0.0
  %2711 = vadd.xlane.f32.xlu0 %v2710
  %v2712 = vpop.xlane.xlu0 %2711
  %v2713 = vsel %vm493, %v2704, 0.0
  %2714 = vadd.xlane.f32.xlu0 %v2713
  %v2715 = vpop.xlane.xlu0 %2714
  %v2716 = vsel %vm493, %v2706, 0.0
  %2717 = vadd.xlane.f32.xlu0 %v2716
  %v2718 = vpop.xlane.xlu0 %2717
  %v2719 = vrcp.pop %v2709
  %v2720 = vrcp.pop %v2712
  %v2721 = vrcp.pop %v2715
  %v2722 = vrcp.pop %v2718
  %v2723 = vmul.f32 %v2700, %v2719
  %v2724 = vmul.f32 %v2702, %v2720
  %v2725 = vmul.f32 %v2704, %v2721
  %v2726 = vmul.f32 %v2706, %v2722
  %v2727 = vpack.c.bf16 %v2723, %v2723
  %v2728 = vpack.c.bf16 %v2724, %v2724
  %v2729 = vpack.c.bf16 %v2725, %v2725
  %v2730 = vpack.c.bf16 %v2726, %v2726
  %v2732 = vsel %vm493, %v2727, 0
  %v2735 = vsel %vm621, %v2592, 0
  %2737 = vmatpush.bf16.msra.mxu0 0
  %2738 = vmatpush.bf16.msra.mxu0 0
  %2739 = vmatpush.bf16.msra.mxu0 0
  %2740 = vmatpush.bf16.msra.mxu0 0
  %2741 = vmatpush.bf16.msra.mxu0 0
  %2742 = vmatpush.bf16.msra.mxu0 0
  %2743 = vmatpush.bf16.msra.mxu0 0
  %2744 = vmatpush.bf16.msra.mxu0 %v2735
  %2745 = vmatmul.bf16.gmra.mxu0 %v2732
  %v2746 = vpop.f32.mrf.mxu0
  %v2747 = vadd.f32 0.0, %v2746
  %v2748 = vpop.f32.mrf.mxu0
  %2749 = vdwg.mxu0
  %v2751 = vsel %vm493, %v2728, 0
  %v2754 = vsel %vm621, %v2595, 0
  %2756 = vmatpush.bf16.msra.mxu0 0
  %2757 = vmatpush.bf16.msra.mxu0 0
  %2758 = vmatpush.bf16.msra.mxu0 0
  %2759 = vmatpush.bf16.msra.mxu0 0
  %2760 = vmatpush.bf16.msra.mxu0 0
  %2761 = vmatpush.bf16.msra.mxu0 0
  %2762 = vmatpush.bf16.msra.mxu0 0
  %2763 = vmatpush.bf16.msra.mxu0 %v2754
  %2764 = vmatmul.bf16.gmra.mxu0 %v2751
  %v2765 = vpop.f32.mrf.mxu0
  %v2766 = vadd.f32 0.0, %v2765
  %v2767 = vpop.f32.mrf.mxu0
  %2768 = vdwg.mxu0
  %v2770 = vsel %vm493, %v2729, 0
  %v2773 = vsel %vm621, %v2598, 0
  %2775 = vmatpush.bf16.msra.mxu0 0
  %2776 = vmatpush.bf16.msra.mxu0 0
  %2777 = vmatpush.bf16.msra.mxu0 0
  %2778 = vmatpush.bf16.msra.mxu0 0
  %2779 = vmatpush.bf16.msra.mxu0 0
  %2780 = vmatpush.bf16.msra.mxu0 0
  %2781 = vmatpush.bf16.msra.mxu0 0
  %2782 = vmatpush.bf16.msra.mxu0 %v2773
  %2783 = vmatmul.bf16.gmra.mxu0 %v2770
  %v2784 = vpop.f32.mrf.mxu0
  %v2785 = vadd.f32 0.0, %v2784
  %v2786 = vpop.f32.mrf.mxu0
  %2787 = vdwg.mxu0
  %v2789 = vsel %vm493, %v2730, 0
  %v2792 = vsel %vm621, %v2601, 0
  %2794 = vmatpush.bf16.msra.mxu0 0
  %2795 = vmatpush.bf16.msra.mxu0 0
  %2796 = vmatpush.bf16.msra.mxu0 0
  %2797 = vmatpush.bf16.msra.mxu0 0
  %2798 = vmatpush.bf16.msra.mxu0 0
  %2799 = vmatpush.bf16.msra.mxu0 0
  %2800 = vmatpush.bf16.msra.mxu0 0
  %2801 = vmatpush.bf16.msra.mxu0 %v2792
  %2802 = vmatmul.bf16.gmra.mxu0 %v2789
  %v2803 = vpop.f32.mrf.mxu0
  %v2804 = vadd.f32 0.0, %v2803
  %v2805 = vpop.f32.mrf.mxu0
  %2806 = vdwg.mxu0
  %v2807 = vrot.slane %v2785, 4
  %v2808 = vsel %vm696, %v2807, %v2747
  %v2809 = vrot.slane %v2747, 4
  %v2810 = vsel %vm696, %v2785, %v2809
  %v2812 = vunpack.c.l.s4 1983009808
  %v2813 = vunpack.c.0.s8 %v2812
  %v2814 = vperm.slane %v2808, %v2813
  %v2816 = vunpack.c.l.s4 1983009808
  %v2817 = vunpack.c.0.s8 %v2816
  %v2818 = vperm.slane %v2810, %v2817
  %v2819 = vrot.slane %v2804, 4
  %v2820 = vsel %vm696, %v2819, %v2766
  %v2821 = vrot.slane %v2766, 4
  %v2822 = vsel %vm696, %v2804, %v2821
  %v2824 = vunpack.c.l.s4 1983009808
  %v2825 = vunpack.c.0.s8 %v2824
  %v2826 = vperm.slane %v2820, %v2825
  %v2828 = vunpack.c.l.s4 1983009808
  %v2829 = vunpack.c.0.s8 %v2828
  %v2830 = vperm.slane %v2822, %v2829
  %v2831 = vrot.slane %v2826, 4
  %v2832 = vsel %vm696, %v2831, %v2814
  %v2833 = vrot.slane %v2814, 4
  %v2834 = vsel %vm696, %v2826, %v2833
  %v2836 = vunpack.c.l.s4 1934713408
  %v2837 = vunpack.c.0.s8 %v2836
  %v2838 = vperm.slane %v2832, %v2837
  %v2840 = vunpack.c.l.s4 1934713408
  %v2841 = vunpack.c.0.s8 %v2840
  %v2842 = vperm.slane %v2834, %v2841
  %v2843 = vrot.slane %v2830, 4
  %v2844 = vsel %vm696, %v2843, %v2818
  %v2845 = vrot.slane %v2818, 4
  %v2846 = vsel %vm696, %v2830, %v2845
  %v2848 = vunpack.c.l.s4 1934713408
  %v2849 = vunpack.c.0.s8 %v2848
  %v2850 = vperm.slane %v2844, %v2849
  %v2852 = vunpack.c.l.s4 1934713408
  %v2853 = vunpack.c.0.s8 %v2852
  %v2854 = vperm.slane %v2846, %v2853
  %v2855 = vrot.slane %v2838, 4
  %v2856 = vsel %vm696, 0.0, %v2855
  %v2857 = vrot.slane %v2842, 4
  %v2858 = vsel %vm696, 0.0, %v2857
  %v2859 = vrot.slane %v2850, 4
  %v2860 = vsel %vm696, 0.0, %v2859
  %v2861 = vrot.slane %v2854, 4
  %v2862 = vsel %vm696, 0.0, %v2861
  %v2863 = vsel %vm696, %v2857, %v2838
  %v2865 = vunpack.c.l.s4 1983009808
  %v2866 = vunpack.c.0.s8 %v2865
  %v2867 = vperm.slane %v2863, %v2866
  %v2868 = vrot.slane %v2858, 4
  %v2869 = vsel %vm696, %v2868, %v2856
  %v2871 = vunpack.c.l.s4 1983009808
  %v2872 = vunpack.c.0.s8 %v2871
  %v2873 = vperm.slane %v2869, %v2872
  %v2874 = vsel %vm696, %v2861, %v2850
  %v2876 = vunpack.c.l.s4 1983009808
  %v2877 = vunpack.c.0.s8 %v2876
  %v2878 = vperm.slane %v2874, %v2877
  %v2879 = vrot.slane %v2862, 4
  %v2880 = vsel %vm696, %v2879, %v2860
  %v2882 = vunpack.c.l.s4 1983009808
  %v2883 = vunpack.c.0.s8 %v2882
  %v2884 = vperm.slane %v2880, %v2883
  %v2885 = vrot.slane %v2873, 4
  %v2886 = vsel %vm696, %v2885, %v2867
  %v2887 = vrot.slane %v2867, 4
  %v2888 = vsel %vm696, %v2873, %v2887
  %v2890 = vunpack.c.l.s4 1934713408
  %v2891 = vunpack.c.0.s8 %v2890
  %v2892 = vperm.slane %v2886, %v2891
  %v2894 = vunpack.c.l.s4 1934713408
  %v2895 = vunpack.c.0.s8 %v2894
  %v2896 = vperm.slane %v2888, %v2895
  %v2897 = vrot.slane %v2884, 4
  %v2898 = vsel %vm696, %v2897, %v2878
  %v2899 = vrot.slane %v2878, 4
  %v2900 = vsel %vm696, %v2884, %v2899
  %v2902 = vunpack.c.l.s4 1934713408
  %v2903 = vunpack.c.0.s8 %v2902
  %v2904 = vperm.slane %v2898, %v2903
  %v2906 = vunpack.c.l.s4 1934713408
  %v2907 = vunpack.c.0.s8 %v2906
  %v2908 = vperm.slane %v2900, %v2907
  %v2909 = vrot.slane %v2904, 4
  %v2910 = vsel %vm696, %v2909, %v2892
  %v2911 = vrot.slane %v2892, 4
  %v2912 = vsel %vm696, %v2904, %v2911
  %v2913 = vrot.slane %v2908, 4
  %v2914 = vsel %vm696, %v2913, %v2896
  %v2915 = vrot.slane %v2896, 4
  %v2916 = vsel %vm696, %v2908, %v2915
  %2918 = vrot.lane.b32.xlu0 %v2912, 8
  %v2919 = vpop.permute.xlu0 %2918
  %2922 = vrot.lane.b32.xlu0 %v2914, 16
  %v2923 = vpop.permute.xlu0 %2922
  %2926 = vrot.lane.b32.xlu0 %v2916, 24
  %v2927 = vpop.permute.xlu0 %2926
  %v2929 = vsel %vm493, %v2910, %v2919
  %v2930 = vsel %vm819, %v2929, %v2923
  %v2931 = vsel %vm821, %v2930, %v2927
  %v2932 = vpack.c.bf16 %v2931, %v2931
  %v2934 = vunpack.c.l.b16 %v1526
  %v2935 = vpack.c.b16 %v2934, %v2934
  %v2937 = vunpack.c.l.b16 %v2932
  %v2938 = vpack.c.b16 %v2937, %v2937
  %v2941 = vsel %vm621, %v823, %v2935
  %v2944 = vsel %vm621, %v2229, %v2938
  %v2945 = vld [vmem:[%s4] sm:$0xf]
  %v2946 = vld [vmem:[%s4 + $0x4] sm:$0xf]
  %v2947 = vld [vmem:[%s4 + $0x8] sm:$0xf]
  %v2948 = vld [vmem:[%s4 + $0xc] sm:$0xf]
  %v2949 = vld [vmem:[%s5] sm:$0x1]
  %v2951 = vperm.slane %v2949, 0
  %v2957 = vunpack.c.l.b16 %v2945
  %v2958 = vunpack.c.l.b16 %v2946
  %v2959 = vunpack.c.l.b16 %v2947
  %v2960 = vunpack.c.l.b16 %v2948
  %v2961 = vpack.c.b16 %v2958, %v2957
  %v2962 = vpack.c.b16 %v2960, %v2959
  %v2965 = vsel %vm78, %v2941, 0
  %v2967 = vsel %vm78, %v2944, 0
  %2969 = vmatpush.bf16.msra.mxu0 0
  %2970 = vmatpush.bf16.msra.mxu0 0
  %2971 = vmatpush.bf16.msra.mxu0 0
  %2972 = vmatpush.bf16.msra.mxu0 0
  %2973 = vmatpush.bf16.msra.mxu0 0
  %2974 = vmatpush.bf16.msra.mxu0 0
  %2975 = vmatpush.bf16.msra.mxu0 %v2962
  %2976 = vmatpush.bf16.msra.mxu0 %v2961
  %2977 = vmatmul.bf16.gmra.mxu0 %v2965
  %v2978 = vpop.f32.mrf.mxu0
  %v2979 = vadd.f32 %v2951, %v2978
  %v2980 = vpop.f32.mrf.mxu0
  %v2981 = vadd.f32 %v2951, %v2980
  %2982 = vmatmul.bf16.gmra.mxu0 %v2967
  %v2983 = vpop.f32.mrf.mxu0
  %v2984 = vadd.f32 %v2951, %v2983
  %v2985 = vpop.f32.mrf.mxu0
  %v2986 = vadd.f32 %v2951, %v2985
  %2987 = vdwg.mxu0
  %v2988 = vadd.f32 %v52, %v2979
  %v2989 = vadd.f32 %v53, %v2981
  %v2990 = vadd.f32 %v54, %v2984
  %v2991 = vadd.f32 %v55, %v2986
  %v2992 = vld [vmem:[%s6] sm:$0x1]
  %v2993 = vld [vmem:[%s7] sm:$0x1]
  %v2994 = vsel %vm78, %v2988, 0.0
  %2995 = vadd.xlane.f32.xlu0 %v2994
  %v2996 = vpop.xlane.xlu0 %2995
  %v2997 = vsel %vm78, %v2989, 0.0
  %2998 = vadd.xlane.f32.xlu0 %v2997
  %v2999 = vpop.xlane.xlu0 %2998
  %v3000 = vsel %vm78, %v2990, 0.0
  %3001 = vadd.xlane.f32.xlu0 %v3000
  %v3002 = vpop.xlane.xlu0 %3001
  %v3003 = vsel %vm78, %v2991, 0.0
  %3004 = vadd.xlane.f32.xlu0 %v3003
  %v3005 = vpop.xlane.xlu0 %3004
  %v3006 = vrcp.pop 32.0
  %v3007 = vmul.f32 32.0, %v3006
  %v3008 = vsub.f32 1.0, %v3007
  %v3009 = vmul.f32 %v3006, %v3008
  %v3010 = vadd.f32 %v3006, %v3009
  %vm3011 = vweird.f32 %v3006
  %v3012 = vsel %vm3011, %v3006, %v3010
  %v3013 = vmul.f32 %v2996, %v3012
  %v3014 = vmul.f32 %v2999, %v3012
  %v3015 = vmul.f32 %v3002, %v3012
  %v3016 = vmul.f32 %v3005, %v3012
  %v3017 = vsub.f32 %v2988, %v3013
  %v3018 = vsub.f32 %v2989, %v3014
  %v3019 = vsub.f32 %v2990, %v3015
  %v3020 = vsub.f32 %v2991, %v3016
  %v3021 = vmul.f32 %v3017, %v3017
  %v3022 = vmul.f32 %v3018, %v3018
  %v3023 = vmul.f32 %v3019, %v3019
  %v3024 = vmul.f32 %v3020, %v3020
  %v3025 = vsel %vm78, %v3021, 0.0
  %3026 = vadd.xlane.f32.xlu0 %v3025
  %v3027 = vpop.xlane.xlu0 %3026
  %v3028 = vsel %vm78, %v3022, 0.0
  %3029 = vadd.xlane.f32.xlu0 %v3028
  %v3030 = vpop.xlane.xlu0 %3029
  %v3031 = vsel %vm78, %v3023, 0.0
  %3032 = vadd.xlane.f32.xlu0 %v3031
  %v3033 = vpop.xlane.xlu0 %3032
  %v3034 = vsel %vm78, %v3024, 0.0
  %3035 = vadd.xlane.f32.xlu0 %v3034
  %v3036 = vpop.xlane.xlu0 %3035
  %v3037 = vmul.f32 %v3027, %v3012
  %v3038 = vmul.f32 %v3030, %v3012
  %v3039 = vmul.f32 %v3033, %v3012
  %v3040 = vmul.f32 %v3036, %v3012
  %v3041 = vadd.f32 %v3037, 1e-12
  %v3042 = vadd.f32 %v3038, 1e-12
  %v3043 = vadd.f32 %v3039, 1e-12
  %v3044 = vadd.f32 %v3040, 1e-12
  %v3045 = vrsqrt.pop %v3041
  %v3046 = vmul.f32 %v3045, %v3041
  %v3047 = vmul.f32 %v3046, %v3045
  %v3048 = vmul.f32 0.5, %v3047
  %v3049 = vsub.f32 1.5, %v3048
  %v3050 = vmul.f32 %v3045, %v3049
  %vm3051 = vweird.f32 %v3041
  %vm3052 = vweird.f32 %v3045
  %vm3053 = vmor %vm3051, %vm3052
  %v3054 = vsel %vm3053, %v3045, %v3050
  %v3055 = vrsqrt.pop %v3042
  %v3056 = vmul.f32 %v3055, %v3042
  %v3057 = vmul.f32 %v3056, %v3055
  %v3058 = vmul.f32 0.5, %v3057
  %v3059 = vsub.f32 1.5, %v3058
  %v3060 = vmul.f32 %v3055, %v3059
  %vm3061 = vweird.f32 %v3042
  %vm3062 = vweird.f32 %v3055
  %vm3063 = vmor %vm3061, %vm3062
  %v3064 = vsel %vm3063, %v3055, %v3060
  %v3065 = vrsqrt.pop %v3043
  %v3066 = vmul.f32 %v3065, %v3043
  %v3067 = vmul.f32 %v3066, %v3065
  %v3068 = vmul.f32 0.5, %v3067
  %v3069 = vsub.f32 1.5, %v3068
  %v3070 = vmul.f32 %v3065, %v3069
  %vm3071 = vweird.f32 %v3043
  %vm3072 = vweird.f32 %v3065
  %vm3073 = vmor %vm3071, %vm3072
  %v3074 = vsel %vm3073, %v3065, %v3070
  %v3075 = vrsqrt.pop %v3044
  %v3076 = vmul.f32 %v3075, %v3044
  %v3077 = vmul.f32 %v3076, %v3075
  %v3078 = vmul.f32 0.5, %v3077
  %v3079 = vsub.f32 1.5, %v3078
  %v3080 = vmul.f32 %v3075, %v3079
  %vm3081 = vweird.f32 %v3044
  %vm3082 = vweird.f32 %v3075
  %vm3083 = vmor %vm3081, %vm3082
  %v3084 = vsel %vm3083, %v3075, %v3080
  %v3085 = vmul.f32 %v3017, %v3054
  %v3086 = vmul.f32 %v3018, %v3064
  %v3087 = vmul.f32 %v3019, %v3074
  %v3088 = vmul.f32 %v3020, %v3084
  %v3090 = vperm.slane %v2992, 0
  %v3092 = vmul.f32 %v3085, %v3090
  %v3093 = vmul.f32 %v3086, %v3090
  %v3094 = vmul.f32 %v3087, %v3090
  %v3095 = vmul.f32 %v3088, %v3090
  %v3097 = vperm.slane %v2993, 0
  %v3099 = vadd.f32 %v3092, %v3097
  %v3100 = vadd.f32 %v3093, %v3097
  %v3101 = vadd.f32 %v3094, %v3097
  %v3102 = vadd.f32 %v3095, %v3097
  %v3103 = vld [vmem:[%s8] sm:$0xf]
  %v3104 = vld [vmem:[%s8 + $0x4] sm:$0xf]
  %v3105 = vld [vmem:[%s8 + $0x8] sm:$0xf]
  %v3106 = vld [vmem:[%s8 + $0xc] sm:$0xf]
  %v3107 = vpack.c.bf16 %v3100, %v3099
  %v3108 = vpack.c.bf16 %v3102, %v3101
  %v3109 = vld [vmem:[%s9] sm:$0x1]
  %v3111 = vperm.slane %v3109, 0
  %v3117 = vunpack.c.l.b16 %v3103
  %v3118 = vunpack.c.l.b16 %v3104
  %v3119 = vunpack.c.l.b16 %v3105
  %v3120 = vunpack.c.l.b16 %v3106
  %v3121 = vpack.c.b16 %v3118, %v3117
  %v3122 = vpack.c.b16 %v3120, %v3119
  %v3126 = vsel %vm78, %v3107, 0
  %v3129 = vsel %vm78, %v3108, 0
  %3131 = vmatpush.bf16.msra.mxu0 0
  %3132 = vmatpush.bf16.msra.mxu0 0
  %3133 = vmatpush.bf16.msra.mxu0 0
  %3134 = vmatpush.bf16.msra.mxu0 0
  %3135 = vmatpush.bf16.msra.mxu0 0
  %3136 = vmatpush.bf16.msra.mxu0 0
  %3137 = vmatpush.bf16.msra.mxu0 %v3122
  %3138 = vmatpush.bf16.msra.mxu0 %v3121
  %3139 = vmatmul.bf16.gmra.mxu0 %v3126
  %v3140 = vpop.f32.mrf.mxu0
  %v3141 = vadd.f32 %v3111, %v3140
  %v3142 = vpop.f32.mrf.mxu0
  %v3143 = vadd.f32 %v3111, %v3142
  %3144 = vmatmul.bf16.gmra.mxu0 %v3129
  %v3145 = vpop.f32.mrf.mxu0
  %v3146 = vadd.f32 %v3111, %v3145
  %v3147 = vpop.f32.mrf.mxu0
  %v3148 = vadd.f32 %v3111, %v3147
  %3149 = vdwg.mxu0
  %v3150 = vmul.f32 %v3141, %v3141
  %v3151 = vmul.f32 %v3143, %v3143
  %v3152 = vmul.f32 %v3146, %v3146
  %v3153 = vmul.f32 %v3148, %v3148
  %v3154 = vmul.f32 %v3141, %v3150
  %v3155 = vmul.f32 %v3143, %v3151
  %v3156 = vmul.f32 %v3146, %v3152
  %v3157 = vmul.f32 %v3148, %v3153
  %v3158 = vmul.f32 %v3154, 0.044715
  %v3159 = vmul.f32 %v3155, 0.044715
  %v3160 = vmul.f32 %v3156, 0.044715
  %v3161 = vmul.f32 %v3157, 0.044715
  %v3162 = vadd.f32 %v3141, %v3158
  %v3163 = vadd.f32 %v3143, %v3159
  %v3164 = vadd.f32 %v3146, %v3160
  %v3165 = vadd.f32 %v3148, %v3161
  %v3166 = vmul.f32 %v3162, 0.7978846
  %v3167 = vmul.f32 %v3163, 0.7978846
  %v3168 = vmul.f32 %v3164, 0.7978846
  %v3169 = vmul.f32 %v3165, 0.7978846
  %v3170 = vtanh.pop %v3166
  %v3171 = vtanh.pop %v3167
  %v3172 = vtanh.pop %v3168
  %v3173 = vtanh.pop %v3169
  %v3174 = vadd.f32 %v3170, 1.0
  %v3175 = vadd.f32 %v3171, 1.0
  %v3176 = vadd.f32 %v3172, 1.0
  %v3177 = vadd.f32 %v3173, 1.0
  %v3178 = vmul.f32 %v3174, 0.5
  %v3179 = vmul.f32 %v3175, 0.5
  %v3180 = vmul.f32 %v3176, 0.5
  %v3181 = vmul.f32 %v3177, 0.5
  %v3182 = vmul.f32 %v3141, %v3178
  %v3183 = vmul.f32 %v3143, %v3179
  %v3184 = vmul.f32 %v3146, %v3180
  %v3185 = vmul.f32 %v3148, %v3181
  %v3186 = vpack.c.bf16 %v3183, %v3182
  %v3187 = vpack.c.bf16 %v3185, %v3184
  %v3188 = vld [vmem:[%s10] sm:$0xf]
  %v3189 = vld [vmem:[%s10 + $0x4] sm:$0xf]
  %v3190 = vld [vmem:[%s10 + $0x8] sm:$0xf]
  %v3191 = vld [vmem:[%s10 + $0xc] sm:$0xf]
  %v3192 = vld [vmem:[%s10 + $0x10] sm:$0xf]
  %v3193 = vld [vmem:[%s10 + $0x14] sm:$0xf]
  %v3194 = vld [vmem:[%s10 + $0x18] sm:$0xf]
  %v3195 = vld [vmem:[%s10 + $0x1c] sm:$0xf]
  %v3196 = vld [vmem:[%s11] sm:$0x1]
  %v3198 = vperm.slane %v3196, 0
  %v3208 = vunpack.c.l.b16 %v3188
  %v3209 = vunpack.c.l.b16 %v3189
  %v3210 = vunpack.c.l.b16 %v3190
  %v3211 = vunpack.c.l.b16 %v3191
  %v3212 = vunpack.c.l.b16 %v3192
  %v3213 = vunpack.c.l.b16 %v3193
  %v3214 = vunpack.c.l.b16 %v3194
  %v3215 = vunpack.c.l.b16 %v3195
  %v3216 = vpack.c.b16 %v3209, %v3208
  %v3217 = vpack.c.b16 %v3211, %v3210
  %v3218 = vpack.c.b16 %v3213, %v3212
  %v3219 = vpack.c.b16 %v3215, %v3214
  %vm3224 = vcmask 523264
  %v3226 = vsel %vm3224, %v3186, 0
  %v3229 = vsel %vm3224, %v3187, 0
  %3231 = vmatpush.bf16.msra.mxu0 0
  %3232 = vmatpush.bf16.msra.mxu0 0
  %3233 = vmatpush.bf16.msra.mxu0 0
  %3234 = vmatpush.bf16.msra.mxu0 0
  %3235 = vmatpush.bf16.msra.mxu0 %v3219
  %3236 = vmatpush.bf16.msra.mxu0 %v3218
  %3237 = vmatpush.bf16.msra.mxu0 %v3217
  %3238 = vmatpush.bf16.msra.mxu0 %v3216
  %3239 = vmatmul.bf16.gmra.mxu0 %v3226
  %v3240 = vpop.f32.mrf.mxu0
  %v3241 = vadd.f32 %v3198, %v3240
  %v3242 = vpop.f32.mrf.mxu0
  %v3243 = vadd.f32 %v3198, %v3242
  %3244 = vmatmul.bf16.gmra.mxu0 %v3229
  %v3245 = vpop.f32.mrf.mxu0
  %v3246 = vadd.f32 %v3198, %v3245
  %v3247 = vpop.f32.mrf.mxu0
  %v3248 = vadd.f32 %v3198, %v3247
  %3249 = vdwg.mxu0
  %v3250 = vadd.f32 %v3099, %v3241
  %v3251 = vadd.f32 %v3100, %v3243
  %v3252 = vadd.f32 %v3101, %v3246
  %v3253 = vadd.f32 %v3102, %v3248
  %v3254 = vld [vmem:[%s12] sm:$0x1]
  %v3255 = vld [vmem:[%s13] sm:$0x1]
  %v3256 = vsel %vm78, %v3250, 0.0
  %3257 = vadd.xlane.f32.xlu0 %v3256
  %v3258 = vpop.xlane.xlu0 %3257
  %v3259 = vsel %vm78, %v3251, 0.0
  %3260 = vadd.xlane.f32.xlu0 %v3259
  %v3261 = vpop.xlane.xlu0 %3260
  %v3262 = vsel %vm78, %v3252, 0.0
  %3263 = vadd.xlane.f32.xlu0 %v3262
  %v3264 = vpop.xlane.xlu0 %3263
  %v3265 = vsel %vm78, %v3253, 0.0
  %3266 = vadd.xlane.f32.xlu0 %v3265
  %v3267 = vpop.xlane.xlu0 %3266
  %v3268 = vmul.f32 %v3258, %v3012
  %v3269 = vmul.f32 %v3261, %v3012
  %v3270 = vmul.f32 %v3264, %v3012
  %v3271 = vmul.f32 %v3267, %v3012
  %v3272 = vsub.f32 %v3250, %v3268
  %v3273 = vsub.f32 %v3251, %v3269
  %v3274 = vsub.f32 %v3252, %v3270
  %v3275 = vsub.f32 %v3253, %v3271
  %v3276 = vmul.f32 %v3272, %v3272
  %v3277 = vmul.f32 %v3273, %v3273
  %v3278 = vmul.f32 %v3274, %v3274
  %v3279 = vmul.f32 %v3275, %v3275
  %v3280 = vsel %vm78, %v3276, 0.0
  %3281 = vadd.xlane.f32.xlu0 %v3280
  %v3282 = vpop.xlane.xlu0 %3281
  %v3283 = vsel %vm78, %v3277, 0.0
  %3284 = vadd.xlane.f32.xlu0 %v3283
  %v3285 = vpop.xlane.xlu0 %3284
  %v3286 = vsel %vm78, %v3278, 0.0
  %3287 = vadd.xlane.f32.xlu0 %v3286
  %v3288 = vpop.xlane.xlu0 %3287
  %v3289 = vsel %vm78, %v3279, 0.0
  %3290 = vadd.xlane.f32.xlu0 %v3289
  %v3291 = vpop.xlane.xlu0 %3290
  %v3292 = vmul.f32 %v3282, %v3012
  %v3293 = vmul.f32 %v3285, %v3012
  %v3294 = vmul.f32 %v3288, %v3012
  %v3295 = vmul.f32 %v3291, %v3012
  %v3296 = vadd.f32 %v3292, 1e-12
  %v3297 = vadd.f32 %v3293, 1e-12
  %v3298 = vadd.f32 %v3294, 1e-12
  %v3299 = vadd.f32 %v3295, 1e-12
  %v3300 = vrsqrt.pop %v3296
  %v3301 = vmul.f32 %v3300, %v3296
  %v3302 = vmul.f32 %v3301, %v3300
  %v3303 = vmul.f32 0.5, %v3302
  %v3304 = vsub.f32 1.5, %v3303
  %v3305 = vmul.f32 %v3300, %v3304
  %vm3306 = vweird.f32 %v3296
  %vm3307 = vweird.f32 %v3300
  %vm3308 = vmor %vm3306, %vm3307
  %v3309 = vsel %vm3308, %v3300, %v3305
  %v3310 = vrsqrt.pop %v3297
  %v3311 = vmul.f32 %v3310, %v3297
  %v3312 = vmul.f32 %v3311, %v3310
  %v3313 = vmul.f32 0.5, %v3312
  %v3314 = vsub.f32 1.5, %v3313
  %v3315 = vmul.f32 %v3310, %v3314
  %vm3316 = vweird.f32 %v3297
  %vm3317 = vweird.f32 %v3310
  %vm3318 = vmor %vm3316, %vm3317
  %v3319 = vsel %vm3318, %v3310, %v3315
  %v3320 = vrsqrt.pop %v3298
  %v3321 = vmul.f32 %v3320, %v3298
  %v3322 = vmul.f32 %v3321, %v3320
  %v3323 = vmul.f32 0.5, %v3322
  %v3324 = vsub.f32 1.5, %v3323
  %v3325 = vmul.f32 %v3320, %v3324
  %vm3326 = vweird.f32 %v3298
  %vm3327 = vweird.f32 %v3320
  %vm3328 = vmor %vm3326, %vm3327
  %v3329 = vsel %vm3328, %v3320, %v3325
  %v3330 = vrsqrt.pop %v3299
  %v3331 = vmul.f32 %v3330, %v3299
  %v3332 = vmul.f32 %v3331, %v3330
  %v3333 = vmul.f32 0.5, %v3332
  %v3334 = vsub.f32 1.5, %v3333
  %v3335 = vmul.f32 %v3330, %v3334
  %vm3336 = vweird.f32 %v3299
  %vm3337 = vweird.f32 %v3330
  %vm3338 = vmor %vm3336, %vm3337
  %v3339 = vsel %vm3338, %v3330, %v3335
  %v3340 = vmul.f32 %v3272, %v3309
  %v3341 = vmul.f32 %v3273, %v3319
  %v3342 = vmul.f32 %v3274, %v3329
  %v3343 = vmul.f32 %v3275, %v3339
  %v3345 = vperm.slane %v3254, 0
  %v3347 = vmul.f32 %v3340, %v3345
  %v3348 = vmul.f32 %v3341, %v3345
  %v3349 = vmul.f32 %v3342, %v3345
  %v3350 = vmul.f32 %v3343, %v3345
  %v3352 = vperm.slane %v3255, 0
  %v3354 = vadd.f32 %v3347, %v3352
  %v3355 = vadd.f32 %v3348, %v3352
  %v3356 = vadd.f32 %v3349, %v3352
  %v3357 = vadd.f32 %v3350, %v3352
  %v3358 = vpack.c.bf16 %v3354, %v3354
  %v3359 = vpack.c.bf16 %v3355, %v3355
  %v3360 = vpack.c.bf16 %v3356, %v3356
  %v3361 = vpack.c.bf16 %v3357, %v3357
  %vm3362 = vcmask 257024
  %3363 = vst.msk [vmem:[%s14] sm:$0xf] %vm3362, %v3358
  %3364 = vst.msk [vmem:[%s14 + $0x4] sm:$0xf] %vm3362, %v3359
  %3365 = vst.msk [vmem:[%s14 + $0x8] sm:$0xf] %vm3362, %v3360
  %3366 = vst.msk [vmem:[%s14 + $0xc] sm:$0xf] %vm3362, %v3361
  // Predicated region
  $region58: #{siamese_bert_forward.4} parent=0 // pred_check
    _
  $region59: #{siamese_bert_forward.4} parent=0 // pred_check_branch
    %3368 = sbr.rel (0) target = $region61
  $region60: #{siamese_bert_forward.4} parent=0 // pred_region
    _
  $region61: #{siamese_bert_forward.4} parent=0 // pred_fallthru
    _
  // Predicated region
  $region62: #{siamese_bert_forward.4} parent=0 // pred_check
    _
  $region63: #{siamese_bert_forward.4} parent=0 // pred_check_branch
    %3370 = sbr.rel (0) target = $region65
  $region64: #{siamese_bert_forward.4} parent=0 // pred_region
    _
  $region65: #{siamese_bert_forward.4} parent=0 // pred_fallthru
    _

</llo_original>
